<compile_context>
chip_gen: v7x
topology: tpu7x:2x2x1
jax: 0.10.0
libtpu: 0.0.40
codegen_flags: <defaults>
</compile_context>

<pallas_src>
import jax
import jax.numpy as jnp
from jax import lax
from jax.experimental import pallas as pl
from jax.experimental.pallas import tpu as pltpu


def _round_up(x, m):
    return (x + m - 1) // m * m


# --------------------------------------------------------------------------
# Forward pass: Pallas kernel + thin layout wrapper
# --------------------------------------------------------------------------
def aspp_forward(x_nchw, params, atrous_rates):
    x = jnp.transpose(x_nchw, (0, 2, 3, 1)).astype(jnp.float32)      # NHWC
    N, H, W, Cin = x.shape
    dils = [1] + list(atrous_rates)
    B3 = len(dils)
    dmax = max(dils)
    Ho = (H - 1) // 2 + 1
    Wo = (W - 1) // 2 + 1
    Hp2 = Ho + dmax                       # rows per stride-2 parity plane (padded)
    Wp2 = Wo + dmax                       # cols per stride-2 parity plane (padded)
    HWp = Hp2 * Wp2                       # flattened plane length
    M2 = (Ho - 1) * Wp2 + Wo              # plane rows touched by any tap window
    Cout = params["wp"].shape[-1]
    Cp = _round_up(max(Cout, 128), 128)   # lane-dense width for intermediates

    # --- input: pad to max dilation, split into 4 stride-2 parity planes,
    #     flatten each plane.  One fused XLA pass over x; the kernel then
    #     reads the feature map exactly once.
    Hp, Wp = 2 * Hp2, 2 * Wp2
    xpad = jnp.pad(x, ((0, 0), (dmax, Hp - H - dmax), (dmax, Wp - W - dmax), (0, 0)))
    xr = (xpad.reshape(N, Hp2, 2, Wp2, 2, Cin)
               .transpose(0, 2, 4, 1, 3, 5)               # (N, rp, cp, hq, wq, C)
               .reshape(N, 4, HWp, Cin)
               .astype(jnp.bfloat16))

    # --- weights: fold BN scales (weights are not streamed data, so this is
    #     free), pad channels to lane-dense Cp, cast to bf16 for the MXU.
    def padc(a):
        return jnp.pad(a, [(0, 0)] * (a.ndim - 1) + [(0, Cp - Cout)])

    w3 = params["w3"] * params["s3"].reshape(B3, 1, 1, Cout)              # fold s3
    w3k = padc(w3).reshape(B3 * 9, Cin, Cp).astype(jnp.bfloat16)
    b3k = padc(params["b3"]).astype(jnp.float32)                          # (B3,1,Cp)

    wproj = params["wproj"][:B3] * params["sproj"].reshape(1, 1, Cout)    # fold sproj
    wproj = jnp.pad(wproj, ((0, 0), (0, Cp - Cout), (0, 0)))              # pad K rows
    wprojk = wproj.reshape(B3 * Cp, Cout).astype(jnp.bfloat16)            # long-K proj

    # --- pooling branch ((N,Cin)-sized, negligible) routed through its own
    #     projection block; sproj/bproj folded so it is a pure epilogue add.
    pooled = jnp.mean(x, axis=(1, 2))
    pv = jnp.maximum(jnp.dot(pooled, params["wp"], precision=lax.Precision.HIGHEST)
                     * params["sp"] + params["bp"], 0.0)
    pc = jnp.dot(pv, params["wproj"][B3], precision=lax.Precision.HIGHEST)
    pck = (pc * params["sproj"] + params["bproj"]).reshape(N, 1, Cout).astype(jnp.float32)

    # --- kernel: one grid step per image ------------------------------------
    def kernel(x_ref, w3_ref, b3_ref, wproj_ref, pc_ref, out_ref):
        ys = []
        for b, d in enumerate(dils):                       # static unroll
            acc = None
            for ky in range(3):
                roff = (ky - 1) * d + dmax
                for kx in range(3):
                    coff = (kx - 1) * d + dmax
                    plane = (roff % 2) * 2 + (coff % 2)    # parity plane (static)
                    base = (roff // 2) * Wp2 + (coff // 2)  # static row offset
                    tap = x_ref[0, plane, base:base + M2, :]           # (M2, Cin)
                    part = jnp.dot(tap, w3_ref[b * 9 + ky * 3 + kx],
                                   preferred_element_type=jnp.float32)
                    acc = part if acc is None else acc + part
            ys.append(jnp.maximum(acc + b3_ref[b], 0.0).astype(jnp.bfloat16))
        y = jnp.concatenate(ys, axis=-1)                   # (M2, B3*Cp)
        proj = jnp.dot(y, wproj_ref[...], preferred_element_type=jnp.float32)
        # Dropout(0.5): inference-mode identity.
        out_ref[0] = jnp.maximum(proj + pc_ref[0], 0.0)

    # --- VMEM budget per generation (v5e/v6e ~109 MiB, v7x ~54 MiB).
    try:
        vmem_limit = int(pltpu.get_tpu_info().vmem_capacity_bytes * 0.85)
    except Exception:
        vmem_limit = None

    def run(single_buffer_weights):
        def const_spec(arr):
            rank = arr.ndim

            def idx(n):
                return (0,) * rank

            if single_buffer_weights:
                # Constant-index weights: single VMEM buffer instead of the
                # default double buffer (w3 alone ~38 MB bf16 at realistic
                # Cin=2048, Cp=256, B3=4).
                return pl.BlockSpec(arr.shape, idx, pipeline_mode=pl.Buffered(1))
            return pl.BlockSpec(arr.shape, idx)

        in_specs = [
            pl.BlockSpec((1, 4, HWp, Cin), lambda n: (n, 0, 0, 0)),   # x: one pass
            const_spec(w3k),
            const_spec(b3k),
            const_spec(wprojk),
            pl.BlockSpec((1, 1, Cout), lambda n: (n, 0, 0)),          # pooling term
        ]
        out_specs = pl.BlockSpec((1, M2, Cout), lambda n: (n, 0, 0))
        return pl.pallas_call(
            kernel,
            out_shape=jax.ShapeDtypeStruct((N, M2, Cout), jnp.float32),
            grid_spec=pltpu.PrefetchScalarGridSpec(
                num_scalar_prefetch=0,
                grid=(N,),
                in_specs=in_specs,
                out_specs=out_specs),
            compiler_params=pltpu.CompilerParams(
                dimension_semantics=("parallel",),
                vmem_limit_bytes=vmem_limit),
        )(xr, w3k, b3k, wprojk, pck)

    try:
        out_flat = run(single_buffer_weights=True)
    except Exception:
        # Fallback for jax versions without single-buffer pipeline_mode support.
        out_flat = run(single_buffer_weights=False)

    # Drop the interleaved junk columns of the flat-plane layout, return NCHW.
    out = jnp.pad(out_flat, ((0, 0), (0, Ho * Wp2 - M2), (0, 0)))
    out = out.reshape(N, Ho, Wp2, Cout)[:, :, :Wo, :]
    return jnp.transpose(out, (0, 3, 1, 2))


# --------------------------------------------------------------------------
# Params + pure-JAX reference (PyTorch eval-mode semantics)
# --------------------------------------------------------------------------
def init_params(key, in_channels, out_channels, atrous_rates):
    dils = [1] + list(atrous_rates)
    B3 = len(dils)
    B = B3 + 1
    ks = jax.random.split(key, 6)
    eps = 1e-5

    def bn(k, shape):
        kg, kb, km, kv = jax.random.split(k, 4)
        gamma = 1.0 + 0.1 * jax.random.normal(kg, shape, jnp.float32)
        beta = 0.1 * jax.random.normal(kb, shape, jnp.float32)
        mean = 0.1 * jax.random.normal(km, shape, jnp.float32)
        var = 0.5 + jax.random.uniform(kv, shape, jnp.float32)
        scale = gamma / jnp.sqrt(var + eps)
        bias = beta - mean * scale
        return scale, bias

    w3 = 0.15 * jax.random.normal(ks[0], (B3, 9, in_channels, out_channels), jnp.float32)
    s3, b3 = bn(ks[1], (B3, 1, out_channels))
    wp = 0.15 * jax.random.normal(ks[2], (in_channels, out_channels), jnp.float32)
    sp, bp = bn(ks[3], (1, out_channels))
    wproj = 0.15 * jax.random.normal(ks[4], (B, out_channels, out_channels), jnp.float32)
    sproj, bproj = bn(ks[5], (1, out_channels))
    return dict(w3=w3, s3=s3, b3=b3, wp=wp, sp=sp, bp=bp,
                wproj=wproj, sproj=sproj, bproj=bproj)


def aspp_reference(x_nchw, params, atrous_rates):
    x = jnp.transpose(x_nchw, (0, 2, 3, 1)).astype(jnp.float32)
    N, H, W, Cin = x.shape
    dils = [1] + list(atrous_rates)
    Cout = params["wp"].shape[-1]
    Ho = (H - 1) // 2 + 1
    Wo = (W - 1) // 2 + 1
    outs = []
    for b, d in enumerate(dils):
        w = params["w3"][b].reshape(3, 3, Cin, Cout)
        y = lax.conv_general_dilated(
            x, w, window_strides=(2, 2), padding=[(d, d), (d, d)],
            rhs_dilation=(d, d), dimension_numbers=("NHWC", "HWIO", "NHWC"),
            precision=lax.Precision.HIGHEST)
        outs.append(jnp.maximum(y * params["s3"][b] + params["b3"][b], 0.0))
    pooled = jnp.mean(x, axis=(1, 2))
    pv = jnp.maximum(jnp.dot(pooled, params["wp"],
                             precision=lax.Precision.HIGHEST)
                     * params["sp"] + params["bp"], 0.0)
    outs.append(jnp.broadcast_to(pv[:, None, None, :], (N, Ho, Wo, Cout)))
    cat = jnp.concatenate(outs, axis=-1)
    B = len(dils) + 1
    wproj_flat = params["wproj"].reshape(B * Cout, Cout)
    y = jnp.einsum("nhwc,cd->nhwd", cat, wproj_flat,
                   precision=lax.Precision.HIGHEST)
    y = jnp.maximum(y * params["sproj"] + params["bproj"], 0.0)
    return jnp.transpose(y, (0, 3, 1, 2))


if __name__ == "__main__":
    in_channels, out_channels = 4, 8
    atrous_rates = (2, 4)

    key = jax.random.PRNGKey(0)
    kx, kp = jax.random.split(key)
    x = jax.random.normal(kx, (2, in_channels, 16, 16), jnp.float32)  # NCHW like PyTorch
    params = init_params(kp, in_channels, out_channels, atrous_rates)

    out = aspp_forward(x, params, atrous_rates)
    out = jax.block_until_ready(out)

    ref = aspp_reference(x, params, atrous_rates)
    assert out.shape == ref.shape == (2, out_channels, 8, 8), (out.shape, ref.shape)
    max_err = float(jnp.max(jnp.abs(out - ref)))
    # bf16 inputs/weights with f32 accumulation vs. an all-f32 HIGHEST reference.
    assert jnp.allclose(out, ref, rtol=5e-2, atol=5e-2), f"max_err={max_err}"

    print("KERNEL_OK")
</pallas_src>

<mosaic_0001>
module attributes {stable_mosaic.version = 11 : i64} {
  func.func @kernel(%arg0: i32, %arg1: memref<1x4x144x4xbf16, #tpu.memory_space<vmem>>, %arg2: memref<27x4x128xbf16, #tpu.memory_space<vmem>>, %arg3: memref<3x1x128xf32, #tpu.memory_space<vmem>>, %arg4: memref<384x8xbf16, #tpu.memory_space<vmem>>, %arg5: memref<1x1x8xf32, #tpu.memory_space<vmem>>, %arg6: memref<1x92x8xf32, #tpu.memory_space<vmem>>) attributes {dimension_semantics = [#tpu.dimension_semantics<parallel>], iteration_bounds = array<i64: 2>, scalar_prefetch = 0 : i64, scratch_operands = 0 : i64, tpu.core_type = #tpu.core_type<tc>, window_params = [{transform_indices = @transform_0, window_bounds = array<i64: 1, 4, 144, 4>}, {pipeline_mode = #tpu.pipeline_mode<synchronous>, transform_indices = @transform_1, window_bounds = array<i64: 27, 4, 128>}, {pipeline_mode = #tpu.pipeline_mode<synchronous>, transform_indices = @transform_2, window_bounds = array<i64: 3, 1, 128>}, {pipeline_mode = #tpu.pipeline_mode<synchronous>, transform_indices = @transform_3, window_bounds = array<i64: 384, 8>}, {transform_indices = @transform_4, window_bounds = array<i64: 1, 1, 8>}, {transform_indices = @transform_5, window_bounds = array<i64: 1, 92, 8>}]} {
    %c0 = arith.constant 0 : index
    %c3 = arith.constant 3 : index
    %c13 = arith.constant 13 : index
    %c0_0 = arith.constant 0 : index
    %0 = vector.load %arg1[%c0, %c3, %c13, %c0_0] : memref<1x4x144x4xbf16, #tpu.memory_space<vmem>>, vector<1x1x92x4xbf16>
    %1 = vector.shape_cast %0 : vector<1x1x92x4xbf16> to vector<92x4xbf16>
    %c0_1 = arith.constant 0 : index
    %c0_2 = arith.constant 0 : index
    %c0_3 = arith.constant 0 : index
    %2 = vector.load %arg2[%c0_1, %c0_2, %c0_3] : memref<27x4x128xbf16, #tpu.memory_space<vmem>>, vector<1x4x128xbf16>
    %3 = vector.shape_cast %2 : vector<1x4x128xbf16> to vector<4x128xbf16>
    %cst = arith.constant dense<0.000000e+00> : vector<92x128xf32>
    %4 = tpu.matmul %1, %3, %cst {dimension_numbers = #tpu.dot_dimension_numbers<[1], [0], [0], [1], [0, 0, 1, 1], [], []>} : vector<92x4xbf16>, vector<4x128xbf16>, vector<92x128xf32> -> vector<92x128xf32>
    %c0_4 = arith.constant 0 : index
    %c2 = arith.constant 2 : index
    %c14 = arith.constant 14 : index
    %c0_5 = arith.constant 0 : index
    %5 = vector.load %arg1[%c0_4, %c2, %c14, %c0_5] : memref<1x4x144x4xbf16, #tpu.memory_space<vmem>>, vector<1x1x92x4xbf16>
    %6 = vector.shape_cast %5 : vector<1x1x92x4xbf16> to vector<92x4xbf16>
    %c1 = arith.constant 1 : index
    %c0_6 = arith.constant 0 : index
    %c0_7 = arith.constant 0 : index
    %7 = vector.load %arg2[%c1, %c0_6, %c0_7] : memref<27x4x128xbf16, #tpu.memory_space<vmem>>, vector<1x4x128xbf16>
    %8 = vector.shape_cast %7 : vector<1x4x128xbf16> to vector<4x128xbf16>
    %cst_8 = arith.constant dense<0.000000e+00> : vector<92x128xf32>
    %9 = tpu.matmul %6, %8, %cst_8 {dimension_numbers = #tpu.dot_dimension_numbers<[1], [0], [0], [1], [0, 0, 1, 1], [], []>} : vector<92x4xbf16>, vector<4x128xbf16>, vector<92x128xf32> -> vector<92x128xf32>
    %10 = arith.addf %4, %9 : vector<92x128xf32>
    %c0_9 = arith.constant 0 : index
    %c3_10 = arith.constant 3 : index
    %c14_11 = arith.constant 14 : index
    %c0_12 = arith.constant 0 : index
    %11 = vector.load %arg1[%c0_9, %c3_10, %c14_11, %c0_12] : memref<1x4x144x4xbf16, #tpu.memory_space<vmem>>, vector<1x1x92x4xbf16>
    %12 = vector.shape_cast %11 : vector<1x1x92x4xbf16> to vector<92x4xbf16>
    %c2_13 = arith.constant 2 : index
    %c0_14 = arith.constant 0 : index
    %c0_15 = arith.constant 0 : index
    %13 = vector.load %arg2[%c2_13, %c0_14, %c0_15] : memref<27x4x128xbf16, #tpu.memory_space<vmem>>, vector<1x4x128xbf16>
    %14 = vector.shape_cast %13 : vector<1x4x128xbf16> to vector<4x128xbf16>
    %cst_16 = arith.constant dense<0.000000e+00> : vector<92x128xf32>
    %15 = tpu.matmul %12, %14, %cst_16 {dimension_numbers = #tpu.dot_dimension_numbers<[1], [0], [0], [1], [0, 0, 1, 1], [], []>} : vector<92x4xbf16>, vector<4x128xbf16>, vector<92x128xf32> -> vector<92x128xf32>
    %16 = arith.addf %10, %15 : vector<92x128xf32>
    %c0_17 = arith.constant 0 : index
    %c1_18 = arith.constant 1 : index
    %c25 = arith.constant 25 : index
    %c0_19 = arith.constant 0 : index
    %17 = vector.load %arg1[%c0_17, %c1_18, %c25, %c0_19] : memref<1x4x144x4xbf16, #tpu.memory_space<vmem>>, vector<1x1x92x4xbf16>
    %18 = vector.shape_cast %17 : vector<1x1x92x4xbf16> to vector<92x4xbf16>
    %c3_20 = arith.constant 3 : index
    %c0_21 = arith.constant 0 : index
    %c0_22 = arith.constant 0 : index
    %19 = vector.load %arg2[%c3_20, %c0_21, %c0_22] : memref<27x4x128xbf16, #tpu.memory_space<vmem>>, vector<1x4x128xbf16>
    %20 = vector.shape_cast %19 : vector<1x4x128xbf16> to vector<4x128xbf16>
    %cst_23 = arith.constant dense<0.000000e+00> : vector<92x128xf32>
    %21 = tpu.matmul %18, %20, %cst_23 {dimension_numbers = #tpu.dot_dimension_numbers<[1], [0], [0], [1], [0, 0, 1, 1], [], []>} : vector<92x4xbf16>, vector<4x128xbf16>, vector<92x128xf32> -> vector<92x128xf32>
    %22 = arith.addf %16, %21 : vector<92x128xf32>
    %c0_24 = arith.constant 0 : index
    %c0_25 = arith.constant 0 : index
    %c26 = arith.constant 26 : index
    %c0_26 = arith.constant 0 : index
    %23 = vector.load %arg1[%c0_24, %c0_25, %c26, %c0_26] : memref<1x4x144x4xbf16, #tpu.memory_space<vmem>>, vector<1x1x92x4xbf16>
    %24 = vector.shape_cast %23 : vector<1x1x92x4xbf16> to vector<92x4xbf16>
    %c4 = arith.constant 4 : index
    %c0_27 = arith.constant 0 : index
    %c0_28 = arith.constant 0 : index
    %25 = vector.load %arg2[%c4, %c0_27, %c0_28] : memref<27x4x128xbf16, #tpu.memory_space<vmem>>, vector<1x4x128xbf16>
    %26 = vector.shape_cast %25 : vector<1x4x128xbf16> to vector<4x128xbf16>
    %cst_29 = arith.constant dense<0.000000e+00> : vector<92x128xf32>
    %27 = tpu.matmul %24, %26, %cst_29 {dimension_numbers = #tpu.dot_dimension_numbers<[1], [0], [0], [1], [0, 0, 1, 1], [], []>} : vector<92x4xbf16>, vector<4x128xbf16>, vector<92x128xf32> -> vector<92x128xf32>
    %28 = arith.addf %22, %27 : vector<92x128xf32>
    %c0_30 = arith.constant 0 : index
    %c1_31 = arith.constant 1 : index
    %c26_32 = arith.constant 26 : index
    %c0_33 = arith.constant 0 : index
    %29 = vector.load %arg1[%c0_30, %c1_31, %c26_32, %c0_33] : memref<1x4x144x4xbf16, #tpu.memory_space<vmem>>, vector<1x1x92x4xbf16>
    %30 = vector.shape_cast %29 : vector<1x1x92x4xbf16> to vector<92x4xbf16>
    %c5 = arith.constant 5 : index
    %c0_34 = arith.constant 0 : index
    %c0_35 = arith.constant 0 : index
    %31 = vector.load %arg2[%c5, %c0_34, %c0_35] : memref<27x4x128xbf16, #tpu.memory_space<vmem>>, vector<1x4x128xbf16>
    %32 = vector.shape_cast %31 : vector<1x4x128xbf16> to vector<4x128xbf16>
    %cst_36 = arith.constant dense<0.000000e+00> : vector<92x128xf32>
    %33 = tpu.matmul %30, %32, %cst_36 {dimension_numbers = #tpu.dot_dimension_numbers<[1], [0], [0], [1], [0, 0, 1, 1], [], []>} : vector<92x4xbf16>, vector<4x128xbf16>, vector<92x128xf32> -> vector<92x128xf32>
    %34 = arith.addf %28, %33 : vector<92x128xf32>
    %c0_37 = arith.constant 0 : index
    %c3_38 = arith.constant 3 : index
    %c25_39 = arith.constant 25 : index
    %c0_40 = arith.constant 0 : index
    %35 = vector.load %arg1[%c0_37, %c3_38, %c25_39, %c0_40] : memref<1x4x144x4xbf16, #tpu.memory_space<vmem>>, vector<1x1x92x4xbf16>
    %36 = vector.shape_cast %35 : vector<1x1x92x4xbf16> to vector<92x4xbf16>
    %c6 = arith.constant 6 : index
    %c0_41 = arith.constant 0 : index
    %c0_42 = arith.constant 0 : index
    %37 = vector.load %arg2[%c6, %c0_41, %c0_42] : memref<27x4x128xbf16, #tpu.memory_space<vmem>>, vector<1x4x128xbf16>
    %38 = vector.shape_cast %37 : vector<1x4x128xbf16> to vector<4x128xbf16>
    %cst_43 = arith.constant dense<0.000000e+00> : vector<92x128xf32>
    %39 = tpu.matmul %36, %38, %cst_43 {dimension_numbers = #tpu.dot_dimension_numbers<[1], [0], [0], [1], [0, 0, 1, 1], [], []>} : vector<92x4xbf16>, vector<4x128xbf16>, vector<92x128xf32> -> vector<92x128xf32>
    %40 = arith.addf %34, %39 : vector<92x128xf32>
    %c0_44 = arith.constant 0 : index
    %c2_45 = arith.constant 2 : index
    %c26_46 = arith.constant 26 : index
    %c0_47 = arith.constant 0 : index
    %41 = vector.load %arg1[%c0_44, %c2_45, %c26_46, %c0_47] : memref<1x4x144x4xbf16, #tpu.memory_space<vmem>>, vector<1x1x92x4xbf16>
    %42 = vector.shape_cast %41 : vector<1x1x92x4xbf16> to vector<92x4xbf16>
    %c7 = arith.constant 7 : index
    %c0_48 = arith.constant 0 : index
    %c0_49 = arith.constant 0 : index
    %43 = vector.load %arg2[%c7, %c0_48, %c0_49] : memref<27x4x128xbf16, #tpu.memory_space<vmem>>, vector<1x4x128xbf16>
    %44 = vector.shape_cast %43 : vector<1x4x128xbf16> to vector<4x128xbf16>
    %cst_50 = arith.constant dense<0.000000e+00> : vector<92x128xf32>
    %45 = tpu.matmul %42, %44, %cst_50 {dimension_numbers = #tpu.dot_dimension_numbers<[1], [0], [0], [1], [0, 0, 1, 1], [], []>} : vector<92x4xbf16>, vector<4x128xbf16>, vector<92x128xf32> -> vector<92x128xf32>
    %46 = arith.addf %40, %45 : vector<92x128xf32>
    %c0_51 = arith.constant 0 : index
    %c3_52 = arith.constant 3 : index
    %c26_53 = arith.constant 26 : index
    %c0_54 = arith.constant 0 : index
    %47 = vector.load %arg1[%c0_51, %c3_52, %c26_53, %c0_54] : memref<1x4x144x4xbf16, #tpu.memory_space<vmem>>, vector<1x1x92x4xbf16>
    %48 = vector.shape_cast %47 : vector<1x1x92x4xbf16> to vector<92x4xbf16>
    %c8 = arith.constant 8 : index
    %c0_55 = arith.constant 0 : index
    %c0_56 = arith.constant 0 : index
    %49 = vector.load %arg2[%c8, %c0_55, %c0_56] : memref<27x4x128xbf16, #tpu.memory_space<vmem>>, vector<1x4x128xbf16>
    %50 = vector.shape_cast %49 : vector<1x4x128xbf16> to vector<4x128xbf16>
    %cst_57 = arith.constant dense<0.000000e+00> : vector<92x128xf32>
    %51 = tpu.matmul %48, %50, %cst_57 {dimension_numbers = #tpu.dot_dimension_numbers<[1], [0], [0], [1], [0, 0, 1, 1], [], []>} : vector<92x4xbf16>, vector<4x128xbf16>, vector<92x128xf32> -> vector<92x128xf32>
    %52 = arith.addf %46, %51 : vector<92x128xf32>
    %c0_58 = arith.constant 0 : index
    %c0_59 = arith.constant 0 : index
    %c0_60 = arith.constant 0 : index
    %53 = vector.load %arg3[%c0_58, %c0_59, %c0_60] : memref<3x1x128xf32, #tpu.memory_space<vmem>>, vector<1x1x128xf32>
    %54 = vector.shape_cast %53 : vector<1x1x128xf32> to vector<1x128xf32>
    %55 = vector.broadcast %54 : vector<1x128xf32> to vector<92x128xf32>
    %56 = arith.addf %52, %55 : vector<92x128xf32>
    %cst_61 = arith.constant 0.000000e+00 : f32
    %57 = vector.broadcast %cst_61 : f32 to vector<92x128xf32>
    %58 = arith.maximumf %56, %57 : vector<92x128xf32>
    %59 = arith.truncf %58 : vector<92x128xf32> to vector<92x128xbf16>
    %c0_62 = arith.constant 0 : index
    %c0_63 = arith.constant 0 : index
    %c13_64 = arith.constant 13 : index
    %c0_65 = arith.constant 0 : index
    %60 = vector.load %arg1[%c0_62, %c0_63, %c13_64, %c0_65] : memref<1x4x144x4xbf16, #tpu.memory_space<vmem>>, vector<1x1x92x4xbf16>
    %61 = vector.shape_cast %60 : vector<1x1x92x4xbf16> to vector<92x4xbf16>
    %c9 = arith.constant 9 : index
    %c0_66 = arith.constant 0 : index
    %c0_67 = arith.constant 0 : index
    %62 = vector.load %arg2[%c9, %c0_66, %c0_67] : memref<27x4x128xbf16, #tpu.memory_space<vmem>>, vector<1x4x128xbf16>
    %63 = vector.shape_cast %62 : vector<1x4x128xbf16> to vector<4x128xbf16>
    %cst_68 = arith.constant dense<0.000000e+00> : vector<92x128xf32>
    %64 = tpu.matmul %61, %63, %cst_68 {dimension_numbers = #tpu.dot_dimension_numbers<[1], [0], [0], [1], [0, 0, 1, 1], [], []>} : vector<92x4xbf16>, vector<4x128xbf16>, vector<92x128xf32> -> vector<92x128xf32>
    %c0_69 = arith.constant 0 : index
    %c0_70 = arith.constant 0 : index
    %c14_71 = arith.constant 14 : index
    %c0_72 = arith.constant 0 : index
    %65 = vector.load %arg1[%c0_69, %c0_70, %c14_71, %c0_72] : memref<1x4x144x4xbf16, #tpu.memory_space<vmem>>, vector<1x1x92x4xbf16>
    %66 = vector.shape_cast %65 : vector<1x1x92x4xbf16> to vector<92x4xbf16>
    %c10 = arith.constant 10 : index
    %c0_73 = arith.constant 0 : index
    %c0_74 = arith.constant 0 : index
    %67 = vector.load %arg2[%c10, %c0_73, %c0_74] : memref<27x4x128xbf16, #tpu.memory_space<vmem>>, vector<1x4x128xbf16>
    %68 = vector.shape_cast %67 : vector<1x4x128xbf16> to vector<4x128xbf16>
    %cst_75 = arith.constant dense<0.000000e+00> : vector<92x128xf32>
    %69 = tpu.matmul %66, %68, %cst_75 {dimension_numbers = #tpu.dot_dimension_numbers<[1], [0], [0], [1], [0, 0, 1, 1], [], []>} : vector<92x4xbf16>, vector<4x128xbf16>, vector<92x128xf32> -> vector<92x128xf32>
    %70 = arith.addf %64, %69 : vector<92x128xf32>
    %c0_76 = arith.constant 0 : index
    %c0_77 = arith.constant 0 : index
    %c15 = arith.constant 15 : index
    %c0_78 = arith.constant 0 : index
    %71 = vector.load %arg1[%c0_76, %c0_77, %c15, %c0_78] : memref<1x4x144x4xbf16, #tpu.memory_space<vmem>>, vector<1x1x92x4xbf16>
    %72 = vector.shape_cast %71 : vector<1x1x92x4xbf16> to vector<92x4xbf16>
    %c11 = arith.constant 11 : index
    %c0_79 = arith.constant 0 : index
    %c0_80 = arith.constant 0 : index
    %73 = vector.load %arg2[%c11, %c0_79, %c0_80] : memref<27x4x128xbf16, #tpu.memory_space<vmem>>, vector<1x4x128xbf16>
    %74 = vector.shape_cast %73 : vector<1x4x128xbf16> to vector<4x128xbf16>
    %cst_81 = arith.constant dense<0.000000e+00> : vector<92x128xf32>
    %75 = tpu.matmul %72, %74, %cst_81 {dimension_numbers = #tpu.dot_dimension_numbers<[1], [0], [0], [1], [0, 0, 1, 1], [], []>} : vector<92x4xbf16>, vector<4x128xbf16>, vector<92x128xf32> -> vector<92x128xf32>
    %76 = arith.addf %70, %75 : vector<92x128xf32>
    %c0_82 = arith.constant 0 : index
    %c0_83 = arith.constant 0 : index
    %c25_84 = arith.constant 25 : index
    %c0_85 = arith.constant 0 : index
    %77 = vector.load %arg1[%c0_82, %c0_83, %c25_84, %c0_85] : memref<1x4x144x4xbf16, #tpu.memory_space<vmem>>, vector<1x1x92x4xbf16>
    %78 = vector.shape_cast %77 : vector<1x1x92x4xbf16> to vector<92x4xbf16>
    %c12 = arith.constant 12 : index
    %c0_86 = arith.constant 0 : index
    %c0_87 = arith.constant 0 : index
    %79 = vector.load %arg2[%c12, %c0_86, %c0_87] : memref<27x4x128xbf16, #tpu.memory_space<vmem>>, vector<1x4x128xbf16>
    %80 = vector.shape_cast %79 : vector<1x4x128xbf16> to vector<4x128xbf16>
    %cst_88 = arith.constant dense<0.000000e+00> : vector<92x128xf32>
    %81 = tpu.matmul %78, %80, %cst_88 {dimension_numbers = #tpu.dot_dimension_numbers<[1], [0], [0], [1], [0, 0, 1, 1], [], []>} : vector<92x4xbf16>, vector<4x128xbf16>, vector<92x128xf32> -> vector<92x128xf32>
    %82 = arith.addf %76, %81 : vector<92x128xf32>
    %c0_89 = arith.constant 0 : index
    %c0_90 = arith.constant 0 : index
    %c26_91 = arith.constant 26 : index
    %c0_92 = arith.constant 0 : index
    %83 = vector.load %arg1[%c0_89, %c0_90, %c26_91, %c0_92] : memref<1x4x144x4xbf16, #tpu.memory_space<vmem>>, vector<1x1x92x4xbf16>
    %84 = vector.shape_cast %83 : vector<1x1x92x4xbf16> to vector<92x4xbf16>
    %c13_93 = arith.constant 13 : index
    %c0_94 = arith.constant 0 : index
    %c0_95 = arith.constant 0 : index
    %85 = vector.load %arg2[%c13_93, %c0_94, %c0_95] : memref<27x4x128xbf16, #tpu.memory_space<vmem>>, vector<1x4x128xbf16>
    %86 = vector.shape_cast %85 : vector<1x4x128xbf16> to vector<4x128xbf16>
    %cst_96 = arith.constant dense<0.000000e+00> : vector<92x128xf32>
    %87 = tpu.matmul %84, %86, %cst_96 {dimension_numbers = #tpu.dot_dimension_numbers<[1], [0], [0], [1], [0, 0, 1, 1], [], []>} : vector<92x4xbf16>, vector<4x128xbf16>, vector<92x128xf32> -> vector<92x128xf32>
    %88 = arith.addf %82, %87 : vector<92x128xf32>
    %c0_97 = arith.constant 0 : index
    %c0_98 = arith.constant 0 : index
    %c27 = arith.constant 27 : index
    %c0_99 = arith.constant 0 : index
    %89 = vector.load %arg1[%c0_97, %c0_98, %c27, %c0_99] : memref<1x4x144x4xbf16, #tpu.memory_space<vmem>>, vector<1x1x92x4xbf16>
    %90 = vector.shape_cast %89 : vector<1x1x92x4xbf16> to vector<92x4xbf16>
    %c14_100 = arith.constant 14 : index
    %c0_101 = arith.constant 0 : index
    %c0_102 = arith.constant 0 : index
    %91 = vector.load %arg2[%c14_100, %c0_101, %c0_102] : memref<27x4x128xbf16, #tpu.memory_space<vmem>>, vector<1x4x128xbf16>
    %92 = vector.shape_cast %91 : vector<1x4x128xbf16> to vector<4x128xbf16>
    %cst_103 = arith.constant dense<0.000000e+00> : vector<92x128xf32>
    %93 = tpu.matmul %90, %92, %cst_103 {dimension_numbers = #tpu.dot_dimension_numbers<[1], [0], [0], [1], [0, 0, 1, 1], [], []>} : vector<92x4xbf16>, vector<4x128xbf16>, vector<92x128xf32> -> vector<92x128xf32>
    %94 = arith.addf %88, %93 : vector<92x128xf32>
    %c0_104 = arith.constant 0 : index
    %c0_105 = arith.constant 0 : index
    %c37 = arith.constant 37 : index
    %c0_106 = arith.constant 0 : index
    %95 = vector.load %arg1[%c0_104, %c0_105, %c37, %c0_106] : memref<1x4x144x4xbf16, #tpu.memory_space<vmem>>, vector<1x1x92x4xbf16>
    %96 = vector.shape_cast %95 : vector<1x1x92x4xbf16> to vector<92x4xbf16>
    %c15_107 = arith.constant 15 : index
    %c0_108 = arith.constant 0 : index
    %c0_109 = arith.constant 0 : index
    %97 = vector.load %arg2[%c15_107, %c0_108, %c0_109] : memref<27x4x128xbf16, #tpu.memory_space<vmem>>, vector<1x4x128xbf16>
    %98 = vector.shape_cast %97 : vector<1x4x128xbf16> to vector<4x128xbf16>
    %cst_110 = arith.constant dense<0.000000e+00> : vector<92x128xf32>
    %99 = tpu.matmul %96, %98, %cst_110 {dimension_numbers = #tpu.dot_dimension_numbers<[1], [0], [0], [1], [0, 0, 1, 1], [], []>} : vector<92x4xbf16>, vector<4x128xbf16>, vector<92x128xf32> -> vector<92x128xf32>
    %100 = arith.addf %94, %99 : vector<92x128xf32>
    %c0_111 = arith.constant 0 : index
    %c0_112 = arith.constant 0 : index
    %c38 = arith.constant 38 : index
    %c0_113 = arith.constant 0 : index
    %101 = vector.load %arg1[%c0_111, %c0_112, %c38, %c0_113] : memref<1x4x144x4xbf16, #tpu.memory_space<vmem>>, vector<1x1x92x4xbf16>
    %102 = vector.shape_cast %101 : vector<1x1x92x4xbf16> to vector<92x4xbf16>
    %c16 = arith.constant 16 : index
    %c0_114 = arith.constant 0 : index
    %c0_115 = arith.constant 0 : index
    %103 = vector.load %arg2[%c16, %c0_114, %c0_115] : memref<27x4x128xbf16, #tpu.memory_space<vmem>>, vector<1x4x128xbf16>
    %104 = vector.shape_cast %103 : vector<1x4x128xbf16> to vector<4x128xbf16>
    %cst_116 = arith.constant dense<0.000000e+00> : vector<92x128xf32>
    %105 = tpu.matmul %102, %104, %cst_116 {dimension_numbers = #tpu.dot_dimension_numbers<[1], [0], [0], [1], [0, 0, 1, 1], [], []>} : vector<92x4xbf16>, vector<4x128xbf16>, vector<92x128xf32> -> vector<92x128xf32>
    %106 = arith.addf %100, %105 : vector<92x128xf32>
    %c0_117 = arith.constant 0 : index
    %c0_118 = arith.constant 0 : index
    %c39 = arith.constant 39 : index
    %c0_119 = arith.constant 0 : index
    %107 = vector.load %arg1[%c0_117, %c0_118, %c39, %c0_119] : memref<1x4x144x4xbf16, #tpu.memory_space<vmem>>, vector<1x1x92x4xbf16>
    %108 = vector.shape_cast %107 : vector<1x1x92x4xbf16> to vector<92x4xbf16>
    %c17 = arith.constant 17 : index
    %c0_120 = arith.constant 0 : index
    %c0_121 = arith.constant 0 : index
    %109 = vector.load %arg2[%c17, %c0_120, %c0_121] : memref<27x4x128xbf16, #tpu.memory_space<vmem>>, vector<1x4x128xbf16>
    %110 = vector.shape_cast %109 : vector<1x4x128xbf16> to vector<4x128xbf16>
    %cst_122 = arith.constant dense<0.000000e+00> : vector<92x128xf32>
    %111 = tpu.matmul %108, %110, %cst_122 {dimension_numbers = #tpu.dot_dimension_numbers<[1], [0], [0], [1], [0, 0, 1, 1], [], []>} : vector<92x4xbf16>, vector<4x128xbf16>, vector<92x128xf32> -> vector<92x128xf32>
    %112 = arith.addf %106, %111 : vector<92x128xf32>
    %c1_123 = arith.constant 1 : index
    %c0_124 = arith.constant 0 : index
    %c0_125 = arith.constant 0 : index
    %113 = vector.load %arg3[%c1_123, %c0_124, %c0_125] : memref<3x1x128xf32, #tpu.memory_space<vmem>>, vector<1x1x128xf32>
    %114 = vector.shape_cast %113 : vector<1x1x128xf32> to vector<1x128xf32>
    %115 = vector.broadcast %114 : vector<1x128xf32> to vector<92x128xf32>
    %116 = arith.addf %112, %115 : vector<92x128xf32>
    %cst_126 = arith.constant 0.000000e+00 : f32
    %117 = vector.broadcast %cst_126 : f32 to vector<92x128xf32>
    %118 = arith.maximumf %116, %117 : vector<92x128xf32>
    %119 = arith.truncf %118 : vector<92x128xf32> to vector<92x128xbf16>
    %c0_127 = arith.constant 0 : index
    %c0_128 = arith.constant 0 : index
    %c0_129 = arith.constant 0 : index
    %c0_130 = arith.constant 0 : index
    %120 = vector.load %arg1[%c0_127, %c0_128, %c0_129, %c0_130] : memref<1x4x144x4xbf16, #tpu.memory_space<vmem>>, vector<1x1x92x4xbf16>
    %121 = vector.shape_cast %120 : vector<1x1x92x4xbf16> to vector<92x4xbf16>
    %c18 = arith.constant 18 : index
    %c0_131 = arith.constant 0 : index
    %c0_132 = arith.constant 0 : index
    %122 = vector.load %arg2[%c18, %c0_131, %c0_132] : memref<27x4x128xbf16, #tpu.memory_space<vmem>>, vector<1x4x128xbf16>
    %123 = vector.shape_cast %122 : vector<1x4x128xbf16> to vector<4x128xbf16>
    %cst_133 = arith.constant dense<0.000000e+00> : vector<92x128xf32>
    %124 = tpu.matmul %121, %123, %cst_133 {dimension_numbers = #tpu.dot_dimension_numbers<[1], [0], [0], [1], [0, 0, 1, 1], [], []>} : vector<92x4xbf16>, vector<4x128xbf16>, vector<92x128xf32> -> vector<92x128xf32>
    %c0_134 = arith.constant 0 : index
    %c0_135 = arith.constant 0 : index
    %c2_136 = arith.constant 2 : index
    %c0_137 = arith.constant 0 : index
    %125 = vector.load %arg1[%c0_134, %c0_135, %c2_136, %c0_137] : memref<1x4x144x4xbf16, #tpu.memory_space<vmem>>, vector<1x1x92x4xbf16>
    %126 = vector.shape_cast %125 : vector<1x1x92x4xbf16> to vector<92x4xbf16>
    %c19 = arith.constant 19 : index
    %c0_138 = arith.constant 0 : index
    %c0_139 = arith.constant 0 : index
    %127 = vector.load %arg2[%c19, %c0_138, %c0_139] : memref<27x4x128xbf16, #tpu.memory_space<vmem>>, vector<1x4x128xbf16>
    %128 = vector.shape_cast %127 : vector<1x4x128xbf16> to vector<4x128xbf16>
    %cst_140 = arith.constant dense<0.000000e+00> : vector<92x128xf32>
    %129 = tpu.matmul %126, %128, %cst_140 {dimension_numbers = #tpu.dot_dimension_numbers<[1], [0], [0], [1], [0, 0, 1, 1], [], []>} : vector<92x4xbf16>, vector<4x128xbf16>, vector<92x128xf32> -> vector<92x128xf32>
    %130 = arith.addf %124, %129 : vector<92x128xf32>
    %c0_141 = arith.constant 0 : index
    %c0_142 = arith.constant 0 : index
    %c4_143 = arith.constant 4 : index
    %c0_144 = arith.constant 0 : index
    %131 = vector.load %arg1[%c0_141, %c0_142, %c4_143, %c0_144] : memref<1x4x144x4xbf16, #tpu.memory_space<vmem>>, vector<1x1x92x4xbf16>
    %132 = vector.shape_cast %131 : vector<1x1x92x4xbf16> to vector<92x4xbf16>
    %c20 = arith.constant 20 : index
    %c0_145 = arith.constant 0 : index
    %c0_146 = arith.constant 0 : index
    %133 = vector.load %arg2[%c20, %c0_145, %c0_146] : memref<27x4x128xbf16, #tpu.memory_space<vmem>>, vector<1x4x128xbf16>
    %134 = vector.shape_cast %133 : vector<1x4x128xbf16> to vector<4x128xbf16>
    %cst_147 = arith.constant dense<0.000000e+00> : vector<92x128xf32>
    %135 = tpu.matmul %132, %134, %cst_147 {dimension_numbers = #tpu.dot_dimension_numbers<[1], [0], [0], [1], [0, 0, 1, 1], [], []>} : vector<92x4xbf16>, vector<4x128xbf16>, vector<92x128xf32> -> vector<92x128xf32>
    %136 = arith.addf %130, %135 : vector<92x128xf32>
    %c0_148 = arith.constant 0 : index
    %c0_149 = arith.constant 0 : index
    %c24 = arith.constant 24 : index
    %c0_150 = arith.constant 0 : index
    %137 = vector.load %arg1[%c0_148, %c0_149, %c24, %c0_150] : memref<1x4x144x4xbf16, #tpu.memory_space<vmem>>, vector<1x1x92x4xbf16>
    %138 = vector.shape_cast %137 : vector<1x1x92x4xbf16> to vector<92x4xbf16>
    %c21 = arith.constant 21 : index
    %c0_151 = arith.constant 0 : index
    %c0_152 = arith.constant 0 : index
    %139 = vector.load %arg2[%c21, %c0_151, %c0_152] : memref<27x4x128xbf16, #tpu.memory_space<vmem>>, vector<1x4x128xbf16>
    %140 = vector.shape_cast %139 : vector<1x4x128xbf16> to vector<4x128xbf16>
    %cst_153 = arith.constant dense<0.000000e+00> : vector<92x128xf32>
    %141 = tpu.matmul %138, %140, %cst_153 {dimension_numbers = #tpu.dot_dimension_numbers<[1], [0], [0], [1], [0, 0, 1, 1], [], []>} : vector<92x4xbf16>, vector<4x128xbf16>, vector<92x128xf32> -> vector<92x128xf32>
    %142 = arith.addf %136, %141 : vector<92x128xf32>
    %c0_154 = arith.constant 0 : index
    %c0_155 = arith.constant 0 : index
    %c26_156 = arith.constant 26 : index
    %c0_157 = arith.constant 0 : index
    %143 = vector.load %arg1[%c0_154, %c0_155, %c26_156, %c0_157] : memref<1x4x144x4xbf16, #tpu.memory_space<vmem>>, vector<1x1x92x4xbf16>
    %144 = vector.shape_cast %143 : vector<1x1x92x4xbf16> to vector<92x4xbf16>
    %c22 = arith.constant 22 : index
    %c0_158 = arith.constant 0 : index
    %c0_159 = arith.constant 0 : index
    %145 = vector.load %arg2[%c22, %c0_158, %c0_159] : memref<27x4x128xbf16, #tpu.memory_space<vmem>>, vector<1x4x128xbf16>
    %146 = vector.shape_cast %145 : vector<1x4x128xbf16> to vector<4x128xbf16>
    %cst_160 = arith.constant dense<0.000000e+00> : vector<92x128xf32>
    %147 = tpu.matmul %144, %146, %cst_160 {dimension_numbers = #tpu.dot_dimension_numbers<[1], [0], [0], [1], [0, 0, 1, 1], [], []>} : vector<92x4xbf16>, vector<4x128xbf16>, vector<92x128xf32> -> vector<92x128xf32>
    %148 = arith.addf %142, %147 : vector<92x128xf32>
    %c0_161 = arith.constant 0 : index
    %c0_162 = arith.constant 0 : index
    %c28 = arith.constant 28 : index
    %c0_163 = arith.constant 0 : index
    %149 = vector.load %arg1[%c0_161, %c0_162, %c28, %c0_163] : memref<1x4x144x4xbf16, #tpu.memory_space<vmem>>, vector<1x1x92x4xbf16>
    %150 = vector.shape_cast %149 : vector<1x1x92x4xbf16> to vector<92x4xbf16>
    %c23 = arith.constant 23 : index
    %c0_164 = arith.constant 0 : index
    %c0_165 = arith.constant 0 : index
    %151 = vector.load %arg2[%c23, %c0_164, %c0_165] : memref<27x4x128xbf16, #tpu.memory_space<vmem>>, vector<1x4x128xbf16>
    %152 = vector.shape_cast %151 : vector<1x4x128xbf16> to vector<4x128xbf16>
    %cst_166 = arith.constant dense<0.000000e+00> : vector<92x128xf32>
    %153 = tpu.matmul %150, %152, %cst_166 {dimension_numbers = #tpu.dot_dimension_numbers<[1], [0], [0], [1], [0, 0, 1, 1], [], []>} : vector<92x4xbf16>, vector<4x128xbf16>, vector<92x128xf32> -> vector<92x128xf32>
    %154 = arith.addf %148, %153 : vector<92x128xf32>
    %c0_167 = arith.constant 0 : index
    %c0_168 = arith.constant 0 : index
    %c48 = arith.constant 48 : index
    %c0_169 = arith.constant 0 : index
    %155 = vector.load %arg1[%c0_167, %c0_168, %c48, %c0_169] : memref<1x4x144x4xbf16, #tpu.memory_space<vmem>>, vector<1x1x92x4xbf16>
    %156 = vector.shape_cast %155 : vector<1x1x92x4xbf16> to vector<92x4xbf16>
    %c24_170 = arith.constant 24 : index
    %c0_171 = arith.constant 0 : index
    %c0_172 = arith.constant 0 : index
    %157 = vector.load %arg2[%c24_170, %c0_171, %c0_172] : memref<27x4x128xbf16, #tpu.memory_space<vmem>>, vector<1x4x128xbf16>
    %158 = vector.shape_cast %157 : vector<1x4x128xbf16> to vector<4x128xbf16>
    %cst_173 = arith.constant dense<0.000000e+00> : vector<92x128xf32>
    %159 = tpu.matmul %156, %158, %cst_173 {dimension_numbers = #tpu.dot_dimension_numbers<[1], [0], [0], [1], [0, 0, 1, 1], [], []>} : vector<92x4xbf16>, vector<4x128xbf16>, vector<92x128xf32> -> vector<92x128xf32>
    %160 = arith.addf %154, %159 : vector<92x128xf32>
    %c0_174 = arith.constant 0 : index
    %c0_175 = arith.constant 0 : index
    %c50 = arith.constant 50 : index
    %c0_176 = arith.constant 0 : index
    %161 = vector.load %arg1[%c0_174, %c0_175, %c50, %c0_176] : memref<1x4x144x4xbf16, #tpu.memory_space<vmem>>, vector<1x1x92x4xbf16>
    %162 = vector.shape_cast %161 : vector<1x1x92x4xbf16> to vector<92x4xbf16>
    %c25_177 = arith.constant 25 : index
    %c0_178 = arith.constant 0 : index
    %c0_179 = arith.constant 0 : index
    %163 = vector.load %arg2[%c25_177, %c0_178, %c0_179] : memref<27x4x128xbf16, #tpu.memory_space<vmem>>, vector<1x4x128xbf16>
    %164 = vector.shape_cast %163 : vector<1x4x128xbf16> to vector<4x128xbf16>
    %cst_180 = arith.constant dense<0.000000e+00> : vector<92x128xf32>
    %165 = tpu.matmul %162, %164, %cst_180 {dimension_numbers = #tpu.dot_dimension_numbers<[1], [0], [0], [1], [0, 0, 1, 1], [], []>} : vector<92x4xbf16>, vector<4x128xbf16>, vector<92x128xf32> -> vector<92x128xf32>
    %166 = arith.addf %160, %165 : vector<92x128xf32>
    %c0_181 = arith.constant 0 : index
    %c0_182 = arith.constant 0 : index
    %c52 = arith.constant 52 : index
    %c0_183 = arith.constant 0 : index
    %167 = vector.load %arg1[%c0_181, %c0_182, %c52, %c0_183] : memref<1x4x144x4xbf16, #tpu.memory_space<vmem>>, vector<1x1x92x4xbf16>
    %168 = vector.shape_cast %167 : vector<1x1x92x4xbf16> to vector<92x4xbf16>
    %c26_184 = arith.constant 26 : index
    %c0_185 = arith.constant 0 : index
    %c0_186 = arith.constant 0 : index
    %169 = vector.load %arg2[%c26_184, %c0_185, %c0_186] : memref<27x4x128xbf16, #tpu.memory_space<vmem>>, vector<1x4x128xbf16>
    %170 = vector.shape_cast %169 : vector<1x4x128xbf16> to vector<4x128xbf16>
    %cst_187 = arith.constant dense<0.000000e+00> : vector<92x128xf32>
    %171 = tpu.matmul %168, %170, %cst_187 {dimension_numbers = #tpu.dot_dimension_numbers<[1], [0], [0], [1], [0, 0, 1, 1], [], []>} : vector<92x4xbf16>, vector<4x128xbf16>, vector<92x128xf32> -> vector<92x128xf32>
    %172 = arith.addf %166, %171 : vector<92x128xf32>
    %c2_188 = arith.constant 2 : index
    %c0_189 = arith.constant 0 : index
    %c0_190 = arith.constant 0 : index
    %173 = vector.load %arg3[%c2_188, %c0_189, %c0_190] : memref<3x1x128xf32, #tpu.memory_space<vmem>>, vector<1x1x128xf32>
    %174 = vector.shape_cast %173 : vector<1x1x128xf32> to vector<1x128xf32>
    %175 = vector.broadcast %174 : vector<1x128xf32> to vector<92x128xf32>
    %176 = arith.addf %172, %175 : vector<92x128xf32>
    %cst_191 = arith.constant 0.000000e+00 : f32
    %177 = vector.broadcast %cst_191 : f32 to vector<92x128xf32>
    %178 = arith.maximumf %176, %177 : vector<92x128xf32>
    %179 = arith.truncf %178 : vector<92x128xf32> to vector<92x128xbf16>
    %180 = tpu.concatenate %59, %119, %179 in 1 : vector<92x128xbf16>, vector<92x128xbf16>, vector<92x128xbf16> -> vector<92x384xbf16>
    %c0_192 = arith.constant 0 : index
    %c0_193 = arith.constant 0 : index
    %181 = vector.load %arg4[%c0_192, %c0_193] : memref<384x8xbf16, #tpu.memory_space<vmem>>, vector<384x8xbf16>
    %cst_194 = arith.constant dense<0.000000e+00> : vector<92x8xf32>
    %182 = tpu.matmul %180, %181, %cst_194 {dimension_numbers = #tpu.dot_dimension_numbers<[1], [0], [0], [1], [0, 0, 1, 1], [], []>} : vector<92x384xbf16>, vector<384x8xbf16>, vector<92x8xf32> -> vector<92x8xf32>
    %c0_195 = arith.constant 0 : index
    %c0_196 = arith.constant 0 : index
    %c0_197 = arith.constant 0 : index
    %183 = vector.load %arg5[%c0_195, %c0_196, %c0_197] : memref<1x1x8xf32, #tpu.memory_space<vmem>>, vector<1x1x8xf32>
    %184 = vector.shape_cast %183 : vector<1x1x8xf32> to vector<1x8xf32>
    %185 = vector.broadcast %184 : vector<1x8xf32> to vector<92x8xf32>
    %186 = arith.addf %182, %185 : vector<92x8xf32>
    %cst_198 = arith.constant 0.000000e+00 : f32
    %187 = vector.broadcast %cst_198 : f32 to vector<92x8xf32>
    %188 = arith.maximumf %186, %187 : vector<92x8xf32>
    %c0_199 = arith.constant 0 : index
    %c0_200 = arith.constant 0 : index
    %c0_201 = arith.constant 0 : index
    %189 = vector.load %arg6[%c0_199, %c0_200, %c0_201] : memref<1x92x8xf32, #tpu.memory_space<vmem>>, vector<1x92x8xf32>
    %190 = vector.shape_cast %189 : vector<1x92x8xf32> to vector<92x8xf32>
    %191 = vector.shape_cast %188 : vector<92x8xf32> to vector<1x92x8xf32>
    tpu.vector_store %arg6[%c0_199, %c0_200, %c0_201], %191 {strides = array<i32>} : memref<1x92x8xf32, #tpu.memory_space<vmem>>, vector<1x92x8xf32>,
    return
  }
  func.func @transform_0(%arg0: i32) -> (i32, i32, i32, i32) {
    %c0_i32 = arith.constant 0 : i32
    %c0_i32_0 = arith.constant 0 : i32
    %c0_i32_1 = arith.constant 0 : i32
    %c0_i32_2 = arith.constant 0 : i32
    return %arg0, %c0_i32, %c0_i32_0, %c0_i32_1 : i32, i32, i32, i32
  }
  func.func @transform_1(%arg0: i32) -> (i32, i32, i32) {
    %c0_i32 = arith.constant 0 : i32
    %c0_i32_0 = arith.constant 0 : i32
    %c0_i32_1 = arith.constant 0 : i32
    %c0_i32_2 = arith.constant 0 : i32
    return %c0_i32, %c0_i32_0, %c0_i32_1 : i32, i32, i32
  }
  func.func @transform_2(%arg0: i32) -> (i32, i32, i32) {
    %c0_i32 = arith.constant 0 : i32
    %c0_i32_0 = arith.constant 0 : i32
    %c0_i32_1 = arith.constant 0 : i32
    %c0_i32_2 = arith.constant 0 : i32
    return %c0_i32, %c0_i32_0, %c0_i32_1 : i32, i32, i32
  }
  func.func @transform_3(%arg0: i32) -> (i32, i32) {
    %c0_i32 = arith.constant 0 : i32
    %c0_i32_0 = arith.constant 0 : i32
    %c0_i32_1 = arith.constant 0 : i32
    return %c0_i32, %c0_i32_0 : i32, i32
  }
  func.func @transform_4(%arg0: i32) -> (i32, i32, i32) {
    %c0_i32 = arith.constant 0 : i32
    %c0_i32_0 = arith.constant 0 : i32
    %c0_i32_1 = arith.constant 0 : i32
    return %arg0, %c0_i32, %c0_i32_0 : i32, i32, i32
  }
  func.func @transform_5(%arg0: i32) -> (i32, i32, i32) {
    %c0_i32 = arith.constant 0 : i32
    %c0_i32_0 = arith.constant 0 : i32
    %c0_i32_1 = arith.constant 0 : i32
    return %arg0, %c0_i32, %c0_i32_0 : i32, i32, i32
  }
}

module attributes {stable_mosaic.version = 11 : i64} {
  func.func @kernel(%arg0: i32, %arg1: memref<1x4x144x4xbf16, #tpu.memory_space<vmem>>, %arg2: memref<27x4x128xbf16, #tpu.memory_space<vmem>>, %arg3: memref<3x1x128xf32, #tpu.memory_space<vmem>>, %arg4: memref<384x8xbf16, #tpu.memory_space<vmem>>, %arg5: memref<1x1x8xf32, #tpu.memory_space<vmem>>, %arg6: memref<1x92x8xf32, #tpu.memory_space<vmem>>) attributes {dimension_semantics = [#tpu.dimension_semantics<parallel>], iteration_bounds = array<i64: 2>, scalar_prefetch = 0 : i64, scratch_operands = 0 : i64, tpu.core_type = #tpu.core_type<tc>, window_params = [{transform_indices = @transform_0, window_bounds = array<i64: 1, 4, 144, 4>}, {pipeline_mode = #tpu.pipeline_mode<synchronous>, transform_indices = @transform_1, window_bounds = array<i64: 27, 4, 128>}, {pipeline_mode = #tpu.pipeline_mode<synchronous>, transform_indices = @transform_2, window_bounds = array<i64: 3, 1, 128>}, {pipeline_mode = #tpu.pipeline_mode<synchronous>, transform_indices = @transform_3, window_bounds = array<i64: 384, 8>}, {transform_indices = @transform_4, window_bounds = array<i64: 1, 1, 8>}, {transform_indices = @transform_5, window_bounds = array<i64: 1, 92, 8>}]} {
    %c0 = arith.constant 0 : index
    %c3 = arith.constant 3 : index
    %c13 = arith.constant 13 : index
    %c0_0 = arith.constant 0 : index
    %0 = vector.load %arg1[%c0, %c3, %c13, %c0_0] : memref<1x4x144x4xbf16, #tpu.memory_space<vmem>>, vector<1x1x92x4xbf16>
    %1 = vector.shape_cast %0 : vector<1x1x92x4xbf16> to vector<92x4xbf16>
    %c0_1 = arith.constant 0 : index
    %c0_2 = arith.constant 0 : index
    %c0_3 = arith.constant 0 : index
    %2 = vector.load %arg2[%c0_1, %c0_2, %c0_3] : memref<27x4x128xbf16, #tpu.memory_space<vmem>>, vector<1x4x128xbf16>
    %3 = vector.shape_cast %2 : vector<1x4x128xbf16> to vector<4x128xbf16>
    %cst = arith.constant dense<0.000000e+00> : vector<92x128xf32>
    %4 = tpu.matmul %1, %3, %cst {dimension_numbers = #tpu.dot_dimension_numbers<[1], [0], [0], [1], [0, 0, 1, 1], [], []>} : vector<92x4xbf16>, vector<4x128xbf16>, vector<92x128xf32> -> vector<92x128xf32>
    %c0_4 = arith.constant 0 : index
    %c2 = arith.constant 2 : index
    %c14 = arith.constant 14 : index
    %c0_5 = arith.constant 0 : index
    %5 = vector.load %arg1[%c0_4, %c2, %c14, %c0_5] : memref<1x4x144x4xbf16, #tpu.memory_space<vmem>>, vector<1x1x92x4xbf16>
    %6 = vector.shape_cast %5 : vector<1x1x92x4xbf16> to vector<92x4xbf16>
    %c1 = arith.constant 1 : index
    %c0_6 = arith.constant 0 : index
    %c0_7 = arith.constant 0 : index
    %7 = vector.load %arg2[%c1, %c0_6, %c0_7] : memref<27x4x128xbf16, #tpu.memory_space<vmem>>, vector<1x4x128xbf16>
    %8 = vector.shape_cast %7 : vector<1x4x128xbf16> to vector<4x128xbf16>
    %cst_8 = arith.constant dense<0.000000e+00> : vector<92x128xf32>
    %9 = tpu.matmul %6, %8, %cst_8 {dimension_numbers = #tpu.dot_dimension_numbers<[1], [0], [0], [1], [0, 0, 1, 1], [], []>} : vector<92x4xbf16>, vector<4x128xbf16>, vector<92x128xf32> -> vector<92x128xf32>
    %10 = arith.addf %4, %9 : vector<92x128xf32>
    %c0_9 = arith.constant 0 : index
    %c3_10 = arith.constant 3 : index
    %c14_11 = arith.constant 14 : index
    %c0_12 = arith.constant 0 : index
    %11 = vector.load %arg1[%c0_9, %c3_10, %c14_11, %c0_12] : memref<1x4x144x4xbf16, #tpu.memory_space<vmem>>, vector<1x1x92x4xbf16>
    %12 = vector.shape_cast %11 : vector<1x1x92x4xbf16> to vector<92x4xbf16>
    %c2_13 = arith.constant 2 : index
    %c0_14 = arith.constant 0 : index
    %c0_15 = arith.constant 0 : index
    %13 = vector.load %arg2[%c2_13, %c0_14, %c0_15] : memref<27x4x128xbf16, #tpu.memory_space<vmem>>, vector<1x4x128xbf16>
    %14 = vector.shape_cast %13 : vector<1x4x128xbf16> to vector<4x128xbf16>
    %cst_16 = arith.constant dense<0.000000e+00> : vector<92x128xf32>
    %15 = tpu.matmul %12, %14, %cst_16 {dimension_numbers = #tpu.dot_dimension_numbers<[1], [0], [0], [1], [0, 0, 1, 1], [], []>} : vector<92x4xbf16>, vector<4x128xbf16>, vector<92x128xf32> -> vector<92x128xf32>
    %16 = arith.addf %10, %15 : vector<92x128xf32>
    %c0_17 = arith.constant 0 : index
    %c1_18 = arith.constant 1 : index
    %c25 = arith.constant 25 : index
    %c0_19 = arith.constant 0 : index
    %17 = vector.load %arg1[%c0_17, %c1_18, %c25, %c0_19] : memref<1x4x144x4xbf16, #tpu.memory_space<vmem>>, vector<1x1x92x4xbf16>
    %18 = vector.shape_cast %17 : vector<1x1x92x4xbf16> to vector<92x4xbf16>
    %c3_20 = arith.constant 3 : index
    %c0_21 = arith.constant 0 : index
    %c0_22 = arith.constant 0 : index
    %19 = vector.load %arg2[%c3_20, %c0_21, %c0_22] : memref<27x4x128xbf16, #tpu.memory_space<vmem>>, vector<1x4x128xbf16>
    %20 = vector.shape_cast %19 : vector<1x4x128xbf16> to vector<4x128xbf16>
    %cst_23 = arith.constant dense<0.000000e+00> : vector<92x128xf32>
    %21 = tpu.matmul %18, %20, %cst_23 {dimension_numbers = #tpu.dot_dimension_numbers<[1], [0], [0], [1], [0, 0, 1, 1], [], []>} : vector<92x4xbf16>, vector<4x128xbf16>, vector<92x128xf32> -> vector<92x128xf32>
    %22 = arith.addf %16, %21 : vector<92x128xf32>
    %c0_24 = arith.constant 0 : index
    %c0_25 = arith.constant 0 : index
    %c26 = arith.constant 26 : index
    %c0_26 = arith.constant 0 : index
    %23 = vector.load %arg1[%c0_24, %c0_25, %c26, %c0_26] : memref<1x4x144x4xbf16, #tpu.memory_space<vmem>>, vector<1x1x92x4xbf16>
    %24 = vector.shape_cast %23 : vector<1x1x92x4xbf16> to vector<92x4xbf16>
    %c4 = arith.constant 4 : index
    %c0_27 = arith.constant 0 : index
    %c0_28 = arith.constant 0 : index
    %25 = vector.load %arg2[%c4, %c0_27, %c0_28] : memref<27x4x128xbf16, #tpu.memory_space<vmem>>, vector<1x4x128xbf16>
    %26 = vector.shape_cast %25 : vector<1x4x128xbf16> to vector<4x128xbf16>
    %cst_29 = arith.constant dense<0.000000e+00> : vector<92x128xf32>
    %27 = tpu.matmul %24, %26, %cst_29 {dimension_numbers = #tpu.dot_dimension_numbers<[1], [0], [0], [1], [0, 0, 1, 1], [], []>} : vector<92x4xbf16>, vector<4x128xbf16>, vector<92x128xf32> -> vector<92x128xf32>
    %28 = arith.addf %22, %27 : vector<92x128xf32>
    %c0_30 = arith.constant 0 : index
    %c1_31 = arith.constant 1 : index
    %c26_32 = arith.constant 26 : index
    %c0_33 = arith.constant 0 : index
    %29 = vector.load %arg1[%c0_30, %c1_31, %c26_32, %c0_33] : memref<1x4x144x4xbf16, #tpu.memory_space<vmem>>, vector<1x1x92x4xbf16>
    %30 = vector.shape_cast %29 : vector<1x1x92x4xbf16> to vector<92x4xbf16>
    %c5 = arith.constant 5 : index
    %c0_34 = arith.constant 0 : index
    %c0_35 = arith.constant 0 : index
    %31 = vector.load %arg2[%c5, %c0_34, %c0_35] : memref<27x4x128xbf16, #tpu.memory_space<vmem>>, vector<1x4x128xbf16>
    %32 = vector.shape_cast %31 : vector<1x4x128xbf16> to vector<4x128xbf16>
    %cst_36 = arith.constant dense<0.000000e+00> : vector<92x128xf32>
    %33 = tpu.matmul %30, %32, %cst_36 {dimension_numbers = #tpu.dot_dimension_numbers<[1], [0], [0], [1], [0, 0, 1, 1], [], []>} : vector<92x4xbf16>, vector<4x128xbf16>, vector<92x128xf32> -> vector<92x128xf32>
    %34 = arith.addf %28, %33 : vector<92x128xf32>
    %c0_37 = arith.constant 0 : index
    %c3_38 = arith.constant 3 : index
    %c25_39 = arith.constant 25 : index
    %c0_40 = arith.constant 0 : index
    %35 = vector.load %arg1[%c0_37, %c3_38, %c25_39, %c0_40] : memref<1x4x144x4xbf16, #tpu.memory_space<vmem>>, vector<1x1x92x4xbf16>
    %36 = vector.shape_cast %35 : vector<1x1x92x4xbf16> to vector<92x4xbf16>
    %c6 = arith.constant 6 : index
    %c0_41 = arith.constant 0 : index
    %c0_42 = arith.constant 0 : index
    %37 = vector.load %arg2[%c6, %c0_41, %c0_42] : memref<27x4x128xbf16, #tpu.memory_space<vmem>>, vector<1x4x128xbf16>
    %38 = vector.shape_cast %37 : vector<1x4x128xbf16> to vector<4x128xbf16>
    %cst_43 = arith.constant dense<0.000000e+00> : vector<92x128xf32>
    %39 = tpu.matmul %36, %38, %cst_43 {dimension_numbers = #tpu.dot_dimension_numbers<[1], [0], [0], [1], [0, 0, 1, 1], [], []>} : vector<92x4xbf16>, vector<4x128xbf16>, vector<92x128xf32> -> vector<92x128xf32>
    %40 = arith.addf %34, %39 : vector<92x128xf32>
    %c0_44 = arith.constant 0 : index
    %c2_45 = arith.constant 2 : index
    %c26_46 = arith.constant 26 : index
    %c0_47 = arith.constant 0 : index
    %41 = vector.load %arg1[%c0_44, %c2_45, %c26_46, %c0_47] : memref<1x4x144x4xbf16, #tpu.memory_space<vmem>>, vector<1x1x92x4xbf16>
    %42 = vector.shape_cast %41 : vector<1x1x92x4xbf16> to vector<92x4xbf16>
    %c7 = arith.constant 7 : index
    %c0_48 = arith.constant 0 : index
    %c0_49 = arith.constant 0 : index
    %43 = vector.load %arg2[%c7, %c0_48, %c0_49] : memref<27x4x128xbf16, #tpu.memory_space<vmem>>, vector<1x4x128xbf16>
    %44 = vector.shape_cast %43 : vector<1x4x128xbf16> to vector<4x128xbf16>
    %cst_50 = arith.constant dense<0.000000e+00> : vector<92x128xf32>
    %45 = tpu.matmul %42, %44, %cst_50 {dimension_numbers = #tpu.dot_dimension_numbers<[1], [0], [0], [1], [0, 0, 1, 1], [], []>} : vector<92x4xbf16>, vector<4x128xbf16>, vector<92x128xf32> -> vector<92x128xf32>
    %46 = arith.addf %40, %45 : vector<92x128xf32>
    %c0_51 = arith.constant 0 : index
    %c3_52 = arith.constant 3 : index
    %c26_53 = arith.constant 26 : index
    %c0_54 = arith.constant 0 : index
    %47 = vector.load %arg1[%c0_51, %c3_52, %c26_53, %c0_54] : memref<1x4x144x4xbf16, #tpu.memory_space<vmem>>, vector<1x1x92x4xbf16>
    %48 = vector.shape_cast %47 : vector<1x1x92x4xbf16> to vector<92x4xbf16>
    %c8 = arith.constant 8 : index
    %c0_55 = arith.constant 0 : index
    %c0_56 = arith.constant 0 : index
    %49 = vector.load %arg2[%c8, %c0_55, %c0_56] : memref<27x4x128xbf16, #tpu.memory_space<vmem>>, vector<1x4x128xbf16>
    %50 = vector.shape_cast %49 : vector<1x4x128xbf16> to vector<4x128xbf16>
    %cst_57 = arith.constant dense<0.000000e+00> : vector<92x128xf32>
    %51 = tpu.matmul %48, %50, %cst_57 {dimension_numbers = #tpu.dot_dimension_numbers<[1], [0], [0], [1], [0, 0, 1, 1], [], []>} : vector<92x4xbf16>, vector<4x128xbf16>, vector<92x128xf32> -> vector<92x128xf32>
    %52 = arith.addf %46, %51 : vector<92x128xf32>
    %c0_58 = arith.constant 0 : index
    %c0_59 = arith.constant 0 : index
    %c0_60 = arith.constant 0 : index
    %53 = vector.load %arg3[%c0_58, %c0_59, %c0_60] : memref<3x1x128xf32, #tpu.memory_space<vmem>>, vector<1x1x128xf32>
    %54 = vector.shape_cast %53 : vector<1x1x128xf32> to vector<1x128xf32>
    %55 = vector.broadcast %54 : vector<1x128xf32> to vector<92x128xf32>
    %56 = arith.addf %52, %55 : vector<92x128xf32>
    %cst_61 = arith.constant 0.000000e+00 : f32
    %57 = vector.broadcast %cst_61 : f32 to vector<92x128xf32>
    %58 = arith.maximumf %56, %57 : vector<92x128xf32>
    %59 = arith.truncf %58 : vector<92x128xf32> to vector<92x128xbf16>
    %c0_62 = arith.constant 0 : index
    %c0_63 = arith.constant 0 : index
    %c13_64 = arith.constant 13 : index
    %c0_65 = arith.constant 0 : index
    %60 = vector.load %arg1[%c0_62, %c0_63, %c13_64, %c0_65] : memref<1x4x144x4xbf16, #tpu.memory_space<vmem>>, vector<1x1x92x4xbf16>
    %61 = vector.shape_cast %60 : vector<1x1x92x4xbf16> to vector<92x4xbf16>
    %c9 = arith.constant 9 : index
    %c0_66 = arith.constant 0 : index
    %c0_67 = arith.constant 0 : index
    %62 = vector.load %arg2[%c9, %c0_66, %c0_67] : memref<27x4x128xbf16, #tpu.memory_space<vmem>>, vector<1x4x128xbf16>
    %63 = vector.shape_cast %62 : vector<1x4x128xbf16> to vector<4x128xbf16>
    %cst_68 = arith.constant dense<0.000000e+00> : vector<92x128xf32>
    %64 = tpu.matmul %61, %63, %cst_68 {dimension_numbers = #tpu.dot_dimension_numbers<[1], [0], [0], [1], [0, 0, 1, 1], [], []>} : vector<92x4xbf16>, vector<4x128xbf16>, vector<92x128xf32> -> vector<92x128xf32>
    %c0_69 = arith.constant 0 : index
    %c0_70 = arith.constant 0 : index
    %c14_71 = arith.constant 14 : index
    %c0_72 = arith.constant 0 : index
    %65 = vector.load %arg1[%c0_69, %c0_70, %c14_71, %c0_72] : memref<1x4x144x4xbf16, #tpu.memory_space<vmem>>, vector<1x1x92x4xbf16>
    %66 = vector.shape_cast %65 : vector<1x1x92x4xbf16> to vector<92x4xbf16>
    %c10 = arith.constant 10 : index
    %c0_73 = arith.constant 0 : index
    %c0_74 = arith.constant 0 : index
    %67 = vector.load %arg2[%c10, %c0_73, %c0_74] : memref<27x4x128xbf16, #tpu.memory_space<vmem>>, vector<1x4x128xbf16>
    %68 = vector.shape_cast %67 : vector<1x4x128xbf16> to vector<4x128xbf16>
    %cst_75 = arith.constant dense<0.000000e+00> : vector<92x128xf32>
    %69 = tpu.matmul %66, %68, %cst_75 {dimension_numbers = #tpu.dot_dimension_numbers<[1], [0], [0], [1], [0, 0, 1, 1], [], []>} : vector<92x4xbf16>, vector<4x128xbf16>, vector<92x128xf32> -> vector<92x128xf32>
    %70 = arith.addf %64, %69 : vector<92x128xf32>
    %c0_76 = arith.constant 0 : index
    %c0_77 = arith.constant 0 : index
    %c15 = arith.constant 15 : index
    %c0_78 = arith.constant 0 : index
    %71 = vector.load %arg1[%c0_76, %c0_77, %c15, %c0_78] : memref<1x4x144x4xbf16, #tpu.memory_space<vmem>>, vector<1x1x92x4xbf16>
    %72 = vector.shape_cast %71 : vector<1x1x92x4xbf16> to vector<92x4xbf16>
    %c11 = arith.constant 11 : index
    %c0_79 = arith.constant 0 : index
    %c0_80 = arith.constant 0 : index
    %73 = vector.load %arg2[%c11, %c0_79, %c0_80] : memref<27x4x128xbf16, #tpu.memory_space<vmem>>, vector<1x4x128xbf16>
    %74 = vector.shape_cast %73 : vector<1x4x128xbf16> to vector<4x128xbf16>
    %cst_81 = arith.constant dense<0.000000e+00> : vector<92x128xf32>
    %75 = tpu.matmul %72, %74, %cst_81 {dimension_numbers = #tpu.dot_dimension_numbers<[1], [0], [0], [1], [0, 0, 1, 1], [], []>} : vector<92x4xbf16>, vector<4x128xbf16>, vector<92x128xf32> -> vector<92x128xf32>
    %76 = arith.addf %70, %75 : vector<92x128xf32>
    %c0_82 = arith.constant 0 : index
    %c0_83 = arith.constant 0 : index
    %c25_84 = arith.constant 25 : index
    %c0_85 = arith.constant 0 : index
    %77 = vector.load %arg1[%c0_82, %c0_83, %c25_84, %c0_85] : memref<1x4x144x4xbf16, #tpu.memory_space<vmem>>, vector<1x1x92x4xbf16>
    %78 = vector.shape_cast %77 : vector<1x1x92x4xbf16> to vector<92x4xbf16>
    %c12 = arith.constant 12 : index
    %c0_86 = arith.constant 0 : index
    %c0_87 = arith.constant 0 : index
    %79 = vector.load %arg2[%c12, %c0_86, %c0_87] : memref<27x4x128xbf16, #tpu.memory_space<vmem>>, vector<1x4x128xbf16>
    %80 = vector.shape_cast %79 : vector<1x4x128xbf16> to vector<4x128xbf16>
    %cst_88 = arith.constant dense<0.000000e+00> : vector<92x128xf32>
    %81 = tpu.matmul %78, %80, %cst_88 {dimension_numbers = #tpu.dot_dimension_numbers<[1], [0], [0], [1], [0, 0, 1, 1], [], []>} : vector<92x4xbf16>, vector<4x128xbf16>, vector<92x128xf32> -> vector<92x128xf32>
    %82 = arith.addf %76, %81 : vector<92x128xf32>
    %c0_89 = arith.constant 0 : index
    %c0_90 = arith.constant 0 : index
    %c26_91 = arith.constant 26 : index
    %c0_92 = arith.constant 0 : index
    %83 = vector.load %arg1[%c0_89, %c0_90, %c26_91, %c0_92] : memref<1x4x144x4xbf16, #tpu.memory_space<vmem>>, vector<1x1x92x4xbf16>
    %84 = vector.shape_cast %83 : vector<1x1x92x4xbf16> to vector<92x4xbf16>
    %c13_93 = arith.constant 13 : index
    %c0_94 = arith.constant 0 : index
    %c0_95 = arith.constant 0 : index
    %85 = vector.load %arg2[%c13_93, %c0_94, %c0_95] : memref<27x4x128xbf16, #tpu.memory_space<vmem>>, vector<1x4x128xbf16>
    %86 = vector.shape_cast %85 : vector<1x4x128xbf16> to vector<4x128xbf16>
    %cst_96 = arith.constant dense<0.000000e+00> : vector<92x128xf32>
    %87 = tpu.matmul %84, %86, %cst_96 {dimension_numbers = #tpu.dot_dimension_numbers<[1], [0], [0], [1], [0, 0, 1, 1], [], []>} : vector<92x4xbf16>, vector<4x128xbf16>, vector<92x128xf32> -> vector<92x128xf32>
    %88 = arith.addf %82, %87 : vector<92x128xf32>
    %c0_97 = arith.constant 0 : index
    %c0_98 = arith.constant 0 : index
    %c27 = arith.constant 27 : index
    %c0_99 = arith.constant 0 : index
    %89 = vector.load %arg1[%c0_97, %c0_98, %c27, %c0_99] : memref<1x4x144x4xbf16, #tpu.memory_space<vmem>>, vector<1x1x92x4xbf16>
    %90 = vector.shape_cast %89 : vector<1x1x92x4xbf16> to vector<92x4xbf16>
    %c14_100 = arith.constant 14 : index
    %c0_101 = arith.constant 0 : index
    %c0_102 = arith.constant 0 : index
    %91 = vector.load %arg2[%c14_100, %c0_101, %c0_102] : memref<27x4x128xbf16, #tpu.memory_space<vmem>>, vector<1x4x128xbf16>
    %92 = vector.shape_cast %91 : vector<1x4x128xbf16> to vector<4x128xbf16>
    %cst_103 = arith.constant dense<0.000000e+00> : vector<92x128xf32>
    %93 = tpu.matmul %90, %92, %cst_103 {dimension_numbers = #tpu.dot_dimension_numbers<[1], [0], [0], [1], [0, 0, 1, 1], [], []>} : vector<92x4xbf16>, vector<4x128xbf16>, vector<92x128xf32> -> vector<92x128xf32>
    %94 = arith.addf %88, %93 : vector<92x128xf32>
    %c0_104 = arith.constant 0 : index
    %c0_105 = arith.constant 0 : index
    %c37 = arith.constant 37 : index
    %c0_106 = arith.constant 0 : index
    %95 = vector.load %arg1[%c0_104, %c0_105, %c37, %c0_106] : memref<1x4x144x4xbf16, #tpu.memory_space<vmem>>, vector<1x1x92x4xbf16>
    %96 = vector.shape_cast %95 : vector<1x1x92x4xbf16> to vector<92x4xbf16>
    %c15_107 = arith.constant 15 : index
    %c0_108 = arith.constant 0 : index
    %c0_109 = arith.constant 0 : index
    %97 = vector.load %arg2[%c15_107, %c0_108, %c0_109] : memref<27x4x128xbf16, #tpu.memory_space<vmem>>, vector<1x4x128xbf16>
    %98 = vector.shape_cast %97 : vector<1x4x128xbf16> to vector<4x128xbf16>
    %cst_110 = arith.constant dense<0.000000e+00> : vector<92x128xf32>
    %99 = tpu.matmul %96, %98, %cst_110 {dimension_numbers = #tpu.dot_dimension_numbers<[1], [0], [0], [1], [0, 0, 1, 1], [], []>} : vector<92x4xbf16>, vector<4x128xbf16>, vector<92x128xf32> -> vector<92x128xf32>
    %100 = arith.addf %94, %99 : vector<92x128xf32>
    %c0_111 = arith.constant 0 : index
    %c0_112 = arith.constant 0 : index
    %c38 = arith.constant 38 : index
    %c0_113 = arith.constant 0 : index
    %101 = vector.load %arg1[%c0_111, %c0_112, %c38, %c0_113] : memref<1x4x144x4xbf16, #tpu.memory_space<vmem>>, vector<1x1x92x4xbf16>
    %102 = vector.shape_cast %101 : vector<1x1x92x4xbf16> to vector<92x4xbf16>
    %c16 = arith.constant 16 : index
    %c0_114 = arith.constant 0 : index
    %c0_115 = arith.constant 0 : index
    %103 = vector.load %arg2[%c16, %c0_114, %c0_115] : memref<27x4x128xbf16, #tpu.memory_space<vmem>>, vector<1x4x128xbf16>
    %104 = vector.shape_cast %103 : vector<1x4x128xbf16> to vector<4x128xbf16>
    %cst_116 = arith.constant dense<0.000000e+00> : vector<92x128xf32>
    %105 = tpu.matmul %102, %104, %cst_116 {dimension_numbers = #tpu.dot_dimension_numbers<[1], [0], [0], [1], [0, 0, 1, 1], [], []>} : vector<92x4xbf16>, vector<4x128xbf16>, vector<92x128xf32> -> vector<92x128xf32>
    %106 = arith.addf %100, %105 : vector<92x128xf32>
    %c0_117 = arith.constant 0 : index
    %c0_118 = arith.constant 0 : index
    %c39 = arith.constant 39 : index
    %c0_119 = arith.constant 0 : index
    %107 = vector.load %arg1[%c0_117, %c0_118, %c39, %c0_119] : memref<1x4x144x4xbf16, #tpu.memory_space<vmem>>, vector<1x1x92x4xbf16>
    %108 = vector.shape_cast %107 : vector<1x1x92x4xbf16> to vector<92x4xbf16>
    %c17 = arith.constant 17 : index
    %c0_120 = arith.constant 0 : index
    %c0_121 = arith.constant 0 : index
    %109 = vector.load %arg2[%c17, %c0_120, %c0_121] : memref<27x4x128xbf16, #tpu.memory_space<vmem>>, vector<1x4x128xbf16>
    %110 = vector.shape_cast %109 : vector<1x4x128xbf16> to vector<4x128xbf16>
    %cst_122 = arith.constant dense<0.000000e+00> : vector<92x128xf32>
    %111 = tpu.matmul %108, %110, %cst_122 {dimension_numbers = #tpu.dot_dimension_numbers<[1], [0], [0], [1], [0, 0, 1, 1], [], []>} : vector<92x4xbf16>, vector<4x128xbf16>, vector<92x128xf32> -> vector<92x128xf32>
    %112 = arith.addf %106, %111 : vector<92x128xf32>
    %c1_123 = arith.constant 1 : index
    %c0_124 = arith.constant 0 : index
    %c0_125 = arith.constant 0 : index
    %113 = vector.load %arg3[%c1_123, %c0_124, %c0_125] : memref<3x1x128xf32, #tpu.memory_space<vmem>>, vector<1x1x128xf32>
    %114 = vector.shape_cast %113 : vector<1x1x128xf32> to vector<1x128xf32>
    %115 = vector.broadcast %114 : vector<1x128xf32> to vector<92x128xf32>
    %116 = arith.addf %112, %115 : vector<92x128xf32>
    %cst_126 = arith.constant 0.000000e+00 : f32
    %117 = vector.broadcast %cst_126 : f32 to vector<92x128xf32>
    %118 = arith.maximumf %116, %117 : vector<92x128xf32>
    %119 = arith.truncf %118 : vector<92x128xf32> to vector<92x128xbf16>
    %c0_127 = arith.constant 0 : index
    %c0_128 = arith.constant 0 : index
    %c0_129 = arith.constant 0 : index
    %c0_130 = arith.constant 0 : index
    %120 = vector.load %arg1[%c0_127, %c0_128, %c0_129, %c0_130] : memref<1x4x144x4xbf16, #tpu.memory_space<vmem>>, vector<1x1x92x4xbf16>
    %121 = vector.shape_cast %120 : vector<1x1x92x4xbf16> to vector<92x4xbf16>
    %c18 = arith.constant 18 : index
    %c0_131 = arith.constant 0 : index
    %c0_132 = arith.constant 0 : index
    %122 = vector.load %arg2[%c18, %c0_131, %c0_132] : memref<27x4x128xbf16, #tpu.memory_space<vmem>>, vector<1x4x128xbf16>
    %123 = vector.shape_cast %122 : vector<1x4x128xbf16> to vector<4x128xbf16>
    %cst_133 = arith.constant dense<0.000000e+00> : vector<92x128xf32>
    %124 = tpu.matmul %121, %123, %cst_133 {dimension_numbers = #tpu.dot_dimension_numbers<[1], [0], [0], [1], [0, 0, 1, 1], [], []>} : vector<92x4xbf16>, vector<4x128xbf16>, vector<92x128xf32> -> vector<92x128xf32>
    %c0_134 = arith.constant 0 : index
    %c0_135 = arith.constant 0 : index
    %c2_136 = arith.constant 2 : index
    %c0_137 = arith.constant 0 : index
    %125 = vector.load %arg1[%c0_134, %c0_135, %c2_136, %c0_137] : memref<1x4x144x4xbf16, #tpu.memory_space<vmem>>, vector<1x1x92x4xbf16>
    %126 = vector.shape_cast %125 : vector<1x1x92x4xbf16> to vector<92x4xbf16>
    %c19 = arith.constant 19 : index
    %c0_138 = arith.constant 0 : index
    %c0_139 = arith.constant 0 : index
    %127 = vector.load %arg2[%c19, %c0_138, %c0_139] : memref<27x4x128xbf16, #tpu.memory_space<vmem>>, vector<1x4x128xbf16>
    %128 = vector.shape_cast %127 : vector<1x4x128xbf16> to vector<4x128xbf16>
    %cst_140 = arith.constant dense<0.000000e+00> : vector<92x128xf32>
    %129 = tpu.matmul %126, %128, %cst_140 {dimension_numbers = #tpu.dot_dimension_numbers<[1], [0], [0], [1], [0, 0, 1, 1], [], []>} : vector<92x4xbf16>, vector<4x128xbf16>, vector<92x128xf32> -> vector<92x128xf32>
    %130 = arith.addf %124, %129 : vector<92x128xf32>
    %c0_141 = arith.constant 0 : index
    %c0_142 = arith.constant 0 : index
    %c4_143 = arith.constant 4 : index
    %c0_144 = arith.constant 0 : index
    %131 = vector.load %arg1[%c0_141, %c0_142, %c4_143, %c0_144] : memref<1x4x144x4xbf16, #tpu.memory_space<vmem>>, vector<1x1x92x4xbf16>
    %132 = vector.shape_cast %131 : vector<1x1x92x4xbf16> to vector<92x4xbf16>
    %c20 = arith.constant 20 : index
    %c0_145 = arith.constant 0 : index
    %c0_146 = arith.constant 0 : index
    %133 = vector.load %arg2[%c20, %c0_145, %c0_146] : memref<27x4x128xbf16, #tpu.memory_space<vmem>>, vector<1x4x128xbf16>
    %134 = vector.shape_cast %133 : vector<1x4x128xbf16> to vector<4x128xbf16>
    %cst_147 = arith.constant dense<0.000000e+00> : vector<92x128xf32>
    %135 = tpu.matmul %132, %134, %cst_147 {dimension_numbers = #tpu.dot_dimension_numbers<[1], [0], [0], [1], [0, 0, 1, 1], [], []>} : vector<92x4xbf16>, vector<4x128xbf16>, vector<92x128xf32> -> vector<92x128xf32>
    %136 = arith.addf %130, %135 : vector<92x128xf32>
    %c0_148 = arith.constant 0 : index
    %c0_149 = arith.constant 0 : index
    %c24 = arith.constant 24 : index
    %c0_150 = arith.constant 0 : index
    %137 = vector.load %arg1[%c0_148, %c0_149, %c24, %c0_150] : memref<1x4x144x4xbf16, #tpu.memory_space<vmem>>, vector<1x1x92x4xbf16>
    %138 = vector.shape_cast %137 : vector<1x1x92x4xbf16> to vector<92x4xbf16>
    %c21 = arith.constant 21 : index
    %c0_151 = arith.constant 0 : index
    %c0_152 = arith.constant 0 : index
    %139 = vector.load %arg2[%c21, %c0_151, %c0_152] : memref<27x4x128xbf16, #tpu.memory_space<vmem>>, vector<1x4x128xbf16>
    %140 = vector.shape_cast %139 : vector<1x4x128xbf16> to vector<4x128xbf16>
    %cst_153 = arith.constant dense<0.000000e+00> : vector<92x128xf32>
    %141 = tpu.matmul %138, %140, %cst_153 {dimension_numbers = #tpu.dot_dimension_numbers<[1], [0], [0], [1], [0, 0, 1, 1], [], []>} : vector<92x4xbf16>, vector<4x128xbf16>, vector<92x128xf32> -> vector<92x128xf32>
    %142 = arith.addf %136, %141 : vector<92x128xf32>
    %c0_154 = arith.constant 0 : index
    %c0_155 = arith.constant 0 : index
    %c26_156 = arith.constant 26 : index
    %c0_157 = arith.constant 0 : index
    %143 = vector.load %arg1[%c0_154, %c0_155, %c26_156, %c0_157] : memref<1x4x144x4xbf16, #tpu.memory_space<vmem>>, vector<1x1x92x4xbf16>
    %144 = vector.shape_cast %143 : vector<1x1x92x4xbf16> to vector<92x4xbf16>
    %c22 = arith.constant 22 : index
    %c0_158 = arith.constant 0 : index
    %c0_159 = arith.constant 0 : index
    %145 = vector.load %arg2[%c22, %c0_158, %c0_159] : memref<27x4x128xbf16, #tpu.memory_space<vmem>>, vector<1x4x128xbf16>
    %146 = vector.shape_cast %145 : vector<1x4x128xbf16> to vector<4x128xbf16>
    %cst_160 = arith.constant dense<0.000000e+00> : vector<92x128xf32>
    %147 = tpu.matmul %144, %146, %cst_160 {dimension_numbers = #tpu.dot_dimension_numbers<[1], [0], [0], [1], [0, 0, 1, 1], [], []>} : vector<92x4xbf16>, vector<4x128xbf16>, vector<92x128xf32> -> vector<92x128xf32>
    %148 = arith.addf %142, %147 : vector<92x128xf32>
    %c0_161 = arith.constant 0 : index
    %c0_162 = arith.constant 0 : index
    %c28 = arith.constant 28 : index
    %c0_163 = arith.constant 0 : index
    %149 = vector.load %arg1[%c0_161, %c0_162, %c28, %c0_163] : memref<1x4x144x4xbf16, #tpu.memory_space<vmem>>, vector<1x1x92x4xbf16>
    %150 = vector.shape_cast %149 : vector<1x1x92x4xbf16> to vector<92x4xbf16>
    %c23 = arith.constant 23 : index
    %c0_164 = arith.constant 0 : index
    %c0_165 = arith.constant 0 : index
    %151 = vector.load %arg2[%c23, %c0_164, %c0_165] : memref<27x4x128xbf16, #tpu.memory_space<vmem>>, vector<1x4x128xbf16>
    %152 = vector.shape_cast %151 : vector<1x4x128xbf16> to vector<4x128xbf16>
    %cst_166 = arith.constant dense<0.000000e+00> : vector<92x128xf32>
    %153 = tpu.matmul %150, %152, %cst_166 {dimension_numbers = #tpu.dot_dimension_numbers<[1], [0], [0], [1], [0, 0, 1, 1], [], []>} : vector<92x4xbf16>, vector<4x128xbf16>, vector<92x128xf32> -> vector<92x128xf32>
    %154 = arith.addf %148, %153 : vector<92x128xf32>
    %c0_167 = arith.constant 0 : index
    %c0_168 = arith.constant 0 : index
    %c48 = arith.constant 48 : index
    %c0_169 = arith.constant 0 : index
    %155 = vector.load %arg1[%c0_167, %c0_168, %c48, %c0_169] : memref<1x4x144x4xbf16, #tpu.memory_space<vmem>>, vector<1x1x92x4xbf16>
    %156 = vector.shape_cast %155 : vector<1x1x92x4xbf16> to vector<92x4xbf16>
    %c24_170 = arith.constant 24 : index
    %c0_171 = arith.constant 0 : index
    %c0_172 = arith.constant 0 : index
    %157 = vector.load %arg2[%c24_170, %c0_171, %c0_172] : memref<27x4x128xbf16, #tpu.memory_space<vmem>>, vector<1x4x128xbf16>
    %158 = vector.shape_cast %157 : vector<1x4x128xbf16> to vector<4x128xbf16>
    %cst_173 = arith.constant dense<0.000000e+00> : vector<92x128xf32>
    %159 = tpu.matmul %156, %158, %cst_173 {dimension_numbers = #tpu.dot_dimension_numbers<[1], [0], [0], [1], [0, 0, 1, 1], [], []>} : vector<92x4xbf16>, vector<4x128xbf16>, vector<92x128xf32> -> vector<92x128xf32>
    %160 = arith.addf %154, %159 : vector<92x128xf32>
    %c0_174 = arith.constant 0 : index
    %c0_175 = arith.constant 0 : index
    %c50 = arith.constant 50 : index
    %c0_176 = arith.constant 0 : index
    %161 = vector.load %arg1[%c0_174, %c0_175, %c50, %c0_176] : memref<1x4x144x4xbf16, #tpu.memory_space<vmem>>, vector<1x1x92x4xbf16>
    %162 = vector.shape_cast %161 : vector<1x1x92x4xbf16> to vector<92x4xbf16>
    %c25_177 = arith.constant 25 : index
    %c0_178 = arith.constant 0 : index
    %c0_179 = arith.constant 0 : index
    %163 = vector.load %arg2[%c25_177, %c0_178, %c0_179] : memref<27x4x128xbf16, #tpu.memory_space<vmem>>, vector<1x4x128xbf16>
    %164 = vector.shape_cast %163 : vector<1x4x128xbf16> to vector<4x128xbf16>
    %cst_180 = arith.constant dense<0.000000e+00> : vector<92x128xf32>
    %165 = tpu.matmul %162, %164, %cst_180 {dimension_numbers = #tpu.dot_dimension_numbers<[1], [0], [0], [1], [0, 0, 1, 1], [], []>} : vector<92x4xbf16>, vector<4x128xbf16>, vector<92x128xf32> -> vector<92x128xf32>
    %166 = arith.addf %160, %165 : vector<92x128xf32>
    %c0_181 = arith.constant 0 : index
    %c0_182 = arith.constant 0 : index
    %c52 = arith.constant 52 : index
    %c0_183 = arith.constant 0 : index
    %167 = vector.load %arg1[%c0_181, %c0_182, %c52, %c0_183] : memref<1x4x144x4xbf16, #tpu.memory_space<vmem>>, vector<1x1x92x4xbf16>
    %168 = vector.shape_cast %167 : vector<1x1x92x4xbf16> to vector<92x4xbf16>
    %c26_184 = arith.constant 26 : index
    %c0_185 = arith.constant 0 : index
    %c0_186 = arith.constant 0 : index
    %169 = vector.load %arg2[%c26_184, %c0_185, %c0_186] : memref<27x4x128xbf16, #tpu.memory_space<vmem>>, vector<1x4x128xbf16>
    %170 = vector.shape_cast %169 : vector<1x4x128xbf16> to vector<4x128xbf16>
    %cst_187 = arith.constant dense<0.000000e+00> : vector<92x128xf32>
    %171 = tpu.matmul %168, %170, %cst_187 {dimension_numbers = #tpu.dot_dimension_numbers<[1], [0], [0], [1], [0, 0, 1, 1], [], []>} : vector<92x4xbf16>, vector<4x128xbf16>, vector<92x128xf32> -> vector<92x128xf32>
    %172 = arith.addf %166, %171 : vector<92x128xf32>
    %c2_188 = arith.constant 2 : index
    %c0_189 = arith.constant 0 : index
    %c0_190 = arith.constant 0 : index
    %173 = vector.load %arg3[%c2_188, %c0_189, %c0_190] : memref<3x1x128xf32, #tpu.memory_space<vmem>>, vector<1x1x128xf32>
    %174 = vector.shape_cast %173 : vector<1x1x128xf32> to vector<1x128xf32>
    %175 = vector.broadcast %174 : vector<1x128xf32> to vector<92x128xf32>
    %176 = arith.addf %172, %175 : vector<92x128xf32>
    %cst_191 = arith.constant 0.000000e+00 : f32
    %177 = vector.broadcast %cst_191 : f32 to vector<92x128xf32>
    %178 = arith.maximumf %176, %177 : vector<92x128xf32>
    %179 = arith.truncf %178 : vector<92x128xf32> to vector<92x128xbf16>
    %180 = tpu.concatenate %59, %119, %179 in 1 : vector<92x128xbf16>, vector<92x128xbf16>, vector<92x128xbf16> -> vector<92x384xbf16>
    %c0_192 = arith.constant 0 : index
    %c0_193 = arith.constant 0 : index
    %181 = vector.load %arg4[%c0_192, %c0_193] : memref<384x8xbf16, #tpu.memory_space<vmem>>, vector<384x8xbf16>
    %cst_194 = arith.constant dense<0.000000e+00> : vector<92x8xf32>
    %182 = tpu.matmul %180, %181, %cst_194 {dimension_numbers = #tpu.dot_dimension_numbers<[1], [0], [0], [1], [0, 0, 1, 1], [], []>} : vector<92x384xbf16>, vector<384x8xbf16>, vector<92x8xf32> -> vector<92x8xf32>
    %c0_195 = arith.constant 0 : index
    %c0_196 = arith.constant 0 : index
    %c0_197 = arith.constant 0 : index
    %183 = vector.load %arg5[%c0_195, %c0_196, %c0_197] : memref<1x1x8xf32, #tpu.memory_space<vmem>>, vector<1x1x8xf32>
    %184 = vector.shape_cast %183 : vector<1x1x8xf32> to vector<1x8xf32>
    %185 = vector.broadcast %184 : vector<1x8xf32> to vector<92x8xf32>
    %186 = arith.addf %182, %185 : vector<92x8xf32>
    %cst_198 = arith.constant 0.000000e+00 : f32
    %187 = vector.broadcast %cst_198 : f32 to vector<92x8xf32>
    %188 = arith.maximumf %186, %187 : vector<92x8xf32>
    %c0_199 = arith.constant 0 : index
    %c0_200 = arith.constant 0 : index
    %c0_201 = arith.constant 0 : index
    %189 = vector.load %arg6[%c0_199, %c0_200, %c0_201] : memref<1x92x8xf32, #tpu.memory_space<vmem>>, vector<1x92x8xf32>
    %190 = vector.shape_cast %189 : vector<1x92x8xf32> to vector<92x8xf32>
    %191 = vector.shape_cast %188 : vector<92x8xf32> to vector<1x92x8xf32>
    tpu.vector_store %arg6[%c0_199, %c0_200, %c0_201], %191 {strides = array<i32>} : memref<1x92x8xf32, #tpu.memory_space<vmem>>, vector<1x92x8xf32>,
    return
  }
  func.func @transform_0(%arg0: i32) -> (i32, i32, i32, i32) {
    %c0_i32 = arith.constant 0 : i32
    %c0_i32_0 = arith.constant 0 : i32
    %c0_i32_1 = arith.constant 0 : i32
    %c0_i32_2 = arith.constant 0 : i32
    return %arg0, %c0_i32, %c0_i32_0, %c0_i32_1 : i32, i32, i32, i32
  }
  func.func @transform_1(%arg0: i32) -> (i32, i32, i32) {
    %c0_i32 = arith.constant 0 : i32
    %c0_i32_0 = arith.constant 0 : i32
    %c0_i32_1 = arith.constant 0 : i32
    %c0_i32_2 = arith.constant 0 : i32
    return %c0_i32, %c0_i32_0, %c0_i32_1 : i32, i32, i32
  }
  func.func @transform_2(%arg0: i32) -> (i32, i32, i32) {
    %c0_i32 = arith.constant 0 : i32
    %c0_i32_0 = arith.constant 0 : i32
    %c0_i32_1 = arith.constant 0 : i32
    %c0_i32_2 = arith.constant 0 : i32
    return %c0_i32, %c0_i32_0, %c0_i32_1 : i32, i32, i32
  }
  func.func @transform_3(%arg0: i32) -> (i32, i32) {
    %c0_i32 = arith.constant 0 : i32
    %c0_i32_0 = arith.constant 0 : i32
    %c0_i32_1 = arith.constant 0 : i32
    return %c0_i32, %c0_i32_0 : i32, i32
  }
  func.func @transform_4(%arg0: i32) -> (i32, i32, i32) {
    %c0_i32 = arith.constant 0 : i32
    %c0_i32_0 = arith.constant 0 : i32
    %c0_i32_1 = arith.constant 0 : i32
    return %arg0, %c0_i32, %c0_i32_0 : i32, i32, i32
  }
  func.func @transform_5(%arg0: i32) -> (i32, i32, i32) {
    %c0_i32 = arith.constant 0 : i32
    %c0_i32_0 = arith.constant 0 : i32
    %c0_i32_1 = arith.constant 0 : i32
    return %arg0, %c0_i32, %c0_i32_0 : i32, i32, i32
  }
}

</mosaic_0001>

<llo_original>
// kernel: tpu_custom_call.1
$region0: #{tpu_custom_call.1}
  #allocation0 [shape = 'u32[]', space=smem, size = 0x4, offset = 0x4, fixed_abs, tag = 'smem constant byte address 0x4 - core index']
  #allocation1 [shape = 'u32[144,128]{1,0:T(1,128)}', space=vmem, size = 0x12000, scoped, tag = 'internal scratch']
  %s0 = inlined_call_operand.vmem [shape: bf16[2,4,144,4], index: 0, kind: input, shape index: {}]
  %s1 = inlined_call_operand.vmem [shape: bf16[27,4,128], index: 1, kind: input, shape index: {}]
  %s2 = inlined_call_operand.vmem [shape: f32[3,1,128], index: 2, kind: input, shape index: {}]
  %s3 = inlined_call_operand.vmem [shape: bf16[384,8], index: 3, kind: input, shape index: {}]
  %s4 = inlined_call_operand.vmem [shape: f32[2,1,8], index: 4, kind: input, shape index: {}]
  %s5 = inlined_call_operand.vmem [shape: f32[2,92,8], index: 5, kind: output, shape index: {}]
  %s6 = sld [smem:[#allocation0]]
  $region53: #{tpu_custom_call.1} parent=0
    _
  %s8 = ssub.s32 1, %s6
  %s9 = scalar_select 0, %s8, %s6
  loop: start=0, step=1, limit=4
  $region2: #{tpu_custom_call.1} parent=0 // loop_pre_header
    _
  $region3: #{tpu_custom_call.1} parent=0 // loop_header
    %s11 = sphi 0, %s15
    %p12 = scmp.ge.s32.totalorder %s11, 4
    %s21 = sphi 0, %s23
    %s24 = sphi 0, %s21
    %s25 = sphi 0, %s24
    %s41 = sphi 0, %s25
    %s45 = sphi 0, %s45
    %s47 = sphi 0, %s45
    %s48 = sphi 0, %s47
    %s62 = sphi 0, %s48
    %s66 = sphi 0, %s66
    %s68 = sphi 0, %s66
    %s69 = sphi 0, %s68
    %s83 = sphi 0, %s69
    %s87 = sphi 0, %s87
    %s89 = sphi 0, %s87
    %s90 = sphi 0, %s89
    %s104 = sphi 0, %s90
    %s110 = sphi 0, %s112
    %s113 = sphi 0, %s110
    %s114 = sphi 0, %s113
    %s130 = sphi 0, %s114
    %s136 = sphi 0, %s138
    %s139 = sphi 0, %s136
    %s140 = sphi 0, %s139
    %s156 = sphi 0, %s140
  $region4: #{tpu_custom_call.1} parent=0 // loop_header_branch
    %14 = sbr.rel (%p12) target = $region8
  $region5: #{tpu_custom_call.1} parent=0 // loop_body
    %s16 = ssub.s32 %s11, 1
    %s17 = ssub.s32 %s11, 2
    %s18 = sadd.s32 %s11, 1
    %s19 = ssub.s32 %s11, %s18
    %p20 = scmp.eq.s32.totalorder %s19, 0
    %s22 = sadd.s32 %s21, 1
    %s23 = scalar_select %p20, %s21, %s22
    %p26 = pneg %p20
    %p27 = scmp.eq.s32.totalorder %s11, 1
    %p28 = por %p26, %p27
    %p29 = scmp.ne.s32.totalorder %s21, %s24
    %p30 = scmp.eq.s32.totalorder %s11, 0
    %p31 = por %p29, %p30
    %p32 = scmp.ne.s32.totalorder %s21, %s24
    %p33 = scmp.eq.s32.totalorder %s16, 1
    %p34 = por %p32, %p33
    %p35 = scmp.ne.s32.totalorder %s24, %s25
    %p36 = scmp.eq.s32.totalorder %s16, 0
    %p37 = por %p35, %p36
    %p38 = scmp.ne.s32.totalorder %s24, %s25
    %p39 = scmp.eq.s32.totalorder %s17, 1
    %p40 = por %p38, %p39
    %p42 = scmp.ne.s32.totalorder %s25, %s41
    %p43 = scmp.eq.s32.totalorder %s17, 0
    %p44 = por %p42, %p43
    %s46 = sadd.s32 %s45, 1
    %p49 = scmp.eq.s32.totalorder %s11, 1
    %p50 = scmp.ne.s32.totalorder %s45, %s47
    %p51 = scmp.eq.s32.totalorder %s11, 0
    %p52 = por %p50, %p51
    %p53 = scmp.ne.s32.totalorder %s45, %s47
    %p54 = scmp.eq.s32.totalorder %s16, 1
    %p55 = por %p53, %p54
    %p56 = scmp.ne.s32.totalorder %s47, %s48
    %p57 = scmp.eq.s32.totalorder %s16, 0
    %p58 = por %p56, %p57
    %p59 = scmp.ne.s32.totalorder %s47, %s48
    %p60 = scmp.eq.s32.totalorder %s17, 1
    %p61 = por %p59, %p60
    %p63 = scmp.ne.s32.totalorder %s48, %s62
    %p64 = scmp.eq.s32.totalorder %s17, 0
    %p65 = por %p63, %p64
    %s67 = sadd.s32 %s66, 1
    %p70 = scmp.eq.s32.totalorder %s11, 1
    %p71 = scmp.ne.s32.totalorder %s66, %s68
    %p72 = scmp.eq.s32.totalorder %s11, 0
    %p73 = por %p71, %p72
    %p74 = scmp.ne.s32.totalorder %s66, %s68
    %p75 = scmp.eq.s32.totalorder %s16, 1
    %p76 = por %p74, %p75
    %p77 = scmp.ne.s32.totalorder %s68, %s69
    %p78 = scmp.eq.s32.totalorder %s16, 0
    %p79 = por %p77, %p78
    %p80 = scmp.ne.s32.totalorder %s68, %s69
    %p81 = scmp.eq.s32.totalorder %s17, 1
    %p82 = por %p80, %p81
    %p84 = scmp.ne.s32.totalorder %s69, %s83
    %p85 = scmp.eq.s32.totalorder %s17, 0
    %p86 = por %p84, %p85
    %s88 = sadd.s32 %s87, 1
    %p91 = scmp.eq.s32.totalorder %s11, 1
    %p92 = scmp.ne.s32.totalorder %s87, %s89
    %p93 = scmp.eq.s32.totalorder %s11, 0
    %p94 = por %p92, %p93
    %p95 = scmp.ne.s32.totalorder %s87, %s89
    %p96 = scmp.eq.s32.totalorder %s16, 1
    %p97 = por %p95, %p96
    %p98 = scmp.ne.s32.totalorder %s89, %s90
    %p99 = scmp.eq.s32.totalorder %s16, 0
    %p100 = por %p98, %p99
    %p101 = scmp.ne.s32.totalorder %s89, %s90
    %p102 = scmp.eq.s32.totalorder %s17, 1
    %p103 = por %p101, %p102
    %p105 = scmp.ne.s32.totalorder %s90, %s104
    %p106 = scmp.eq.s32.totalorder %s17, 0
    %p107 = por %p105, %p106
    %s108 = ssub.s32 %s11, %s18
    %p109 = scmp.eq.s32.totalorder %s108, 0
    %s111 = sadd.s32 %s110, 1
    %s112 = scalar_select %p109, %s110, %s111
    %p115 = pneg %p109
    %p116 = scmp.eq.s32.totalorder %s11, 1
    %p117 = por %p115, %p116
    %p118 = scmp.ne.s32.totalorder %s110, %s113
    %p119 = scmp.eq.s32.totalorder %s11, 0
    %p120 = por %p118, %p119
    %p121 = scmp.ne.s32.totalorder %s110, %s113
    %p122 = scmp.eq.s32.totalorder %s16, 1
    %p123 = por %p121, %p122
    %p124 = scmp.ne.s32.totalorder %s113, %s114
    %p125 = scmp.eq.s32.totalorder %s16, 0
    %p126 = por %p124, %p125
    %p127 = scmp.ne.s32.totalorder %s113, %s114
    %p128 = scmp.eq.s32.totalorder %s17, 1
    %p129 = por %p127, %p128
    %p131 = scmp.ne.s32.totalorder %s114, %s130
    %p132 = scmp.eq.s32.totalorder %s17, 0
    %p133 = por %p131, %p132
    %s134 = ssub.s32 %s11, %s18
    %p135 = scmp.eq.s32.totalorder %s134, 0
    %s137 = sadd.s32 %s136, 1
    %s138 = scalar_select %p135, %s136, %s137
    %p141 = pneg %p135
    %p142 = scmp.eq.s32.totalorder %s11, 1
    %p143 = por %p141, %p142
    %p144 = scmp.ne.s32.totalorder %s136, %s139
    %p145 = scmp.eq.s32.totalorder %s11, 0
    %p146 = por %p144, %p145
    %p147 = scmp.ne.s32.totalorder %s136, %s139
    %p148 = scmp.eq.s32.totalorder %s16, 1
    %p149 = por %p147, %p148
    %p150 = scmp.ne.s32.totalorder %s139, %s140
    %p151 = scmp.eq.s32.totalorder %s16, 0
    %p152 = por %p150, %p151
    %p153 = scmp.ne.s32.totalorder %s139, %s140
    %p154 = scmp.eq.s32.totalorder %s17, 1
    %p155 = por %p153, %p154
    %p157 = scmp.ne.s32.totalorder %s140, %s156
    %p158 = scmp.eq.s32.totalorder %s17, 0
    %p159 = por %p157, %p158
    %p160 = scmp.le.s32.totalorder 1, %s11
    %p161 = scmp.lt.s32.totalorder %s11, 3
    %p162 = pnand %p160, %p161
    %p163 = pneg %p162
    // Predicated region
    $region9: #{tpu_custom_call.1} parent=5 // pred_check
      _
    $region10: #{tpu_custom_call.1} parent=5 // pred_check_branch
      %165 = sbr.rel (%p162) target = $region12
    $region11: #{tpu_custom_call.1} parent=5 // pred_region
      %s166 = ssub.s32 %s11, 1
      // Predicated region
      $region13: #{tpu_custom_call.1} parent=11 // pred_check
        %p167 = pneg %p58
      $region14: #{tpu_custom_call.1} parent=11 // pred_check_branch
        %169 = sbr.rel (%p167) target = $region16
      $region15: #{tpu_custom_call.1} parent=11 // pred_region
        _
      $region16: #{tpu_custom_call.1} parent=11 // pred_fallthru
        _
      // Predicated region
      $region17: #{tpu_custom_call.1} parent=11 // pred_check
        %p170 = pneg %p79
      $region18: #{tpu_custom_call.1} parent=11 // pred_check_branch
        %172 = sbr.rel (%p170) target = $region20
      $region19: #{tpu_custom_call.1} parent=11 // pred_region
        _
      $region20: #{tpu_custom_call.1} parent=11 // pred_fallthru
        _
      // Predicated region
      $region21: #{tpu_custom_call.1} parent=11 // pred_check
        %p173 = pneg %p100
      $region22: #{tpu_custom_call.1} parent=11 // pred_check_branch
        %175 = sbr.rel (%p173) target = $region24
      $region23: #{tpu_custom_call.1} parent=11 // pred_region
        _
      $region24: #{tpu_custom_call.1} parent=11 // pred_fallthru
        _
    $region12: #{tpu_custom_call.1} parent=5 // pred_fallthru
      _
    %p176 = scmp.lt.s32.totalorder %s11, 2
    // Predicated region
    $region25: #{tpu_custom_call.1} parent=5 // pred_check
      %p177 = pneg %p176
    $region26: #{tpu_custom_call.1} parent=5 // pred_check_branch
      %179 = sbr.rel (%p177) target = $region28
    $region27: #{tpu_custom_call.1} parent=5 // pred_region
      // Predicated region
      $region29: #{tpu_custom_call.1} parent=27 // pred_check
        %p180 = pneg %p31
      $region30: #{tpu_custom_call.1} parent=27 // pred_check_branch
        %182 = sbr.rel (%p180) target = $region32
      $region31: #{tpu_custom_call.1} parent=27 // pred_region
        %p183 = scmp.lt.s32.totalorder %s11, 1
        %s184 = scalar_select %p183, %s11, 1
        %s185 = smul.addr %s184, 72
        %s186 = smul.addr %s185, 4
        %s187 = scalar_lea.vmem %s0, %s186
      $region32: #{tpu_custom_call.1} parent=27 // pred_fallthru
        _
      // Predicated region
      $region33: #{tpu_custom_call.1} parent=27 // pred_check
        %p188 = pneg %p120
      $region34: #{tpu_custom_call.1} parent=27 // pred_check_branch
        %190 = sbr.rel (%p188) target = $region36
      $region35: #{tpu_custom_call.1} parent=27 // pred_region
        %p191 = scmp.lt.s32.totalorder %s11, 1
        %s192 = scalar_select %p191, %s11, 1
        %s193 = scalar_lea.vmem %s4, %s192
      $region36: #{tpu_custom_call.1} parent=27 // pred_fallthru
        _
    $region28: #{tpu_custom_call.1} parent=5 // pred_fallthru
      _
    %p194 = scmp.le.s32.totalorder 1, %s11
    %p195 = scmp.lt.s32.totalorder %s11, 3
    %p196 = pnand %p194, %p195
    %p197 = pneg %p196
    // Predicated region
    $region37: #{tpu_custom_call.1} parent=5 // pred_check
      _
    $region38: #{tpu_custom_call.1} parent=5 // pred_check_branch
      %199 = sbr.rel (%p196) target = $region40
    $region39: #{tpu_custom_call.1} parent=5 // pred_region
      %s200 = ssub.s32 %s11, 1
      %p201 = scmp.lt.s32.totalorder %s16, 1
      %s202 = scalar_select %p201, %s16, 1
      %s203 = smul.addr %s202, 72
      %s204 = smul.addr %s203, 4
      %s205 = scalar_lea.vmem %s0, %s204
      %p206 = pneg %p37
      %p207 = pneg %p34
      %p208 = pneg %p58
      %p209 = pneg %p55
      %p210 = pneg %p79
      %p211 = pneg %p76
      %p212 = pneg %p100
      %p213 = pneg %p97
      %p214 = scmp.lt.s32.totalorder %s16, 1
      %s215 = scalar_select %p214, %s16, 1
      %s216 = scalar_lea.vmem %s4, %s215
      %p217 = pneg %p126
      %p218 = pneg %p123
      %p219 = pneg %p152
      %p220 = pneg %p149
      %p221 = scmp.lt.s32.totalorder %s16, 1
      %s222 = scalar_select %p221, %s16, 1
      %s223 = smul.addr %s222, 12
      %s224 = smul.addr %s223, 8
      %s225 = scalar_lea.vmem %s5, %s224
      %p226 = scmp.lt.s32.totalorder %s16, 1
      %s227 = scalar_select %p226, %s16, 1
      %s228 = smul.addr %s227, 72
      %s229 = smul.addr %s228, 4
      %s230 = scalar_lea.vmem %s0, %s229
      %p231 = scmp.lt.s32.totalorder %s16, 1
      %s232 = scalar_select %p231, %s16, 1
      %s233 = scalar_lea.vmem %s4, %s232
      %p234 = scmp.lt.s32.totalorder %s16, 1
      %s235 = scalar_select %p234, %s16, 1
      %s236 = smul.addr %s235, 12
      %s237 = smul.addr %s236, 8
      %s238 = scalar_lea.vmem %s5, %s237
      %s240 = scalar_lea.vmem %s230, 216
      %v241 = vld [vmem:[%s240 + $0x4] sm:$0xc]
      %v242 = vld [vmem:[%s240 + $0x8] sm:$0xf]
      %v243 = vld [vmem:[%s240 + $0xc] sm:$0xf]
      %v244 = vld [vmem:[%s240 + $0x10] sm:$0xf]
      %v245 = vld [vmem:[%s240 + $0x14] sm:$0xf]
      %v246 = vld [vmem:[%s240 + $0x18] sm:$0xf]
      %v247 = vld [vmem:[%s240 + $0x1c] sm:$0xf]
      %v248 = vld [vmem:[%s240 + $0x20] sm:$0xf]
      %v249 = vld [vmem:[%s240 + $0x24] sm:$0xf]
      %v250 = vld [vmem:[%s240 + $0x28] sm:$0xf]
      %v251 = vld [vmem:[%s240 + $0x2c] sm:$0xf]
      %v252 = vld [vmem:[%s240 + $0x30] sm:$0xf]
      %v253 = vld [vmem:[%s240 + $0x34] sm:$0x1]
      %v254 = vld [vmem:[%s1] sm:$0x3]
      %s255 = scalar_lea.vmem %s230, 144
      %v256 = vld [vmem:[%s255 + $0x4] sm:$0x8]
      %v257 = vld [vmem:[%s255 + $0x8] sm:$0xf]
      %v258 = vld [vmem:[%s255 + $0xc] sm:$0xf]
      %v259 = vld [vmem:[%s255 + $0x10] sm:$0xf]
      %v260 = vld [vmem:[%s255 + $0x14] sm:$0xf]
      %v261 = vld [vmem:[%s255 + $0x18] sm:$0xf]
      %v262 = vld [vmem:[%s255 + $0x1c] sm:$0xf]
      %v263 = vld [vmem:[%s255 + $0x20] sm:$0xf]
      %v264 = vld [vmem:[%s255 + $0x24] sm:$0xf]
      %v265 = vld [vmem:[%s255 + $0x28] sm:$0xf]
      %v266 = vld [vmem:[%s255 + $0x2c] sm:$0xf]
      %v267 = vld [vmem:[%s255 + $0x30] sm:$0xf]
      %v268 = vld [vmem:[%s255 + $0x34] sm:$0x1]
      %s269 = scalar_lea.vmem %s1, 2
      %v270 = vld [vmem:[%s269] sm:$0x3]
      %v284 = vunpack.c.l.b16 %v256
      %v285 = vunpack.c.l.b16 %v257
      %v286 = vunpack.c.l.b16 %v258
      %v287 = vunpack.c.l.b16 %v259
      %v288 = vunpack.c.l.b16 %v260
      %v289 = vunpack.c.l.b16 %v261
      %v290 = vunpack.c.l.b16 %v262
      %v291 = vunpack.c.l.b16 %v263
      %v292 = vunpack.c.l.b16 %v264
      %v293 = vunpack.c.l.b16 %v265
      %v294 = vunpack.c.l.b16 %v266
      %v295 = vunpack.c.l.b16 %v267
      %v296 = vunpack.c.l.b16 %v268
      %v297 = vpack.c.b16 %v285, %v284
      %v298 = vpack.c.b16 %v287, %v286
      %v299 = vpack.c.b16 %v289, %v288
      %v300 = vpack.c.b16 %v291, %v290
      %v301 = vpack.c.b16 %v293, %v292
      %v302 = vpack.c.b16 %v295, %v294
      %v303 = vpack.c.b16 %v296, %v296
      %vm304 = vcmask 1044480
      %v305 = vrot.slane %v297, 3
      %v306 = vrot.slane %v298, 3
      %v307 = vsel %vm304, %v305, %v306
      %v308 = vrot.slane %v299, 3
      %v309 = vsel %vm304, %v306, %v308
      %v310 = vrot.slane %v300, 3
      %v311 = vsel %vm304, %v308, %v310
      %v312 = vrot.slane %v301, 3
      %v313 = vsel %vm304, %v310, %v312
      %v314 = vrot.slane %v302, 3
      %v315 = vsel %vm304, %v312, %v314
      %v316 = vrot.slane %v303, 3
      %v317 = vsel %vm304, %v314, %v316
      %vm318 = vcmask 31744
      %v320 = vsel %vm318, %v307, 0
      %v323 = vsel %vm318, %v309, 0
      %v326 = vsel %vm318, %v311, 0
      %v329 = vsel %vm318, %v313, 0
      %v332 = vsel %vm318, %v315, 0
      %v335 = vsel %vm318, %v317, 0
      %vm337 = vcmask 1041408
      %v339 = vsel %vm337, %v270, 0
      %341 = vmatprep.subr.bf16.mxu0 0
      %342 = vmatpush1.bf16.msra.mxu0 %v339
      %343 = vmatprep.subr.bf16.mxu0 0
      %344 = vmatpush1.bf16.msra.mxu0 0
      %345 = vmatprep.subr.bf16.mxu0 0
      %346 = vmatpush1.bf16.msra.mxu0 0
      %347 = vmatprep.subr.bf16.mxu0 0
      %348 = vmatpush1.bf16.msra.mxu0 0
      %349 = vmatprep.subr.bf16.mxu0 0
      %350 = vmatpush1.bf16.msra.mxu0 0
      %351 = vmatprep.subr.bf16.mxu0 0
      %352 = vmatpush1.bf16.msra.mxu0 0
      %353 = vmatprep.subr.bf16.mxu0 0
      %354 = vmatpush1.bf16.msra.mxu0 0
      %355 = vmatprep.subr.bf16.mxu0 0
      %356 = vmatpush1.bf16.msra.mxu0 0
      %357 = vmatprep.subr.bf16.mxu0 0
      %358 = vmatpush1.bf16.msra.mxu0 0
      %359 = vmatprep.subr.bf16.mxu0 0
      %360 = vmatpush1.bf16.msra.mxu0 0
      %361 = vmatprep.subr.bf16.mxu0 0
      %362 = vmatpush1.bf16.msra.mxu0 0
      %363 = vmatprep.subr.bf16.mxu0 0
      %364 = vmatpush1.bf16.msra.mxu0 0
      %365 = vmatprep.subr.bf16.mxu0 0
      %366 = vmatpush1.bf16.msra.mxu0 0
      %367 = vmatprep.subr.bf16.mxu0 0
      %368 = vmatpush1.bf16.msra.mxu0 0
      %369 = vmatprep.subr.bf16.mxu0 0
      %370 = vmatpush1.bf16.msra.mxu0 0
      %371 = vmatprep.subr.bf16.mxu0 0
      %372 = vmatpush1.bf16.msra.mxu0 0
      %373 = vmatprep.mubr.bf16.mxu0 0
      %374 = vmatmul.mubr.bf16.gmra.mrb[0].mxu0 %v320
      %v375 = vpop.f32.mrb[0].mxu0
      %v376 = vadd.f32 0.0, %v375
      %v377 = vpop.f32.mrb[0].mxu0
      %v378 = vpop.f32.mrb[0].mxu0
      %v379 = vadd.f32 0.0, %v378
      %v380 = vpop.f32.mrb[0].mxu0
      %381 = vmatprep.mubr.bf16.mxu0 0
      %382 = vmatmul.mubr.bf16.gmra.mrb[0].mxu0 %v323
      %v383 = vpop.f32.mrb[0].mxu0
      %v384 = vadd.f32 0.0, %v383
      %v385 = vpop.f32.mrb[0].mxu0
      %v386 = vpop.f32.mrb[0].mxu0
      %v387 = vadd.f32 0.0, %v386
      %v388 = vpop.f32.mrb[0].mxu0
      %389 = vmatprep.mubr.bf16.mxu0 0
      %390 = vmatmul.mubr.bf16.gmra.mrb[0].mxu0 %v326
      %v391 = vpop.f32.mrb[0].mxu0
      %v392 = vadd.f32 0.0, %v391
      %v393 = vpop.f32.mrb[0].mxu0
      %v394 = vpop.f32.mrb[0].mxu0
      %v395 = vadd.f32 0.0, %v394
      %v396 = vpop.f32.mrb[0].mxu0
      %397 = vmatprep.mubr.bf16.mxu0 0
      %398 = vmatmul.mubr.bf16.gmra.mrb[0].mxu0 %v329
      %v399 = vpop.f32.mrb[0].mxu0
      %v400 = vadd.f32 0.0, %v399
      %v401 = vpop.f32.mrb[0].mxu0
      %v402 = vpop.f32.mrb[0].mxu0
      %v403 = vadd.f32 0.0, %v402
      %v404 = vpop.f32.mrb[0].mxu0
      %405 = vmatprep.mubr.bf16.mxu0 0
      %406 = vmatmul.mubr.bf16.gmra.mrb[0].mxu0 %v332
      %v407 = vpop.f32.mrb[0].mxu0
      %v408 = vadd.f32 0.0, %v407
      %v409 = vpop.f32.mrb[0].mxu0
      %v410 = vpop.f32.mrb[0].mxu0
      %v411 = vadd.f32 0.0, %v410
      %v412 = vpop.f32.mrb[0].mxu0
      %413 = vmatprep.mubr.bf16.mxu0 0
      %414 = vmatmul.mubr.bf16.gmra.mrb[0].mxu0 %v335
      %v415 = vpop.f32.mrb[0].mxu0
      %v416 = vadd.f32 0.0, %v415
      %v417 = vpop.f32.mrb[0].mxu0
      %v418 = vpop.f32.mrb[0].mxu0
      %v419 = vadd.f32 0.0, %v418
      %v420 = vpop.f32.mrb[0].mxu0
      %421 = vdwg.mxu0
      %v435 = vunpack.c.l.b16 %v241
      %v436 = vunpack.c.l.b16 %v242
      %v437 = vunpack.c.l.b16 %v243
      %v438 = vunpack.c.l.b16 %v244
      %v439 = vunpack.c.l.b16 %v245
      %v440 = vunpack.c.l.b16 %v246
      %v441 = vunpack.c.l.b16 %v247
      %v442 = vunpack.c.l.b16 %v248
      %v443 = vunpack.c.l.b16 %v249
      %v444 = vunpack.c.l.b16 %v250
      %v445 = vunpack.c.l.b16 %v251
      %v446 = vunpack.c.l.b16 %v252
      %v447 = vunpack.c.l.b16 %v253
      %v448 = vpack.c.b16 %v436, %v435
      %v449 = vpack.c.b16 %v438, %v437
      %v450 = vpack.c.b16 %v440, %v439
      %v451 = vpack.c.b16 %v442, %v441
      %v452 = vpack.c.b16 %v444, %v443
      %v453 = vpack.c.b16 %v446, %v445
      %v454 = vpack.c.b16 %v447, %v447
      %vm455 = vsmask.f32 5376
      %v457 = vshrl.u32 %v448, 16
      %v459 = vrot.slane %v457, 2
      %v460 = vshll.u32 %v448, 16
      %v462 = vrot.slane %v460, 3
      %v463 = vor.u32 %v459, %v462
      %v465 = vshrl.u32 %v449, 16
      %v467 = vrot.slane %v465, 2
      %v468 = vshll.u32 %v449, 16
      %v470 = vrot.slane %v468, 3
      %v471 = vor.u32 %v467, %v470
      %v472 = vsel %vm455, %v463, %v471
      %v474 = vshrl.u32 %v450, 16
      %v476 = vrot.slane %v474, 2
      %v477 = vshll.u32 %v450, 16
      %v479 = vrot.slane %v477, 3
      %v480 = vor.u32 %v476, %v479
      %v481 = vsel %vm455, %v471, %v480
      %v483 = vshrl.u32 %v451, 16
      %v485 = vrot.slane %v483, 2
      %v486 = vshll.u32 %v451, 16
      %v488 = vrot.slane %v486, 3
      %v489 = vor.u32 %v485, %v488
      %v490 = vsel %vm455, %v480, %v489
      %v492 = vshrl.u32 %v452, 16
      %v494 = vrot.slane %v492, 2
      %v495 = vshll.u32 %v452, 16
      %v497 = vrot.slane %v495, 3
      %v498 = vor.u32 %v494, %v497
      %v499 = vsel %vm455, %v489, %v498
      %v501 = vshrl.u32 %v453, 16
      %v503 = vrot.slane %v501, 2
      %v504 = vshll.u32 %v453, 16
      %v506 = vrot.slane %v504, 3
      %v507 = vor.u32 %v503, %v506
      %v508 = vsel %vm455, %v498, %v507
      %v510 = vshll.u32 %v454, 16
      %v512 = vrot.slane %v510, 3
      %v513 = vsel %vm455, %v507, %v512
      %v515 = vsel %vm318, %v472, 0
      %v518 = vsel %vm318, %v481, 0
      %v521 = vsel %vm318, %v490, 0
      %v524 = vsel %vm318, %v499, 0
      %v527 = vsel %vm318, %v508, 0
      %v530 = vsel %vm318, %v513, 0
      %v533 = vsel %vm337, %v254, 0
      %535 = vmatprep.subr.bf16.mxu0 0
      %536 = vmatpush1.bf16.msra.mxu0 %v533
      %537 = vmatprep.subr.bf16.mxu0 0
      %538 = vmatpush1.bf16.msra.mxu0 0
      %539 = vmatprep.subr.bf16.mxu0 0
      %540 = vmatpush1.bf16.msra.mxu0 0
      %541 = vmatprep.subr.bf16.mxu0 0
      %542 = vmatpush1.bf16.msra.mxu0 0
      %543 = vmatprep.subr.bf16.mxu0 0
      %544 = vmatpush1.bf16.msra.mxu0 0
      %545 = vmatprep.subr.bf16.mxu0 0
      %546 = vmatpush1.bf16.msra.mxu0 0
      %547 = vmatprep.subr.bf16.mxu0 0
      %548 = vmatpush1.bf16.msra.mxu0 0
      %549 = vmatprep.subr.bf16.mxu0 0
      %550 = vmatpush1.bf16.msra.mxu0 0
      %551 = vmatprep.subr.bf16.mxu0 0
      %552 = vmatpush1.bf16.msra.mxu0 0
      %553 = vmatprep.subr.bf16.mxu0 0
      %554 = vmatpush1.bf16.msra.mxu0 0
      %555 = vmatprep.subr.bf16.mxu0 0
      %556 = vmatpush1.bf16.msra.mxu0 0
      %557 = vmatprep.subr.bf16.mxu0 0
      %558 = vmatpush1.bf16.msra.mxu0 0
      %559 = vmatprep.subr.bf16.mxu0 0
      %560 = vmatpush1.bf16.msra.mxu0 0
      %561 = vmatprep.subr.bf16.mxu0 0
      %562 = vmatpush1.bf16.msra.mxu0 0
      %563 = vmatprep.subr.bf16.mxu0 0
      %564 = vmatpush1.bf16.msra.mxu0 0
      %565 = vmatprep.subr.bf16.mxu0 0
      %566 = vmatpush1.bf16.msra.mxu0 0
      %567 = vmatprep.mubr.bf16.mxu0 0
      %568 = vmatmul.mubr.bf16.gmra.mrb[0].mxu0 %v515
      %v569 = vpop.f32.mrb[0].mxu0
      %v570 = vadd.f32 %v376, %v569
      %v571 = vpop.f32.mrb[0].mxu0
      %v572 = vpop.f32.mrb[0].mxu0
      %v573 = vadd.f32 %v379, %v572
      %v574 = vpop.f32.mrb[0].mxu0
      %575 = vmatprep.mubr.bf16.mxu0 0
      %576 = vmatmul.mubr.bf16.gmra.mrb[0].mxu0 %v518
      %v577 = vpop.f32.mrb[0].mxu0
      %v578 = vadd.f32 %v384, %v577
      %v579 = vpop.f32.mrb[0].mxu0
      %v580 = vpop.f32.mrb[0].mxu0
      %v581 = vadd.f32 %v387, %v580
      %v582 = vpop.f32.mrb[0].mxu0
      %583 = vmatprep.mubr.bf16.mxu0 0
      %584 = vmatmul.mubr.bf16.gmra.mrb[0].mxu0 %v521
      %v585 = vpop.f32.mrb[0].mxu0
      %v586 = vadd.f32 %v392, %v585
      %v587 = vpop.f32.mrb[0].mxu0
      %v588 = vpop.f32.mrb[0].mxu0
      %v589 = vadd.f32 %v395, %v588
      %v590 = vpop.f32.mrb[0].mxu0
      %591 = vmatprep.mubr.bf16.mxu0 0
      %592 = vmatmul.mubr.bf16.gmra.mrb[0].mxu0 %v524
      %v593 = vpop.f32.mrb[0].mxu0
      %v594 = vadd.f32 %v400, %v593
      %v595 = vpop.f32.mrb[0].mxu0
      %v596 = vpop.f32.mrb[0].mxu0
      %v597 = vadd.f32 %v403, %v596
      %v598 = vpop.f32.mrb[0].mxu0
      %599 = vmatprep.mubr.bf16.mxu0 0
      %600 = vmatmul.mubr.bf16.gmra.mrb[0].mxu0 %v527
      %v601 = vpop.f32.mrb[0].mxu0
      %v602 = vadd.f32 %v408, %v601
      %v603 = vpop.f32.mrb[0].mxu0
      %v604 = vpop.f32.mrb[0].mxu0
      %v605 = vadd.f32 %v411, %v604
      %v606 = vpop.f32.mrb[0].mxu0
      %607 = vmatprep.mubr.bf16.mxu0 0
      %608 = vmatmul.mubr.bf16.gmra.mrb[0].mxu0 %v530
      %v609 = vpop.f32.mrb[0].mxu0
      %v610 = vadd.f32 %v416, %v609
      %v611 = vpop.f32.mrb[0].mxu0
      %v612 = vpop.f32.mrb[0].mxu0
      %v613 = vadd.f32 %v419, %v612
      %v614 = vpop.f32.mrb[0].mxu0
      %615 = vdwg.mxu0
      %v616 = vld [vmem:[%s240 + $0x4] sm:$0x8]
      %s617 = scalar_lea.vmem %s1, 4
      %v618 = vld [vmem:[%s617] sm:$0x3]
      %v620 = vunpack.c.l.b16 %v616
      %v621 = vpack.c.b16 %v436, %v620
      %v622 = vrot.slane %v621, 3
      %v623 = vrot.slane %v449, 3
      %v624 = vsel %vm304, %v622, %v623
      %v625 = vrot.slane %v450, 3
      %v626 = vsel %vm304, %v623, %v625
      %v627 = vrot.slane %v451, 3
      %v628 = vsel %vm304, %v625, %v627
      %v629 = vrot.slane %v452, 3
      %v630 = vsel %vm304, %v627, %v629
      %v631 = vrot.slane %v453, 3
      %v632 = vsel %vm304, %v629, %v631
      %v633 = vrot.slane %v454, 3
      %v634 = vsel %vm304, %v631, %v633
      %v636 = vsel %vm318, %v624, 0
      %v639 = vsel %vm318, %v626, 0
      %v642 = vsel %vm318, %v628, 0
      %v645 = vsel %vm318, %v630, 0
      %v648 = vsel %vm318, %v632, 0
      %v651 = vsel %vm318, %v634, 0
      %v654 = vsel %vm337, %v618, 0
      %656 = vmatprep.subr.bf16.mxu0 0
      %657 = vmatpush1.bf16.msra.mxu0 %v654
      %658 = vmatprep.subr.bf16.mxu0 0
      %659 = vmatpush1.bf16.msra.mxu0 0
      %660 = vmatprep.subr.bf16.mxu0 0
      %661 = vmatpush1.bf16.msra.mxu0 0
      %662 = vmatprep.subr.bf16.mxu0 0
      %663 = vmatpush1.bf16.msra.mxu0 0
      %664 = vmatprep.subr.bf16.mxu0 0
      %665 = vmatpush1.bf16.msra.mxu0 0
      %666 = vmatprep.subr.bf16.mxu0 0
      %667 = vmatpush1.bf16.msra.mxu0 0
      %668 = vmatprep.subr.bf16.mxu0 0
      %669 = vmatpush1.bf16.msra.mxu0 0
      %670 = vmatprep.subr.bf16.mxu0 0
      %671 = vmatpush1.bf16.msra.mxu0 0
      %672 = vmatprep.subr.bf16.mxu0 0
      %673 = vmatpush1.bf16.msra.mxu0 0
      %674 = vmatprep.subr.bf16.mxu0 0
      %675 = vmatpush1.bf16.msra.mxu0 0
      %676 = vmatprep.subr.bf16.mxu0 0
      %677 = vmatpush1.bf16.msra.mxu0 0
      %678 = vmatprep.subr.bf16.mxu0 0
      %679 = vmatpush1.bf16.msra.mxu0 0
      %680 = vmatprep.subr.bf16.mxu0 0
      %681 = vmatpush1.bf16.msra.mxu0 0
      %682 = vmatprep.subr.bf16.mxu0 0
      %683 = vmatpush1.bf16.msra.mxu0 0
      %684 = vmatprep.subr.bf16.mxu0 0
      %685 = vmatpush1.bf16.msra.mxu0 0
      %686 = vmatprep.subr.bf16.mxu0 0
      %687 = vmatpush1.bf16.msra.mxu0 0
      %688 = vmatprep.mubr.bf16.mxu0 0
      %689 = vmatmul.mubr.bf16.gmra.mrb[0].mxu0 %v636
      %v690 = vpop.f32.mrb[0].mxu0
      %v691 = vadd.f32 0.0, %v690
      %v692 = vpop.f32.mrb[0].mxu0
      %v693 = vpop.f32.mrb[0].mxu0
      %v694 = vadd.f32 0.0, %v693
      %v695 = vpop.f32.mrb[0].mxu0
      %696 = vmatprep.mubr.bf16.mxu0 0
      %697 = vmatmul.mubr.bf16.gmra.mrb[0].mxu0 %v639
      %v698 = vpop.f32.mrb[0].mxu0
      %v699 = vadd.f32 0.0, %v698
      %v700 = vpop.f32.mrb[0].mxu0
      %v701 = vpop.f32.mrb[0].mxu0
      %v702 = vadd.f32 0.0, %v701
      %v703 = vpop.f32.mrb[0].mxu0
      %704 = vmatprep.mubr.bf16.mxu0 0
      %705 = vmatmul.mubr.bf16.gmra.mrb[0].mxu0 %v642
      %v706 = vpop.f32.mrb[0].mxu0
      %v707 = vadd.f32 0.0, %v706
      %v708 = vpop.f32.mrb[0].mxu0
      %v709 = vpop.f32.mrb[0].mxu0
      %v710 = vadd.f32 0.0, %v709
      %v711 = vpop.f32.mrb[0].mxu0
      %712 = vmatprep.mubr.bf16.mxu0 0
      %713 = vmatmul.mubr.bf16.gmra.mrb[0].mxu0 %v645
      %v714 = vpop.f32.mrb[0].mxu0
      %v715 = vadd.f32 0.0, %v714
      %v716 = vpop.f32.mrb[0].mxu0
      %v717 = vpop.f32.mrb[0].mxu0
      %v718 = vadd.f32 0.0, %v717
      %v719 = vpop.f32.mrb[0].mxu0
      %720 = vmatprep.mubr.bf16.mxu0 0
      %721 = vmatmul.mubr.bf16.gmra.mrb[0].mxu0 %v648
      %v722 = vpop.f32.mrb[0].mxu0
      %v723 = vadd.f32 0.0, %v722
      %v724 = vpop.f32.mrb[0].mxu0
      %v725 = vpop.f32.mrb[0].mxu0
      %v726 = vadd.f32 0.0, %v725
      %v727 = vpop.f32.mrb[0].mxu0
      %728 = vmatprep.mubr.bf16.mxu0 0
      %729 = vmatmul.mubr.bf16.gmra.mrb[0].mxu0 %v651
      %v730 = vpop.f32.mrb[0].mxu0
      %v731 = vadd.f32 0.0, %v730
      %v732 = vpop.f32.mrb[0].mxu0
      %v733 = vpop.f32.mrb[0].mxu0
      %v734 = vadd.f32 0.0, %v733
      %v735 = vpop.f32.mrb[0].mxu0
      %736 = vdwg.mxu0
      %v737 = vadd.f32 %v570, %v691
      %v738 = vadd.f32 %v573, %v694
      %v739 = vadd.f32 %v578, %v699
      %v740 = vadd.f32 %v581, %v702
      %v741 = vadd.f32 %v586, %v707
      %v742 = vadd.f32 %v589, %v710
      %v743 = vadd.f32 %v594, %v715
      %v744 = vadd.f32 %v597, %v718
      %v745 = vadd.f32 %v602, %v723
      %v746 = vadd.f32 %v605, %v726
      %v747 = vadd.f32 %v610, %v731
      %v748 = vadd.f32 %v613, %v734
      %s749 = scalar_lea.vmem %s230, 72
      %v750 = vld [vmem:[%s749 + $0xc] sm:$0xf]
      %v751 = vld [vmem:[%s749 + $0x10] sm:$0xf]
      %v752 = vld [vmem:[%s749 + $0x14] sm:$0xf]
      %v753 = vld [vmem:[%s749 + $0x18] sm:$0xf]
      %v754 = vld [vmem:[%s749 + $0x1c] sm:$0xf]
      %v755 = vld [vmem:[%s749 + $0x20] sm:$0xf]
      %v756 = vld [vmem:[%s749 + $0x24] sm:$0xf]
      %v757 = vld [vmem:[%s749 + $0x28] sm:$0xf]
      %v758 = vld [vmem:[%s749 + $0x2c] sm:$0xf]
      %v759 = vld [vmem:[%s749 + $0x30] sm:$0xf]
      %v760 = vld [vmem:[%s749 + $0x34] sm:$0xf]
      %v761 = vld [vmem:[%s749 + $0x38] sm:$0x7]
      %s762 = scalar_lea.vmem %s1, 6
      %v763 = vld [vmem:[%s762] sm:$0x3]
      %v776 = vunpack.c.l.b16 %v750
      %v777 = vunpack.c.l.b16 %v751
      %v778 = vunpack.c.l.b16 %v752
      %v779 = vunpack.c.l.b16 %v753
      %v780 = vunpack.c.l.b16 %v754
      %v781 = vunpack.c.l.b16 %v755
      %v782 = vunpack.c.l.b16 %v756
      %v783 = vunpack.c.l.b16 %v757
      %v784 = vunpack.c.l.b16 %v758
      %v785 = vunpack.c.l.b16 %v759
      %v786 = vunpack.c.l.b16 %v760
      %v787 = vunpack.c.l.b16 %v761
      %v788 = vpack.c.b16 %v777, %v776
      %v789 = vpack.c.b16 %v779, %v778
      %v790 = vpack.c.b16 %v781, %v780
      %v791 = vpack.c.b16 %v783, %v782
      %v792 = vpack.c.b16 %v785, %v784
      %v793 = vpack.c.b16 %v787, %v786
      %vm794 = vsmask.f32 7424
      %v796 = vshrl.u32 %v788, 16
      %v798 = vshll.u32 %v788, 16
      %v800 = vrot.slane %v798, 1
      %v801 = vor.u32 %v796, %v800
      %v803 = vshll.u32 %v789, 16
      %v805 = vrot.slane %v803, 1
      %v806 = vsel %vm794, %v801, %v805
      %v807 = vshrl.u32 %v789, 16
      %v809 = vor.u32 %v807, %v805
      %v811 = vshll.u32 %v790, 16
      %v813 = vrot.slane %v811, 1
      %v814 = vsel %vm794, %v809, %v813
      %v815 = vshrl.u32 %v790, 16
      %v817 = vor.u32 %v815, %v813
      %v819 = vshll.u32 %v791, 16
      %v821 = vrot.slane %v819, 1
      %v822 = vsel %vm794, %v817, %v821
      %v823 = vshrl.u32 %v791, 16
      %v825 = vor.u32 %v823, %v821
      %v827 = vshll.u32 %v792, 16
      %v829 = vrot.slane %v827, 1
      %v830 = vsel %vm794, %v825, %v829
      %v831 = vshrl.u32 %v792, 16
      %v833 = vor.u32 %v831, %v829
      %v835 = vshll.u32 %v793, 16
      %v837 = vrot.slane %v835, 1
      %v838 = vsel %vm794, %v833, %v837
      %v839 = vshrl.u32 %v793, 16
      %v841 = vor.u32 %v839, %v837
      %v843 = vsel %vm318, %v806, 0
      %v846 = vsel %vm318, %v814, 0
      %v849 = vsel %vm318, %v822, 0
      %v852 = vsel %vm318, %v830, 0
      %v855 = vsel %vm318, %v838, 0
      %v858 = vsel %vm318, %v841, 0
      %v861 = vsel %vm337, %v763, 0
      %863 = vmatprep.subr.bf16.mxu0 0
      %864 = vmatpush1.bf16.msra.mxu0 %v861
      %865 = vmatprep.subr.bf16.mxu0 0
      %866 = vmatpush1.bf16.msra.mxu0 0
      %867 = vmatprep.subr.bf16.mxu0 0
      %868 = vmatpush1.bf16.msra.mxu0 0
      %869 = vmatprep.subr.bf16.mxu0 0
      %870 = vmatpush1.bf16.msra.mxu0 0
      %871 = vmatprep.subr.bf16.mxu0 0
      %872 = vmatpush1.bf16.msra.mxu0 0
      %873 = vmatprep.subr.bf16.mxu0 0
      %874 = vmatpush1.bf16.msra.mxu0 0
      %875 = vmatprep.subr.bf16.mxu0 0
      %876 = vmatpush1.bf16.msra.mxu0 0
      %877 = vmatprep.subr.bf16.mxu0 0
      %878 = vmatpush1.bf16.msra.mxu0 0
      %879 = vmatprep.subr.bf16.mxu0 0
      %880 = vmatpush1.bf16.msra.mxu0 0
      %881 = vmatprep.subr.bf16.mxu0 0
      %882 = vmatpush1.bf16.msra.mxu0 0
      %883 = vmatprep.subr.bf16.mxu0 0
      %884 = vmatpush1.bf16.msra.mxu0 0
      %885 = vmatprep.subr.bf16.mxu0 0
      %886 = vmatpush1.bf16.msra.mxu0 0
      %887 = vmatprep.subr.bf16.mxu0 0
      %888 = vmatpush1.bf16.msra.mxu0 0
      %889 = vmatprep.subr.bf16.mxu0 0
      %890 = vmatpush1.bf16.msra.mxu0 0
      %891 = vmatprep.subr.bf16.mxu0 0
      %892 = vmatpush1.bf16.msra.mxu0 0
      %893 = vmatprep.subr.bf16.mxu0 0
      %894 = vmatpush1.bf16.msra.mxu0 0
      %895 = vmatprep.mubr.bf16.mxu0 0
      %896 = vmatmul.mubr.bf16.gmra.mrb[0].mxu0 %v843
      %v897 = vpop.f32.mrb[0].mxu0
      %v898 = vadd.f32 0.0, %v897
      %v899 = vpop.f32.mrb[0].mxu0
      %v900 = vpop.f32.mrb[0].mxu0
      %v901 = vadd.f32 0.0, %v900
      %v902 = vpop.f32.mrb[0].mxu0
      %903 = vmatprep.mubr.bf16.mxu0 0
      %904 = vmatmul.mubr.bf16.gmra.mrb[0].mxu0 %v846
      %v905 = vpop.f32.mrb[0].mxu0
      %v906 = vadd.f32 0.0, %v905
      %v907 = vpop.f32.mrb[0].mxu0
      %v908 = vpop.f32.mrb[0].mxu0
      %v909 = vadd.f32 0.0, %v908
      %v910 = vpop.f32.mrb[0].mxu0
      %911 = vmatprep.mubr.bf16.mxu0 0
      %912 = vmatmul.mubr.bf16.gmra.mrb[0].mxu0 %v849
      %v913 = vpop.f32.mrb[0].mxu0
      %v914 = vadd.f32 0.0, %v913
      %v915 = vpop.f32.mrb[0].mxu0
      %v916 = vpop.f32.mrb[0].mxu0
      %v917 = vadd.f32 0.0, %v916
      %v918 = vpop.f32.mrb[0].mxu0
      %919 = vmatprep.mubr.bf16.mxu0 0
      %920 = vmatmul.mubr.bf16.gmra.mrb[0].mxu0 %v852
      %v921 = vpop.f32.mrb[0].mxu0
      %v922 = vadd.f32 0.0, %v921
      %v923 = vpop.f32.mrb[0].mxu0
      %v924 = vpop.f32.mrb[0].mxu0
      %v925 = vadd.f32 0.0, %v924
      %v926 = vpop.f32.mrb[0].mxu0
      %927 = vmatprep.mubr.bf16.mxu0 0
      %928 = vmatmul.mubr.bf16.gmra.mrb[0].mxu0 %v855
      %v929 = vpop.f32.mrb[0].mxu0
      %v930 = vadd.f32 0.0, %v929
      %v931 = vpop.f32.mrb[0].mxu0
      %v932 = vpop.f32.mrb[0].mxu0
      %v933 = vadd.f32 0.0, %v932
      %v934 = vpop.f32.mrb[0].mxu0
      %935 = vmatprep.mubr.bf16.mxu0 0
      %936 = vmatmul.mubr.bf16.gmra.mrb[0].mxu0 %v858
      %v937 = vpop.f32.mrb[0].mxu0
      %v938 = vadd.f32 0.0, %v937
      %v939 = vpop.f32.mrb[0].mxu0
      %v940 = vpop.f32.mrb[0].mxu0
      %v941 = vadd.f32 0.0, %v940
      %v942 = vpop.f32.mrb[0].mxu0
      %943 = vdwg.mxu0
      %v944 = vadd.f32 %v737, %v898
      %v945 = vadd.f32 %v738, %v901
      %v946 = vadd.f32 %v739, %v906
      %v947 = vadd.f32 %v740, %v909
      %v948 = vadd.f32 %v741, %v914
      %v949 = vadd.f32 %v742, %v917
      %v950 = vadd.f32 %v743, %v922
      %v951 = vadd.f32 %v744, %v925
      %v952 = vadd.f32 %v745, %v930
      %v953 = vadd.f32 %v746, %v933
      %v954 = vadd.f32 %v747, %v938
      %v955 = vadd.f32 %v748, %v941
      %v956 = vld [vmem:[%s230 + $0xc] sm:$0xe]
      %v957 = vld [vmem:[%s230 + $0x10] sm:$0xf]
      %v958 = vld [vmem:[%s230 + $0x14] sm:$0xf]
      %v959 = vld [vmem:[%s230 + $0x18] sm:$0xf]
      %v960 = vld [vmem:[%s230 + $0x1c] sm:$0xf]
      %v961 = vld [vmem:[%s230 + $0x20] sm:$0xf]
      %v962 = vld [vmem:[%s230 + $0x24] sm:$0xf]
      %v963 = vld [vmem:[%s230 + $0x28] sm:$0xf]
      %v964 = vld [vmem:[%s230 + $0x2c] sm:$0xf]
      %v965 = vld [vmem:[%s230 + $0x30] sm:$0xf]
      %v966 = vld [vmem:[%s230 + $0x34] sm:$0xf]
      %v967 = vld [vmem:[%s230 + $0x38] sm:$0x7]
      %s968 = scalar_lea.vmem %s1, 8
      %v969 = vld [vmem:[%s968] sm:$0x3]
      %v982 = vunpack.c.l.b16 %v956
      %v983 = vunpack.c.l.b16 %v957
      %v984 = vunpack.c.l.b16 %v958
      %v985 = vunpack.c.l.b16 %v959
      %v986 = vunpack.c.l.b16 %v960
      %v987 = vunpack.c.l.b16 %v961
      %v988 = vunpack.c.l.b16 %v962
      %v989 = vunpack.c.l.b16 %v963
      %v990 = vunpack.c.l.b16 %v964
      %v991 = vunpack.c.l.b16 %v965
      %v992 = vunpack.c.l.b16 %v966
      %v993 = vunpack.c.l.b16 %v967
      %v994 = vpack.c.b16 %v983, %v982
      %v995 = vpack.c.b16 %v985, %v984
      %v996 = vpack.c.b16 %v987, %v986
      %v997 = vpack.c.b16 %v989, %v988
      %v998 = vpack.c.b16 %v991, %v990
      %v999 = vpack.c.b16 %v993, %v992
      %vm1000 = vcmask 1046528
      %v1001 = vrot.slane %v994, 1
      %v1002 = vrot.slane %v995, 1
      %v1003 = vsel %vm1000, %v1001, %v1002
      %v1004 = vrot.slane %v996, 1
      %v1005 = vsel %vm1000, %v1002, %v1004
      %v1006 = vrot.slane %v997, 1
      %v1007 = vsel %vm1000, %v1004, %v1006
      %v1008 = vrot.slane %v998, 1
      %v1009 = vsel %vm1000, %v1006, %v1008
      %v1010 = vrot.slane %v999, 1
      %v1011 = vsel %vm1000, %v1008, %v1010
      %v1013 = vsel %vm318, %v1003, 0
      %v1016 = vsel %vm318, %v1005, 0
      %v1019 = vsel %vm318, %v1007, 0
      %v1022 = vsel %vm318, %v1009, 0
      %v1025 = vsel %vm318, %v1011, 0
      %v1028 = vsel %vm318, %v1010, 0
      %v1031 = vsel %vm337, %v969, 0
      %1033 = vmatprep.subr.bf16.mxu0 0
      %1034 = vmatpush1.bf16.msra.mxu0 %v1031
      %1035 = vmatprep.subr.bf16.mxu0 0
      %1036 = vmatpush1.bf16.msra.mxu0 0
      %1037 = vmatprep.subr.bf16.mxu0 0
      %1038 = vmatpush1.bf16.msra.mxu0 0
      %1039 = vmatprep.subr.bf16.mxu0 0
      %1040 = vmatpush1.bf16.msra.mxu0 0
      %1041 = vmatprep.subr.bf16.mxu0 0
      %1042 = vmatpush1.bf16.msra.mxu0 0
      %1043 = vmatprep.subr.bf16.mxu0 0
      %1044 = vmatpush1.bf16.msra.mxu0 0
      %1045 = vmatprep.subr.bf16.mxu0 0
      %1046 = vmatpush1.bf16.msra.mxu0 0
      %1047 = vmatprep.subr.bf16.mxu0 0
      %1048 = vmatpush1.bf16.msra.mxu0 0
      %1049 = vmatprep.subr.bf16.mxu0 0
      %1050 = vmatpush1.bf16.msra.mxu0 0
      %1051 = vmatprep.subr.bf16.mxu0 0
      %1052 = vmatpush1.bf16.msra.mxu0 0
      %1053 = vmatprep.subr.bf16.mxu0 0
      %1054 = vmatpush1.bf16.msra.mxu0 0
      %1055 = vmatprep.subr.bf16.mxu0 0
      %1056 = vmatpush1.bf16.msra.mxu0 0
      %1057 = vmatprep.subr.bf16.mxu0 0
      %1058 = vmatpush1.bf16.msra.mxu0 0
      %1059 = vmatprep.subr.bf16.mxu0 0
      %1060 = vmatpush1.bf16.msra.mxu0 0
      %1061 = vmatprep.subr.bf16.mxu0 0
      %1062 = vmatpush1.bf16.msra.mxu0 0
      %1063 = vmatprep.subr.bf16.mxu0 0
      %1064 = vmatpush1.bf16.msra.mxu0 0
      %1065 = vmatprep.mubr.bf16.mxu0 0
      %1066 = vmatmul.mubr.bf16.gmra.mrb[0].mxu0 %v1013
      %v1067 = vpop.f32.mrb[0].mxu0
      %v1068 = vadd.f32 0.0, %v1067
      %v1069 = vpop.f32.mrb[0].mxu0
      %v1070 = vpop.f32.mrb[0].mxu0
      %v1071 = vadd.f32 0.0, %v1070
      %v1072 = vpop.f32.mrb[0].mxu0
      %1073 = vmatprep.mubr.bf16.mxu0 0
      %1074 = vmatmul.mubr.bf16.gmra.mrb[0].mxu0 %v1016
      %v1075 = vpop.f32.mrb[0].mxu0
      %v1076 = vadd.f32 0.0, %v1075
      %v1077 = vpop.f32.mrb[0].mxu0
      %v1078 = vpop.f32.mrb[0].mxu0
      %v1079 = vadd.f32 0.0, %v1078
      %v1080 = vpop.f32.mrb[0].mxu0
      %1081 = vmatprep.mubr.bf16.mxu0 0
      %1082 = vmatmul.mubr.bf16.gmra.mrb[0].mxu0 %v1019
      %v1083 = vpop.f32.mrb[0].mxu0
      %v1084 = vadd.f32 0.0, %v1083
      %v1085 = vpop.f32.mrb[0].mxu0
      %v1086 = vpop.f32.mrb[0].mxu0
      %v1087 = vadd.f32 0.0, %v1086
      %v1088 = vpop.f32.mrb[0].mxu0
      %1089 = vmatprep.mubr.bf16.mxu0 0
      %1090 = vmatmul.mubr.bf16.gmra.mrb[0].mxu0 %v1022
      %v1091 = vpop.f32.mrb[0].mxu0
      %v1092 = vadd.f32 0.0, %v1091
      %v1093 = vpop.f32.mrb[0].mxu0
      %v1094 = vpop.f32.mrb[0].mxu0
      %v1095 = vadd.f32 0.0, %v1094
      %v1096 = vpop.f32.mrb[0].mxu0
      %1097 = vmatprep.mubr.bf16.mxu0 0
      %1098 = vmatmul.mubr.bf16.gmra.mrb[0].mxu0 %v1025
      %v1099 = vpop.f32.mrb[0].mxu0
      %v1100 = vadd.f32 0.0, %v1099
      %v1101 = vpop.f32.mrb[0].mxu0
      %v1102 = vpop.f32.mrb[0].mxu0
      %v1103 = vadd.f32 0.0, %v1102
      %v1104 = vpop.f32.mrb[0].mxu0
      %1105 = vmatprep.mubr.bf16.mxu0 0
      %1106 = vmatmul.mubr.bf16.gmra.mrb[0].mxu0 %v1028
      %v1107 = vpop.f32.mrb[0].mxu0
      %v1108 = vadd.f32 0.0, %v1107
      %v1109 = vpop.f32.mrb[0].mxu0
      %v1110 = vpop.f32.mrb[0].mxu0
      %v1111 = vadd.f32 0.0, %v1110
      %v1112 = vpop.f32.mrb[0].mxu0
      %1113 = vdwg.mxu0
      %v1114 = vadd.f32 %v944, %v1068
      %v1115 = vadd.f32 %v945, %v1071
      %v1116 = vadd.f32 %v946, %v1076
      %v1117 = vadd.f32 %v947, %v1079
      %v1118 = vadd.f32 %v948, %v1084
      %v1119 = vadd.f32 %v949, %v1087
      %v1120 = vadd.f32 %v950, %v1092
      %v1121 = vadd.f32 %v951, %v1095
      %v1122 = vadd.f32 %v952, %v1100
      %v1123 = vadd.f32 %v953, %v1103
      %v1124 = vadd.f32 %v954, %v1108
      %v1125 = vadd.f32 %v955, %v1111
      %v1126 = vld [vmem:[%s749 + $0xc] sm:$0xe]
      %s1127 = scalar_lea.vmem %s1, 10
      %v1128 = vld [vmem:[%s1127] sm:$0x3]
      %v1130 = vunpack.c.l.b16 %v1126
      %v1131 = vpack.c.b16 %v777, %v1130
      %v1132 = vrot.slane %v1131, 1
      %v1133 = vrot.slane %v789, 1
      %v1134 = vsel %vm1000, %v1132, %v1133
      %v1135 = vrot.slane %v790, 1
      %v1136 = vsel %vm1000, %v1133, %v1135
      %v1137 = vrot.slane %v791, 1
      %v1138 = vsel %vm1000, %v1135, %v1137
      %v1139 = vrot.slane %v792, 1
      %v1140 = vsel %vm1000, %v1137, %v1139
      %v1141 = vrot.slane %v793, 1
      %v1142 = vsel %vm1000, %v1139, %v1141
      %v1144 = vsel %vm318, %v1134, 0
      %v1147 = vsel %vm318, %v1136, 0
      %v1150 = vsel %vm318, %v1138, 0
      %v1153 = vsel %vm318, %v1140, 0
      %v1156 = vsel %vm318, %v1142, 0
      %v1159 = vsel %vm318, %v1141, 0
      %v1162 = vsel %vm337, %v1128, 0
      %1164 = vmatprep.subr.bf16.mxu0 0
      %1165 = vmatpush1.bf16.msra.mxu0 %v1162
      %1166 = vmatprep.subr.bf16.mxu0 0
      %1167 = vmatpush1.bf16.msra.mxu0 0
      %1168 = vmatprep.subr.bf16.mxu0 0
      %1169 = vmatpush1.bf16.msra.mxu0 0
      %1170 = vmatprep.subr.bf16.mxu0 0
      %1171 = vmatpush1.bf16.msra.mxu0 0
      %1172 = vmatprep.subr.bf16.mxu0 0
      %1173 = vmatpush1.bf16.msra.mxu0 0
      %1174 = vmatprep.subr.bf16.mxu0 0
      %1175 = vmatpush1.bf16.msra.mxu0 0
      %1176 = vmatprep.subr.bf16.mxu0 0
      %1177 = vmatpush1.bf16.msra.mxu0 0
      %1178 = vmatprep.subr.bf16.mxu0 0
      %1179 = vmatpush1.bf16.msra.mxu0 0
      %1180 = vmatprep.subr.bf16.mxu0 0
      %1181 = vmatpush1.bf16.msra.mxu0 0
      %1182 = vmatprep.subr.bf16.mxu0 0
      %1183 = vmatpush1.bf16.msra.mxu0 0
      %1184 = vmatprep.subr.bf16.mxu0 0
      %1185 = vmatpush1.bf16.msra.mxu0 0
      %1186 = vmatprep.subr.bf16.mxu0 0
      %1187 = vmatpush1.bf16.msra.mxu0 0
      %1188 = vmatprep.subr.bf16.mxu0 0
      %1189 = vmatpush1.bf16.msra.mxu0 0
      %1190 = vmatprep.subr.bf16.mxu0 0
      %1191 = vmatpush1.bf16.msra.mxu0 0
      %1192 = vmatprep.subr.bf16.mxu0 0
      %1193 = vmatpush1.bf16.msra.mxu0 0
      %1194 = vmatprep.subr.bf16.mxu0 0
      %1195 = vmatpush1.bf16.msra.mxu0 0
      %1196 = vmatprep.mubr.bf16.mxu0 0
      %1197 = vmatmul.mubr.bf16.gmra.mrb[0].mxu0 %v1144
      %v1198 = vpop.f32.mrb[0].mxu0
      %v1199 = vadd.f32 0.0, %v1198
      %v1200 = vpop.f32.mrb[0].mxu0
      %v1201 = vpop.f32.mrb[0].mxu0
      %v1202 = vadd.f32 0.0, %v1201
      %v1203 = vpop.f32.mrb[0].mxu0
      %1204 = vmatprep.mubr.bf16.mxu0 0
      %1205 = vmatmul.mubr.bf16.gmra.mrb[0].mxu0 %v1147
      %v1206 = vpop.f32.mrb[0].mxu0
      %v1207 = vadd.f32 0.0, %v1206
      %v1208 = vpop.f32.mrb[0].mxu0
      %v1209 = vpop.f32.mrb[0].mxu0
      %v1210 = vadd.f32 0.0, %v1209
      %v1211 = vpop.f32.mrb[0].mxu0
      %1212 = vmatprep.mubr.bf16.mxu0 0
      %1213 = vmatmul.mubr.bf16.gmra.mrb[0].mxu0 %v1150
      %v1214 = vpop.f32.mrb[0].mxu0
      %v1215 = vadd.f32 0.0, %v1214
      %v1216 = vpop.f32.mrb[0].mxu0
      %v1217 = vpop.f32.mrb[0].mxu0
      %v1218 = vadd.f32 0.0, %v1217
      %v1219 = vpop.f32.mrb[0].mxu0
      %1220 = vmatprep.mubr.bf16.mxu0 0
      %1221 = vmatmul.mubr.bf16.gmra.mrb[0].mxu0 %v1153
      %v1222 = vpop.f32.mrb[0].mxu0
      %v1223 = vadd.f32 0.0, %v1222
      %v1224 = vpop.f32.mrb[0].mxu0
      %v1225 = vpop.f32.mrb[0].mxu0
      %v1226 = vadd.f32 0.0, %v1225
      %v1227 = vpop.f32.mrb[0].mxu0
      %1228 = vmatprep.mubr.bf16.mxu0 0
      %1229 = vmatmul.mubr.bf16.gmra.mrb[0].mxu0 %v1156
      %v1230 = vpop.f32.mrb[0].mxu0
      %v1231 = vadd.f32 0.0, %v1230
      %v1232 = vpop.f32.mrb[0].mxu0
      %v1233 = vpop.f32.mrb[0].mxu0
      %v1234 = vadd.f32 0.0, %v1233
      %v1235 = vpop.f32.mrb[0].mxu0
      %1236 = vmatprep.mubr.bf16.mxu0 0
      %1237 = vmatmul.mubr.bf16.gmra.mrb[0].mxu0 %v1159
      %v1238 = vpop.f32.mrb[0].mxu0
      %v1239 = vadd.f32 0.0, %v1238
      %v1240 = vpop.f32.mrb[0].mxu0
      %v1241 = vpop.f32.mrb[0].mxu0
      %v1242 = vadd.f32 0.0, %v1241
      %v1243 = vpop.f32.mrb[0].mxu0
      %1244 = vdwg.mxu0
      %v1245 = vadd.f32 %v1114, %v1199
      %v1246 = vadd.f32 %v1115, %v1202
      %v1247 = vadd.f32 %v1116, %v1207
      %v1248 = vadd.f32 %v1117, %v1210
      %v1249 = vadd.f32 %v1118, %v1215
      %v1250 = vadd.f32 %v1119, %v1218
      %v1251 = vadd.f32 %v1120, %v1223
      %v1252 = vadd.f32 %v1121, %v1226
      %v1253 = vadd.f32 %v1122, %v1231
      %v1254 = vadd.f32 %v1123, %v1234
      %v1255 = vadd.f32 %v1124, %v1239
      %v1256 = vadd.f32 %v1125, %v1242
      %v1257 = vld [vmem:[%s240 + $0xc] sm:$0xf]
      %v1258 = vld [vmem:[%s240 + $0x10] sm:$0xf]
      %v1259 = vld [vmem:[%s240 + $0x14] sm:$0xf]
      %v1260 = vld [vmem:[%s240 + $0x18] sm:$0xf]
      %v1261 = vld [vmem:[%s240 + $0x1c] sm:$0xf]
      %v1262 = vld [vmem:[%s240 + $0x20] sm:$0xf]
      %v1263 = vld [vmem:[%s240 + $0x24] sm:$0xf]
      %v1264 = vld [vmem:[%s240 + $0x28] sm:$0xf]
      %v1265 = vld [vmem:[%s240 + $0x2c] sm:$0xf]
      %v1266 = vld [vmem:[%s240 + $0x30] sm:$0xf]
      %v1267 = vld [vmem:[%s240 + $0x34] sm:$0xf]
      %v1268 = vld [vmem:[%s240 + $0x38] sm:$0x7]
      %s1269 = scalar_lea.vmem %s1, 12
      %v1270 = vld [vmem:[%s1269] sm:$0x3]
      %v1283 = vunpack.c.l.b16 %v1257
      %v1284 = vunpack.c.l.b16 %v1258
      %v1285 = vunpack.c.l.b16 %v1259
      %v1286 = vunpack.c.l.b16 %v1260
      %v1287 = vunpack.c.l.b16 %v1261
      %v1288 = vunpack.c.l.b16 %v1262
      %v1289 = vunpack.c.l.b16 %v1263
      %v1290 = vunpack.c.l.b16 %v1264
      %v1291 = vunpack.c.l.b16 %v1265
      %v1292 = vunpack.c.l.b16 %v1266
      %v1293 = vunpack.c.l.b16 %v1267
      %v1294 = vunpack.c.l.b16 %v1268
      %v1295 = vpack.c.b16 %v1284, %v1283
      %v1296 = vpack.c.b16 %v1286, %v1285
      %v1297 = vpack.c.b16 %v1288, %v1287
      %v1298 = vpack.c.b16 %v1290, %v1289
      %v1299 = vpack.c.b16 %v1292, %v1291
      %v1300 = vpack.c.b16 %v1294, %v1293
      %v1302 = vshrl.u32 %v1295, 16
      %v1304 = vshll.u32 %v1295, 16
      %v1306 = vrot.slane %v1304, 1
      %v1307 = vor.u32 %v1302, %v1306
      %v1309 = vshll.u32 %v1296, 16
      %v1311 = vrot.slane %v1309, 1
      %v1312 = vsel %vm794, %v1307, %v1311
      %v1313 = vshrl.u32 %v1296, 16
      %v1315 = vor.u32 %v1313, %v1311
      %v1317 = vshll.u32 %v1297, 16
      %v1319 = vrot.slane %v1317, 1
      %v1320 = vsel %vm794, %v1315, %v1319
      %v1321 = vshrl.u32 %v1297, 16
      %v1323 = vor.u32 %v1321, %v1319
      %v1325 = vshll.u32 %v1298, 16
      %v1327 = vrot.slane %v1325, 1
      %v1328 = vsel %vm794, %v1323, %v1327
      %v1329 = vshrl.u32 %v1298, 16
      %v1331 = vor.u32 %v1329, %v1327
      %v1333 = vshll.u32 %v1299, 16
      %v1335 = vrot.slane %v1333, 1
      %v1336 = vsel %vm794, %v1331, %v1335
      %v1337 = vshrl.u32 %v1299, 16
      %v1339 = vor.u32 %v1337, %v1335
      %v1341 = vshll.u32 %v1300, 16
      %v1343 = vrot.slane %v1341, 1
      %v1344 = vsel %vm794, %v1339, %v1343
      %v1345 = vshrl.u32 %v1300, 16
      %v1347 = vor.u32 %v1345, %v1343
      %v1349 = vsel %vm318, %v1312, 0
      %v1352 = vsel %vm318, %v1320, 0
      %v1355 = vsel %vm318, %v1328, 0
      %v1358 = vsel %vm318, %v1336, 0
      %v1361 = vsel %vm318, %v1344, 0
      %v1364 = vsel %vm318, %v1347, 0
      %v1367 = vsel %vm337, %v1270, 0
      %1369 = vmatprep.subr.bf16.mxu0 0
      %1370 = vmatpush1.bf16.msra.mxu0 %v1367
      %1371 = vmatprep.subr.bf16.mxu0 0
      %1372 = vmatpush1.bf16.msra.mxu0 0
      %1373 = vmatprep.subr.bf16.mxu0 0
      %1374 = vmatpush1.bf16.msra.mxu0 0
      %1375 = vmatprep.subr.bf16.mxu0 0
      %1376 = vmatpush1.bf16.msra.mxu0 0
      %1377 = vmatprep.subr.bf16.mxu0 0
      %1378 = vmatpush1.bf16.msra.mxu0 0
      %1379 = vmatprep.subr.bf16.mxu0 0
      %1380 = vmatpush1.bf16.msra.mxu0 0
      %1381 = vmatprep.subr.bf16.mxu0 0
      %1382 = vmatpush1.bf16.msra.mxu0 0
      %1383 = vmatprep.subr.bf16.mxu0 0
      %1384 = vmatpush1.bf16.msra.mxu0 0
      %1385 = vmatprep.subr.bf16.mxu0 0
      %1386 = vmatpush1.bf16.msra.mxu0 0
      %1387 = vmatprep.subr.bf16.mxu0 0
      %1388 = vmatpush1.bf16.msra.mxu0 0
      %1389 = vmatprep.subr.bf16.mxu0 0
      %1390 = vmatpush1.bf16.msra.mxu0 0
      %1391 = vmatprep.subr.bf16.mxu0 0
      %1392 = vmatpush1.bf16.msra.mxu0 0
      %1393 = vmatprep.subr.bf16.mxu0 0
      %1394 = vmatpush1.bf16.msra.mxu0 0
      %1395 = vmatprep.subr.bf16.mxu0 0
      %1396 = vmatpush1.bf16.msra.mxu0 0
      %1397 = vmatprep.subr.bf16.mxu0 0
      %1398 = vmatpush1.bf16.msra.mxu0 0
      %1399 = vmatprep.subr.bf16.mxu0 0
      %1400 = vmatpush1.bf16.msra.mxu0 0
      %1401 = vmatprep.mubr.bf16.mxu0 0
      %1402 = vmatmul.mubr.bf16.gmra.mrb[0].mxu0 %v1349
      %v1403 = vpop.f32.mrb[0].mxu0
      %v1404 = vadd.f32 0.0, %v1403
      %v1405 = vpop.f32.mrb[0].mxu0
      %v1406 = vpop.f32.mrb[0].mxu0
      %v1407 = vadd.f32 0.0, %v1406
      %v1408 = vpop.f32.mrb[0].mxu0
      %1409 = vmatprep.mubr.bf16.mxu0 0
      %1410 = vmatmul.mubr.bf16.gmra.mrb[0].mxu0 %v1352
      %v1411 = vpop.f32.mrb[0].mxu0
      %v1412 = vadd.f32 0.0, %v1411
      %v1413 = vpop.f32.mrb[0].mxu0
      %v1414 = vpop.f32.mrb[0].mxu0
      %v1415 = vadd.f32 0.0, %v1414
      %v1416 = vpop.f32.mrb[0].mxu0
      %1417 = vmatprep.mubr.bf16.mxu0 0
      %1418 = vmatmul.mubr.bf16.gmra.mrb[0].mxu0 %v1355
      %v1419 = vpop.f32.mrb[0].mxu0
      %v1420 = vadd.f32 0.0, %v1419
      %v1421 = vpop.f32.mrb[0].mxu0
      %v1422 = vpop.f32.mrb[0].mxu0
      %v1423 = vadd.f32 0.0, %v1422
      %v1424 = vpop.f32.mrb[0].mxu0
      %1425 = vmatprep.mubr.bf16.mxu0 0
      %1426 = vmatmul.mubr.bf16.gmra.mrb[0].mxu0 %v1358
      %v1427 = vpop.f32.mrb[0].mxu0
      %v1428 = vadd.f32 0.0, %v1427
      %v1429 = vpop.f32.mrb[0].mxu0
      %v1430 = vpop.f32.mrb[0].mxu0
      %v1431 = vadd.f32 0.0, %v1430
      %v1432 = vpop.f32.mrb[0].mxu0
      %1433 = vmatprep.mubr.bf16.mxu0 0
      %1434 = vmatmul.mubr.bf16.gmra.mrb[0].mxu0 %v1361
      %v1435 = vpop.f32.mrb[0].mxu0
      %v1436 = vadd.f32 0.0, %v1435
      %v1437 = vpop.f32.mrb[0].mxu0
      %v1438 = vpop.f32.mrb[0].mxu0
      %v1439 = vadd.f32 0.0, %v1438
      %v1440 = vpop.f32.mrb[0].mxu0
      %1441 = vmatprep.mubr.bf16.mxu0 0
      %1442 = vmatmul.mubr.bf16.gmra.mrb[0].mxu0 %v1364
      %v1443 = vpop.f32.mrb[0].mxu0
      %v1444 = vadd.f32 0.0, %v1443
      %v1445 = vpop.f32.mrb[0].mxu0
      %v1446 = vpop.f32.mrb[0].mxu0
      %v1447 = vadd.f32 0.0, %v1446
      %v1448 = vpop.f32.mrb[0].mxu0
      %1449 = vdwg.mxu0
      %v1450 = vadd.f32 %v1245, %v1404
      %v1451 = vadd.f32 %v1246, %v1407
      %v1452 = vadd.f32 %v1247, %v1412
      %v1453 = vadd.f32 %v1248, %v1415
      %v1454 = vadd.f32 %v1249, %v1420
      %v1455 = vadd.f32 %v1250, %v1423
      %v1456 = vadd.f32 %v1251, %v1428
      %v1457 = vadd.f32 %v1252, %v1431
      %v1458 = vadd.f32 %v1253, %v1436
      %v1459 = vadd.f32 %v1254, %v1439
      %v1460 = vadd.f32 %v1255, %v1444
      %v1461 = vadd.f32 %v1256, %v1447
      %v1462 = vld [vmem:[%s255 + $0xc] sm:$0xe]
      %v1463 = vld [vmem:[%s255 + $0x10] sm:$0xf]
      %v1464 = vld [vmem:[%s255 + $0x14] sm:$0xf]
      %v1465 = vld [vmem:[%s255 + $0x18] sm:$0xf]
      %v1466 = vld [vmem:[%s255 + $0x1c] sm:$0xf]
      %v1467 = vld [vmem:[%s255 + $0x20] sm:$0xf]
      %v1468 = vld [vmem:[%s255 + $0x24] sm:$0xf]
      %v1469 = vld [vmem:[%s255 + $0x28] sm:$0xf]
      %v1470 = vld [vmem:[%s255 + $0x2c] sm:$0xf]
      %v1471 = vld [vmem:[%s255 + $0x30] sm:$0xf]
      %v1472 = vld [vmem:[%s255 + $0x34] sm:$0xf]
      %v1473 = vld [vmem:[%s255 + $0x38] sm:$0x7]
      %s1474 = scalar_lea.vmem %s1, 14
      %v1475 = vld [vmem:[%s1474] sm:$0x3]
      %v1488 = vunpack.c.l.b16 %v1462
      %v1489 = vunpack.c.l.b16 %v1463
      %v1490 = vunpack.c.l.b16 %v1464
      %v1491 = vunpack.c.l.b16 %v1465
      %v1492 = vunpack.c.l.b16 %v1466
      %v1493 = vunpack.c.l.b16 %v1467
      %v1494 = vunpack.c.l.b16 %v1468
      %v1495 = vunpack.c.l.b16 %v1469
      %v1496 = vunpack.c.l.b16 %v1470
      %v1497 = vunpack.c.l.b16 %v1471
      %v1498 = vunpack.c.l.b16 %v1472
      %v1499 = vunpack.c.l.b16 %v1473
      %v1500 = vpack.c.b16 %v1489, %v1488
      %v1501 = vpack.c.b16 %v1491, %v1490
      %v1502 = vpack.c.b16 %v1493, %v1492
      %v1503 = vpack.c.b16 %v1495, %v1494
      %v1504 = vpack.c.b16 %v1497, %v1496
      %v1505 = vpack.c.b16 %v1499, %v1498
      %v1506 = vrot.slane %v1500, 1
      %v1507 = vrot.slane %v1501, 1
      %v1508 = vsel %vm1000, %v1506, %v1507
      %v1509 = vrot.slane %v1502, 1
      %v1510 = vsel %vm1000, %v1507, %v1509
      %v1511 = vrot.slane %v1503, 1
      %v1512 = vsel %vm1000, %v1509, %v1511
      %v1513 = vrot.slane %v1504, 1
      %v1514 = vsel %vm1000, %v1511, %v1513
      %v1515 = vrot.slane %v1505, 1
      %v1516 = vsel %vm1000, %v1513, %v1515
      %v1518 = vsel %vm318, %v1508, 0
      %v1521 = vsel %vm318, %v1510, 0
      %v1524 = vsel %vm318, %v1512, 0
      %v1527 = vsel %vm318, %v1514, 0
      %v1530 = vsel %vm318, %v1516, 0
      %v1533 = vsel %vm318, %v1515, 0
      %v1536 = vsel %vm337, %v1475, 0
      %1538 = vmatprep.subr.bf16.mxu0 0
      %1539 = vmatpush1.bf16.msra.mxu0 %v1536
      %1540 = vmatprep.subr.bf16.mxu0 0
      %1541 = vmatpush1.bf16.msra.mxu0 0
      %1542 = vmatprep.subr.bf16.mxu0 0
      %1543 = vmatpush1.bf16.msra.mxu0 0
      %1544 = vmatprep.subr.bf16.mxu0 0
      %1545 = vmatpush1.bf16.msra.mxu0 0
      %1546 = vmatprep.subr.bf16.mxu0 0
      %1547 = vmatpush1.bf16.msra.mxu0 0
      %1548 = vmatprep.subr.bf16.mxu0 0
      %1549 = vmatpush1.bf16.msra.mxu0 0
      %1550 = vmatprep.subr.bf16.mxu0 0
      %1551 = vmatpush1.bf16.msra.mxu0 0
      %1552 = vmatprep.subr.bf16.mxu0 0
      %1553 = vmatpush1.bf16.msra.mxu0 0
      %1554 = vmatprep.subr.bf16.mxu0 0
      %1555 = vmatpush1.bf16.msra.mxu0 0
      %1556 = vmatprep.subr.bf16.mxu0 0
      %1557 = vmatpush1.bf16.msra.mxu0 0
      %1558 = vmatprep.subr.bf16.mxu0 0
      %1559 = vmatpush1.bf16.msra.mxu0 0
      %1560 = vmatprep.subr.bf16.mxu0 0
      %1561 = vmatpush1.bf16.msra.mxu0 0
      %1562 = vmatprep.subr.bf16.mxu0 0
      %1563 = vmatpush1.bf16.msra.mxu0 0
      %1564 = vmatprep.subr.bf16.mxu0 0
      %1565 = vmatpush1.bf16.msra.mxu0 0
      %1566 = vmatprep.subr.bf16.mxu0 0
      %1567 = vmatpush1.bf16.msra.mxu0 0
      %1568 = vmatprep.subr.bf16.mxu0 0
      %1569 = vmatpush1.bf16.msra.mxu0 0
      %1570 = vmatprep.mubr.bf16.mxu0 0
      %1571 = vmatmul.mubr.bf16.gmra.mrb[0].mxu0 %v1518
      %v1572 = vpop.f32.mrb[0].mxu0
      %v1573 = vadd.f32 0.0, %v1572
      %v1574 = vpop.f32.mrb[0].mxu0
      %v1575 = vpop.f32.mrb[0].mxu0
      %v1576 = vadd.f32 0.0, %v1575
      %v1577 = vpop.f32.mrb[0].mxu0
      %1578 = vmatprep.mubr.bf16.mxu0 0
      %1579 = vmatmul.mubr.bf16.gmra.mrb[0].mxu0 %v1521
      %v1580 = vpop.f32.mrb[0].mxu0
      %v1581 = vadd.f32 0.0, %v1580
      %v1582 = vpop.f32.mrb[0].mxu0
      %v1583 = vpop.f32.mrb[0].mxu0
      %v1584 = vadd.f32 0.0, %v1583
      %v1585 = vpop.f32.mrb[0].mxu0
      %1586 = vmatprep.mubr.bf16.mxu0 0
      %1587 = vmatmul.mubr.bf16.gmra.mrb[0].mxu0 %v1524
      %v1588 = vpop.f32.mrb[0].mxu0
      %v1589 = vadd.f32 0.0, %v1588
      %v1590 = vpop.f32.mrb[0].mxu0
      %v1591 = vpop.f32.mrb[0].mxu0
      %v1592 = vadd.f32 0.0, %v1591
      %v1593 = vpop.f32.mrb[0].mxu0
      %1594 = vmatprep.mubr.bf16.mxu0 0
      %1595 = vmatmul.mubr.bf16.gmra.mrb[0].mxu0 %v1527
      %v1596 = vpop.f32.mrb[0].mxu0
      %v1597 = vadd.f32 0.0, %v1596
      %v1598 = vpop.f32.mrb[0].mxu0
      %v1599 = vpop.f32.mrb[0].mxu0
      %v1600 = vadd.f32 0.0, %v1599
      %v1601 = vpop.f32.mrb[0].mxu0
      %1602 = vmatprep.mubr.bf16.mxu0 0
      %1603 = vmatmul.mubr.bf16.gmra.mrb[0].mxu0 %v1530
      %v1604 = vpop.f32.mrb[0].mxu0
      %v1605 = vadd.f32 0.0, %v1604
      %v1606 = vpop.f32.mrb[0].mxu0
      %v1607 = vpop.f32.mrb[0].mxu0
      %v1608 = vadd.f32 0.0, %v1607
      %v1609 = vpop.f32.mrb[0].mxu0
      %1610 = vmatprep.mubr.bf16.mxu0 0
      %1611 = vmatmul.mubr.bf16.gmra.mrb[0].mxu0 %v1533
      %v1612 = vpop.f32.mrb[0].mxu0
      %v1613 = vadd.f32 0.0, %v1612
      %v1614 = vpop.f32.mrb[0].mxu0
      %v1615 = vpop.f32.mrb[0].mxu0
      %v1616 = vadd.f32 0.0, %v1615
      %v1617 = vpop.f32.mrb[0].mxu0
      %1618 = vdwg.mxu0
      %v1619 = vadd.f32 %v1450, %v1573
      %v1620 = vadd.f32 %v1451, %v1576
      %v1621 = vadd.f32 %v1452, %v1581
      %v1622 = vadd.f32 %v1453, %v1584
      %v1623 = vadd.f32 %v1454, %v1589
      %v1624 = vadd.f32 %v1455, %v1592
      %v1625 = vadd.f32 %v1456, %v1597
      %v1626 = vadd.f32 %v1457, %v1600
      %v1627 = vadd.f32 %v1458, %v1605
      %v1628 = vadd.f32 %v1459, %v1608
      %v1629 = vadd.f32 %v1460, %v1613
      %v1630 = vadd.f32 %v1461, %v1616
      %v1631 = vld [vmem:[%s240 + $0xc] sm:$0xe]
      %s1632 = scalar_lea.vmem %s1, 16
      %v1633 = vld [vmem:[%s1632] sm:$0x3]
      %v1635 = vunpack.c.l.b16 %v1631
      %v1636 = vpack.c.b16 %v1284, %v1635
      %v1637 = vrot.slane %v1636, 1
      %v1638 = vrot.slane %v1296, 1
      %v1639 = vsel %vm1000, %v1637, %v1638
      %v1640 = vrot.slane %v1297, 1
      %v1641 = vsel %vm1000, %v1638, %v1640
      %v1642 = vrot.slane %v1298, 1
      %v1643 = vsel %vm1000, %v1640, %v1642
      %v1644 = vrot.slane %v1299, 1
      %v1645 = vsel %vm1000, %v1642, %v1644
      %v1646 = vrot.slane %v1300, 1
      %v1647 = vsel %vm1000, %v1644, %v1646
      %v1649 = vsel %vm318, %v1639, 0
      %v1652 = vsel %vm318, %v1641, 0
      %v1655 = vsel %vm318, %v1643, 0
      %v1658 = vsel %vm318, %v1645, 0
      %v1661 = vsel %vm318, %v1647, 0
      %v1664 = vsel %vm318, %v1646, 0
      %v1667 = vsel %vm337, %v1633, 0
      %1669 = vmatprep.subr.bf16.mxu0 0
      %1670 = vmatpush1.bf16.msra.mxu0 %v1667
      %1671 = vmatprep.subr.bf16.mxu0 0
      %1672 = vmatpush1.bf16.msra.mxu0 0
      %1673 = vmatprep.subr.bf16.mxu0 0
      %1674 = vmatpush1.bf16.msra.mxu0 0
      %1675 = vmatprep.subr.bf16.mxu0 0
      %1676 = vmatpush1.bf16.msra.mxu0 0
      %1677 = vmatprep.subr.bf16.mxu0 0
      %1678 = vmatpush1.bf16.msra.mxu0 0
      %1679 = vmatprep.subr.bf16.mxu0 0
      %1680 = vmatpush1.bf16.msra.mxu0 0
      %1681 = vmatprep.subr.bf16.mxu0 0
      %1682 = vmatpush1.bf16.msra.mxu0 0
      %1683 = vmatprep.subr.bf16.mxu0 0
      %1684 = vmatpush1.bf16.msra.mxu0 0
      %1685 = vmatprep.subr.bf16.mxu0 0
      %1686 = vmatpush1.bf16.msra.mxu0 0
      %1687 = vmatprep.subr.bf16.mxu0 0
      %1688 = vmatpush1.bf16.msra.mxu0 0
      %1689 = vmatprep.subr.bf16.mxu0 0
      %1690 = vmatpush1.bf16.msra.mxu0 0
      %1691 = vmatprep.subr.bf16.mxu0 0
      %1692 = vmatpush1.bf16.msra.mxu0 0
      %1693 = vmatprep.subr.bf16.mxu0 0
      %1694 = vmatpush1.bf16.msra.mxu0 0
      %1695 = vmatprep.subr.bf16.mxu0 0
      %1696 = vmatpush1.bf16.msra.mxu0 0
      %1697 = vmatprep.subr.bf16.mxu0 0
      %1698 = vmatpush1.bf16.msra.mxu0 0
      %1699 = vmatprep.subr.bf16.mxu0 0
      %1700 = vmatpush1.bf16.msra.mxu0 0
      %1701 = vmatprep.mubr.bf16.mxu0 0
      %1702 = vmatmul.mubr.bf16.gmra.mrb[0].mxu0 %v1649
      %v1703 = vpop.f32.mrb[0].mxu0
      %v1704 = vadd.f32 0.0, %v1703
      %v1705 = vpop.f32.mrb[0].mxu0
      %v1706 = vpop.f32.mrb[0].mxu0
      %v1707 = vadd.f32 0.0, %v1706
      %v1708 = vpop.f32.mrb[0].mxu0
      %1709 = vmatprep.mubr.bf16.mxu0 0
      %1710 = vmatmul.mubr.bf16.gmra.mrb[0].mxu0 %v1652
      %v1711 = vpop.f32.mrb[0].mxu0
      %v1712 = vadd.f32 0.0, %v1711
      %v1713 = vpop.f32.mrb[0].mxu0
      %v1714 = vpop.f32.mrb[0].mxu0
      %v1715 = vadd.f32 0.0, %v1714
      %v1716 = vpop.f32.mrb[0].mxu0
      %1717 = vmatprep.mubr.bf16.mxu0 0
      %1718 = vmatmul.mubr.bf16.gmra.mrb[0].mxu0 %v1655
      %v1719 = vpop.f32.mrb[0].mxu0
      %v1720 = vadd.f32 0.0, %v1719
      %v1721 = vpop.f32.mrb[0].mxu0
      %v1722 = vpop.f32.mrb[0].mxu0
      %v1723 = vadd.f32 0.0, %v1722
      %v1724 = vpop.f32.mrb[0].mxu0
      %1725 = vmatprep.mubr.bf16.mxu0 0
      %1726 = vmatmul.mubr.bf16.gmra.mrb[0].mxu0 %v1658
      %v1727 = vpop.f32.mrb[0].mxu0
      %v1728 = vadd.f32 0.0, %v1727
      %v1729 = vpop.f32.mrb[0].mxu0
      %v1730 = vpop.f32.mrb[0].mxu0
      %v1731 = vadd.f32 0.0, %v1730
      %v1732 = vpop.f32.mrb[0].mxu0
      %1733 = vmatprep.mubr.bf16.mxu0 0
      %1734 = vmatmul.mubr.bf16.gmra.mrb[0].mxu0 %v1661
      %v1735 = vpop.f32.mrb[0].mxu0
      %v1736 = vadd.f32 0.0, %v1735
      %v1737 = vpop.f32.mrb[0].mxu0
      %v1738 = vpop.f32.mrb[0].mxu0
      %v1739 = vadd.f32 0.0, %v1738
      %v1740 = vpop.f32.mrb[0].mxu0
      %1741 = vmatprep.mubr.bf16.mxu0 0
      %1742 = vmatmul.mubr.bf16.gmra.mrb[0].mxu0 %v1664
      %v1743 = vpop.f32.mrb[0].mxu0
      %v1744 = vadd.f32 0.0, %v1743
      %v1745 = vpop.f32.mrb[0].mxu0
      %v1746 = vpop.f32.mrb[0].mxu0
      %v1747 = vadd.f32 0.0, %v1746
      %v1748 = vpop.f32.mrb[0].mxu0
      %1749 = vdwg.mxu0
      %v1750 = vadd.f32 %v1619, %v1704
      %v1751 = vadd.f32 %v1620, %v1707
      %v1752 = vadd.f32 %v1621, %v1712
      %v1753 = vadd.f32 %v1622, %v1715
      %v1754 = vadd.f32 %v1623, %v1720
      %v1755 = vadd.f32 %v1624, %v1723
      %v1756 = vadd.f32 %v1625, %v1728
      %v1757 = vadd.f32 %v1626, %v1731
      %v1758 = vadd.f32 %v1627, %v1736
      %v1759 = vadd.f32 %v1628, %v1739
      %v1760 = vadd.f32 %v1629, %v1744
      %v1761 = vadd.f32 %v1630, %v1747
      %v1762 = vld [vmem:[%s2] sm:$0x1]
      %v1764 = vlaneseq
      %v1765 = vshrl.u32 %v1764, 7
      %v1766 = vsub.s32 0, %v1765
      %v1767 = vrot.slane %v1762, %v1766
      %v1769 = vadd.f32 %v1750, %v1767
      %v1770 = vadd.f32 %v1751, %v1767
      %v1771 = vadd.f32 %v1752, %v1767
      %v1772 = vadd.f32 %v1753, %v1767
      %v1773 = vadd.f32 %v1754, %v1767
      %v1774 = vadd.f32 %v1755, %v1767
      %v1775 = vadd.f32 %v1756, %v1767
      %v1776 = vadd.f32 %v1757, %v1767
      %v1777 = vadd.f32 %v1758, %v1767
      %v1778 = vadd.f32 %v1759, %v1767
      %v1779 = vadd.f32 %v1760, %v1767
      %v1780 = vadd.f32 %v1761, %v1767
      %v1781 = vmax.f32 %v1769, 0.0
      %v1782 = vmax.f32 %v1770, 0.0
      %v1783 = vmax.f32 %v1771, 0.0
      %v1784 = vmax.f32 %v1772, 0.0
      %v1785 = vmax.f32 %v1773, 0.0
      %v1786 = vmax.f32 %v1774, 0.0
      %v1787 = vmax.f32 %v1775, 0.0
      %v1788 = vmax.f32 %v1776, 0.0
      %v1789 = vmax.f32 %v1777, 0.0
      %v1790 = vmax.f32 %v1778, 0.0
      %v1791 = vmax.f32 %v1779, 0.0
      %v1792 = vmax.f32 %v1780, 0.0
      %v1793 = vpack.c.bf16 %v1782, %v1781
      %v1794 = vpack.c.bf16 %v1784, %v1783
      %v1795 = vpack.c.bf16 %v1786, %v1785
      %v1796 = vpack.c.bf16 %v1788, %v1787
      %v1797 = vpack.c.bf16 %v1790, %v1789
      %v1798 = vpack.c.bf16 %v1792, %v1791
      %v1799 = vld [vmem:[%s230 + $0x4] sm:$0xc]
      %v1800 = vld [vmem:[%s230 + $0x8] sm:$0xf]
      %v1801 = vld [vmem:[%s230 + $0xc] sm:$0xf]
      %v1802 = vld [vmem:[%s230 + $0x10] sm:$0xf]
      %v1803 = vld [vmem:[%s230 + $0x14] sm:$0xf]
      %v1804 = vld [vmem:[%s230 + $0x18] sm:$0xf]
      %v1805 = vld [vmem:[%s230 + $0x1c] sm:$0xf]
      %v1806 = vld [vmem:[%s230 + $0x20] sm:$0xf]
      %v1807 = vld [vmem:[%s230 + $0x24] sm:$0xf]
      %v1808 = vld [vmem:[%s230 + $0x28] sm:$0xf]
      %v1809 = vld [vmem:[%s230 + $0x2c] sm:$0xf]
      %v1810 = vld [vmem:[%s230 + $0x30] sm:$0xf]
      %v1811 = vld [vmem:[%s230 + $0x34] sm:$0x1]
      %s1812 = scalar_lea.vmem %s1, 18
      %v1813 = vld [vmem:[%s1812] sm:$0x3]
      %v1814 = vld [vmem:[%s230 + $0x4] sm:$0x8]
      %s1815 = scalar_lea.vmem %s1, 20
      %v1816 = vld [vmem:[%s1815] sm:$0x3]
      %v1830 = vunpack.c.l.b16 %v1814
      %v1831 = vunpack.c.l.b16 %v1800
      %v1832 = vunpack.c.l.b16 %v1801
      %v1833 = vunpack.c.l.b16 %v1802
      %v1834 = vunpack.c.l.b16 %v1803
      %v1835 = vunpack.c.l.b16 %v1804
      %v1836 = vunpack.c.l.b16 %v1805
      %v1837 = vunpack.c.l.b16 %v1806
      %v1838 = vunpack.c.l.b16 %v1807
      %v1839 = vunpack.c.l.b16 %v1808
      %v1840 = vunpack.c.l.b16 %v1809
      %v1841 = vunpack.c.l.b16 %v1810
      %v1842 = vunpack.c.l.b16 %v1811
      %v1843 = vpack.c.b16 %v1831, %v1830
      %v1844 = vpack.c.b16 %v1833, %v1832
      %v1845 = vpack.c.b16 %v1835, %v1834
      %v1846 = vpack.c.b16 %v1837, %v1836
      %v1847 = vpack.c.b16 %v1839, %v1838
      %v1848 = vpack.c.b16 %v1841, %v1840
      %v1849 = vpack.c.b16 %v1842, %v1842
      %v1850 = vrot.slane %v1843, 3
      %v1851 = vrot.slane %v1844, 3
      %v1852 = vsel %vm304, %v1850, %v1851
      %v1853 = vrot.slane %v1845, 3
      %v1854 = vsel %vm304, %v1851, %v1853
      %v1855 = vrot.slane %v1846, 3
      %v1856 = vsel %vm304, %v1853, %v1855
      %v1857 = vrot.slane %v1847, 3
      %v1858 = vsel %vm304, %v1855, %v1857
      %v1859 = vrot.slane %v1848, 3
      %v1860 = vsel %vm304, %v1857, %v1859
      %v1861 = vrot.slane %v1849, 3
      %v1862 = vsel %vm304, %v1859, %v1861
      %v1864 = vsel %vm318, %v1852, 0
      %v1867 = vsel %vm318, %v1854, 0
      %v1870 = vsel %vm318, %v1856, 0
      %v1873 = vsel %vm318, %v1858, 0
      %v1876 = vsel %vm318, %v1860, 0
      %v1879 = vsel %vm318, %v1862, 0
      %v1882 = vsel %vm337, %v1816, 0
      %1884 = vmatprep.subr.bf16.mxu0 0
      %1885 = vmatpush1.bf16.msra.mxu0 %v1882
      %1886 = vmatprep.subr.bf16.mxu0 0
      %1887 = vmatpush1.bf16.msra.mxu0 0
      %1888 = vmatprep.subr.bf16.mxu0 0
      %1889 = vmatpush1.bf16.msra.mxu0 0
      %1890 = vmatprep.subr.bf16.mxu0 0
      %1891 = vmatpush1.bf16.msra.mxu0 0
      %1892 = vmatprep.subr.bf16.mxu0 0
      %1893 = vmatpush1.bf16.msra.mxu0 0
      %1894 = vmatprep.subr.bf16.mxu0 0
      %1895 = vmatpush1.bf16.msra.mxu0 0
      %1896 = vmatprep.subr.bf16.mxu0 0
      %1897 = vmatpush1.bf16.msra.mxu0 0
      %1898 = vmatprep.subr.bf16.mxu0 0
      %1899 = vmatpush1.bf16.msra.mxu0 0
      %1900 = vmatprep.subr.bf16.mxu0 0
      %1901 = vmatpush1.bf16.msra.mxu0 0
      %1902 = vmatprep.subr.bf16.mxu0 0
      %1903 = vmatpush1.bf16.msra.mxu0 0
      %1904 = vmatprep.subr.bf16.mxu0 0
      %1905 = vmatpush1.bf16.msra.mxu0 0
      %1906 = vmatprep.subr.bf16.mxu0 0
      %1907 = vmatpush1.bf16.msra.mxu0 0
      %1908 = vmatprep.subr.bf16.mxu0 0
      %1909 = vmatpush1.bf16.msra.mxu0 0
      %1910 = vmatprep.subr.bf16.mxu0 0
      %1911 = vmatpush1.bf16.msra.mxu0 0
      %1912 = vmatprep.subr.bf16.mxu0 0
      %1913 = vmatpush1.bf16.msra.mxu0 0
      %1914 = vmatprep.subr.bf16.mxu0 0
      %1915 = vmatpush1.bf16.msra.mxu0 0
      %1916 = vmatprep.mubr.bf16.mxu0 0
      %1917 = vmatmul.mubr.bf16.gmra.mrb[0].mxu0 %v1864
      %v1918 = vpop.f32.mrb[0].mxu0
      %v1919 = vadd.f32 0.0, %v1918
      %v1920 = vpop.f32.mrb[0].mxu0
      %v1921 = vpop.f32.mrb[0].mxu0
      %v1922 = vadd.f32 0.0, %v1921
      %v1923 = vpop.f32.mrb[0].mxu0
      %1924 = vmatprep.mubr.bf16.mxu0 0
      %1925 = vmatmul.mubr.bf16.gmra.mrb[0].mxu0 %v1867
      %v1926 = vpop.f32.mrb[0].mxu0
      %v1927 = vadd.f32 0.0, %v1926
      %v1928 = vpop.f32.mrb[0].mxu0
      %v1929 = vpop.f32.mrb[0].mxu0
      %v1930 = vadd.f32 0.0, %v1929
      %v1931 = vpop.f32.mrb[0].mxu0
      %1932 = vmatprep.mubr.bf16.mxu0 0
      %1933 = vmatmul.mubr.bf16.gmra.mrb[0].mxu0 %v1870
      %v1934 = vpop.f32.mrb[0].mxu0
      %v1935 = vadd.f32 0.0, %v1934
      %v1936 = vpop.f32.mrb[0].mxu0
      %v1937 = vpop.f32.mrb[0].mxu0
      %v1938 = vadd.f32 0.0, %v1937
      %v1939 = vpop.f32.mrb[0].mxu0
      %1940 = vmatprep.mubr.bf16.mxu0 0
      %1941 = vmatmul.mubr.bf16.gmra.mrb[0].mxu0 %v1873
      %v1942 = vpop.f32.mrb[0].mxu0
      %v1943 = vadd.f32 0.0, %v1942
      %v1944 = vpop.f32.mrb[0].mxu0
      %v1945 = vpop.f32.mrb[0].mxu0
      %v1946 = vadd.f32 0.0, %v1945
      %v1947 = vpop.f32.mrb[0].mxu0
      %1948 = vmatprep.mubr.bf16.mxu0 0
      %1949 = vmatmul.mubr.bf16.gmra.mrb[0].mxu0 %v1876
      %v1950 = vpop.f32.mrb[0].mxu0
      %v1951 = vadd.f32 0.0, %v1950
      %v1952 = vpop.f32.mrb[0].mxu0
      %v1953 = vpop.f32.mrb[0].mxu0
      %v1954 = vadd.f32 0.0, %v1953
      %v1955 = vpop.f32.mrb[0].mxu0
      %1956 = vmatprep.mubr.bf16.mxu0 0
      %1957 = vmatmul.mubr.bf16.gmra.mrb[0].mxu0 %v1879
      %v1958 = vpop.f32.mrb[0].mxu0
      %v1959 = vadd.f32 0.0, %v1958
      %v1960 = vpop.f32.mrb[0].mxu0
      %v1961 = vpop.f32.mrb[0].mxu0
      %v1962 = vadd.f32 0.0, %v1961
      %v1963 = vpop.f32.mrb[0].mxu0
      %1964 = vdwg.mxu0
      %v1966 = vunpack.c.l.b16 %v1799
      %v1967 = vpack.c.b16 %v1831, %v1966
      %v1969 = vshrl.u32 %v1967, 16
      %v1971 = vrot.slane %v1969, 2
      %v1972 = vshll.u32 %v1967, 16
      %v1974 = vrot.slane %v1972, 3
      %v1975 = vor.u32 %v1971, %v1974
      %v1977 = vshrl.u32 %v1844, 16
      %v1979 = vrot.slane %v1977, 2
      %v1980 = vshll.u32 %v1844, 16
      %v1982 = vrot.slane %v1980, 3
      %v1983 = vor.u32 %v1979, %v1982
      %v1984 = vsel %vm455, %v1975, %v1983
      %v1986 = vshrl.u32 %v1845, 16
      %v1988 = vrot.slane %v1986, 2
      %v1989 = vshll.u32 %v1845, 16
      %v1991 = vrot.slane %v1989, 3
      %v1992 = vor.u32 %v1988, %v1991
      %v1993 = vsel %vm455, %v1983, %v1992
      %v1995 = vshrl.u32 %v1846, 16
      %v1997 = vrot.slane %v1995, 2
      %v1998 = vshll.u32 %v1846, 16
      %v2000 = vrot.slane %v1998, 3
      %v2001 = vor.u32 %v1997, %v2000
      %v2002 = vsel %vm455, %v1992, %v2001
      %v2004 = vshrl.u32 %v1847, 16
      %v2006 = vrot.slane %v2004, 2
      %v2007 = vshll.u32 %v1847, 16
      %v2009 = vrot.slane %v2007, 3
      %v2010 = vor.u32 %v2006, %v2009
      %v2011 = vsel %vm455, %v2001, %v2010
      %v2013 = vshrl.u32 %v1848, 16
      %v2015 = vrot.slane %v2013, 2
      %v2016 = vshll.u32 %v1848, 16
      %v2018 = vrot.slane %v2016, 3
      %v2019 = vor.u32 %v2015, %v2018
      %v2020 = vsel %vm455, %v2010, %v2019
      %v2022 = vshll.u32 %v1849, 16
      %v2024 = vrot.slane %v2022, 3
      %v2025 = vsel %vm455, %v2019, %v2024
      %v2027 = vsel %vm318, %v1984, 0
      %v2030 = vsel %vm318, %v1993, 0
      %v2033 = vsel %vm318, %v2002, 0
      %v2036 = vsel %vm318, %v2011, 0
      %v2039 = vsel %vm318, %v2020, 0
      %v2042 = vsel %vm318, %v2025, 0
      %v2045 = vsel %vm337, %v1813, 0
      %2047 = vmatprep.subr.bf16.mxu0 0
      %2048 = vmatpush1.bf16.msra.mxu0 %v2045
      %2049 = vmatprep.subr.bf16.mxu0 0
      %2050 = vmatpush1.bf16.msra.mxu0 0
      %2051 = vmatprep.subr.bf16.mxu0 0
      %2052 = vmatpush1.bf16.msra.mxu0 0
      %2053 = vmatprep.subr.bf16.mxu0 0
      %2054 = vmatpush1.bf16.msra.mxu0 0
      %2055 = vmatprep.subr.bf16.mxu0 0
      %2056 = vmatpush1.bf16.msra.mxu0 0
      %2057 = vmatprep.subr.bf16.mxu0 0
      %2058 = vmatpush1.bf16.msra.mxu0 0
      %2059 = vmatprep.subr.bf16.mxu0 0
      %2060 = vmatpush1.bf16.msra.mxu0 0
      %2061 = vmatprep.subr.bf16.mxu0 0
      %2062 = vmatpush1.bf16.msra.mxu0 0
      %2063 = vmatprep.subr.bf16.mxu0 0
      %2064 = vmatpush1.bf16.msra.mxu0 0
      %2065 = vmatprep.subr.bf16.mxu0 0
      %2066 = vmatpush1.bf16.msra.mxu0 0
      %2067 = vmatprep.subr.bf16.mxu0 0
      %2068 = vmatpush1.bf16.msra.mxu0 0
      %2069 = vmatprep.subr.bf16.mxu0 0
      %2070 = vmatpush1.bf16.msra.mxu0 0
      %2071 = vmatprep.subr.bf16.mxu0 0
      %2072 = vmatpush1.bf16.msra.mxu0 0
      %2073 = vmatprep.subr.bf16.mxu0 0
      %2074 = vmatpush1.bf16.msra.mxu0 0
      %2075 = vmatprep.subr.bf16.mxu0 0
      %2076 = vmatpush1.bf16.msra.mxu0 0
      %2077 = vmatprep.subr.bf16.mxu0 0
      %2078 = vmatpush1.bf16.msra.mxu0 0
      %2079 = vmatprep.mubr.bf16.mxu0 0
      %2080 = vmatmul.mubr.bf16.gmra.mrb[0].mxu0 %v2027
      %v2081 = vpop.f32.mrb[0].mxu0
      %v2082 = vadd.f32 %v1919, %v2081
      %v2083 = vpop.f32.mrb[0].mxu0
      %v2084 = vpop.f32.mrb[0].mxu0
      %v2085 = vadd.f32 %v1922, %v2084
      %v2086 = vpop.f32.mrb[0].mxu0
      %2087 = vmatprep.mubr.bf16.mxu0 0
      %2088 = vmatmul.mubr.bf16.gmra.mrb[0].mxu0 %v2030
      %v2089 = vpop.f32.mrb[0].mxu0
      %v2090 = vadd.f32 %v1927, %v2089
      %v2091 = vpop.f32.mrb[0].mxu0
      %v2092 = vpop.f32.mrb[0].mxu0
      %v2093 = vadd.f32 %v1930, %v2092
      %v2094 = vpop.f32.mrb[0].mxu0
      %2095 = vmatprep.mubr.bf16.mxu0 0
      %2096 = vmatmul.mubr.bf16.gmra.mrb[0].mxu0 %v2033
      %v2097 = vpop.f32.mrb[0].mxu0
      %v2098 = vadd.f32 %v1935, %v2097
      %v2099 = vpop.f32.mrb[0].mxu0
      %v2100 = vpop.f32.mrb[0].mxu0
      %v2101 = vadd.f32 %v1938, %v2100
      %v2102 = vpop.f32.mrb[0].mxu0
      %2103 = vmatprep.mubr.bf16.mxu0 0
      %2104 = vmatmul.mubr.bf16.gmra.mrb[0].mxu0 %v2036
      %v2105 = vpop.f32.mrb[0].mxu0
      %v2106 = vadd.f32 %v1943, %v2105
      %v2107 = vpop.f32.mrb[0].mxu0
      %v2108 = vpop.f32.mrb[0].mxu0
      %v2109 = vadd.f32 %v1946, %v2108
      %v2110 = vpop.f32.mrb[0].mxu0
      %2111 = vmatprep.mubr.bf16.mxu0 0
      %2112 = vmatmul.mubr.bf16.gmra.mrb[0].mxu0 %v2039
      %v2113 = vpop.f32.mrb[0].mxu0
      %v2114 = vadd.f32 %v1951, %v2113
      %v2115 = vpop.f32.mrb[0].mxu0
      %v2116 = vpop.f32.mrb[0].mxu0
      %v2117 = vadd.f32 %v1954, %v2116
      %v2118 = vpop.f32.mrb[0].mxu0
      %2119 = vmatprep.mubr.bf16.mxu0 0
      %2120 = vmatmul.mubr.bf16.gmra.mrb[0].mxu0 %v2042
      %v2121 = vpop.f32.mrb[0].mxu0
      %v2122 = vadd.f32 %v1959, %v2121
      %v2123 = vpop.f32.mrb[0].mxu0
      %v2124 = vpop.f32.mrb[0].mxu0
      %v2125 = vadd.f32 %v1962, %v2124
      %v2126 = vpop.f32.mrb[0].mxu0
      %2127 = vdwg.mxu0
      %v2128 = vld [vmem:[%s230 + $0x34] sm:$0x3]
      %s2129 = scalar_lea.vmem %s1, 22
      %v2130 = vld [vmem:[%s2129] sm:$0x3]
      %v2132 = vunpack.c.l.b16 %v2128
      %v2133 = vpack.c.b16 %v2132, %v2132
      %vm2134 = vsmask.f32 4352
      %v2136 = vshrl.u32 %v1843, 16
      %v2138 = vrot.slane %v2136, 3
      %v2139 = vshll.u32 %v1843, 16
      %v2141 = vrot.slane %v2139, 4
      %v2142 = vor.u32 %v2138, %v2141
      %v2143 = vrot.slane %v1977, 3
      %v2144 = vrot.slane %v1980, 4
      %v2145 = vor.u32 %v2143, %v2144
      %v2146 = vsel %vm2134, %v2142, %v2145
      %v2147 = vrot.slane %v1986, 3
      %v2148 = vrot.slane %v1989, 4
      %v2149 = vor.u32 %v2147, %v2148
      %v2150 = vsel %vm2134, %v2145, %v2149
      %v2151 = vrot.slane %v1995, 3
      %v2152 = vrot.slane %v1998, 4
      %v2153 = vor.u32 %v2151, %v2152
      %v2154 = vsel %vm2134, %v2149, %v2153
      %v2155 = vrot.slane %v2004, 3
      %v2156 = vrot.slane %v2007, 4
      %v2157 = vor.u32 %v2155, %v2156
      %v2158 = vsel %vm2134, %v2153, %v2157
      %v2159 = vrot.slane %v2013, 3
      %v2160 = vrot.slane %v2016, 4
      %v2161 = vor.u32 %v2159, %v2160
      %v2162 = vsel %vm2134, %v2157, %v2161
      %v2164 = vshrl.u32 %v2133, 16
      %v2166 = vrot.slane %v2164, 3
      %v2167 = vshll.u32 %v2133, 16
      %v2169 = vrot.slane %v2167, 4
      %v2170 = vor.u32 %v2166, %v2169
      %v2171 = vsel %vm2134, %v2161, %v2170
      %v2173 = vsel %vm318, %v2146, 0
      %v2176 = vsel %vm318, %v2150, 0
      %v2179 = vsel %vm318, %v2154, 0
      %v2182 = vsel %vm318, %v2158, 0
      %v2185 = vsel %vm318, %v2162, 0
      %v2188 = vsel %vm318, %v2171, 0
      %v2191 = vsel %vm337, %v2130, 0
      %2193 = vmatprep.subr.bf16.mxu0 0
      %2194 = vmatpush1.bf16.msra.mxu0 %v2191
      %2195 = vmatprep.subr.bf16.mxu0 0
      %2196 = vmatpush1.bf16.msra.mxu0 0
      %2197 = vmatprep.subr.bf16.mxu0 0
      %2198 = vmatpush1.bf16.msra.mxu0 0
      %2199 = vmatprep.subr.bf16.mxu0 0
      %2200 = vmatpush1.bf16.msra.mxu0 0
      %2201 = vmatprep.subr.bf16.mxu0 0
      %2202 = vmatpush1.bf16.msra.mxu0 0
      %2203 = vmatprep.subr.bf16.mxu0 0
      %2204 = vmatpush1.bf16.msra.mxu0 0
      %2205 = vmatprep.subr.bf16.mxu0 0
      %2206 = vmatpush1.bf16.msra.mxu0 0
      %2207 = vmatprep.subr.bf16.mxu0 0
      %2208 = vmatpush1.bf16.msra.mxu0 0
      %2209 = vmatprep.subr.bf16.mxu0 0
      %2210 = vmatpush1.bf16.msra.mxu0 0
      %2211 = vmatprep.subr.bf16.mxu0 0
      %2212 = vmatpush1.bf16.msra.mxu0 0
      %2213 = vmatprep.subr.bf16.mxu0 0
      %2214 = vmatpush1.bf16.msra.mxu0 0
      %2215 = vmatprep.subr.bf16.mxu0 0
      %2216 = vmatpush1.bf16.msra.mxu0 0
      %2217 = vmatprep.subr.bf16.mxu0 0
      %2218 = vmatpush1.bf16.msra.mxu0 0
      %2219 = vmatprep.subr.bf16.mxu0 0
      %2220 = vmatpush1.bf16.msra.mxu0 0
      %2221 = vmatprep.subr.bf16.mxu0 0
      %2222 = vmatpush1.bf16.msra.mxu0 0
      %2223 = vmatprep.subr.bf16.mxu0 0
      %2224 = vmatpush1.bf16.msra.mxu0 0
      %2225 = vmatprep.mubr.bf16.mxu0 0
      %2226 = vmatmul.mubr.bf16.gmra.mrb[0].mxu0 %v2173
      %v2227 = vpop.f32.mrb[0].mxu0
      %v2228 = vadd.f32 0.0, %v2227
      %v2229 = vpop.f32.mrb[0].mxu0
      %v2230 = vpop.f32.mrb[0].mxu0
      %v2231 = vadd.f32 0.0, %v2230
      %v2232 = vpop.f32.mrb[0].mxu0
      %2233 = vmatprep.mubr.bf16.mxu0 0
      %2234 = vmatmul.mubr.bf16.gmra.mrb[0].mxu0 %v2176
      %v2235 = vpop.f32.mrb[0].mxu0
      %v2236 = vadd.f32 0.0, %v2235
      %v2237 = vpop.f32.mrb[0].mxu0
      %v2238 = vpop.f32.mrb[0].mxu0
      %v2239 = vadd.f32 0.0, %v2238
      %v2240 = vpop.f32.mrb[0].mxu0
      %2241 = vmatprep.mubr.bf16.mxu0 0
      %2242 = vmatmul.mubr.bf16.gmra.mrb[0].mxu0 %v2179
      %v2243 = vpop.f32.mrb[0].mxu0
      %v2244 = vadd.f32 0.0, %v2243
      %v2245 = vpop.f32.mrb[0].mxu0
      %v2246 = vpop.f32.mrb[0].mxu0
      %v2247 = vadd.f32 0.0, %v2246
      %v2248 = vpop.f32.mrb[0].mxu0
      %2249 = vmatprep.mubr.bf16.mxu0 0
      %2250 = vmatmul.mubr.bf16.gmra.mrb[0].mxu0 %v2182
      %v2251 = vpop.f32.mrb[0].mxu0
      %v2252 = vadd.f32 0.0, %v2251
      %v2253 = vpop.f32.mrb[0].mxu0
      %v2254 = vpop.f32.mrb[0].mxu0
      %v2255 = vadd.f32 0.0, %v2254
      %v2256 = vpop.f32.mrb[0].mxu0
      %2257 = vmatprep.mubr.bf16.mxu0 0
      %2258 = vmatmul.mubr.bf16.gmra.mrb[0].mxu0 %v2185
      %v2259 = vpop.f32.mrb[0].mxu0
      %v2260 = vadd.f32 0.0, %v2259
      %v2261 = vpop.f32.mrb[0].mxu0
      %v2262 = vpop.f32.mrb[0].mxu0
      %v2263 = vadd.f32 0.0, %v2262
      %v2264 = vpop.f32.mrb[0].mxu0
      %2265 = vmatprep.mubr.bf16.mxu0 0
      %2266 = vmatmul.mubr.bf16.gmra.mrb[0].mxu0 %v2188
      %v2267 = vpop.f32.mrb[0].mxu0
      %v2268 = vadd.f32 0.0, %v2267
      %v2269 = vpop.f32.mrb[0].mxu0
      %v2270 = vpop.f32.mrb[0].mxu0
      %v2271 = vadd.f32 0.0, %v2270
      %v2272 = vpop.f32.mrb[0].mxu0
      %2273 = vdwg.mxu0
      %v2274 = vadd.f32 %v2082, %v2228
      %v2275 = vadd.f32 %v2085, %v2231
      %v2276 = vadd.f32 %v2090, %v2236
      %v2277 = vadd.f32 %v2093, %v2239
      %v2278 = vadd.f32 %v2098, %v2244
      %v2279 = vadd.f32 %v2101, %v2247
      %v2280 = vadd.f32 %v2106, %v2252
      %v2281 = vadd.f32 %v2109, %v2255
      %v2282 = vadd.f32 %v2114, %v2260
      %v2283 = vadd.f32 %v2117, %v2263
      %v2284 = vadd.f32 %v2122, %v2268
      %v2285 = vadd.f32 %v2125, %v2271
      %v2286 = vld [vmem:[%s230 + $0xc] sm:$0xf]
      %s2287 = scalar_lea.vmem %s1, 24
      %v2288 = vld [vmem:[%s2287] sm:$0x3]
      %v2290 = vunpack.c.l.b16 %v2286
      %v2291 = vpack.c.b16 %v983, %v2290
      %v2293 = vshrl.u32 %v2291, 16
      %v2295 = vshll.u32 %v2291, 16
      %v2297 = vrot.slane %v2295, 1
      %v2298 = vor.u32 %v2293, %v2297
      %v2300 = vshll.u32 %v995, 16
      %v2302 = vrot.slane %v2300, 1
      %v2303 = vsel %vm794, %v2298, %v2302
      %v2304 = vshrl.u32 %v995, 16
      %v2306 = vor.u32 %v2304, %v2302
      %v2308 = vshll.u32 %v996, 16
      %v2310 = vrot.slane %v2308, 1
      %v2311 = vsel %vm794, %v2306, %v2310
      %v2312 = vshrl.u32 %v996, 16
      %v2314 = vor.u32 %v2312, %v2310
      %v2316 = vshll.u32 %v997, 16
      %v2318 = vrot.slane %v2316, 1
      %v2319 = vsel %vm794, %v2314, %v2318
      %v2320 = vshrl.u32 %v997, 16
      %v2322 = vor.u32 %v2320, %v2318
      %v2324 = vshll.u32 %v998, 16
      %v2326 = vrot.slane %v2324, 1
      %v2327 = vsel %vm794, %v2322, %v2326
      %v2328 = vshrl.u32 %v998, 16
      %v2330 = vor.u32 %v2328, %v2326
      %v2332 = vshll.u32 %v999, 16
      %v2334 = vrot.slane %v2332, 1
      %v2335 = vsel %vm794, %v2330, %v2334
      %v2336 = vshrl.u32 %v999, 16
      %v2338 = vor.u32 %v2336, %v2334
      %v2340 = vsel %vm318, %v2303, 0
      %v2343 = vsel %vm318, %v2311, 0
      %v2346 = vsel %vm318, %v2319, 0
      %v2349 = vsel %vm318, %v2327, 0
      %v2352 = vsel %vm318, %v2335, 0
      %v2355 = vsel %vm318, %v2338, 0
      %v2358 = vsel %vm337, %v2288, 0
      %2360 = vmatprep.subr.bf16.mxu0 0
      %2361 = vmatpush1.bf16.msra.mxu0 %v2358
      %2362 = vmatprep.subr.bf16.mxu0 0
      %2363 = vmatpush1.bf16.msra.mxu0 0
      %2364 = vmatprep.subr.bf16.mxu0 0
      %2365 = vmatpush1.bf16.msra.mxu0 0
      %2366 = vmatprep.subr.bf16.mxu0 0
      %2367 = vmatpush1.bf16.msra.mxu0 0
      %2368 = vmatprep.subr.bf16.mxu0 0
      %2369 = vmatpush1.bf16.msra.mxu0 0
      %2370 = vmatprep.subr.bf16.mxu0 0
      %2371 = vmatpush1.bf16.msra.mxu0 0
      %2372 = vmatprep.subr.bf16.mxu0 0
      %2373 = vmatpush1.bf16.msra.mxu0 0
      %2374 = vmatprep.subr.bf16.mxu0 0
      %2375 = vmatpush1.bf16.msra.mxu0 0
      %2376 = vmatprep.subr.bf16.mxu0 0
      %2377 = vmatpush1.bf16.msra.mxu0 0
      %2378 = vmatprep.subr.bf16.mxu0 0
      %2379 = vmatpush1.bf16.msra.mxu0 0
      %2380 = vmatprep.subr.bf16.mxu0 0
      %2381 = vmatpush1.bf16.msra.mxu0 0
      %2382 = vmatprep.subr.bf16.mxu0 0
      %2383 = vmatpush1.bf16.msra.mxu0 0
      %2384 = vmatprep.subr.bf16.mxu0 0
      %2385 = vmatpush1.bf16.msra.mxu0 0
      %2386 = vmatprep.subr.bf16.mxu0 0
      %2387 = vmatpush1.bf16.msra.mxu0 0
      %2388 = vmatprep.subr.bf16.mxu0 0
      %2389 = vmatpush1.bf16.msra.mxu0 0
      %2390 = vmatprep.subr.bf16.mxu0 0
      %2391 = vmatpush1.bf16.msra.mxu0 0
      %2392 = vmatprep.mubr.bf16.mxu0 0
      %2393 = vmatmul.mubr.bf16.gmra.mrb[0].mxu0 %v2340
      %v2394 = vpop.f32.mrb[0].mxu0
      %v2395 = vadd.f32 0.0, %v2394
      %v2396 = vpop.f32.mrb[0].mxu0
      %v2397 = vpop.f32.mrb[0].mxu0
      %v2398 = vadd.f32 0.0, %v2397
      %v2399 = vpop.f32.mrb[0].mxu0
      %2400 = vmatprep.mubr.bf16.mxu0 0
      %2401 = vmatmul.mubr.bf16.gmra.mrb[0].mxu0 %v2343
      %v2402 = vpop.f32.mrb[0].mxu0
      %v2403 = vadd.f32 0.0, %v2402
      %v2404 = vpop.f32.mrb[0].mxu0
      %v2405 = vpop.f32.mrb[0].mxu0
      %v2406 = vadd.f32 0.0, %v2405
      %v2407 = vpop.f32.mrb[0].mxu0
      %2408 = vmatprep.mubr.bf16.mxu0 0
      %2409 = vmatmul.mubr.bf16.gmra.mrb[0].mxu0 %v2346
      %v2410 = vpop.f32.mrb[0].mxu0
      %v2411 = vadd.f32 0.0, %v2410
      %v2412 = vpop.f32.mrb[0].mxu0
      %v2413 = vpop.f32.mrb[0].mxu0
      %v2414 = vadd.f32 0.0, %v2413
      %v2415 = vpop.f32.mrb[0].mxu0
      %2416 = vmatprep.mubr.bf16.mxu0 0
      %2417 = vmatmul.mubr.bf16.gmra.mrb[0].mxu0 %v2349
      %v2418 = vpop.f32.mrb[0].mxu0
      %v2419 = vadd.f32 0.0, %v2418
      %v2420 = vpop.f32.mrb[0].mxu0
      %v2421 = vpop.f32.mrb[0].mxu0
      %v2422 = vadd.f32 0.0, %v2421
      %v2423 = vpop.f32.mrb[0].mxu0
      %2424 = vmatprep.mubr.bf16.mxu0 0
      %2425 = vmatmul.mubr.bf16.gmra.mrb[0].mxu0 %v2352
      %v2426 = vpop.f32.mrb[0].mxu0
      %v2427 = vadd.f32 0.0, %v2426
      %v2428 = vpop.f32.mrb[0].mxu0
      %v2429 = vpop.f32.mrb[0].mxu0
      %v2430 = vadd.f32 0.0, %v2429
      %v2431 = vpop.f32.mrb[0].mxu0
      %2432 = vmatprep.mubr.bf16.mxu0 0
      %2433 = vmatmul.mubr.bf16.gmra.mrb[0].mxu0 %v2355
      %v2434 = vpop.f32.mrb[0].mxu0
      %v2435 = vadd.f32 0.0, %v2434
      %v2436 = vpop.f32.mrb[0].mxu0
      %v2437 = vpop.f32.mrb[0].mxu0
      %v2438 = vadd.f32 0.0, %v2437
      %v2439 = vpop.f32.mrb[0].mxu0
      %2440 = vdwg.mxu0
      %v2441 = vadd.f32 %v2274, %v2395
      %v2442 = vadd.f32 %v2275, %v2398
      %v2443 = vadd.f32 %v2276, %v2403
      %v2444 = vadd.f32 %v2277, %v2406
      %v2445 = vadd.f32 %v2278, %v2411
      %v2446 = vadd.f32 %v2279, %v2414
      %v2447 = vadd.f32 %v2280, %v2419
      %v2448 = vadd.f32 %v2281, %v2422
      %v2449 = vadd.f32 %v2282, %v2427
      %v2450 = vadd.f32 %v2283, %v2430
      %v2451 = vadd.f32 %v2284, %v2435
      %v2452 = vadd.f32 %v2285, %v2438
      %s2453 = scalar_lea.vmem %s1, 26
      %v2454 = vld [vmem:[%s2453] sm:$0x3]
      %v2456 = vsel %vm337, %v2454, 0
      %2458 = vmatprep.subr.bf16.mxu0 0
      %2459 = vmatpush1.bf16.msra.mxu0 %v2456
      %2460 = vmatprep.subr.bf16.mxu0 0
      %2461 = vmatpush1.bf16.msra.mxu0 0
      %2462 = vmatprep.subr.bf16.mxu0 0
      %2463 = vmatpush1.bf16.msra.mxu0 0
      %2464 = vmatprep.subr.bf16.mxu0 0
      %2465 = vmatpush1.bf16.msra.mxu0 0
      %2466 = vmatprep.subr.bf16.mxu0 0
      %2467 = vmatpush1.bf16.msra.mxu0 0
      %2468 = vmatprep.subr.bf16.mxu0 0
      %2469 = vmatpush1.bf16.msra.mxu0 0
      %2470 = vmatprep.subr.bf16.mxu0 0
      %2471 = vmatpush1.bf16.msra.mxu0 0
      %2472 = vmatprep.subr.bf16.mxu0 0
      %2473 = vmatpush1.bf16.msra.mxu0 0
      %2474 = vmatprep.subr.bf16.mxu0 0
      %2475 = vmatpush1.bf16.msra.mxu0 0
      %2476 = vmatprep.subr.bf16.mxu0 0
      %2477 = vmatpush1.bf16.msra.mxu0 0
      %2478 = vmatprep.subr.bf16.mxu0 0
      %2479 = vmatpush1.bf16.msra.mxu0 0
      %2480 = vmatprep.subr.bf16.mxu0 0
      %2481 = vmatpush1.bf16.msra.mxu0 0
      %2482 = vmatprep.subr.bf16.mxu0 0
      %2483 = vmatpush1.bf16.msra.mxu0 0
      %2484 = vmatprep.subr.bf16.mxu0 0
      %2485 = vmatpush1.bf16.msra.mxu0 0
      %2486 = vmatprep.subr.bf16.mxu0 0
      %2487 = vmatpush1.bf16.msra.mxu0 0
      %2488 = vmatprep.subr.bf16.mxu0 0
      %2489 = vmatpush1.bf16.msra.mxu0 0
      %2490 = vmatprep.mubr.bf16.mxu0 0
      %2491 = vmatmul.mubr.bf16.gmra.mrb[0].mxu0 %v1013
      %v2492 = vpop.f32.mrb[0].mxu0
      %v2493 = vadd.f32 0.0, %v2492
      %v2494 = vpop.f32.mrb[0].mxu0
      %v2495 = vpop.f32.mrb[0].mxu0
      %v2496 = vadd.f32 0.0, %v2495
      %v2497 = vpop.f32.mrb[0].mxu0
      %2498 = vmatprep.mubr.bf16.mxu0 0
      %2499 = vmatmul.mubr.bf16.gmra.mrb[0].mxu0 %v1016
      %v2500 = vpop.f32.mrb[0].mxu0
      %v2501 = vadd.f32 0.0, %v2500
      %v2502 = vpop.f32.mrb[0].mxu0
      %v2503 = vpop.f32.mrb[0].mxu0
      %v2504 = vadd.f32 0.0, %v2503
      %v2505 = vpop.f32.mrb[0].mxu0
      %2506 = vmatprep.mubr.bf16.mxu0 0
      %2507 = vmatmul.mubr.bf16.gmra.mrb[0].mxu0 %v1019
      %v2508 = vpop.f32.mrb[0].mxu0
      %v2509 = vadd.f32 0.0, %v2508
      %v2510 = vpop.f32.mrb[0].mxu0
      %v2511 = vpop.f32.mrb[0].mxu0
      %v2512 = vadd.f32 0.0, %v2511
      %v2513 = vpop.f32.mrb[0].mxu0
      %2514 = vmatprep.mubr.bf16.mxu0 0
      %2515 = vmatmul.mubr.bf16.gmra.mrb[0].mxu0 %v1022
      %v2516 = vpop.f32.mrb[0].mxu0
      %v2517 = vadd.f32 0.0, %v2516
      %v2518 = vpop.f32.mrb[0].mxu0
      %v2519 = vpop.f32.mrb[0].mxu0
      %v2520 = vadd.f32 0.0, %v2519
      %v2521 = vpop.f32.mrb[0].mxu0
      %2522 = vmatprep.mubr.bf16.mxu0 0
      %2523 = vmatmul.mubr.bf16.gmra.mrb[0].mxu0 %v1025
      %v2524 = vpop.f32.mrb[0].mxu0
      %v2525 = vadd.f32 0.0, %v2524
      %v2526 = vpop.f32.mrb[0].mxu0
      %v2527 = vpop.f32.mrb[0].mxu0
      %v2528 = vadd.f32 0.0, %v2527
      %v2529 = vpop.f32.mrb[0].mxu0
      %2530 = vmatprep.mubr.bf16.mxu0 0
      %2531 = vmatmul.mubr.bf16.gmra.mrb[0].mxu0 %v1028
      %v2532 = vpop.f32.mrb[0].mxu0
      %v2533 = vadd.f32 0.0, %v2532
      %v2534 = vpop.f32.mrb[0].mxu0
      %v2535 = vpop.f32.mrb[0].mxu0
      %v2536 = vadd.f32 0.0, %v2535
      %v2537 = vpop.f32.mrb[0].mxu0
      %2538 = vdwg.mxu0
      %v2539 = vadd.f32 %v2441, %v2493
      %v2540 = vadd.f32 %v2442, %v2496
      %v2541 = vadd.f32 %v2443, %v2501
      %v2542 = vadd.f32 %v2444, %v2504
      %v2543 = vadd.f32 %v2445, %v2509
      %v2544 = vadd.f32 %v2446, %v2512
      %v2545 = vadd.f32 %v2447, %v2517
      %v2546 = vadd.f32 %v2448, %v2520
      %v2547 = vadd.f32 %v2449, %v2525
      %v2548 = vadd.f32 %v2450, %v2528
      %v2549 = vadd.f32 %v2451, %v2533
      %v2550 = vadd.f32 %v2452, %v2536
      %v2551 = vld [vmem:[%s230 + $0x38] sm:$0xf]
      %s2552 = scalar_lea.vmem %s1, 28
      %v2553 = vld [vmem:[%s2552] sm:$0x3]
      %v2555 = vunpack.c.l.b16 %v2551
      %v2556 = vpack.c.b16 %v2555, %v992
      %vm2557 = vsmask.f32 6400
      %v2559 = vshrl.u32 %v994, 16
      %v2561 = vrot.slane %v2559, 1
      %v2562 = vshll.u32 %v994, 16
      %v2564 = vrot.slane %v2562, 2
      %v2565 = vor.u32 %v2561, %v2564
      %v2566 = vrot.slane %v2304, 1
      %v2567 = vrot.slane %v2300, 2
      %v2568 = vor.u32 %v2566, %v2567
      %v2569 = vsel %vm2557, %v2565, %v2568
      %v2570 = vrot.slane %v2312, 1
      %v2571 = vrot.slane %v2308, 2
      %v2572 = vor.u32 %v2570, %v2571
      %v2573 = vsel %vm2557, %v2568, %v2572
      %v2574 = vrot.slane %v2320, 1
      %v2575 = vrot.slane %v2316, 2
      %v2576 = vor.u32 %v2574, %v2575
      %v2577 = vsel %vm2557, %v2572, %v2576
      %v2578 = vrot.slane %v2328, 1
      %v2579 = vrot.slane %v2324, 2
      %v2580 = vor.u32 %v2578, %v2579
      %v2581 = vsel %vm2557, %v2576, %v2580
      %v2583 = vshrl.u32 %v2556, 16
      %v2585 = vrot.slane %v2583, 1
      %v2586 = vshll.u32 %v2556, 16
      %v2588 = vrot.slane %v2586, 2
      %v2589 = vor.u32 %v2585, %v2588
      %v2590 = vsel %vm2557, %v2580, %v2589
      %v2592 = vsel %vm318, %v2569, 0
      %v2595 = vsel %vm318, %v2573, 0
      %v2598 = vsel %vm318, %v2577, 0
      %v2601 = vsel %vm318, %v2581, 0
      %v2604 = vsel %vm318, %v2590, 0
      %v2607 = vsel %vm318, %v2589, 0
      %v2610 = vsel %vm337, %v2553, 0
      %2612 = vmatprep.subr.bf16.mxu0 0
      %2613 = vmatpush1.bf16.msra.mxu0 %v2610
      %2614 = vmatprep.subr.bf16.mxu0 0
      %2615 = vmatpush1.bf16.msra.mxu0 0
      %2616 = vmatprep.subr.bf16.mxu0 0
      %2617 = vmatpush1.bf16.msra.mxu0 0
      %2618 = vmatprep.subr.bf16.mxu0 0
      %2619 = vmatpush1.bf16.msra.mxu0 0
      %2620 = vmatprep.subr.bf16.mxu0 0
      %2621 = vmatpush1.bf16.msra.mxu0 0
      %2622 = vmatprep.subr.bf16.mxu0 0
      %2623 = vmatpush1.bf16.msra.mxu0 0
      %2624 = vmatprep.subr.bf16.mxu0 0
      %2625 = vmatpush1.bf16.msra.mxu0 0
      %2626 = vmatprep.subr.bf16.mxu0 0
      %2627 = vmatpush1.bf16.msra.mxu0 0
      %2628 = vmatprep.subr.bf16.mxu0 0
      %2629 = vmatpush1.bf16.msra.mxu0 0
      %2630 = vmatprep.subr.bf16.mxu0 0
      %2631 = vmatpush1.bf16.msra.mxu0 0
      %2632 = vmatprep.subr.bf16.mxu0 0
      %2633 = vmatpush1.bf16.msra.mxu0 0
      %2634 = vmatprep.subr.bf16.mxu0 0
      %2635 = vmatpush1.bf16.msra.mxu0 0
      %2636 = vmatprep.subr.bf16.mxu0 0
      %2637 = vmatpush1.bf16.msra.mxu0 0
      %2638 = vmatprep.subr.bf16.mxu0 0
      %2639 = vmatpush1.bf16.msra.mxu0 0
      %2640 = vmatprep.subr.bf16.mxu0 0
      %2641 = vmatpush1.bf16.msra.mxu0 0
      %2642 = vmatprep.subr.bf16.mxu0 0
      %2643 = vmatpush1.bf16.msra.mxu0 0
      %2644 = vmatprep.mubr.bf16.mxu0 0
      %2645 = vmatmul.mubr.bf16.gmra.mrb[0].mxu0 %v2592
      %v2646 = vpop.f32.mrb[0].mxu0
      %v2647 = vadd.f32 0.0, %v2646
      %v2648 = vpop.f32.mrb[0].mxu0
      %v2649 = vpop.f32.mrb[0].mxu0
      %v2650 = vadd.f32 0.0, %v2649
      %v2651 = vpop.f32.mrb[0].mxu0
      %2652 = vmatprep.mubr.bf16.mxu0 0
      %2653 = vmatmul.mubr.bf16.gmra.mrb[0].mxu0 %v2595
      %v2654 = vpop.f32.mrb[0].mxu0
      %v2655 = vadd.f32 0.0, %v2654
      %v2656 = vpop.f32.mrb[0].mxu0
      %v2657 = vpop.f32.mrb[0].mxu0
      %v2658 = vadd.f32 0.0, %v2657
      %v2659 = vpop.f32.mrb[0].mxu0
      %2660 = vmatprep.mubr.bf16.mxu0 0
      %2661 = vmatmul.mubr.bf16.gmra.mrb[0].mxu0 %v2598
      %v2662 = vpop.f32.mrb[0].mxu0
      %v2663 = vadd.f32 0.0, %v2662
      %v2664 = vpop.f32.mrb[0].mxu0
      %v2665 = vpop.f32.mrb[0].mxu0
      %v2666 = vadd.f32 0.0, %v2665
      %v2667 = vpop.f32.mrb[0].mxu0
      %2668 = vmatprep.mubr.bf16.mxu0 0
      %2669 = vmatmul.mubr.bf16.gmra.mrb[0].mxu0 %v2601
      %v2670 = vpop.f32.mrb[0].mxu0
      %v2671 = vadd.f32 0.0, %v2670
      %v2672 = vpop.f32.mrb[0].mxu0
      %v2673 = vpop.f32.mrb[0].mxu0
      %v2674 = vadd.f32 0.0, %v2673
      %v2675 = vpop.f32.mrb[0].mxu0
      %2676 = vmatprep.mubr.bf16.mxu0 0
      %2677 = vmatmul.mubr.bf16.gmra.mrb[0].mxu0 %v2604
      %v2678 = vpop.f32.mrb[0].mxu0
      %v2679 = vadd.f32 0.0, %v2678
      %v2680 = vpop.f32.mrb[0].mxu0
      %v2681 = vpop.f32.mrb[0].mxu0
      %v2682 = vadd.f32 0.0, %v2681
      %v2683 = vpop.f32.mrb[0].mxu0
      %2684 = vmatprep.mubr.bf16.mxu0 0
      %2685 = vmatmul.mubr.bf16.gmra.mrb[0].mxu0 %v2607
      %v2686 = vpop.f32.mrb[0].mxu0
      %v2687 = vadd.f32 0.0, %v2686
      %v2688 = vpop.f32.mrb[0].mxu0
      %v2689 = vpop.f32.mrb[0].mxu0
      %v2690 = vadd.f32 0.0, %v2689
      %v2691 = vpop.f32.mrb[0].mxu0
      %2692 = vdwg.mxu0
      %v2693 = vadd.f32 %v2539, %v2647
      %v2694 = vadd.f32 %v2540, %v2650
      %v2695 = vadd.f32 %v2541, %v2655
      %v2696 = vadd.f32 %v2542, %v2658
      %v2697 = vadd.f32 %v2543, %v2663
      %v2698 = vadd.f32 %v2544, %v2666
      %v2699 = vadd.f32 %v2545, %v2671
      %v2700 = vadd.f32 %v2546, %v2674
      %v2701 = vadd.f32 %v2547, %v2679
      %v2702 = vadd.f32 %v2548, %v2682
      %v2703 = vadd.f32 %v2549, %v2687
      %v2704 = vadd.f32 %v2550, %v2690
      %v2705 = vld [vmem:[%s230 + $0x10] sm:$0xc]
      %v2706 = vld [vmem:[%s230 + $0x14] sm:$0xf]
      %v2707 = vld [vmem:[%s230 + $0x18] sm:$0xf]
      %v2708 = vld [vmem:[%s230 + $0x1c] sm:$0xf]
      %v2709 = vld [vmem:[%s230 + $0x20] sm:$0xf]
      %v2710 = vld [vmem:[%s230 + $0x24] sm:$0xf]
      %v2711 = vld [vmem:[%s230 + $0x28] sm:$0xf]
      %v2712 = vld [vmem:[%s230 + $0x2c] sm:$0xf]
      %v2713 = vld [vmem:[%s230 + $0x30] sm:$0xf]
      %v2714 = vld [vmem:[%s230 + $0x34] sm:$0xf]
      %v2715 = vld [vmem:[%s230 + $0x38] sm:$0xf]
      %v2716 = vld [vmem:[%s230 + $0x3c] sm:$0xf]
      %v2717 = vld [vmem:[%s230 + $0x40] sm:$0x1]
      %s2718 = scalar_lea.vmem %s1, 30
      %v2719 = vld [vmem:[%s2718] sm:$0x3]
      %v2733 = vunpack.c.l.b16 %v2705
      %v2734 = vunpack.c.l.b16 %v2706
      %v2735 = vunpack.c.l.b16 %v2707
      %v2736 = vunpack.c.l.b16 %v2708
      %v2737 = vunpack.c.l.b16 %v2709
      %v2738 = vunpack.c.l.b16 %v2710
      %v2739 = vunpack.c.l.b16 %v2711
      %v2740 = vunpack.c.l.b16 %v2712
      %v2741 = vunpack.c.l.b16 %v2713
      %v2742 = vunpack.c.l.b16 %v2714
      %v2743 = vunpack.c.l.b16 %v2715
      %v2744 = vunpack.c.l.b16 %v2716
      %v2745 = vunpack.c.l.b16 %v2717
      %v2746 = vpack.c.b16 %v2734, %v2733
      %v2747 = vpack.c.b16 %v2736, %v2735
      %v2748 = vpack.c.b16 %v2738, %v2737
      %v2749 = vpack.c.b16 %v2740, %v2739
      %v2750 = vpack.c.b16 %v2742, %v2741
      %v2751 = vpack.c.b16 %v2744, %v2743
      %v2752 = vpack.c.b16 %v2745, %v2745
      %v2754 = vshrl.u32 %v2746, 16
      %v2756 = vrot.slane %v2754, 2
      %v2757 = vshll.u32 %v2746, 16
      %v2759 = vrot.slane %v2757, 3
      %v2760 = vor.u32 %v2756, %v2759
      %v2762 = vshrl.u32 %v2747, 16
      %v2764 = vrot.slane %v2762, 2
      %v2765 = vshll.u32 %v2747, 16
      %v2767 = vrot.slane %v2765, 3
      %v2768 = vor.u32 %v2764, %v2767
      %v2769 = vsel %vm455, %v2760, %v2768
      %v2771 = vshrl.u32 %v2748, 16
      %v2773 = vrot.slane %v2771, 2
      %v2774 = vshll.u32 %v2748, 16
      %v2776 = vrot.slane %v2774, 3
      %v2777 = vor.u32 %v2773, %v2776
      %v2778 = vsel %vm455, %v2768, %v2777
      %v2780 = vshrl.u32 %v2749, 16
      %v2782 = vrot.slane %v2780, 2
      %v2783 = vshll.u32 %v2749, 16
      %v2785 = vrot.slane %v2783, 3
      %v2786 = vor.u32 %v2782, %v2785
      %v2787 = vsel %vm455, %v2777, %v2786
      %v2789 = vshrl.u32 %v2750, 16
      %v2791 = vrot.slane %v2789, 2
      %v2792 = vshll.u32 %v2750, 16
      %v2794 = vrot.slane %v2792, 3
      %v2795 = vor.u32 %v2791, %v2794
      %v2796 = vsel %vm455, %v2786, %v2795
      %v2798 = vshrl.u32 %v2751, 16
      %v2800 = vrot.slane %v2798, 2
      %v2801 = vshll.u32 %v2751, 16
      %v2803 = vrot.slane %v2801, 3
      %v2804 = vor.u32 %v2800, %v2803
      %v2805 = vsel %vm455, %v2795, %v2804
      %v2807 = vshll.u32 %v2752, 16
      %v2809 = vrot.slane %v2807, 3
      %v2810 = vsel %vm455, %v2804, %v2809
      %v2812 = vsel %vm318, %v2769, 0
      %v2815 = vsel %vm318, %v2778, 0
      %v2818 = vsel %vm318, %v2787, 0
      %v2821 = vsel %vm318, %v2796, 0
      %v2824 = vsel %vm318, %v2805, 0
      %v2827 = vsel %vm318, %v2810, 0
      %v2830 = vsel %vm337, %v2719, 0
      %2832 = vmatprep.subr.bf16.mxu0 0
      %2833 = vmatpush1.bf16.msra.mxu0 %v2830
      %2834 = vmatprep.subr.bf16.mxu0 0
      %2835 = vmatpush1.bf16.msra.mxu0 0
      %2836 = vmatprep.subr.bf16.mxu0 0
      %2837 = vmatpush1.bf16.msra.mxu0 0
      %2838 = vmatprep.subr.bf16.mxu0 0
      %2839 = vmatpush1.bf16.msra.mxu0 0
      %2840 = vmatprep.subr.bf16.mxu0 0
      %2841 = vmatpush1.bf16.msra.mxu0 0
      %2842 = vmatprep.subr.bf16.mxu0 0
      %2843 = vmatpush1.bf16.msra.mxu0 0
      %2844 = vmatprep.subr.bf16.mxu0 0
      %2845 = vmatpush1.bf16.msra.mxu0 0
      %2846 = vmatprep.subr.bf16.mxu0 0
      %2847 = vmatpush1.bf16.msra.mxu0 0
      %2848 = vmatprep.subr.bf16.mxu0 0
      %2849 = vmatpush1.bf16.msra.mxu0 0
      %2850 = vmatprep.subr.bf16.mxu0 0
      %2851 = vmatpush1.bf16.msra.mxu0 0
      %2852 = vmatprep.subr.bf16.mxu0 0
      %2853 = vmatpush1.bf16.msra.mxu0 0
      %2854 = vmatprep.subr.bf16.mxu0 0
      %2855 = vmatpush1.bf16.msra.mxu0 0
      %2856 = vmatprep.subr.bf16.mxu0 0
      %2857 = vmatpush1.bf16.msra.mxu0 0
      %2858 = vmatprep.subr.bf16.mxu0 0
      %2859 = vmatpush1.bf16.msra.mxu0 0
      %2860 = vmatprep.subr.bf16.mxu0 0
      %2861 = vmatpush1.bf16.msra.mxu0 0
      %2862 = vmatprep.subr.bf16.mxu0 0
      %2863 = vmatpush1.bf16.msra.mxu0 0
      %2864 = vmatprep.mubr.bf16.mxu0 0
      %2865 = vmatmul.mubr.bf16.gmra.mrb[0].mxu0 %v2812
      %v2866 = vpop.f32.mrb[0].mxu0
      %v2867 = vadd.f32 0.0, %v2866
      %v2868 = vpop.f32.mrb[0].mxu0
      %v2869 = vpop.f32.mrb[0].mxu0
      %v2870 = vadd.f32 0.0, %v2869
      %v2871 = vpop.f32.mrb[0].mxu0
      %2872 = vmatprep.mubr.bf16.mxu0 0
      %2873 = vmatmul.mubr.bf16.gmra.mrb[0].mxu0 %v2815
      %v2874 = vpop.f32.mrb[0].mxu0
      %v2875 = vadd.f32 0.0, %v2874
      %v2876 = vpop.f32.mrb[0].mxu0
      %v2877 = vpop.f32.mrb[0].mxu0
      %v2878 = vadd.f32 0.0, %v2877
      %v2879 = vpop.f32.mrb[0].mxu0
      %2880 = vmatprep.mubr.bf16.mxu0 0
      %2881 = vmatmul.mubr.bf16.gmra.mrb[0].mxu0 %v2818
      %v2882 = vpop.f32.mrb[0].mxu0
      %v2883 = vadd.f32 0.0, %v2882
      %v2884 = vpop.f32.mrb[0].mxu0
      %v2885 = vpop.f32.mrb[0].mxu0
      %v2886 = vadd.f32 0.0, %v2885
      %v2887 = vpop.f32.mrb[0].mxu0
      %2888 = vmatprep.mubr.bf16.mxu0 0
      %2889 = vmatmul.mubr.bf16.gmra.mrb[0].mxu0 %v2821
      %v2890 = vpop.f32.mrb[0].mxu0
      %v2891 = vadd.f32 0.0, %v2890
      %v2892 = vpop.f32.mrb[0].mxu0
      %v2893 = vpop.f32.mrb[0].mxu0
      %v2894 = vadd.f32 0.0, %v2893
      %v2895 = vpop.f32.mrb[0].mxu0
      %2896 = vmatprep.mubr.bf16.mxu0 0
      %2897 = vmatmul.mubr.bf16.gmra.mrb[0].mxu0 %v2824
      %v2898 = vpop.f32.mrb[0].mxu0
      %v2899 = vadd.f32 0.0, %v2898
      %v2900 = vpop.f32.mrb[0].mxu0
      %v2901 = vpop.f32.mrb[0].mxu0
      %v2902 = vadd.f32 0.0, %v2901
      %v2903 = vpop.f32.mrb[0].mxu0
      %2904 = vmatprep.mubr.bf16.mxu0 0
      %2905 = vmatmul.mubr.bf16.gmra.mrb[0].mxu0 %v2827
      %v2906 = vpop.f32.mrb[0].mxu0
      %v2907 = vadd.f32 0.0, %v2906
      %v2908 = vpop.f32.mrb[0].mxu0
      %v2909 = vpop.f32.mrb[0].mxu0
      %v2910 = vadd.f32 0.0, %v2909
      %v2911 = vpop.f32.mrb[0].mxu0
      %2912 = vdwg.mxu0
      %v2913 = vadd.f32 %v2693, %v2867
      %v2914 = vadd.f32 %v2694, %v2870
      %v2915 = vadd.f32 %v2695, %v2875
      %v2916 = vadd.f32 %v2696, %v2878
      %v2917 = vadd.f32 %v2697, %v2883
      %v2918 = vadd.f32 %v2698, %v2886
      %v2919 = vadd.f32 %v2699, %v2891
      %v2920 = vadd.f32 %v2700, %v2894
      %v2921 = vadd.f32 %v2701, %v2899
      %v2922 = vadd.f32 %v2702, %v2902
      %v2923 = vadd.f32 %v2703, %v2907
      %v2924 = vadd.f32 %v2704, %v2910
      %v2925 = vld [vmem:[%s230 + $0x10] sm:$0x8]
      %s2926 = scalar_lea.vmem %s1, 32
      %v2927 = vld [vmem:[%s2926] sm:$0x3]
      %v2929 = vunpack.c.l.b16 %v2925
      %v2930 = vpack.c.b16 %v2734, %v2929
      %v2931 = vrot.slane %v2930, 3
      %v2932 = vrot.slane %v2747, 3
      %v2933 = vsel %vm304, %v2931, %v2932
      %v2934 = vrot.slane %v2748, 3
      %v2935 = vsel %vm304, %v2932, %v2934
      %v2936 = vrot.slane %v2749, 3
      %v2937 = vsel %vm304, %v2934, %v2936
      %v2938 = vrot.slane %v2750, 3
      %v2939 = vsel %vm304, %v2936, %v2938
      %v2940 = vrot.slane %v2751, 3
      %v2941 = vsel %vm304, %v2938, %v2940
      %v2942 = vrot.slane %v2752, 3
      %v2943 = vsel %vm304, %v2940, %v2942
      %v2945 = vsel %vm318, %v2933, 0
      %v2948 = vsel %vm318, %v2935, 0
      %v2951 = vsel %vm318, %v2937, 0
      %v2954 = vsel %vm318, %v2939, 0
      %v2957 = vsel %vm318, %v2941, 0
      %v2960 = vsel %vm318, %v2943, 0
      %v2963 = vsel %vm337, %v2927, 0
      %2965 = vmatprep.subr.bf16.mxu0 0
      %2966 = vmatpush1.bf16.msra.mxu0 %v2963
      %2967 = vmatprep.subr.bf16.mxu0 0
      %2968 = vmatpush1.bf16.msra.mxu0 0
      %2969 = vmatprep.subr.bf16.mxu0 0
      %2970 = vmatpush1.bf16.msra.mxu0 0
      %2971 = vmatprep.subr.bf16.mxu0 0
      %2972 = vmatpush1.bf16.msra.mxu0 0
      %2973 = vmatprep.subr.bf16.mxu0 0
      %2974 = vmatpush1.bf16.msra.mxu0 0
      %2975 = vmatprep.subr.bf16.mxu0 0
      %2976 = vmatpush1.bf16.msra.mxu0 0
      %2977 = vmatprep.subr.bf16.mxu0 0
      %2978 = vmatpush1.bf16.msra.mxu0 0
      %2979 = vmatprep.subr.bf16.mxu0 0
      %2980 = vmatpush1.bf16.msra.mxu0 0
      %2981 = vmatprep.subr.bf16.mxu0 0
      %2982 = vmatpush1.bf16.msra.mxu0 0
      %2983 = vmatprep.subr.bf16.mxu0 0
      %2984 = vmatpush1.bf16.msra.mxu0 0
      %2985 = vmatprep.subr.bf16.mxu0 0
      %2986 = vmatpush1.bf16.msra.mxu0 0
      %2987 = vmatprep.subr.bf16.mxu0 0
      %2988 = vmatpush1.bf16.msra.mxu0 0
      %2989 = vmatprep.subr.bf16.mxu0 0
      %2990 = vmatpush1.bf16.msra.mxu0 0
      %2991 = vmatprep.subr.bf16.mxu0 0
      %2992 = vmatpush1.bf16.msra.mxu0 0
      %2993 = vmatprep.subr.bf16.mxu0 0
      %2994 = vmatpush1.bf16.msra.mxu0 0
      %2995 = vmatprep.subr.bf16.mxu0 0
      %2996 = vmatpush1.bf16.msra.mxu0 0
      %2997 = vmatprep.mubr.bf16.mxu0 0
      %2998 = vmatmul.mubr.bf16.gmra.mrb[0].mxu0 %v2945
      %v2999 = vpop.f32.mrb[0].mxu0
      %v3000 = vadd.f32 0.0, %v2999
      %v3001 = vpop.f32.mrb[0].mxu0
      %v3002 = vpop.f32.mrb[0].mxu0
      %v3003 = vadd.f32 0.0, %v3002
      %v3004 = vpop.f32.mrb[0].mxu0
      %3005 = vmatprep.mubr.bf16.mxu0 0
      %3006 = vmatmul.mubr.bf16.gmra.mrb[0].mxu0 %v2948
      %v3007 = vpop.f32.mrb[0].mxu0
      %v3008 = vadd.f32 0.0, %v3007
      %v3009 = vpop.f32.mrb[0].mxu0
      %v3010 = vpop.f32.mrb[0].mxu0
      %v3011 = vadd.f32 0.0, %v3010
      %v3012 = vpop.f32.mrb[0].mxu0
      %3013 = vmatprep.mubr.bf16.mxu0 0
      %3014 = vmatmul.mubr.bf16.gmra.mrb[0].mxu0 %v2951
      %v3015 = vpop.f32.mrb[0].mxu0
      %v3016 = vadd.f32 0.0, %v3015
      %v3017 = vpop.f32.mrb[0].mxu0
      %v3018 = vpop.f32.mrb[0].mxu0
      %v3019 = vadd.f32 0.0, %v3018
      %v3020 = vpop.f32.mrb[0].mxu0
      %3021 = vmatprep.mubr.bf16.mxu0 0
      %3022 = vmatmul.mubr.bf16.gmra.mrb[0].mxu0 %v2954
      %v3023 = vpop.f32.mrb[0].mxu0
      %v3024 = vadd.f32 0.0, %v3023
      %v3025 = vpop.f32.mrb[0].mxu0
      %v3026 = vpop.f32.mrb[0].mxu0
      %v3027 = vadd.f32 0.0, %v3026
      %v3028 = vpop.f32.mrb[0].mxu0
      %3029 = vmatprep.mubr.bf16.mxu0 0
      %3030 = vmatmul.mubr.bf16.gmra.mrb[0].mxu0 %v2957
      %v3031 = vpop.f32.mrb[0].mxu0
      %v3032 = vadd.f32 0.0, %v3031
      %v3033 = vpop.f32.mrb[0].mxu0
      %v3034 = vpop.f32.mrb[0].mxu0
      %v3035 = vadd.f32 0.0, %v3034
      %v3036 = vpop.f32.mrb[0].mxu0
      %3037 = vmatprep.mubr.bf16.mxu0 0
      %3038 = vmatmul.mubr.bf16.gmra.mrb[0].mxu0 %v2960
      %v3039 = vpop.f32.mrb[0].mxu0
      %v3040 = vadd.f32 0.0, %v3039
      %v3041 = vpop.f32.mrb[0].mxu0
      %v3042 = vpop.f32.mrb[0].mxu0
      %v3043 = vadd.f32 0.0, %v3042
      %v3044 = vpop.f32.mrb[0].mxu0
      %3045 = vdwg.mxu0
      %v3046 = vadd.f32 %v2913, %v3000
      %v3047 = vadd.f32 %v2914, %v3003
      %v3048 = vadd.f32 %v2915, %v3008
      %v3049 = vadd.f32 %v2916, %v3011
      %v3050 = vadd.f32 %v2917, %v3016
      %v3051 = vadd.f32 %v2918, %v3019
      %v3052 = vadd.f32 %v2919, %v3024
      %v3053 = vadd.f32 %v2920, %v3027
      %v3054 = vadd.f32 %v2921, %v3032
      %v3055 = vadd.f32 %v2922, %v3035
      %v3056 = vadd.f32 %v2923, %v3040
      %v3057 = vadd.f32 %v2924, %v3043
      %v3058 = vld [vmem:[%s230 + $0x40] sm:$0x3]
      %s3059 = scalar_lea.vmem %s1, 34
      %v3060 = vld [vmem:[%s3059] sm:$0x3]
      %v3062 = vunpack.c.l.b16 %v3058
      %v3063 = vpack.c.b16 %v3062, %v3062
      %v3065 = vshrl.u32 %v2930, 16
      %v3067 = vrot.slane %v3065, 3
      %v3068 = vshll.u32 %v2930, 16
      %v3070 = vrot.slane %v3068, 4
      %v3071 = vor.u32 %v3067, %v3070
      %v3072 = vrot.slane %v2762, 3
      %v3073 = vrot.slane %v2765, 4
      %v3074 = vor.u32 %v3072, %v3073
      %v3075 = vsel %vm2134, %v3071, %v3074
      %v3076 = vrot.slane %v2771, 3
      %v3077 = vrot.slane %v2774, 4
      %v3078 = vor.u32 %v3076, %v3077
      %v3079 = vsel %vm2134, %v3074, %v3078
      %v3080 = vrot.slane %v2780, 3
      %v3081 = vrot.slane %v2783, 4
      %v3082 = vor.u32 %v3080, %v3081
      %v3083 = vsel %vm2134, %v3078, %v3082
      %v3084 = vrot.slane %v2789, 3
      %v3085 = vrot.slane %v2792, 4
      %v3086 = vor.u32 %v3084, %v3085
      %v3087 = vsel %vm2134, %v3082, %v3086
      %v3088 = vrot.slane %v2798, 3
      %v3089 = vrot.slane %v2801, 4
      %v3090 = vor.u32 %v3088, %v3089
      %v3091 = vsel %vm2134, %v3086, %v3090
      %v3093 = vshrl.u32 %v3063, 16
      %v3095 = vrot.slane %v3093, 3
      %v3096 = vshll.u32 %v3063, 16
      %v3098 = vrot.slane %v3096, 4
      %v3099 = vor.u32 %v3095, %v3098
      %v3100 = vsel %vm2134, %v3090, %v3099
      %v3102 = vsel %vm318, %v3075, 0
      %v3105 = vsel %vm318, %v3079, 0
      %v3108 = vsel %vm318, %v3083, 0
      %v3111 = vsel %vm318, %v3087, 0
      %v3114 = vsel %vm318, %v3091, 0
      %v3117 = vsel %vm318, %v3100, 0
      %v3120 = vsel %vm337, %v3060, 0
      %3122 = vmatprep.subr.bf16.mxu0 0
      %3123 = vmatpush1.bf16.msra.mxu0 %v3120
      %3124 = vmatprep.subr.bf16.mxu0 0
      %3125 = vmatpush1.bf16.msra.mxu0 0
      %3126 = vmatprep.subr.bf16.mxu0 0
      %3127 = vmatpush1.bf16.msra.mxu0 0
      %3128 = vmatprep.subr.bf16.mxu0 0
      %3129 = vmatpush1.bf16.msra.mxu0 0
      %3130 = vmatprep.subr.bf16.mxu0 0
      %3131 = vmatpush1.bf16.msra.mxu0 0
      %3132 = vmatprep.subr.bf16.mxu0 0
      %3133 = vmatpush1.bf16.msra.mxu0 0
      %3134 = vmatprep.subr.bf16.mxu0 0
      %3135 = vmatpush1.bf16.msra.mxu0 0
      %3136 = vmatprep.subr.bf16.mxu0 0
      %3137 = vmatpush1.bf16.msra.mxu0 0
      %3138 = vmatprep.subr.bf16.mxu0 0
      %3139 = vmatpush1.bf16.msra.mxu0 0
      %3140 = vmatprep.subr.bf16.mxu0 0
      %3141 = vmatpush1.bf16.msra.mxu0 0
      %3142 = vmatprep.subr.bf16.mxu0 0
      %3143 = vmatpush1.bf16.msra.mxu0 0
      %3144 = vmatprep.subr.bf16.mxu0 0
      %3145 = vmatpush1.bf16.msra.mxu0 0
      %3146 = vmatprep.subr.bf16.mxu0 0
      %3147 = vmatpush1.bf16.msra.mxu0 0
      %3148 = vmatprep.subr.bf16.mxu0 0
      %3149 = vmatpush1.bf16.msra.mxu0 0
      %3150 = vmatprep.subr.bf16.mxu0 0
      %3151 = vmatpush1.bf16.msra.mxu0 0
      %3152 = vmatprep.subr.bf16.mxu0 0
      %3153 = vmatpush1.bf16.msra.mxu0 0
      %3154 = vmatprep.mubr.bf16.mxu0 0
      %3155 = vmatmul.mubr.bf16.gmra.mrb[0].mxu0 %v3102
      %v3156 = vpop.f32.mrb[0].mxu0
      %v3157 = vadd.f32 0.0, %v3156
      %v3158 = vpop.f32.mrb[0].mxu0
      %v3159 = vpop.f32.mrb[0].mxu0
      %v3160 = vadd.f32 0.0, %v3159
      %v3161 = vpop.f32.mrb[0].mxu0
      %3162 = vmatprep.mubr.bf16.mxu0 0
      %3163 = vmatmul.mubr.bf16.gmra.mrb[0].mxu0 %v3105
      %v3164 = vpop.f32.mrb[0].mxu0
      %v3165 = vadd.f32 0.0, %v3164
      %v3166 = vpop.f32.mrb[0].mxu0
      %v3167 = vpop.f32.mrb[0].mxu0
      %v3168 = vadd.f32 0.0, %v3167
      %v3169 = vpop.f32.mrb[0].mxu0
      %3170 = vmatprep.mubr.bf16.mxu0 0
      %3171 = vmatmul.mubr.bf16.gmra.mrb[0].mxu0 %v3108
      %v3172 = vpop.f32.mrb[0].mxu0
      %v3173 = vadd.f32 0.0, %v3172
      %v3174 = vpop.f32.mrb[0].mxu0
      %v3175 = vpop.f32.mrb[0].mxu0
      %v3176 = vadd.f32 0.0, %v3175
      %v3177 = vpop.f32.mrb[0].mxu0
      %3178 = vmatprep.mubr.bf16.mxu0 0
      %3179 = vmatmul.mubr.bf16.gmra.mrb[0].mxu0 %v3111
      %v3180 = vpop.f32.mrb[0].mxu0
      %v3181 = vadd.f32 0.0, %v3180
      %v3182 = vpop.f32.mrb[0].mxu0
      %v3183 = vpop.f32.mrb[0].mxu0
      %v3184 = vadd.f32 0.0, %v3183
      %v3185 = vpop.f32.mrb[0].mxu0
      %3186 = vmatprep.mubr.bf16.mxu0 0
      %3187 = vmatmul.mubr.bf16.gmra.mrb[0].mxu0 %v3114
      %v3188 = vpop.f32.mrb[0].mxu0
      %v3189 = vadd.f32 0.0, %v3188
      %v3190 = vpop.f32.mrb[0].mxu0
      %v3191 = vpop.f32.mrb[0].mxu0
      %v3192 = vadd.f32 0.0, %v3191
      %v3193 = vpop.f32.mrb[0].mxu0
      %3194 = vmatprep.mubr.bf16.mxu0 0
      %3195 = vmatmul.mubr.bf16.gmra.mrb[0].mxu0 %v3117
      %v3196 = vpop.f32.mrb[0].mxu0
      %v3197 = vadd.f32 0.0, %v3196
      %v3198 = vpop.f32.mrb[0].mxu0
      %v3199 = vpop.f32.mrb[0].mxu0
      %v3200 = vadd.f32 0.0, %v3199
      %v3201 = vpop.f32.mrb[0].mxu0
      %3202 = vdwg.mxu0
      %v3203 = vadd.f32 %v3046, %v3157
      %v3204 = vadd.f32 %v3047, %v3160
      %v3205 = vadd.f32 %v3048, %v3165
      %v3206 = vadd.f32 %v3049, %v3168
      %v3207 = vadd.f32 %v3050, %v3173
      %v3208 = vadd.f32 %v3051, %v3176
      %v3209 = vadd.f32 %v3052, %v3181
      %v3210 = vadd.f32 %v3053, %v3184
      %v3211 = vadd.f32 %v3054, %v3189
      %v3212 = vadd.f32 %v3055, %v3192
      %v3213 = vadd.f32 %v3056, %v3197
      %v3214 = vadd.f32 %v3057, %v3200
      %s3215 = scalar_lea.vmem %s2, 1
      %v3216 = vld [vmem:[%s3215] sm:$0x1]
      %v3218 = vlaneseq
      %v3219 = vshrl.u32 %v3218, 7
      %v3220 = vsub.s32 0, %v3219
      %v3221 = vrot.slane %v3216, %v3220
      %v3223 = vadd.f32 %v3203, %v3221
      %v3224 = vadd.f32 %v3204, %v3221
      %v3225 = vadd.f32 %v3205, %v3221
      %v3226 = vadd.f32 %v3206, %v3221
      %v3227 = vadd.f32 %v3207, %v3221
      %v3228 = vadd.f32 %v3208, %v3221
      %v3229 = vadd.f32 %v3209, %v3221
      %v3230 = vadd.f32 %v3210, %v3221
      %v3231 = vadd.f32 %v3211, %v3221
      %v3232 = vadd.f32 %v3212, %v3221
      %v3233 = vadd.f32 %v3213, %v3221
      %v3234 = vadd.f32 %v3214, %v3221
      %v3235 = vmax.f32 %v3223, 0.0
      %v3236 = vmax.f32 %v3224, 0.0
      %v3237 = vmax.f32 %v3225, 0.0
      %v3238 = vmax.f32 %v3226, 0.0
      %v3239 = vmax.f32 %v3227, 0.0
      %v3240 = vmax.f32 %v3228, 0.0
      %v3241 = vmax.f32 %v3229, 0.0
      %v3242 = vmax.f32 %v3230, 0.0
      %v3243 = vmax.f32 %v3231, 0.0
      %v3244 = vmax.f32 %v3232, 0.0
      %v3245 = vmax.f32 %v3233, 0.0
      %v3246 = vmax.f32 %v3234, 0.0
      %v3247 = vpack.c.bf16 %v3236, %v3235
      %v3248 = vpack.c.bf16 %v3238, %v3237
      %v3249 = vpack.c.bf16 %v3240, %v3239
      %v3250 = vpack.c.bf16 %v3242, %v3241
      %v3251 = vpack.c.bf16 %v3244, %v3243
      %v3252 = vpack.c.bf16 %v3246, %v3245
      %v3253 = vld [vmem:[%s230] sm:$0xf]
      %v3254 = vld [vmem:[%s230 + $0x4] sm:$0xf]
      %v3255 = vld [vmem:[%s230 + $0x8] sm:$0xf]
      %v3256 = vld [vmem:[%s230 + $0xc] sm:$0xf]
      %v3257 = vld [vmem:[%s230 + $0x10] sm:$0xf]
      %v3258 = vld [vmem:[%s230 + $0x14] sm:$0xf]
      %v3259 = vld [vmem:[%s230 + $0x18] sm:$0xf]
      %v3260 = vld [vmem:[%s230 + $0x1c] sm:$0xf]
      %v3261 = vld [vmem:[%s230 + $0x20] sm:$0xf]
      %v3262 = vld [vmem:[%s230 + $0x24] sm:$0xf]
      %v3263 = vld [vmem:[%s230 + $0x28] sm:$0xf]
      %v3264 = vld [vmem:[%s230 + $0x2c] sm:$0x3]
      %s3265 = scalar_lea.vmem %s1, 36
      %v3266 = vld [vmem:[%s3265] sm:$0x3]
      %v3267 = vld [vmem:[%s230] sm:$0xe]
      %v3268 = vld [vmem:[%s230 + $0x2c] sm:$0x7]
      %s3269 = scalar_lea.vmem %s1, 38
      %v3270 = vld [vmem:[%s3269] sm:$0x3]
      %v3283 = vunpack.c.l.b16 %v3267
      %v3284 = vunpack.c.l.b16 %v3254
      %v3285 = vunpack.c.l.b16 %v3255
      %v3286 = vunpack.c.l.b16 %v3256
      %v3287 = vunpack.c.l.b16 %v3257
      %v3288 = vunpack.c.l.b16 %v3258
      %v3289 = vunpack.c.l.b16 %v3259
      %v3290 = vunpack.c.l.b16 %v3260
      %v3291 = vunpack.c.l.b16 %v3261
      %v3292 = vunpack.c.l.b16 %v3262
      %v3293 = vunpack.c.l.b16 %v3263
      %v3294 = vunpack.c.l.b16 %v3268
      %v3295 = vpack.c.b16 %v3284, %v3283
      %v3296 = vpack.c.b16 %v3286, %v3285
      %v3297 = vpack.c.b16 %v3288, %v3287
      %v3298 = vpack.c.b16 %v3290, %v3289
      %v3299 = vpack.c.b16 %v3292, %v3291
      %v3300 = vpack.c.b16 %v3294, %v3293
      %v3301 = vrot.slane %v3295, 1
      %v3302 = vrot.slane %v3296, 1
      %v3303 = vsel %vm1000, %v3301, %v3302
      %v3304 = vrot.slane %v3297, 1
      %v3305 = vsel %vm1000, %v3302, %v3304
      %v3306 = vrot.slane %v3298, 1
      %v3307 = vsel %vm1000, %v3304, %v3306
      %v3308 = vrot.slane %v3299, 1
      %v3309 = vsel %vm1000, %v3306, %v3308
      %v3310 = vrot.slane %v3300, 1
      %v3311 = vsel %vm1000, %v3308, %v3310
      %v3313 = vsel %vm318, %v3303, 0
      %v3316 = vsel %vm318, %v3305, 0
      %v3319 = vsel %vm318, %v3307, 0
      %v3322 = vsel %vm318, %v3309, 0
      %v3325 = vsel %vm318, %v3311, 0
      %v3328 = vsel %vm318, %v3310, 0
      %v3331 = vsel %vm337, %v3270, 0
      %3333 = vmatprep.subr.bf16.mxu0 0
      %3334 = vmatpush1.bf16.msra.mxu0 %v3331
      %3335 = vmatprep.subr.bf16.mxu0 0
      %3336 = vmatpush1.bf16.msra.mxu0 0
      %3337 = vmatprep.subr.bf16.mxu0 0
      %3338 = vmatpush1.bf16.msra.mxu0 0
      %3339 = vmatprep.subr.bf16.mxu0 0
      %3340 = vmatpush1.bf16.msra.mxu0 0
      %3341 = vmatprep.subr.bf16.mxu0 0
      %3342 = vmatpush1.bf16.msra.mxu0 0
      %3343 = vmatprep.subr.bf16.mxu0 0
      %3344 = vmatpush1.bf16.msra.mxu0 0
      %3345 = vmatprep.subr.bf16.mxu0 0
      %3346 = vmatpush1.bf16.msra.mxu0 0
      %3347 = vmatprep.subr.bf16.mxu0 0
      %3348 = vmatpush1.bf16.msra.mxu0 0
      %3349 = vmatprep.subr.bf16.mxu0 0
      %3350 = vmatpush1.bf16.msra.mxu0 0
      %3351 = vmatprep.subr.bf16.mxu0 0
      %3352 = vmatpush1.bf16.msra.mxu0 0
      %3353 = vmatprep.subr.bf16.mxu0 0
      %3354 = vmatpush1.bf16.msra.mxu0 0
      %3355 = vmatprep.subr.bf16.mxu0 0
      %3356 = vmatpush1.bf16.msra.mxu0 0
      %3357 = vmatprep.subr.bf16.mxu0 0
      %3358 = vmatpush1.bf16.msra.mxu0 0
      %3359 = vmatprep.subr.bf16.mxu0 0
      %3360 = vmatpush1.bf16.msra.mxu0 0
      %3361 = vmatprep.subr.bf16.mxu0 0
      %3362 = vmatpush1.bf16.msra.mxu0 0
      %3363 = vmatprep.subr.bf16.mxu0 0
      %3364 = vmatpush1.bf16.msra.mxu0 0
      %3365 = vmatprep.mubr.bf16.mxu0 0
      %3366 = vmatmul.mubr.bf16.gmra.mrb[0].mxu0 %v3313
      %v3367 = vpop.f32.mrb[0].mxu0
      %v3368 = vadd.f32 0.0, %v3367
      %v3369 = vpop.f32.mrb[0].mxu0
      %v3370 = vpop.f32.mrb[0].mxu0
      %v3371 = vadd.f32 0.0, %v3370
      %v3372 = vpop.f32.mrb[0].mxu0
      %3373 = vmatprep.mubr.bf16.mxu0 0
      %3374 = vmatmul.mubr.bf16.gmra.mrb[0].mxu0 %v3316
      %v3375 = vpop.f32.mrb[0].mxu0
      %v3376 = vadd.f32 0.0, %v3375
      %v3377 = vpop.f32.mrb[0].mxu0
      %v3378 = vpop.f32.mrb[0].mxu0
      %v3379 = vadd.f32 0.0, %v3378
      %v3380 = vpop.f32.mrb[0].mxu0
      %3381 = vmatprep.mubr.bf16.mxu0 0
      %3382 = vmatmul.mubr.bf16.gmra.mrb[0].mxu0 %v3319
      %v3383 = vpop.f32.mrb[0].mxu0
      %v3384 = vadd.f32 0.0, %v3383
      %v3385 = vpop.f32.mrb[0].mxu0
      %v3386 = vpop.f32.mrb[0].mxu0
      %v3387 = vadd.f32 0.0, %v3386
      %v3388 = vpop.f32.mrb[0].mxu0
      %3389 = vmatprep.mubr.bf16.mxu0 0
      %3390 = vmatmul.mubr.bf16.gmra.mrb[0].mxu0 %v3322
      %v3391 = vpop.f32.mrb[0].mxu0
      %v3392 = vadd.f32 0.0, %v3391
      %v3393 = vpop.f32.mrb[0].mxu0
      %v3394 = vpop.f32.mrb[0].mxu0
      %v3395 = vadd.f32 0.0, %v3394
      %v3396 = vpop.f32.mrb[0].mxu0
      %3397 = vmatprep.mubr.bf16.mxu0 0
      %3398 = vmatmul.mubr.bf16.gmra.mrb[0].mxu0 %v3325
      %v3399 = vpop.f32.mrb[0].mxu0
      %v3400 = vadd.f32 0.0, %v3399
      %v3401 = vpop.f32.mrb[0].mxu0
      %v3402 = vpop.f32.mrb[0].mxu0
      %v3403 = vadd.f32 0.0, %v3402
      %v3404 = vpop.f32.mrb[0].mxu0
      %3405 = vmatprep.mubr.bf16.mxu0 0
      %3406 = vmatmul.mubr.bf16.gmra.mrb[0].mxu0 %v3328
      %v3407 = vpop.f32.mrb[0].mxu0
      %v3408 = vadd.f32 0.0, %v3407
      %v3409 = vpop.f32.mrb[0].mxu0
      %v3410 = vpop.f32.mrb[0].mxu0
      %v3411 = vadd.f32 0.0, %v3410
      %v3412 = vpop.f32.mrb[0].mxu0
      %3413 = vdwg.mxu0
      %v3416 = vunpack.c.l.b16 %v3253
      %v3417 = vunpack.c.l.b16 %v3264
      %v3418 = vpack.c.b16 %v3284, %v3416
      %v3419 = vpack.c.b16 %v3417, %v3293
      %v3421 = vsel %vm318, %v3418, 0
      %v3424 = vsel %vm318, %v3296, 0
      %v3427 = vsel %vm318, %v3297, 0
      %v3430 = vsel %vm318, %v3298, 0
      %v3433 = vsel %vm318, %v3299, 0
      %v3436 = vsel %vm318, %v3419, 0
      %v3439 = vsel %vm337, %v3266, 0
      %3441 = vmatprep.subr.bf16.mxu0 0
      %3442 = vmatpush1.bf16.msra.mxu0 %v3439
      %3443 = vmatprep.subr.bf16.mxu0 0
      %3444 = vmatpush1.bf16.msra.mxu0 0
      %3445 = vmatprep.subr.bf16.mxu0 0
      %3446 = vmatpush1.bf16.msra.mxu0 0
      %3447 = vmatprep.subr.bf16.mxu0 0
      %3448 = vmatpush1.bf16.msra.mxu0 0
      %3449 = vmatprep.subr.bf16.mxu0 0
      %3450 = vmatpush1.bf16.msra.mxu0 0
      %3451 = vmatprep.subr.bf16.mxu0 0
      %3452 = vmatpush1.bf16.msra.mxu0 0
      %3453 = vmatprep.subr.bf16.mxu0 0
      %3454 = vmatpush1.bf16.msra.mxu0 0
      %3455 = vmatprep.subr.bf16.mxu0 0
      %3456 = vmatpush1.bf16.msra.mxu0 0
      %3457 = vmatprep.subr.bf16.mxu0 0
      %3458 = vmatpush1.bf16.msra.mxu0 0
      %3459 = vmatprep.subr.bf16.mxu0 0
      %3460 = vmatpush1.bf16.msra.mxu0 0
      %3461 = vmatprep.subr.bf16.mxu0 0
      %3462 = vmatpush1.bf16.msra.mxu0 0
      %3463 = vmatprep.subr.bf16.mxu0 0
      %3464 = vmatpush1.bf16.msra.mxu0 0
      %3465 = vmatprep.subr.bf16.mxu0 0
      %3466 = vmatpush1.bf16.msra.mxu0 0
      %3467 = vmatprep.subr.bf16.mxu0 0
      %3468 = vmatpush1.bf16.msra.mxu0 0
      %3469 = vmatprep.subr.bf16.mxu0 0
      %3470 = vmatpush1.bf16.msra.mxu0 0
      %3471 = vmatprep.subr.bf16.mxu0 0
      %3472 = vmatpush1.bf16.msra.mxu0 0
      %3473 = vmatprep.mubr.bf16.mxu0 0
      %3474 = vmatmul.mubr.bf16.gmra.mrb[0].mxu0 %v3421
      %v3475 = vpop.f32.mrb[0].mxu0
      %v3476 = vadd.f32 %v3368, %v3475
      %v3477 = vpop.f32.mrb[0].mxu0
      %v3478 = vpop.f32.mrb[0].mxu0
      %v3479 = vadd.f32 %v3371, %v3478
      %v3480 = vpop.f32.mrb[0].mxu0
      %3481 = vmatprep.mubr.bf16.mxu0 0
      %3482 = vmatmul.mubr.bf16.gmra.mrb[0].mxu0 %v3424
      %v3483 = vpop.f32.mrb[0].mxu0
      %v3484 = vadd.f32 %v3376, %v3483
      %v3485 = vpop.f32.mrb[0].mxu0
      %v3486 = vpop.f32.mrb[0].mxu0
      %v3487 = vadd.f32 %v3379, %v3486
      %v3488 = vpop.f32.mrb[0].mxu0
      %3489 = vmatprep.mubr.bf16.mxu0 0
      %3490 = vmatmul.mubr.bf16.gmra.mrb[0].mxu0 %v3427
      %v3491 = vpop.f32.mrb[0].mxu0
      %v3492 = vadd.f32 %v3384, %v3491
      %v3493 = vpop.f32.mrb[0].mxu0
      %v3494 = vpop.f32.mrb[0].mxu0
      %v3495 = vadd.f32 %v3387, %v3494
      %v3496 = vpop.f32.mrb[0].mxu0
      %3497 = vmatprep.mubr.bf16.mxu0 0
      %3498 = vmatmul.mubr.bf16.gmra.mrb[0].mxu0 %v3430
      %v3499 = vpop.f32.mrb[0].mxu0
      %v3500 = vadd.f32 %v3392, %v3499
      %v3501 = vpop.f32.mrb[0].mxu0
      %v3502 = vpop.f32.mrb[0].mxu0
      %v3503 = vadd.f32 %v3395, %v3502
      %v3504 = vpop.f32.mrb[0].mxu0
      %3505 = vmatprep.mubr.bf16.mxu0 0
      %3506 = vmatmul.mubr.bf16.gmra.mrb[0].mxu0 %v3433
      %v3507 = vpop.f32.mrb[0].mxu0
      %v3508 = vadd.f32 %v3400, %v3507
      %v3509 = vpop.f32.mrb[0].mxu0
      %v3510 = vpop.f32.mrb[0].mxu0
      %v3511 = vadd.f32 %v3403, %v3510
      %v3512 = vpop.f32.mrb[0].mxu0
      %3513 = vmatprep.mubr.bf16.mxu0 0
      %3514 = vmatmul.mubr.bf16.gmra.mrb[0].mxu0 %v3436
      %v3515 = vpop.f32.mrb[0].mxu0
      %v3516 = vadd.f32 %v3408, %v3515
      %v3517 = vpop.f32.mrb[0].mxu0
      %v3518 = vpop.f32.mrb[0].mxu0
      %v3519 = vadd.f32 %v3411, %v3518
      %v3520 = vpop.f32.mrb[0].mxu0
      %3521 = vdwg.mxu0
      %v3522 = vld [vmem:[%s230] sm:$0xc]
      %v3523 = vld [vmem:[%s230 + $0x2c] sm:$0xf]
      %s3524 = scalar_lea.vmem %s1, 40
      %v3525 = vld [vmem:[%s3524] sm:$0x3]
      %v3528 = vunpack.c.l.b16 %v3522
      %v3529 = vunpack.c.l.b16 %v3523
      %v3530 = vpack.c.b16 %v3284, %v3528
      %v3531 = vpack.c.b16 %v3529, %v3293
      %vm3532 = vcmask 1045504
      %v3533 = vrot.slane %v3530, 2
      %v3534 = vrot.slane %v3296, 2
      %v3535 = vsel %vm3532, %v3533, %v3534
      %v3536 = vrot.slane %v3297, 2
      %v3537 = vsel %vm3532, %v3534, %v3536
      %v3538 = vrot.slane %v3298, 2
      %v3539 = vsel %vm3532, %v3536, %v3538
      %v3540 = vrot.slane %v3299, 2
      %v3541 = vsel %vm3532, %v3538, %v3540
      %v3542 = vrot.slane %v3531, 2
      %v3543 = vsel %vm3532, %v3540, %v3542
      %v3545 = vsel %vm318, %v3535, 0
      %v3548 = vsel %vm318, %v3537, 0
      %v3551 = vsel %vm318, %v3539, 0
      %v3554 = vsel %vm318, %v3541, 0
      %v3557 = vsel %vm318, %v3543, 0
      %v3560 = vsel %vm318, %v3542, 0
      %v3563 = vsel %vm337, %v3525, 0
      %3565 = vmatprep.subr.bf16.mxu0 0
      %3566 = vmatpush1.bf16.msra.mxu0 %v3563
      %3567 = vmatprep.subr.bf16.mxu0 0
      %3568 = vmatpush1.bf16.msra.mxu0 0
      %3569 = vmatprep.subr.bf16.mxu0 0
      %3570 = vmatpush1.bf16.msra.mxu0 0
      %3571 = vmatprep.subr.bf16.mxu0 0
      %3572 = vmatpush1.bf16.msra.mxu0 0
      %3573 = vmatprep.subr.bf16.mxu0 0
      %3574 = vmatpush1.bf16.msra.mxu0 0
      %3575 = vmatprep.subr.bf16.mxu0 0
      %3576 = vmatpush1.bf16.msra.mxu0 0
      %3577 = vmatprep.subr.bf16.mxu0 0
      %3578 = vmatpush1.bf16.msra.mxu0 0
      %3579 = vmatprep.subr.bf16.mxu0 0
      %3580 = vmatpush1.bf16.msra.mxu0 0
      %3581 = vmatprep.subr.bf16.mxu0 0
      %3582 = vmatpush1.bf16.msra.mxu0 0
      %3583 = vmatprep.subr.bf16.mxu0 0
      %3584 = vmatpush1.bf16.msra.mxu0 0
      %3585 = vmatprep.subr.bf16.mxu0 0
      %3586 = vmatpush1.bf16.msra.mxu0 0
      %3587 = vmatprep.subr.bf16.mxu0 0
      %3588 = vmatpush1.bf16.msra.mxu0 0
      %3589 = vmatprep.subr.bf16.mxu0 0
      %3590 = vmatpush1.bf16.msra.mxu0 0
      %3591 = vmatprep.subr.bf16.mxu0 0
      %3592 = vmatpush1.bf16.msra.mxu0 0
      %3593 = vmatprep.subr.bf16.mxu0 0
      %3594 = vmatpush1.bf16.msra.mxu0 0
      %3595 = vmatprep.subr.bf16.mxu0 0
      %3596 = vmatpush1.bf16.msra.mxu0 0
      %3597 = vmatprep.mubr.bf16.mxu0 0
      %3598 = vmatmul.mubr.bf16.gmra.mrb[0].mxu0 %v3545
      %v3599 = vpop.f32.mrb[0].mxu0
      %v3600 = vadd.f32 0.0, %v3599
      %v3601 = vpop.f32.mrb[0].mxu0
      %v3602 = vpop.f32.mrb[0].mxu0
      %v3603 = vadd.f32 0.0, %v3602
      %v3604 = vpop.f32.mrb[0].mxu0
      %3605 = vmatprep.mubr.bf16.mxu0 0
      %3606 = vmatmul.mubr.bf16.gmra.mrb[0].mxu0 %v3548
      %v3607 = vpop.f32.mrb[0].mxu0
      %v3608 = vadd.f32 0.0, %v3607
      %v3609 = vpop.f32.mrb[0].mxu0
      %v3610 = vpop.f32.mrb[0].mxu0
      %v3611 = vadd.f32 0.0, %v3610
      %v3612 = vpop.f32.mrb[0].mxu0
      %3613 = vmatprep.mubr.bf16.mxu0 0
      %3614 = vmatmul.mubr.bf16.gmra.mrb[0].mxu0 %v3551
      %v3615 = vpop.f32.mrb[0].mxu0
      %v3616 = vadd.f32 0.0, %v3615
      %v3617 = vpop.f32.mrb[0].mxu0
      %v3618 = vpop.f32.mrb[0].mxu0
      %v3619 = vadd.f32 0.0, %v3618
      %v3620 = vpop.f32.mrb[0].mxu0
      %3621 = vmatprep.mubr.bf16.mxu0 0
      %3622 = vmatmul.mubr.bf16.gmra.mrb[0].mxu0 %v3554
      %v3623 = vpop.f32.mrb[0].mxu0
      %v3624 = vadd.f32 0.0, %v3623
      %v3625 = vpop.f32.mrb[0].mxu0
      %v3626 = vpop.f32.mrb[0].mxu0
      %v3627 = vadd.f32 0.0, %v3626
      %v3628 = vpop.f32.mrb[0].mxu0
      %3629 = vmatprep.mubr.bf16.mxu0 0
      %3630 = vmatmul.mubr.bf16.gmra.mrb[0].mxu0 %v3557
      %v3631 = vpop.f32.mrb[0].mxu0
      %v3632 = vadd.f32 0.0, %v3631
      %v3633 = vpop.f32.mrb[0].mxu0
      %v3634 = vpop.f32.mrb[0].mxu0
      %v3635 = vadd.f32 0.0, %v3634
      %v3636 = vpop.f32.mrb[0].mxu0
      %3637 = vmatprep.mubr.bf16.mxu0 0
      %3638 = vmatmul.mubr.bf16.gmra.mrb[0].mxu0 %v3560
      %v3639 = vpop.f32.mrb[0].mxu0
      %v3640 = vadd.f32 0.0, %v3639
      %v3641 = vpop.f32.mrb[0].mxu0
      %v3642 = vpop.f32.mrb[0].mxu0
      %v3643 = vadd.f32 0.0, %v3642
      %v3644 = vpop.f32.mrb[0].mxu0
      %3645 = vdwg.mxu0
      %v3646 = vadd.f32 %v3476, %v3600
      %v3647 = vadd.f32 %v3479, %v3603
      %v3648 = vadd.f32 %v3484, %v3608
      %v3649 = vadd.f32 %v3487, %v3611
      %v3650 = vadd.f32 %v3492, %v3616
      %v3651 = vadd.f32 %v3495, %v3619
      %v3652 = vadd.f32 %v3500, %v3624
      %v3653 = vadd.f32 %v3503, %v3627
      %v3654 = vadd.f32 %v3508, %v3632
      %v3655 = vadd.f32 %v3511, %v3635
      %v3656 = vadd.f32 %v3516, %v3640
      %v3657 = vadd.f32 %v3519, %v3643
      %v3658 = vld [vmem:[%s230 + $0x38] sm:$0x3]
      %s3659 = scalar_lea.vmem %s1, 42
      %v3660 = vld [vmem:[%s3659] sm:$0x3]
      %v3662 = vunpack.c.l.b16 %v3658
      %v3663 = vpack.c.b16 %v3662, %v992
      %v3664 = vsel %vm318, %v2291, 0
      %v3666 = vsel %vm318, %v995, 0
      %v3668 = vsel %vm318, %v996, 0
      %v3670 = vsel %vm318, %v997, 0
      %v3672 = vsel %vm318, %v998, 0
      %v3675 = vsel %vm318, %v3663, 0
      %v3678 = vsel %vm337, %v3660, 0
      %3680 = vmatprep.subr.bf16.mxu0 0
      %3681 = vmatpush1.bf16.msra.mxu0 %v3678
      %3682 = vmatprep.subr.bf16.mxu0 0
      %3683 = vmatpush1.bf16.msra.mxu0 0
      %3684 = vmatprep.subr.bf16.mxu0 0
      %3685 = vmatpush1.bf16.msra.mxu0 0
      %3686 = vmatprep.subr.bf16.mxu0 0
      %3687 = vmatpush1.bf16.msra.mxu0 0
      %3688 = vmatprep.subr.bf16.mxu0 0
      %3689 = vmatpush1.bf16.msra.mxu0 0
      %3690 = vmatprep.subr.bf16.mxu0 0
      %3691 = vmatpush1.bf16.msra.mxu0 0
      %3692 = vmatprep.subr.bf16.mxu0 0
      %3693 = vmatpush1.bf16.msra.mxu0 0
      %3694 = vmatprep.subr.bf16.mxu0 0
      %3695 = vmatpush1.bf16.msra.mxu0 0
      %3696 = vmatprep.subr.bf16.mxu0 0
      %3697 = vmatpush1.bf16.msra.mxu0 0
      %3698 = vmatprep.subr.bf16.mxu0 0
      %3699 = vmatpush1.bf16.msra.mxu0 0
      %3700 = vmatprep.subr.bf16.mxu0 0
      %3701 = vmatpush1.bf16.msra.mxu0 0
      %3702 = vmatprep.subr.bf16.mxu0 0
      %3703 = vmatpush1.bf16.msra.mxu0 0
      %3704 = vmatprep.subr.bf16.mxu0 0
      %3705 = vmatpush1.bf16.msra.mxu0 0
      %3706 = vmatprep.subr.bf16.mxu0 0
      %3707 = vmatpush1.bf16.msra.mxu0 0
      %3708 = vmatprep.subr.bf16.mxu0 0
      %3709 = vmatpush1.bf16.msra.mxu0 0
      %3710 = vmatprep.subr.bf16.mxu0 0
      %3711 = vmatpush1.bf16.msra.mxu0 0
      %3712 = vmatprep.mubr.bf16.mxu0 0
      %3713 = vmatmul.mubr.bf16.gmra.mrb[0].mxu0 %v3664
      %v3714 = vpop.f32.mrb[0].mxu0
      %v3715 = vadd.f32 0.0, %v3714
      %v3716 = vpop.f32.mrb[0].mxu0
      %v3717 = vpop.f32.mrb[0].mxu0
      %v3718 = vadd.f32 0.0, %v3717
      %v3719 = vpop.f32.mrb[0].mxu0
      %3720 = vmatprep.mubr.bf16.mxu0 0
      %3721 = vmatmul.mubr.bf16.gmra.mrb[0].mxu0 %v3666
      %v3722 = vpop.f32.mrb[0].mxu0
      %v3723 = vadd.f32 0.0, %v3722
      %v3724 = vpop.f32.mrb[0].mxu0
      %v3725 = vpop.f32.mrb[0].mxu0
      %v3726 = vadd.f32 0.0, %v3725
      %v3727 = vpop.f32.mrb[0].mxu0
      %3728 = vmatprep.mubr.bf16.mxu0 0
      %3729 = vmatmul.mubr.bf16.gmra.mrb[0].mxu0 %v3668
      %v3730 = vpop.f32.mrb[0].mxu0
      %v3731 = vadd.f32 0.0, %v3730
      %v3732 = vpop.f32.mrb[0].mxu0
      %v3733 = vpop.f32.mrb[0].mxu0
      %v3734 = vadd.f32 0.0, %v3733
      %v3735 = vpop.f32.mrb[0].mxu0
      %3736 = vmatprep.mubr.bf16.mxu0 0
      %3737 = vmatmul.mubr.bf16.gmra.mrb[0].mxu0 %v3670
      %v3738 = vpop.f32.mrb[0].mxu0
      %v3739 = vadd.f32 0.0, %v3738
      %v3740 = vpop.f32.mrb[0].mxu0
      %v3741 = vpop.f32.mrb[0].mxu0
      %v3742 = vadd.f32 0.0, %v3741
      %v3743 = vpop.f32.mrb[0].mxu0
      %3744 = vmatprep.mubr.bf16.mxu0 0
      %3745 = vmatmul.mubr.bf16.gmra.mrb[0].mxu0 %v3672
      %v3746 = vpop.f32.mrb[0].mxu0
      %v3747 = vadd.f32 0.0, %v3746
      %v3748 = vpop.f32.mrb[0].mxu0
      %v3749 = vpop.f32.mrb[0].mxu0
      %v3750 = vadd.f32 0.0, %v3749
      %v3751 = vpop.f32.mrb[0].mxu0
      %3752 = vmatprep.mubr.bf16.mxu0 0
      %3753 = vmatmul.mubr.bf16.gmra.mrb[0].mxu0 %v3675
      %v3754 = vpop.f32.mrb[0].mxu0
      %v3755 = vadd.f32 0.0, %v3754
      %v3756 = vpop.f32.mrb[0].mxu0
      %v3757 = vpop.f32.mrb[0].mxu0
      %v3758 = vadd.f32 0.0, %v3757
      %v3759 = vpop.f32.mrb[0].mxu0
      %3760 = vdwg.mxu0
      %v3761 = vadd.f32 %v3646, %v3715
      %v3762 = vadd.f32 %v3647, %v3718
      %v3763 = vadd.f32 %v3648, %v3723
      %v3764 = vadd.f32 %v3649, %v3726
      %v3765 = vadd.f32 %v3650, %v3731
      %v3766 = vadd.f32 %v3651, %v3734
      %v3767 = vadd.f32 %v3652, %v3739
      %v3768 = vadd.f32 %v3653, %v3742
      %v3769 = vadd.f32 %v3654, %v3747
      %v3770 = vadd.f32 %v3655, %v3750
      %v3771 = vadd.f32 %v3656, %v3755
      %v3772 = vadd.f32 %v3657, %v3758
      %s3773 = scalar_lea.vmem %s1, 44
      %v3774 = vld [vmem:[%s3773] sm:$0x3]
      %v3776 = vsel %vm337, %v3774, 0
      %3778 = vmatprep.subr.bf16.mxu0 0
      %3779 = vmatpush1.bf16.msra.mxu0 %v3776
      %3780 = vmatprep.subr.bf16.mxu0 0
      %3781 = vmatpush1.bf16.msra.mxu0 0
      %3782 = vmatprep.subr.bf16.mxu0 0
      %3783 = vmatpush1.bf16.msra.mxu0 0
      %3784 = vmatprep.subr.bf16.mxu0 0
      %3785 = vmatpush1.bf16.msra.mxu0 0
      %3786 = vmatprep.subr.bf16.mxu0 0
      %3787 = vmatpush1.bf16.msra.mxu0 0
      %3788 = vmatprep.subr.bf16.mxu0 0
      %3789 = vmatpush1.bf16.msra.mxu0 0
      %3790 = vmatprep.subr.bf16.mxu0 0
      %3791 = vmatpush1.bf16.msra.mxu0 0
      %3792 = vmatprep.subr.bf16.mxu0 0
      %3793 = vmatpush1.bf16.msra.mxu0 0
      %3794 = vmatprep.subr.bf16.mxu0 0
      %3795 = vmatpush1.bf16.msra.mxu0 0
      %3796 = vmatprep.subr.bf16.mxu0 0
      %3797 = vmatpush1.bf16.msra.mxu0 0
      %3798 = vmatprep.subr.bf16.mxu0 0
      %3799 = vmatpush1.bf16.msra.mxu0 0
      %3800 = vmatprep.subr.bf16.mxu0 0
      %3801 = vmatpush1.bf16.msra.mxu0 0
      %3802 = vmatprep.subr.bf16.mxu0 0
      %3803 = vmatpush1.bf16.msra.mxu0 0
      %3804 = vmatprep.subr.bf16.mxu0 0
      %3805 = vmatpush1.bf16.msra.mxu0 0
      %3806 = vmatprep.subr.bf16.mxu0 0
      %3807 = vmatpush1.bf16.msra.mxu0 0
      %3808 = vmatprep.subr.bf16.mxu0 0
      %3809 = vmatpush1.bf16.msra.mxu0 0
      %3810 = vmatprep.mubr.bf16.mxu0 0
      %3811 = vmatmul.mubr.bf16.gmra.mrb[0].mxu0 %v1013
      %v3812 = vpop.f32.mrb[0].mxu0
      %v3813 = vadd.f32 0.0, %v3812
      %v3814 = vpop.f32.mrb[0].mxu0
      %v3815 = vpop.f32.mrb[0].mxu0
      %v3816 = vadd.f32 0.0, %v3815
      %v3817 = vpop.f32.mrb[0].mxu0
      %3818 = vmatprep.mubr.bf16.mxu0 0
      %3819 = vmatmul.mubr.bf16.gmra.mrb[0].mxu0 %v1016
      %v3820 = vpop.f32.mrb[0].mxu0
      %v3821 = vadd.f32 0.0, %v3820
      %v3822 = vpop.f32.mrb[0].mxu0
      %v3823 = vpop.f32.mrb[0].mxu0
      %v3824 = vadd.f32 0.0, %v3823
      %v3825 = vpop.f32.mrb[0].mxu0
      %3826 = vmatprep.mubr.bf16.mxu0 0
      %3827 = vmatmul.mubr.bf16.gmra.mrb[0].mxu0 %v1019
      %v3828 = vpop.f32.mrb[0].mxu0
      %v3829 = vadd.f32 0.0, %v3828
      %v3830 = vpop.f32.mrb[0].mxu0
      %v3831 = vpop.f32.mrb[0].mxu0
      %v3832 = vadd.f32 0.0, %v3831
      %v3833 = vpop.f32.mrb[0].mxu0
      %3834 = vmatprep.mubr.bf16.mxu0 0
      %3835 = vmatmul.mubr.bf16.gmra.mrb[0].mxu0 %v1022
      %v3836 = vpop.f32.mrb[0].mxu0
      %v3837 = vadd.f32 0.0, %v3836
      %v3838 = vpop.f32.mrb[0].mxu0
      %v3839 = vpop.f32.mrb[0].mxu0
      %v3840 = vadd.f32 0.0, %v3839
      %v3841 = vpop.f32.mrb[0].mxu0
      %3842 = vmatprep.mubr.bf16.mxu0 0
      %3843 = vmatmul.mubr.bf16.gmra.mrb[0].mxu0 %v1025
      %v3844 = vpop.f32.mrb[0].mxu0
      %v3845 = vadd.f32 0.0, %v3844
      %v3846 = vpop.f32.mrb[0].mxu0
      %v3847 = vpop.f32.mrb[0].mxu0
      %v3848 = vadd.f32 0.0, %v3847
      %v3849 = vpop.f32.mrb[0].mxu0
      %3850 = vmatprep.mubr.bf16.mxu0 0
      %3851 = vmatmul.mubr.bf16.gmra.mrb[0].mxu0 %v1028
      %v3852 = vpop.f32.mrb[0].mxu0
      %v3853 = vadd.f32 0.0, %v3852
      %v3854 = vpop.f32.mrb[0].mxu0
      %v3855 = vpop.f32.mrb[0].mxu0
      %v3856 = vadd.f32 0.0, %v3855
      %v3857 = vpop.f32.mrb[0].mxu0
      %3858 = vdwg.mxu0
      %v3859 = vadd.f32 %v3761, %v3813
      %v3860 = vadd.f32 %v3762, %v3816
      %v3861 = vadd.f32 %v3763, %v3821
      %v3862 = vadd.f32 %v3764, %v3824
      %v3863 = vadd.f32 %v3765, %v3829
      %v3864 = vadd.f32 %v3766, %v3832
      %v3865 = vadd.f32 %v3767, %v3837
      %v3866 = vadd.f32 %v3768, %v3840
      %v3867 = vadd.f32 %v3769, %v3845
      %v3868 = vadd.f32 %v3770, %v3848
      %v3869 = vadd.f32 %v3771, %v3853
      %v3870 = vadd.f32 %v3772, %v3856
      %v3871 = vld [vmem:[%s230 + $0xc] sm:$0xc]
      %s3872 = scalar_lea.vmem %s1, 46
      %v3873 = vld [vmem:[%s3872] sm:$0x3]
      %v3875 = vunpack.c.l.b16 %v3871
      %v3876 = vpack.c.b16 %v983, %v3875
      %v3877 = vrot.slane %v3876, 2
      %v3878 = vrot.slane %v995, 2
      %v3879 = vsel %vm3532, %v3877, %v3878
      %v3880 = vrot.slane %v996, 2
      %v3881 = vsel %vm3532, %v3878, %v3880
      %v3882 = vrot.slane %v997, 2
      %v3883 = vsel %vm3532, %v3880, %v3882
      %v3884 = vrot.slane %v998, 2
      %v3885 = vsel %vm3532, %v3882, %v3884
      %v3886 = vrot.slane %v2556, 2
      %v3887 = vsel %vm3532, %v3884, %v3886
      %v3889 = vsel %vm318, %v3879, 0
      %v3892 = vsel %vm318, %v3881, 0
      %v3895 = vsel %vm318, %v3883, 0
      %v3898 = vsel %vm318, %v3885, 0
      %v3901 = vsel %vm318, %v3887, 0
      %v3904 = vsel %vm318, %v3886, 0
      %v3907 = vsel %vm337, %v3873, 0
      %3909 = vmatprep.subr.bf16.mxu0 0
      %3910 = vmatpush1.bf16.msra.mxu0 %v3907
      %3911 = vmatprep.subr.bf16.mxu0 0
      %3912 = vmatpush1.bf16.msra.mxu0 0
      %3913 = vmatprep.subr.bf16.mxu0 0
      %3914 = vmatpush1.bf16.msra.mxu0 0
      %3915 = vmatprep.subr.bf16.mxu0 0
      %3916 = vmatpush1.bf16.msra.mxu0 0
      %3917 = vmatprep.subr.bf16.mxu0 0
      %3918 = vmatpush1.bf16.msra.mxu0 0
      %3919 = vmatprep.subr.bf16.mxu0 0
      %3920 = vmatpush1.bf16.msra.mxu0 0
      %3921 = vmatprep.subr.bf16.mxu0 0
      %3922 = vmatpush1.bf16.msra.mxu0 0
      %3923 = vmatprep.subr.bf16.mxu0 0
      %3924 = vmatpush1.bf16.msra.mxu0 0
      %3925 = vmatprep.subr.bf16.mxu0 0
      %3926 = vmatpush1.bf16.msra.mxu0 0
      %3927 = vmatprep.subr.bf16.mxu0 0
      %3928 = vmatpush1.bf16.msra.mxu0 0
      %3929 = vmatprep.subr.bf16.mxu0 0
      %3930 = vmatpush1.bf16.msra.mxu0 0
      %3931 = vmatprep.subr.bf16.mxu0 0
      %3932 = vmatpush1.bf16.msra.mxu0 0
      %3933 = vmatprep.subr.bf16.mxu0 0
      %3934 = vmatpush1.bf16.msra.mxu0 0
      %3935 = vmatprep.subr.bf16.mxu0 0
      %3936 = vmatpush1.bf16.msra.mxu0 0
      %3937 = vmatprep.subr.bf16.mxu0 0
      %3938 = vmatpush1.bf16.msra.mxu0 0
      %3939 = vmatprep.subr.bf16.mxu0 0
      %3940 = vmatpush1.bf16.msra.mxu0 0
      %3941 = vmatprep.mubr.bf16.mxu0 0
      %3942 = vmatmul.mubr.bf16.gmra.mrb[0].mxu0 %v3889
      %v3943 = vpop.f32.mrb[0].mxu0
      %v3944 = vadd.f32 0.0, %v3943
      %v3945 = vpop.f32.mrb[0].mxu0
      %v3946 = vpop.f32.mrb[0].mxu0
      %v3947 = vadd.f32 0.0, %v3946
      %v3948 = vpop.f32.mrb[0].mxu0
      %3949 = vmatprep.mubr.bf16.mxu0 0
      %3950 = vmatmul.mubr.bf16.gmra.mrb[0].mxu0 %v3892
      %v3951 = vpop.f32.mrb[0].mxu0
      %v3952 = vadd.f32 0.0, %v3951
      %v3953 = vpop.f32.mrb[0].mxu0
      %v3954 = vpop.f32.mrb[0].mxu0
      %v3955 = vadd.f32 0.0, %v3954
      %v3956 = vpop.f32.mrb[0].mxu0
      %3957 = vmatprep.mubr.bf16.mxu0 0
      %3958 = vmatmul.mubr.bf16.gmra.mrb[0].mxu0 %v3895
      %v3959 = vpop.f32.mrb[0].mxu0
      %v3960 = vadd.f32 0.0, %v3959
      %v3961 = vpop.f32.mrb[0].mxu0
      %v3962 = vpop.f32.mrb[0].mxu0
      %v3963 = vadd.f32 0.0, %v3962
      %v3964 = vpop.f32.mrb[0].mxu0
      %3965 = vmatprep.mubr.bf16.mxu0 0
      %3966 = vmatmul.mubr.bf16.gmra.mrb[0].mxu0 %v3898
      %v3967 = vpop.f32.mrb[0].mxu0
      %v3968 = vadd.f32 0.0, %v3967
      %v3969 = vpop.f32.mrb[0].mxu0
      %v3970 = vpop.f32.mrb[0].mxu0
      %v3971 = vadd.f32 0.0, %v3970
      %v3972 = vpop.f32.mrb[0].mxu0
      %3973 = vmatprep.mubr.bf16.mxu0 0
      %3974 = vmatmul.mubr.bf16.gmra.mrb[0].mxu0 %v3901
      %v3975 = vpop.f32.mrb[0].mxu0
      %v3976 = vadd.f32 0.0, %v3975
      %v3977 = vpop.f32.mrb[0].mxu0
      %v3978 = vpop.f32.mrb[0].mxu0
      %v3979 = vadd.f32 0.0, %v3978
      %v3980 = vpop.f32.mrb[0].mxu0
      %3981 = vmatprep.mubr.bf16.mxu0 0
      %3982 = vmatmul.mubr.bf16.gmra.mrb[0].mxu0 %v3904
      %v3983 = vpop.f32.mrb[0].mxu0
      %v3984 = vadd.f32 0.0, %v3983
      %v3985 = vpop.f32.mrb[0].mxu0
      %v3986 = vpop.f32.mrb[0].mxu0
      %v3987 = vadd.f32 0.0, %v3986
      %v3988 = vpop.f32.mrb[0].mxu0
      %3989 = vdwg.mxu0
      %v3990 = vadd.f32 %v3859, %v3944
      %v3991 = vadd.f32 %v3860, %v3947
      %v3992 = vadd.f32 %v3861, %v3952
      %v3993 = vadd.f32 %v3862, %v3955
      %v3994 = vadd.f32 %v3863, %v3960
      %v3995 = vadd.f32 %v3864, %v3963
      %v3996 = vadd.f32 %v3865, %v3968
      %v3997 = vadd.f32 %v3866, %v3971
      %v3998 = vadd.f32 %v3867, %v3976
      %v3999 = vadd.f32 %v3868, %v3979
      %v4000 = vadd.f32 %v3869, %v3984
      %v4001 = vadd.f32 %v3870, %v3987
      %v4002 = vld [vmem:[%s230 + $0x18] sm:$0xf]
      %v4003 = vld [vmem:[%s230 + $0x1c] sm:$0xf]
      %v4004 = vld [vmem:[%s230 + $0x20] sm:$0xf]
      %v4005 = vld [vmem:[%s230 + $0x24] sm:$0xf]
      %v4006 = vld [vmem:[%s230 + $0x28] sm:$0xf]
      %v4007 = vld [vmem:[%s230 + $0x2c] sm:$0xf]
      %v4008 = vld [vmem:[%s230 + $0x30] sm:$0xf]
      %v4009 = vld [vmem:[%s230 + $0x34] sm:$0xf]
      %v4010 = vld [vmem:[%s230 + $0x38] sm:$0xf]
      %v4011 = vld [vmem:[%s230 + $0x3c] sm:$0xf]
      %v4012 = vld [vmem:[%s230 + $0x40] sm:$0xf]
      %v4013 = vld [vmem:[%s230 + $0x44] sm:$0x3]
      %s4014 = scalar_lea.vmem %s1, 48
      %v4015 = vld [vmem:[%s4014] sm:$0x3]
      %v4028 = vunpack.c.l.b16 %v4002
      %v4029 = vunpack.c.l.b16 %v4003
      %v4030 = vunpack.c.l.b16 %v4004
      %v4031 = vunpack.c.l.b16 %v4005
      %v4032 = vunpack.c.l.b16 %v4006
      %v4033 = vunpack.c.l.b16 %v4007
      %v4034 = vunpack.c.l.b16 %v4008
      %v4035 = vunpack.c.l.b16 %v4009
      %v4036 = vunpack.c.l.b16 %v4010
      %v4037 = vunpack.c.l.b16 %v4011
      %v4038 = vunpack.c.l.b16 %v4012
      %v4039 = vunpack.c.l.b16 %v4013
      %v4040 = vpack.c.b16 %v4029, %v4028
      %v4041 = vpack.c.b16 %v4031, %v4030
      %v4042 = vpack.c.b16 %v4033, %v4032
      %v4043 = vpack.c.b16 %v4035, %v4034
      %v4044 = vpack.c.b16 %v4037, %v4036
      %v4045 = vpack.c.b16 %v4039, %v4038
      %v4047 = vsel %vm318, %v4040, 0
      %v4050 = vsel %vm318, %v4041, 0
      %v4053 = vsel %vm318, %v4042, 0
      %v4056 = vsel %vm318, %v4043, 0
      %v4059 = vsel %vm318, %v4044, 0
      %v4062 = vsel %vm318, %v4045, 0
      %v4065 = vsel %vm337, %v4015, 0
      %4067 = vmatprep.subr.bf16.mxu0 0
      %4068 = vmatpush1.bf16.msra.mxu0 %v4065
      %4069 = vmatprep.subr.bf16.mxu0 0
      %4070 = vmatpush1.bf16.msra.mxu0 0
      %4071 = vmatprep.subr.bf16.mxu0 0
      %4072 = vmatpush1.bf16.msra.mxu0 0
      %4073 = vmatprep.subr.bf16.mxu0 0
      %4074 = vmatpush1.bf16.msra.mxu0 0
      %4075 = vmatprep.subr.bf16.mxu0 0
      %4076 = vmatpush1.bf16.msra.mxu0 0
      %4077 = vmatprep.subr.bf16.mxu0 0
      %4078 = vmatpush1.bf16.msra.mxu0 0
      %4079 = vmatprep.subr.bf16.mxu0 0
      %4080 = vmatpush1.bf16.msra.mxu0 0
      %4081 = vmatprep.subr.bf16.mxu0 0
      %4082 = vmatpush1.bf16.msra.mxu0 0
      %4083 = vmatprep.subr.bf16.mxu0 0
      %4084 = vmatpush1.bf16.msra.mxu0 0
      %4085 = vmatprep.subr.bf16.mxu0 0
      %4086 = vmatpush1.bf16.msra.mxu0 0
      %4087 = vmatprep.subr.bf16.mxu0 0
      %4088 = vmatpush1.bf16.msra.mxu0 0
      %4089 = vmatprep.subr.bf16.mxu0 0
      %4090 = vmatpush1.bf16.msra.mxu0 0
      %4091 = vmatprep.subr.bf16.mxu0 0
      %4092 = vmatpush1.bf16.msra.mxu0 0
      %4093 = vmatprep.subr.bf16.mxu0 0
      %4094 = vmatpush1.bf16.msra.mxu0 0
      %4095 = vmatprep.subr.bf16.mxu0 0
      %4096 = vmatpush1.bf16.msra.mxu0 0
      %4097 = vmatprep.subr.bf16.mxu0 0
      %4098 = vmatpush1.bf16.msra.mxu0 0
      %4099 = vmatprep.mubr.bf16.mxu0 0
      %4100 = vmatmul.mubr.bf16.gmra.mrb[0].mxu0 %v4047
      %v4101 = vpop.f32.mrb[0].mxu0
      %v4102 = vadd.f32 0.0, %v4101
      %v4103 = vpop.f32.mrb[0].mxu0
      %v4104 = vpop.f32.mrb[0].mxu0
      %v4105 = vadd.f32 0.0, %v4104
      %v4106 = vpop.f32.mrb[0].mxu0
      %4107 = vmatprep.mubr.bf16.mxu0 0
      %4108 = vmatmul.mubr.bf16.gmra.mrb[0].mxu0 %v4050
      %v4109 = vpop.f32.mrb[0].mxu0
      %v4110 = vadd.f32 0.0, %v4109
      %v4111 = vpop.f32.mrb[0].mxu0
      %v4112 = vpop.f32.mrb[0].mxu0
      %v4113 = vadd.f32 0.0, %v4112
      %v4114 = vpop.f32.mrb[0].mxu0
      %4115 = vmatprep.mubr.bf16.mxu0 0
      %4116 = vmatmul.mubr.bf16.gmra.mrb[0].mxu0 %v4053
      %v4117 = vpop.f32.mrb[0].mxu0
      %v4118 = vadd.f32 0.0, %v4117
      %v4119 = vpop.f32.mrb[0].mxu0
      %v4120 = vpop.f32.mrb[0].mxu0
      %v4121 = vadd.f32 0.0, %v4120
      %v4122 = vpop.f32.mrb[0].mxu0
      %4123 = vmatprep.mubr.bf16.mxu0 0
      %4124 = vmatmul.mubr.bf16.gmra.mrb[0].mxu0 %v4056
      %v4125 = vpop.f32.mrb[0].mxu0
      %v4126 = vadd.f32 0.0, %v4125
      %v4127 = vpop.f32.mrb[0].mxu0
      %v4128 = vpop.f32.mrb[0].mxu0
      %v4129 = vadd.f32 0.0, %v4128
      %v4130 = vpop.f32.mrb[0].mxu0
      %4131 = vmatprep.mubr.bf16.mxu0 0
      %4132 = vmatmul.mubr.bf16.gmra.mrb[0].mxu0 %v4059
      %v4133 = vpop.f32.mrb[0].mxu0
      %v4134 = vadd.f32 0.0, %v4133
      %v4135 = vpop.f32.mrb[0].mxu0
      %v4136 = vpop.f32.mrb[0].mxu0
      %v4137 = vadd.f32 0.0, %v4136
      %v4138 = vpop.f32.mrb[0].mxu0
      %4139 = vmatprep.mubr.bf16.mxu0 0
      %4140 = vmatmul.mubr.bf16.gmra.mrb[0].mxu0 %v4062
      %v4141 = vpop.f32.mrb[0].mxu0
      %v4142 = vadd.f32 0.0, %v4141
      %v4143 = vpop.f32.mrb[0].mxu0
      %v4144 = vpop.f32.mrb[0].mxu0
      %v4145 = vadd.f32 0.0, %v4144
      %v4146 = vpop.f32.mrb[0].mxu0
      %4147 = vdwg.mxu0
      %v4148 = vadd.f32 %v3990, %v4102
      %v4149 = vadd.f32 %v3991, %v4105
      %v4150 = vadd.f32 %v3992, %v4110
      %v4151 = vadd.f32 %v3993, %v4113
      %v4152 = vadd.f32 %v3994, %v4118
      %v4153 = vadd.f32 %v3995, %v4121
      %v4154 = vadd.f32 %v3996, %v4126
      %v4155 = vadd.f32 %v3997, %v4129
      %v4156 = vadd.f32 %v3998, %v4134
      %v4157 = vadd.f32 %v3999, %v4137
      %v4158 = vadd.f32 %v4000, %v4142
      %v4159 = vadd.f32 %v4001, %v4145
      %v4160 = vld [vmem:[%s230 + $0x18] sm:$0xe]
      %v4161 = vld [vmem:[%s230 + $0x44] sm:$0x7]
      %s4162 = scalar_lea.vmem %s1, 50
      %v4163 = vld [vmem:[%s4162] sm:$0x3]
      %v4166 = vunpack.c.l.b16 %v4160
      %v4167 = vunpack.c.l.b16 %v4161
      %v4168 = vpack.c.b16 %v4029, %v4166
      %v4169 = vpack.c.b16 %v4167, %v4038
      %v4170 = vrot.slane %v4168, 1
      %v4171 = vrot.slane %v4041, 1
      %v4172 = vsel %vm1000, %v4170, %v4171
      %v4173 = vrot.slane %v4042, 1
      %v4174 = vsel %vm1000, %v4171, %v4173
      %v4175 = vrot.slane %v4043, 1
      %v4176 = vsel %vm1000, %v4173, %v4175
      %v4177 = vrot.slane %v4044, 1
      %v4178 = vsel %vm1000, %v4175, %v4177
      %v4179 = vrot.slane %v4169, 1
      %v4180 = vsel %vm1000, %v4177, %v4179
      %v4182 = vsel %vm318, %v4172, 0
      %v4185 = vsel %vm318, %v4174, 0
      %v4188 = vsel %vm318, %v4176, 0
      %v4191 = vsel %vm318, %v4178, 0
      %v4194 = vsel %vm318, %v4180, 0
      %v4197 = vsel %vm318, %v4179, 0
      %v4200 = vsel %vm337, %v4163, 0
      %4202 = vmatprep.subr.bf16.mxu0 0
      %4203 = vmatpush1.bf16.msra.mxu0 %v4200
      %4204 = vmatprep.subr.bf16.mxu0 0
      %4205 = vmatpush1.bf16.msra.mxu0 0
      %4206 = vmatprep.subr.bf16.mxu0 0
      %4207 = vmatpush1.bf16.msra.mxu0 0
      %4208 = vmatprep.subr.bf16.mxu0 0
      %4209 = vmatpush1.bf16.msra.mxu0 0
      %4210 = vmatprep.subr.bf16.mxu0 0
      %4211 = vmatpush1.bf16.msra.mxu0 0
      %4212 = vmatprep.subr.bf16.mxu0 0
      %4213 = vmatpush1.bf16.msra.mxu0 0
      %4214 = vmatprep.subr.bf16.mxu0 0
      %4215 = vmatpush1.bf16.msra.mxu0 0
      %4216 = vmatprep.subr.bf16.mxu0 0
      %4217 = vmatpush1.bf16.msra.mxu0 0
      %4218 = vmatprep.subr.bf16.mxu0 0
      %4219 = vmatpush1.bf16.msra.mxu0 0
      %4220 = vmatprep.subr.bf16.mxu0 0
      %4221 = vmatpush1.bf16.msra.mxu0 0
      %4222 = vmatprep.subr.bf16.mxu0 0
      %4223 = vmatpush1.bf16.msra.mxu0 0
      %4224 = vmatprep.subr.bf16.mxu0 0
      %4225 = vmatpush1.bf16.msra.mxu0 0
      %4226 = vmatprep.subr.bf16.mxu0 0
      %4227 = vmatpush1.bf16.msra.mxu0 0
      %4228 = vmatprep.subr.bf16.mxu0 0
      %4229 = vmatpush1.bf16.msra.mxu0 0
      %4230 = vmatprep.subr.bf16.mxu0 0
      %4231 = vmatpush1.bf16.msra.mxu0 0
      %4232 = vmatprep.subr.bf16.mxu0 0
      %4233 = vmatpush1.bf16.msra.mxu0 0
      %4234 = vmatprep.mubr.bf16.mxu0 0
      %4235 = vmatmul.mubr.bf16.gmra.mrb[0].mxu0 %v4182
      %v4236 = vpop.f32.mrb[0].mxu0
      %v4237 = vadd.f32 0.0, %v4236
      %v4238 = vpop.f32.mrb[0].mxu0
      %v4239 = vpop.f32.mrb[0].mxu0
      %v4240 = vadd.f32 0.0, %v4239
      %v4241 = vpop.f32.mrb[0].mxu0
      %4242 = vmatprep.mubr.bf16.mxu0 0
      %4243 = vmatmul.mubr.bf16.gmra.mrb[0].mxu0 %v4185
      %v4244 = vpop.f32.mrb[0].mxu0
      %v4245 = vadd.f32 0.0, %v4244
      %v4246 = vpop.f32.mrb[0].mxu0
      %v4247 = vpop.f32.mrb[0].mxu0
      %v4248 = vadd.f32 0.0, %v4247
      %v4249 = vpop.f32.mrb[0].mxu0
      %4250 = vmatprep.mubr.bf16.mxu0 0
      %4251 = vmatmul.mubr.bf16.gmra.mrb[0].mxu0 %v4188
      %v4252 = vpop.f32.mrb[0].mxu0
      %v4253 = vadd.f32 0.0, %v4252
      %v4254 = vpop.f32.mrb[0].mxu0
      %v4255 = vpop.f32.mrb[0].mxu0
      %v4256 = vadd.f32 0.0, %v4255
      %v4257 = vpop.f32.mrb[0].mxu0
      %4258 = vmatprep.mubr.bf16.mxu0 0
      %4259 = vmatmul.mubr.bf16.gmra.mrb[0].mxu0 %v4191
      %v4260 = vpop.f32.mrb[0].mxu0
      %v4261 = vadd.f32 0.0, %v4260
      %v4262 = vpop.f32.mrb[0].mxu0
      %v4263 = vpop.f32.mrb[0].mxu0
      %v4264 = vadd.f32 0.0, %v4263
      %v4265 = vpop.f32.mrb[0].mxu0
      %4266 = vmatprep.mubr.bf16.mxu0 0
      %4267 = vmatmul.mubr.bf16.gmra.mrb[0].mxu0 %v4194
      %v4268 = vpop.f32.mrb[0].mxu0
      %v4269 = vadd.f32 0.0, %v4268
      %v4270 = vpop.f32.mrb[0].mxu0
      %v4271 = vpop.f32.mrb[0].mxu0
      %v4272 = vadd.f32 0.0, %v4271
      %v4273 = vpop.f32.mrb[0].mxu0
      %4274 = vmatprep.mubr.bf16.mxu0 0
      %4275 = vmatmul.mubr.bf16.gmra.mrb[0].mxu0 %v4197
      %v4276 = vpop.f32.mrb[0].mxu0
      %v4277 = vadd.f32 0.0, %v4276
      %v4278 = vpop.f32.mrb[0].mxu0
      %v4279 = vpop.f32.mrb[0].mxu0
      %v4280 = vadd.f32 0.0, %v4279
      %v4281 = vpop.f32.mrb[0].mxu0
      %4282 = vdwg.mxu0
      %v4283 = vadd.f32 %v4148, %v4237
      %v4284 = vadd.f32 %v4149, %v4240
      %v4285 = vadd.f32 %v4150, %v4245
      %v4286 = vadd.f32 %v4151, %v4248
      %v4287 = vadd.f32 %v4152, %v4253
      %v4288 = vadd.f32 %v4153, %v4256
      %v4289 = vadd.f32 %v4154, %v4261
      %v4290 = vadd.f32 %v4155, %v4264
      %v4291 = vadd.f32 %v4156, %v4269
      %v4292 = vadd.f32 %v4157, %v4272
      %v4293 = vadd.f32 %v4158, %v4277
      %v4294 = vadd.f32 %v4159, %v4280
      %v4295 = vld [vmem:[%s230 + $0x18] sm:$0xc]
      %v4296 = vld [vmem:[%s230 + $0x44] sm:$0xf]
      %s4297 = scalar_lea.vmem %s1, 52
      %v4298 = vld [vmem:[%s4297] sm:$0x3]
      %v4301 = vunpack.c.l.b16 %v4295
      %v4302 = vunpack.c.l.b16 %v4296
      %v4303 = vpack.c.b16 %v4029, %v4301
      %v4304 = vpack.c.b16 %v4302, %v4038
      %v4305 = vrot.slane %v4303, 2
      %v4306 = vrot.slane %v4041, 2
      %v4307 = vsel %vm3532, %v4305, %v4306
      %v4308 = vrot.slane %v4042, 2
      %v4309 = vsel %vm3532, %v4306, %v4308
      %v4310 = vrot.slane %v4043, 2
      %v4311 = vsel %vm3532, %v4308, %v4310
      %v4312 = vrot.slane %v4044, 2
      %v4313 = vsel %vm3532, %v4310, %v4312
      %v4314 = vrot.slane %v4304, 2
      %v4315 = vsel %vm3532, %v4312, %v4314
      %v4317 = vsel %vm318, %v4307, 0
      %v4320 = vsel %vm318, %v4309, 0
      %v4323 = vsel %vm318, %v4311, 0
      %v4326 = vsel %vm318, %v4313, 0
      %v4329 = vsel %vm318, %v4315, 0
      %v4332 = vsel %vm318, %v4314, 0
      %v4335 = vsel %vm337, %v4298, 0
      %4337 = vmatprep.subr.bf16.mxu0 0
      %4338 = vmatpush1.bf16.msra.mxu0 %v4335
      %4339 = vmatprep.subr.bf16.mxu0 0
      %4340 = vmatpush1.bf16.msra.mxu0 0
      %4341 = vmatprep.subr.bf16.mxu0 0
      %4342 = vmatpush1.bf16.msra.mxu0 0
      %4343 = vmatprep.subr.bf16.mxu0 0
      %4344 = vmatpush1.bf16.msra.mxu0 0
      %4345 = vmatprep.subr.bf16.mxu0 0
      %4346 = vmatpush1.bf16.msra.mxu0 0
      %4347 = vmatprep.subr.bf16.mxu0 0
      %4348 = vmatpush1.bf16.msra.mxu0 0
      %4349 = vmatprep.subr.bf16.mxu0 0
      %4350 = vmatpush1.bf16.msra.mxu0 0
      %4351 = vmatprep.subr.bf16.mxu0 0
      %4352 = vmatpush1.bf16.msra.mxu0 0
      %4353 = vmatprep.subr.bf16.mxu0 0
      %4354 = vmatpush1.bf16.msra.mxu0 0
      %4355 = vmatprep.subr.bf16.mxu0 0
      %4356 = vmatpush1.bf16.msra.mxu0 0
      %4357 = vmatprep.subr.bf16.mxu0 0
      %4358 = vmatpush1.bf16.msra.mxu0 0
      %4359 = vmatprep.subr.bf16.mxu0 0
      %4360 = vmatpush1.bf16.msra.mxu0 0
      %4361 = vmatprep.subr.bf16.mxu0 0
      %4362 = vmatpush1.bf16.msra.mxu0 0
      %4363 = vmatprep.subr.bf16.mxu0 0
      %4364 = vmatpush1.bf16.msra.mxu0 0
      %4365 = vmatprep.subr.bf16.mxu0 0
      %4366 = vmatpush1.bf16.msra.mxu0 0
      %4367 = vmatprep.subr.bf16.mxu0 0
      %4368 = vmatpush1.bf16.msra.mxu0 0
      %4369 = vmatprep.mubr.bf16.mxu0 0
      %4370 = vmatmul.mubr.bf16.gmra.mrb[0].mxu0 %v4317
      %v4371 = vpop.f32.mrb[0].mxu0
      %v4372 = vadd.f32 0.0, %v4371
      %v4373 = vpop.f32.mrb[0].mxu0
      %v4374 = vpop.f32.mrb[0].mxu0
      %v4375 = vadd.f32 0.0, %v4374
      %v4376 = vpop.f32.mrb[0].mxu0
      %4377 = vmatprep.mubr.bf16.mxu0 0
      %4378 = vmatmul.mubr.bf16.gmra.mrb[0].mxu0 %v4320
      %v4379 = vpop.f32.mrb[0].mxu0
      %v4380 = vadd.f32 0.0, %v4379
      %v4381 = vpop.f32.mrb[0].mxu0
      %v4382 = vpop.f32.mrb[0].mxu0
      %v4383 = vadd.f32 0.0, %v4382
      %v4384 = vpop.f32.mrb[0].mxu0
      %4385 = vmatprep.mubr.bf16.mxu0 0
      %4386 = vmatmul.mubr.bf16.gmra.mrb[0].mxu0 %v4323
      %v4387 = vpop.f32.mrb[0].mxu0
      %v4388 = vadd.f32 0.0, %v4387
      %v4389 = vpop.f32.mrb[0].mxu0
      %v4390 = vpop.f32.mrb[0].mxu0
      %v4391 = vadd.f32 0.0, %v4390
      %v4392 = vpop.f32.mrb[0].mxu0
      %4393 = vmatprep.mubr.bf16.mxu0 0
      %4394 = vmatmul.mubr.bf16.gmra.mrb[0].mxu0 %v4326
      %v4395 = vpop.f32.mrb[0].mxu0
      %v4396 = vadd.f32 0.0, %v4395
      %v4397 = vpop.f32.mrb[0].mxu0
      %v4398 = vpop.f32.mrb[0].mxu0
      %v4399 = vadd.f32 0.0, %v4398
      %v4400 = vpop.f32.mrb[0].mxu0
      %4401 = vmatprep.mubr.bf16.mxu0 0
      %4402 = vmatmul.mubr.bf16.gmra.mrb[0].mxu0 %v4329
      %v4403 = vpop.f32.mrb[0].mxu0
      %v4404 = vadd.f32 0.0, %v4403
      %v4405 = vpop.f32.mrb[0].mxu0
      %v4406 = vpop.f32.mrb[0].mxu0
      %v4407 = vadd.f32 0.0, %v4406
      %v4408 = vpop.f32.mrb[0].mxu0
      %4409 = vmatprep.mubr.bf16.mxu0 0
      %4410 = vmatmul.mubr.bf16.gmra.mrb[0].mxu0 %v4332
      %v4411 = vpop.f32.mrb[0].mxu0
      %v4412 = vadd.f32 0.0, %v4411
      %v4413 = vpop.f32.mrb[0].mxu0
      %v4414 = vpop.f32.mrb[0].mxu0
      %v4415 = vadd.f32 0.0, %v4414
      %v4416 = vpop.f32.mrb[0].mxu0
      %4417 = vdwg.mxu0
      %v4418 = vadd.f32 %v4283, %v4372
      %v4419 = vadd.f32 %v4284, %v4375
      %v4420 = vadd.f32 %v4285, %v4380
      %v4421 = vadd.f32 %v4286, %v4383
      %v4422 = vadd.f32 %v4287, %v4388
      %v4423 = vadd.f32 %v4288, %v4391
      %v4424 = vadd.f32 %v4289, %v4396
      %v4425 = vadd.f32 %v4290, %v4399
      %v4426 = vadd.f32 %v4291, %v4404
      %v4427 = vadd.f32 %v4292, %v4407
      %v4428 = vadd.f32 %v4293, %v4412
      %v4429 = vadd.f32 %v4294, %v4415
      %s4430 = scalar_lea.vmem %s2, 2
      %v4431 = vld [vmem:[%s4430] sm:$0x1]
      %v4433 = vlaneseq
      %v4434 = vshrl.u32 %v4433, 7
      %v4435 = vsub.s32 0, %v4434
      %v4436 = vrot.slane %v4431, %v4435
      %v4438 = vadd.f32 %v4418, %v4436
      %v4439 = vadd.f32 %v4419, %v4436
      %v4440 = vadd.f32 %v4420, %v4436
      %v4441 = vadd.f32 %v4421, %v4436
      %v4442 = vadd.f32 %v4422, %v4436
      %v4443 = vadd.f32 %v4423, %v4436
      %v4444 = vadd.f32 %v4424, %v4436
      %v4445 = vadd.f32 %v4425, %v4436
      %v4446 = vadd.f32 %v4426, %v4436
      %v4447 = vadd.f32 %v4427, %v4436
      %v4448 = vadd.f32 %v4428, %v4436
      %v4449 = vadd.f32 %v4429, %v4436
      %v4450 = vmax.f32 %v4438, 0.0
      %v4451 = vmax.f32 %v4439, 0.0
      %v4452 = vmax.f32 %v4440, 0.0
      %v4453 = vmax.f32 %v4441, 0.0
      %v4454 = vmax.f32 %v4442, 0.0
      %v4455 = vmax.f32 %v4443, 0.0
      %v4456 = vmax.f32 %v4444, 0.0
      %v4457 = vmax.f32 %v4445, 0.0
      %v4458 = vmax.f32 %v4446, 0.0
      %v4459 = vmax.f32 %v4447, 0.0
      %v4460 = vmax.f32 %v4448, 0.0
      %v4461 = vmax.f32 %v4449, 0.0
      %v4462 = vpack.c.bf16 %v4451, %v4450
      %v4463 = vpack.c.bf16 %v4453, %v4452
      %v4464 = vpack.c.bf16 %v4455, %v4454
      %v4465 = vpack.c.bf16 %v4457, %v4456
      %v4466 = vpack.c.bf16 %v4459, %v4458
      %v4467 = vpack.c.bf16 %v4461, %v4460
      %v4468 = vld [vmem:[%s3] sm:$0xf]
      %v4469 = vld [vmem:[%s3 + $0x4] sm:$0xf]
      %v4470 = vld [vmem:[%s3 + $0x8] sm:$0xf]
      %v4471 = vld [vmem:[%s3 + $0xc] sm:$0xf]
      %v4472 = vld [vmem:[%s3 + $0x10] sm:$0xf]
      %v4473 = vld [vmem:[%s3 + $0x14] sm:$0xf]
      %v4474 = vld [vmem:[%s3 + $0x18] sm:$0xf]
      %v4475 = vld [vmem:[%s3 + $0x1c] sm:$0xf]
      %v4476 = vld [vmem:[%s3 + $0x20] sm:$0xf]
      %v4477 = vld [vmem:[%s3 + $0x24] sm:$0xf]
      %v4478 = vld [vmem:[%s3 + $0x28] sm:$0xf]
      %v4479 = vld [vmem:[%s3 + $0x2c] sm:$0xf]
      %v4480 = vld [vmem:[%s3 + $0x30] sm:$0xf]
      %v4481 = vld [vmem:[%s3 + $0x34] sm:$0xf]
      %v4482 = vld [vmem:[%s3 + $0x38] sm:$0xf]
      %v4483 = vld [vmem:[%s3 + $0x3c] sm:$0xf]
      %v4484 = vld [vmem:[%s3 + $0x40] sm:$0xf]
      %v4485 = vld [vmem:[%s3 + $0x44] sm:$0xf]
      %v4486 = vld [vmem:[%s3 + $0x48] sm:$0xf]
      %v4487 = vld [vmem:[%s3 + $0x4c] sm:$0xf]
      %v4488 = vld [vmem:[%s3 + $0x50] sm:$0xf]
      %v4489 = vld [vmem:[%s3 + $0x54] sm:$0xf]
      %v4490 = vld [vmem:[%s3 + $0x58] sm:$0xf]
      %v4491 = vld [vmem:[%s3 + $0x5c] sm:$0xf]
      %v4492 = vld [vmem:[%s3 + $0x60] sm:$0xf]
      %v4493 = vld [vmem:[%s3 + $0x64] sm:$0xf]
      %v4494 = vld [vmem:[%s3 + $0x68] sm:$0xf]
      %v4495 = vld [vmem:[%s3 + $0x6c] sm:$0xf]
      %v4496 = vld [vmem:[%s3 + $0x70] sm:$0xf]
      %v4497 = vld [vmem:[%s3 + $0x74] sm:$0xf]
      %v4498 = vld [vmem:[%s3 + $0x78] sm:$0xf]
      %v4499 = vld [vmem:[%s3 + $0x7c] sm:$0xf]
      %v4500 = vld [vmem:[%s3 + $0x80] sm:$0xf]
      %v4501 = vld [vmem:[%s3 + $0x84] sm:$0xf]
      %v4502 = vld [vmem:[%s3 + $0x88] sm:$0xf]
      %v4503 = vld [vmem:[%s3 + $0x8c] sm:$0xf]
      %v4504 = vld [vmem:[%s3 + $0x90] sm:$0xf]
      %v4505 = vld [vmem:[%s3 + $0x94] sm:$0xf]
      %v4506 = vld [vmem:[%s3 + $0x98] sm:$0xf]
      %v4507 = vld [vmem:[%s3 + $0x9c] sm:$0xf]
      %v4508 = vld [vmem:[%s3 + $0xa0] sm:$0xf]
      %v4509 = vld [vmem:[%s3 + $0xa4] sm:$0xf]
      %v4510 = vld [vmem:[%s3 + $0xa8] sm:$0xf]
      %v4511 = vld [vmem:[%s3 + $0xac] sm:$0xf]
      %v4512 = vld [vmem:[%s3 + $0xb0] sm:$0xf]
      %v4513 = vld [vmem:[%s3 + $0xb4] sm:$0xf]
      %v4514 = vld [vmem:[%s3 + $0xb8] sm:$0xf]
      %v4515 = vld [vmem:[%s3 + $0xbc] sm:$0xf]
      %v4516 = vld [vmem:[%s233] sm:$0x1]
      %v4518 = vlaneseq
      %v4519 = vshrl.u32 %v4518, 7
      %v4520 = vsub.s32 0, %v4519
      %v4521 = vrot.slane %v4516, %v4520
      %v4571 = vunpack.c.l.b16 %v4468
      %v4572 = vunpack.c.l.b16 %v4469
      %v4573 = vunpack.c.l.b16 %v4470
      %v4574 = vunpack.c.l.b16 %v4471
      %v4575 = vunpack.c.l.b16 %v4472
      %v4576 = vunpack.c.l.b16 %v4473
      %v4577 = vunpack.c.l.b16 %v4474
      %v4578 = vunpack.c.l.b16 %v4475
      %v4579 = vunpack.c.l.b16 %v4476
      %v4580 = vunpack.c.l.b16 %v4477
      %v4581 = vunpack.c.l.b16 %v4478
      %v4582 = vunpack.c.l.b16 %v4479
      %v4583 = vunpack.c.l.b16 %v4480
      %v4584 = vunpack.c.l.b16 %v4481
      %v4585 = vunpack.c.l.b16 %v4482
      %v4586 = vunpack.c.l.b16 %v4483
      %v4587 = vunpack.c.l.b16 %v4484
      %v4588 = vunpack.c.l.b16 %v4485
      %v4589 = vunpack.c.l.b16 %v4486
      %v4590 = vunpack.c.l.b16 %v4487
      %v4591 = vunpack.c.l.b16 %v4488
      %v4592 = vunpack.c.l.b16 %v4489
      %v4593 = vunpack.c.l.b16 %v4490
      %v4594 = vunpack.c.l.b16 %v4491
      %v4595 = vunpack.c.l.b16 %v4492
      %v4596 = vunpack.c.l.b16 %v4493
      %v4597 = vunpack.c.l.b16 %v4494
      %v4598 = vunpack.c.l.b16 %v4495
      %v4599 = vunpack.c.l.b16 %v4496
      %v4600 = vunpack.c.l.b16 %v4497
      %v4601 = vunpack.c.l.b16 %v4498
      %v4602 = vunpack.c.l.b16 %v4499
      %v4603 = vunpack.c.l.b16 %v4500
      %v4604 = vunpack.c.l.b16 %v4501
      %v4605 = vunpack.c.l.b16 %v4502
      %v4606 = vunpack.c.l.b16 %v4503
      %v4607 = vunpack.c.l.b16 %v4504
      %v4608 = vunpack.c.l.b16 %v4505
      %v4609 = vunpack.c.l.b16 %v4506
      %v4610 = vunpack.c.l.b16 %v4507
      %v4611 = vunpack.c.l.b16 %v4508
      %v4612 = vunpack.c.l.b16 %v4509
      %v4613 = vunpack.c.l.b16 %v4510
      %v4614 = vunpack.c.l.b16 %v4511
      %v4615 = vunpack.c.l.b16 %v4512
      %v4616 = vunpack.c.l.b16 %v4513
      %v4617 = vunpack.c.l.b16 %v4514
      %v4618 = vunpack.c.l.b16 %v4515
      %v4619 = vpack.c.b16 %v4572, %v4571
      %v4620 = vpack.c.b16 %v4574, %v4573
      %v4621 = vpack.c.b16 %v4576, %v4575
      %v4622 = vpack.c.b16 %v4578, %v4577
      %v4623 = vpack.c.b16 %v4580, %v4579
      %v4624 = vpack.c.b16 %v4582, %v4581
      %v4625 = vpack.c.b16 %v4584, %v4583
      %v4626 = vpack.c.b16 %v4586, %v4585
      %v4627 = vpack.c.b16 %v4588, %v4587
      %v4628 = vpack.c.b16 %v4590, %v4589
      %v4629 = vpack.c.b16 %v4592, %v4591
      %v4630 = vpack.c.b16 %v4594, %v4593
      %v4631 = vpack.c.b16 %v4596, %v4595
      %v4632 = vpack.c.b16 %v4598, %v4597
      %v4633 = vpack.c.b16 %v4600, %v4599
      %v4634 = vpack.c.b16 %v4602, %v4601
      %v4635 = vpack.c.b16 %v4604, %v4603
      %v4636 = vpack.c.b16 %v4606, %v4605
      %v4637 = vpack.c.b16 %v4608, %v4607
      %v4638 = vpack.c.b16 %v4610, %v4609
      %v4639 = vpack.c.b16 %v4612, %v4611
      %v4640 = vpack.c.b16 %v4614, %v4613
      %v4641 = vpack.c.b16 %v4616, %v4615
      %v4642 = vpack.c.b16 %v4618, %v4617
      %4667 = vmatprep.subr.bf16.mxu0 0
      %4668 = vmatpush1.bf16.msra.mxu0 %v4619
      %4669 = vmatprep.subr.bf16.mxu0 0
      %4670 = vmatpush1.bf16.msra.mxu0 %v4620
      %4671 = vmatprep.subr.bf16.mxu0 0
      %4672 = vmatpush1.bf16.msra.mxu0 %v4621
      %4673 = vmatprep.subr.bf16.mxu0 0
      %4674 = vmatpush1.bf16.msra.mxu0 %v4622
      %4675 = vmatprep.subr.bf16.mxu0 0
      %4676 = vmatpush1.bf16.msra.mxu0 %v4623
      %4677 = vmatprep.subr.bf16.mxu0 0
      %4678 = vmatpush1.bf16.msra.mxu0 %v4624
      %4679 = vmatprep.subr.bf16.mxu0 0
      %4680 = vmatpush1.bf16.msra.mxu0 %v4625
      %4681 = vmatprep.subr.bf16.mxu0 0
      %4682 = vmatpush1.bf16.msra.mxu0 %v4626
      %4683 = vmatprep.subr.bf16.mxu0 0
      %4684 = vmatpush1.bf16.msra.mxu0 %v4627
      %4685 = vmatprep.subr.bf16.mxu0 0
      %4686 = vmatpush1.bf16.msra.mxu0 %v4628
      %4687 = vmatprep.subr.bf16.mxu0 0
      %4688 = vmatpush1.bf16.msra.mxu0 %v4629
      %4689 = vmatprep.subr.bf16.mxu0 0
      %4690 = vmatpush1.bf16.msra.mxu0 %v4630
      %4691 = vmatprep.subr.bf16.mxu0 0
      %4692 = vmatpush1.bf16.msra.mxu0 %v4631
      %4693 = vmatprep.subr.bf16.mxu0 0
      %4694 = vmatpush1.bf16.msra.mxu0 %v4632
      %4695 = vmatprep.subr.bf16.mxu0 0
      %4696 = vmatpush1.bf16.msra.mxu0 %v4633
      %4697 = vmatprep.subr.bf16.mxu0 0
      %4698 = vmatpush1.bf16.msra.mxu0 %v4634
      %4699 = vmatprep.mubr.bf16.mxu0 %v3247
      %4700 = vmatmul.mubr.bf16.gmra.mrb[0].mxu0 %v1793
      %v4701 = vpop.f32.mrb[0].mxu0
      %v4702 = vadd.f32 %v4521, %v4701
      %v4703 = vpop.f32.mrb[0].mxu0
      %v4704 = vpop.f32.mrb[0].mxu0
      %v4705 = vadd.f32 %v4521, %v4704
      %v4706 = vpop.f32.mrb[0].mxu0
      %4707 = vmatprep.mubr.bf16.mxu0 %v3248
      %4708 = vmatmul.mubr.bf16.gmra.mrb[0].mxu0 %v1794
      %v4709 = vpop.f32.mrb[0].mxu0
      %v4710 = vadd.f32 %v4521, %v4709
      %v4711 = vpop.f32.mrb[0].mxu0
      %v4712 = vpop.f32.mrb[0].mxu0
      %v4713 = vadd.f32 %v4521, %v4712
      %v4714 = vpop.f32.mrb[0].mxu0
      %4715 = vmatprep.mubr.bf16.mxu0 %v3249
      %4716 = vmatmul.mubr.bf16.gmra.mrb[0].mxu0 %v1795
      %v4717 = vpop.f32.mrb[0].mxu0
      %v4718 = vadd.f32 %v4521, %v4717
      %v4719 = vpop.f32.mrb[0].mxu0
      %v4720 = vpop.f32.mrb[0].mxu0
      %v4721 = vadd.f32 %v4521, %v4720
      %v4722 = vpop.f32.mrb[0].mxu0
      %4723 = vmatprep.mubr.bf16.mxu0 %v3250
      %4724 = vmatmul.mubr.bf16.gmra.mrb[0].mxu0 %v1796
      %v4725 = vpop.f32.mrb[0].mxu0
      %v4726 = vadd.f32 %v4521, %v4725
      %v4727 = vpop.f32.mrb[0].mxu0
      %v4728 = vpop.f32.mrb[0].mxu0
      %v4729 = vadd.f32 %v4521, %v4728
      %v4730 = vpop.f32.mrb[0].mxu0
      %4731 = vmatprep.mubr.bf16.mxu0 %v3251
      %4732 = vmatmul.mubr.bf16.gmra.mrb[0].mxu0 %v1797
      %v4733 = vpop.f32.mrb[0].mxu0
      %v4734 = vadd.f32 %v4521, %v4733
      %v4735 = vpop.f32.mrb[0].mxu0
      %v4736 = vpop.f32.mrb[0].mxu0
      %v4737 = vadd.f32 %v4521, %v4736
      %v4738 = vpop.f32.mrb[0].mxu0
      %4739 = vmatprep.mubr.bf16.mxu0 %v3252
      %4740 = vmatmul.mubr.bf16.gmra.mrb[0].mxu0 %v1798
      %v4741 = vpop.f32.mrb[0].mxu0
      %v4742 = vadd.f32 %v4521, %v4741
      %v4743 = vpop.f32.mrb[0].mxu0
      %v4744 = vpop.f32.mrb[0].mxu0
      %v4745 = vadd.f32 %v4521, %v4744
      %v4746 = vpop.f32.mrb[0].mxu0
      %4747 = vdwg.mxu0
      %4748 = vmatprep.subr.bf16.mxu0 0
      %4749 = vmatpush1.bf16.msra.mxu0 %v4635
      %4750 = vmatprep.subr.bf16.mxu0 0
      %4751 = vmatpush1.bf16.msra.mxu0 %v4636
      %4752 = vmatprep.subr.bf16.mxu0 0
      %4753 = vmatpush1.bf16.msra.mxu0 %v4637
      %4754 = vmatprep.subr.bf16.mxu0 0
      %4755 = vmatpush1.bf16.msra.mxu0 %v4638
      %4756 = vmatprep.subr.bf16.mxu0 0
      %4757 = vmatpush1.bf16.msra.mxu0 %v4639
      %4758 = vmatprep.subr.bf16.mxu0 0
      %4759 = vmatpush1.bf16.msra.mxu0 %v4640
      %4760 = vmatprep.subr.bf16.mxu0 0
      %4761 = vmatpush1.bf16.msra.mxu0 %v4641
      %4762 = vmatprep.subr.bf16.mxu0 0
      %4763 = vmatpush1.bf16.msra.mxu0 %v4642
      %4764 = vmatprep.subr.bf16.mxu0 0
      %4765 = vmatpush1.bf16.msra.mxu0 0
      %4766 = vmatprep.subr.bf16.mxu0 0
      %4767 = vmatpush1.bf16.msra.mxu0 0
      %4768 = vmatprep.subr.bf16.mxu0 0
      %4769 = vmatpush1.bf16.msra.mxu0 0
      %4770 = vmatprep.subr.bf16.mxu0 0
      %4771 = vmatpush1.bf16.msra.mxu0 0
      %4772 = vmatprep.subr.bf16.mxu0 0
      %4773 = vmatpush1.bf16.msra.mxu0 0
      %4774 = vmatprep.subr.bf16.mxu0 0
      %4775 = vmatpush1.bf16.msra.mxu0 0
      %4776 = vmatprep.subr.bf16.mxu0 0
      %4777 = vmatpush1.bf16.msra.mxu0 0
      %4778 = vmatprep.subr.bf16.mxu0 0
      %4779 = vmatpush1.bf16.msra.mxu0 0
      %4780 = vmatprep.mubr.bf16.mxu0 0
      %4781 = vmatmul.mubr.bf16.gmra.mrb[0].mxu0 %v4462
      %v4782 = vpop.f32.mrb[0].mxu0
      %v4783 = vadd.f32 %v4702, %v4782
      %v4784 = vpop.f32.mrb[0].mxu0
      %v4785 = vpop.f32.mrb[0].mxu0
      %v4786 = vadd.f32 %v4705, %v4785
      %v4787 = vpop.f32.mrb[0].mxu0
      %4788 = vmatprep.mubr.bf16.mxu0 0
      %4789 = vmatmul.mubr.bf16.gmra.mrb[0].mxu0 %v4463
      %v4790 = vpop.f32.mrb[0].mxu0
      %v4791 = vadd.f32 %v4710, %v4790
      %v4792 = vpop.f32.mrb[0].mxu0
      %v4793 = vpop.f32.mrb[0].mxu0
      %v4794 = vadd.f32 %v4713, %v4793
      %v4795 = vpop.f32.mrb[0].mxu0
      %4796 = vmatprep.mubr.bf16.mxu0 0
      %4797 = vmatmul.mubr.bf16.gmra.mrb[0].mxu0 %v4464
      %v4798 = vpop.f32.mrb[0].mxu0
      %v4799 = vadd.f32 %v4718, %v4798
      %v4800 = vpop.f32.mrb[0].mxu0
      %v4801 = vpop.f32.mrb[0].mxu0
      %v4802 = vadd.f32 %v4721, %v4801
      %v4803 = vpop.f32.mrb[0].mxu0
      %4804 = vmatprep.mubr.bf16.mxu0 0
      %4805 = vmatmul.mubr.bf16.gmra.mrb[0].mxu0 %v4465
      %v4806 = vpop.f32.mrb[0].mxu0
      %v4807 = vadd.f32 %v4726, %v4806
      %v4808 = vpop.f32.mrb[0].mxu0
      %v4809 = vpop.f32.mrb[0].mxu0
      %v4810 = vadd.f32 %v4729, %v4809
      %v4811 = vpop.f32.mrb[0].mxu0
      %4812 = vmatprep.mubr.bf16.mxu0 0
      %4813 = vmatmul.mubr.bf16.gmra.mrb[0].mxu0 %v4466
      %v4814 = vpop.f32.mrb[0].mxu0
      %v4815 = vadd.f32 %v4734, %v4814
      %v4816 = vpop.f32.mrb[0].mxu0
      %v4817 = vpop.f32.mrb[0].mxu0
      %v4818 = vadd.f32 %v4737, %v4817
      %v4819 = vpop.f32.mrb[0].mxu0
      %4820 = vmatprep.mubr.bf16.mxu0 0
      %4821 = vmatmul.mubr.bf16.gmra.mrb[0].mxu0 %v4467
      %v4822 = vpop.f32.mrb[0].mxu0
      %v4823 = vadd.f32 %v4742, %v4822
      %v4824 = vpop.f32.mrb[0].mxu0
      %v4825 = vpop.f32.mrb[0].mxu0
      %v4826 = vadd.f32 %v4745, %v4825
      %v4827 = vpop.f32.mrb[0].mxu0
      %4828 = vdwg.mxu0
      %v4829 = vmax.f32 %v4783, 0.0
      %v4830 = vmax.f32 %v4786, 0.0
      %v4831 = vmax.f32 %v4791, 0.0
      %v4832 = vmax.f32 %v4794, 0.0
      %v4833 = vmax.f32 %v4799, 0.0
      %v4834 = vmax.f32 %v4802, 0.0
      %v4835 = vmax.f32 %v4807, 0.0
      %v4836 = vmax.f32 %v4810, 0.0
      %v4837 = vmax.f32 %v4815, 0.0
      %v4838 = vmax.f32 %v4818, 0.0
      %v4839 = vmax.f32 %v4823, 0.0
      %v4840 = vmax.f32 %v4826, 0.0
      %vm4841 = vcmask 64512
      %4842 = vst.msk [vmem:[%s238] sm:$0xff] %vm4841, %v4829
      %4843 = vst.msk [vmem:[%s238 + $0x8] sm:$0xff] %vm4841, %v4830
      %4844 = vst.msk [vmem:[%s238 + $0x10] sm:$0xff] %vm4841, %v4831
      %4845 = vst.msk [vmem:[%s238 + $0x18] sm:$0xff] %vm4841, %v4832
      %4846 = vst.msk [vmem:[%s238 + $0x20] sm:$0xff] %vm4841, %v4833
      %4847 = vst.msk [vmem:[%s238 + $0x28] sm:$0xff] %vm4841, %v4834
      %4848 = vst.msk [vmem:[%s238 + $0x30] sm:$0xff] %vm4841, %v4835
      %4849 = vst.msk [vmem:[%s238 + $0x38] sm:$0xff] %vm4841, %v4836
      %4850 = vst.msk [vmem:[%s238 + $0x40] sm:$0xff] %vm4841, %v4837
      %4851 = vst.msk [vmem:[%s238 + $0x48] sm:$0xff] %vm4841, %v4838
      %4852 = vst.msk [vmem:[%s238 + $0x50] sm:$0xff] %vm4841, %v4839
      %vm4853 = vcmask 60416
      %4854 = vst.msk [vmem:[%s238 + $0x58] sm:$0xf] %vm4853, %v4840
      %p4855 = scmp.lt.s32.totalorder %s16, 1
      %s4856 = scalar_select %p4855, %s16, 1
      %s4857 = smul.addr %s4856, 12
      %s4858 = smul.addr %s4857, 8
      %s4859 = scalar_lea.vmem %s5, %s4858
      // Predicated region
      $region41: #{tpu_custom_call.1} parent=39 // pred_check
        %p4860 = pneg %p149
      $region42: #{tpu_custom_call.1} parent=39 // pred_check_branch
        %4862 = sbr.rel (%p4860) target = $region44
      $region43: #{tpu_custom_call.1} parent=39 // pred_region
        _
      $region44: #{tpu_custom_call.1} parent=39 // pred_fallthru
        _
    $region40: #{tpu_custom_call.1} parent=5 // pred_fallthru
      _
    %p4863 = scmp.le.s32.totalorder 2, %s11
    // Predicated region
    $region45: #{tpu_custom_call.1} parent=5 // pred_check
      %p4864 = pneg %p4863
    $region46: #{tpu_custom_call.1} parent=5 // pred_check_branch
      %4866 = sbr.rel (%p4864) target = $region48
    $region47: #{tpu_custom_call.1} parent=5 // pred_region
      %s4867 = ssub.s32 %s11, 2
      // Predicated region
      $region49: #{tpu_custom_call.1} parent=47 // pred_check
        %p4868 = pneg %p155
      $region50: #{tpu_custom_call.1} parent=47 // pred_check_branch
        %4870 = sbr.rel (%p4868) target = $region52
      $region51: #{tpu_custom_call.1} parent=47 // pred_region
        %p4871 = scmp.lt.s32.totalorder %s17, 1
        %s4872 = scalar_select %p4871, %s17, 1
        %s4873 = smul.addr %s4872, 12
        %s4874 = smul.addr %s4873, 8
        %s4875 = scalar_lea.vmem %s5, %s4874
      $region52: #{tpu_custom_call.1} parent=47 // pred_fallthru
        _
    $region48: #{tpu_custom_call.1} parent=5 // pred_fallthru
      _
  $region6: #{tpu_custom_call.1} parent=0 // loop_footer
    %s15 = sadd.s32 1, %s11
  $region7: #{tpu_custom_call.1} parent=0 // loop_footer_branch
    %10 = sbr.rel target = $region3
  $region8: #{tpu_custom_call.1} parent=0 // loop_exit
    _

// kernel: tpu_custom_call.1
$region0: #{tpu_custom_call.1}
  #allocation0 [shape = 'u32[]', space=smem, size = 0x4, offset = 0x4, fixed_abs, tag = 'smem constant byte address 0x4 - core index']
  #allocation1 [shape = 'u32[144,128]{1,0:T(1,128)}', space=vmem, size = 0x12000, scoped, tag = 'internal scratch']
  %s0 = inlined_call_operand.vmem [shape: bf16[2,4,144,4], index: 0, kind: input, shape index: {}]
  %s1 = inlined_call_operand.vmem [shape: bf16[27,4,128], index: 1, kind: input, shape index: {}]
  %s2 = inlined_call_operand.vmem [shape: f32[3,1,128], index: 2, kind: input, shape index: {}]
  %s3 = inlined_call_operand.vmem [shape: bf16[384,8], index: 3, kind: input, shape index: {}]
  %s4 = inlined_call_operand.vmem [shape: f32[2,1,8], index: 4, kind: input, shape index: {}]
  %s5 = inlined_call_operand.vmem [shape: f32[2,92,8], index: 5, kind: output, shape index: {}]
  %s6 = sld [smem:[#allocation0]]
  $region53: #{tpu_custom_call.1} parent=0
    _
  %s8 = ssub.s32 1, %s6
  %s9 = scalar_select 0, %s8, %s6
  loop: start=0, step=1, limit=4
  $region2: #{tpu_custom_call.1} parent=0 // loop_pre_header
    _
  $region3: #{tpu_custom_call.1} parent=0 // loop_header
    %s11 = sphi 0, %s15
    %p12 = scmp.ge.s32.totalorder %s11, 4
    %s21 = sphi 0, %s23
    %s24 = sphi 0, %s21
    %s25 = sphi 0, %s24
    %s41 = sphi 0, %s25
    %s45 = sphi 0, %s45
    %s47 = sphi 0, %s45
    %s48 = sphi 0, %s47
    %s62 = sphi 0, %s48
    %s66 = sphi 0, %s66
    %s68 = sphi 0, %s66
    %s69 = sphi 0, %s68
    %s83 = sphi 0, %s69
    %s87 = sphi 0, %s87
    %s89 = sphi 0, %s87
    %s90 = sphi 0, %s89
    %s104 = sphi 0, %s90
    %s110 = sphi 0, %s112
    %s113 = sphi 0, %s110
    %s114 = sphi 0, %s113
    %s130 = sphi 0, %s114
    %s136 = sphi 0, %s138
    %s139 = sphi 0, %s136
    %s140 = sphi 0, %s139
    %s156 = sphi 0, %s140
  $region4: #{tpu_custom_call.1} parent=0 // loop_header_branch
    %14 = sbr.rel (%p12) target = $region8
  $region5: #{tpu_custom_call.1} parent=0 // loop_body
    %s16 = ssub.s32 %s11, 1
    %s17 = ssub.s32 %s11, 2
    %s18 = sadd.s32 %s11, 1
    %s19 = ssub.s32 %s11, %s18
    %p20 = scmp.eq.s32.totalorder %s19, 0
    %s22 = sadd.s32 %s21, 1
    %s23 = scalar_select %p20, %s21, %s22
    %p26 = pneg %p20
    %p27 = scmp.eq.s32.totalorder %s11, 1
    %p28 = por %p26, %p27
    %p29 = scmp.ne.s32.totalorder %s21, %s24
    %p30 = scmp.eq.s32.totalorder %s11, 0
    %p31 = por %p29, %p30
    %p32 = scmp.ne.s32.totalorder %s21, %s24
    %p33 = scmp.eq.s32.totalorder %s16, 1
    %p34 = por %p32, %p33
    %p35 = scmp.ne.s32.totalorder %s24, %s25
    %p36 = scmp.eq.s32.totalorder %s16, 0
    %p37 = por %p35, %p36
    %p38 = scmp.ne.s32.totalorder %s24, %s25
    %p39 = scmp.eq.s32.totalorder %s17, 1
    %p40 = por %p38, %p39
    %p42 = scmp.ne.s32.totalorder %s25, %s41
    %p43 = scmp.eq.s32.totalorder %s17, 0
    %p44 = por %p42, %p43
    %s46 = sadd.s32 %s45, 1
    %p49 = scmp.eq.s32.totalorder %s11, 1
    %p50 = scmp.ne.s32.totalorder %s45, %s47
    %p51 = scmp.eq.s32.totalorder %s11, 0
    %p52 = por %p50, %p51
    %p53 = scmp.ne.s32.totalorder %s45, %s47
    %p54 = scmp.eq.s32.totalorder %s16, 1
    %p55 = por %p53, %p54
    %p56 = scmp.ne.s32.totalorder %s47, %s48
    %p57 = scmp.eq.s32.totalorder %s16, 0
    %p58 = por %p56, %p57
    %p59 = scmp.ne.s32.totalorder %s47, %s48
    %p60 = scmp.eq.s32.totalorder %s17, 1
    %p61 = por %p59, %p60
    %p63 = scmp.ne.s32.totalorder %s48, %s62
    %p64 = scmp.eq.s32.totalorder %s17, 0
    %p65 = por %p63, %p64
    %s67 = sadd.s32 %s66, 1
    %p70 = scmp.eq.s32.totalorder %s11, 1
    %p71 = scmp.ne.s32.totalorder %s66, %s68
    %p72 = scmp.eq.s32.totalorder %s11, 0
    %p73 = por %p71, %p72
    %p74 = scmp.ne.s32.totalorder %s66, %s68
    %p75 = scmp.eq.s32.totalorder %s16, 1
    %p76 = por %p74, %p75
    %p77 = scmp.ne.s32.totalorder %s68, %s69
    %p78 = scmp.eq.s32.totalorder %s16, 0
    %p79 = por %p77, %p78
    %p80 = scmp.ne.s32.totalorder %s68, %s69
    %p81 = scmp.eq.s32.totalorder %s17, 1
    %p82 = por %p80, %p81
    %p84 = scmp.ne.s32.totalorder %s69, %s83
    %p85 = scmp.eq.s32.totalorder %s17, 0
    %p86 = por %p84, %p85
    %s88 = sadd.s32 %s87, 1
    %p91 = scmp.eq.s32.totalorder %s11, 1
    %p92 = scmp.ne.s32.totalorder %s87, %s89
    %p93 = scmp.eq.s32.totalorder %s11, 0
    %p94 = por %p92, %p93
    %p95 = scmp.ne.s32.totalorder %s87, %s89
    %p96 = scmp.eq.s32.totalorder %s16, 1
    %p97 = por %p95, %p96
    %p98 = scmp.ne.s32.totalorder %s89, %s90
    %p99 = scmp.eq.s32.totalorder %s16, 0
    %p100 = por %p98, %p99
    %p101 = scmp.ne.s32.totalorder %s89, %s90
    %p102 = scmp.eq.s32.totalorder %s17, 1
    %p103 = por %p101, %p102
    %p105 = scmp.ne.s32.totalorder %s90, %s104
    %p106 = scmp.eq.s32.totalorder %s17, 0
    %p107 = por %p105, %p106
    %s108 = ssub.s32 %s11, %s18
    %p109 = scmp.eq.s32.totalorder %s108, 0
    %s111 = sadd.s32 %s110, 1
    %s112 = scalar_select %p109, %s110, %s111
    %p115 = pneg %p109
    %p116 = scmp.eq.s32.totalorder %s11, 1
    %p117 = por %p115, %p116
    %p118 = scmp.ne.s32.totalorder %s110, %s113
    %p119 = scmp.eq.s32.totalorder %s11, 0
    %p120 = por %p118, %p119
    %p121 = scmp.ne.s32.totalorder %s110, %s113
    %p122 = scmp.eq.s32.totalorder %s16, 1
    %p123 = por %p121, %p122
    %p124 = scmp.ne.s32.totalorder %s113, %s114
    %p125 = scmp.eq.s32.totalorder %s16, 0
    %p126 = por %p124, %p125
    %p127 = scmp.ne.s32.totalorder %s113, %s114
    %p128 = scmp.eq.s32.totalorder %s17, 1
    %p129 = por %p127, %p128
    %p131 = scmp.ne.s32.totalorder %s114, %s130
    %p132 = scmp.eq.s32.totalorder %s17, 0
    %p133 = por %p131, %p132
    %s134 = ssub.s32 %s11, %s18
    %p135 = scmp.eq.s32.totalorder %s134, 0
    %s137 = sadd.s32 %s136, 1
    %s138 = scalar_select %p135, %s136, %s137
    %p141 = pneg %p135
    %p142 = scmp.eq.s32.totalorder %s11, 1
    %p143 = por %p141, %p142
    %p144 = scmp.ne.s32.totalorder %s136, %s139
    %p145 = scmp.eq.s32.totalorder %s11, 0
    %p146 = por %p144, %p145
    %p147 = scmp.ne.s32.totalorder %s136, %s139
    %p148 = scmp.eq.s32.totalorder %s16, 1
    %p149 = por %p147, %p148
    %p150 = scmp.ne.s32.totalorder %s139, %s140
    %p151 = scmp.eq.s32.totalorder %s16, 0
    %p152 = por %p150, %p151
    %p153 = scmp.ne.s32.totalorder %s139, %s140
    %p154 = scmp.eq.s32.totalorder %s17, 1
    %p155 = por %p153, %p154
    %p157 = scmp.ne.s32.totalorder %s140, %s156
    %p158 = scmp.eq.s32.totalorder %s17, 0
    %p159 = por %p157, %p158
    %p160 = scmp.le.s32.totalorder 1, %s11
    %p161 = scmp.lt.s32.totalorder %s11, 3
    %p162 = pnand %p160, %p161
    %p163 = pneg %p162
    // Predicated region
    $region9: #{tpu_custom_call.1} parent=5 // pred_check
      _
    $region10: #{tpu_custom_call.1} parent=5 // pred_check_branch
      %165 = sbr.rel (%p162) target = $region12
    $region11: #{tpu_custom_call.1} parent=5 // pred_region
      %s166 = ssub.s32 %s11, 1
      // Predicated region
      $region13: #{tpu_custom_call.1} parent=11 // pred_check
        %p167 = pneg %p58
      $region14: #{tpu_custom_call.1} parent=11 // pred_check_branch
        %169 = sbr.rel (%p167) target = $region16
      $region15: #{tpu_custom_call.1} parent=11 // pred_region
        _
      $region16: #{tpu_custom_call.1} parent=11 // pred_fallthru
        _
      // Predicated region
      $region17: #{tpu_custom_call.1} parent=11 // pred_check
        %p170 = pneg %p79
      $region18: #{tpu_custom_call.1} parent=11 // pred_check_branch
        %172 = sbr.rel (%p170) target = $region20
      $region19: #{tpu_custom_call.1} parent=11 // pred_region
        _
      $region20: #{tpu_custom_call.1} parent=11 // pred_fallthru
        _
      // Predicated region
      $region21: #{tpu_custom_call.1} parent=11 // pred_check
        %p173 = pneg %p100
      $region22: #{tpu_custom_call.1} parent=11 // pred_check_branch
        %175 = sbr.rel (%p173) target = $region24
      $region23: #{tpu_custom_call.1} parent=11 // pred_region
        _
      $region24: #{tpu_custom_call.1} parent=11 // pred_fallthru
        _
    $region12: #{tpu_custom_call.1} parent=5 // pred_fallthru
      _
    %p176 = scmp.lt.s32.totalorder %s11, 2
    // Predicated region
    $region25: #{tpu_custom_call.1} parent=5 // pred_check
      %p177 = pneg %p176
    $region26: #{tpu_custom_call.1} parent=5 // pred_check_branch
      %179 = sbr.rel (%p177) target = $region28
    $region27: #{tpu_custom_call.1} parent=5 // pred_region
      // Predicated region
      $region29: #{tpu_custom_call.1} parent=27 // pred_check
        %p180 = pneg %p31
      $region30: #{tpu_custom_call.1} parent=27 // pred_check_branch
        %182 = sbr.rel (%p180) target = $region32
      $region31: #{tpu_custom_call.1} parent=27 // pred_region
        %p183 = scmp.lt.s32.totalorder %s11, 1
        %s184 = scalar_select %p183, %s11, 1
        %s185 = smul.addr %s184, 72
        %s186 = smul.addr %s185, 4
        %s187 = scalar_lea.vmem %s0, %s186
      $region32: #{tpu_custom_call.1} parent=27 // pred_fallthru
        _
      // Predicated region
      $region33: #{tpu_custom_call.1} parent=27 // pred_check
        %p188 = pneg %p120
      $region34: #{tpu_custom_call.1} parent=27 // pred_check_branch
        %190 = sbr.rel (%p188) target = $region36
      $region35: #{tpu_custom_call.1} parent=27 // pred_region
        %p191 = scmp.lt.s32.totalorder %s11, 1
        %s192 = scalar_select %p191, %s11, 1
        %s193 = scalar_lea.vmem %s4, %s192
      $region36: #{tpu_custom_call.1} parent=27 // pred_fallthru
        _
    $region28: #{tpu_custom_call.1} parent=5 // pred_fallthru
      _
    %p194 = scmp.le.s32.totalorder 1, %s11
    %p195 = scmp.lt.s32.totalorder %s11, 3
    %p196 = pnand %p194, %p195
    %p197 = pneg %p196
    // Predicated region
    $region37: #{tpu_custom_call.1} parent=5 // pred_check
      _
    $region38: #{tpu_custom_call.1} parent=5 // pred_check_branch
      %199 = sbr.rel (%p196) target = $region40
    $region39: #{tpu_custom_call.1} parent=5 // pred_region
      %s200 = ssub.s32 %s11, 1
      %p201 = scmp.lt.s32.totalorder %s16, 1
      %s202 = scalar_select %p201, %s16, 1
      %s203 = smul.addr %s202, 72
      %s204 = smul.addr %s203, 4
      %s205 = scalar_lea.vmem %s0, %s204
      %p206 = pneg %p37
      %p207 = pneg %p34
      %p208 = pneg %p58
      %p209 = pneg %p55
      %p210 = pneg %p79
      %p211 = pneg %p76
      %p212 = pneg %p100
      %p213 = pneg %p97
      %p214 = scmp.lt.s32.totalorder %s16, 1
      %s215 = scalar_select %p214, %s16, 1
      %s216 = scalar_lea.vmem %s4, %s215
      %p217 = pneg %p126
      %p218 = pneg %p123
      %p219 = pneg %p152
      %p220 = pneg %p149
      %p221 = scmp.lt.s32.totalorder %s16, 1
      %s222 = scalar_select %p221, %s16, 1
      %s223 = smul.addr %s222, 12
      %s224 = smul.addr %s223, 8
      %s225 = scalar_lea.vmem %s5, %s224
      %p226 = scmp.lt.s32.totalorder %s16, 1
      %s227 = scalar_select %p226, %s16, 1
      %s228 = smul.addr %s227, 72
      %s229 = smul.addr %s228, 4
      %s230 = scalar_lea.vmem %s0, %s229
      %p231 = scmp.lt.s32.totalorder %s16, 1
      %s232 = scalar_select %p231, %s16, 1
      %s233 = scalar_lea.vmem %s4, %s232
      %p234 = scmp.lt.s32.totalorder %s16, 1
      %s235 = scalar_select %p234, %s16, 1
      %s236 = smul.addr %s235, 12
      %s237 = smul.addr %s236, 8
      %s238 = scalar_lea.vmem %s5, %s237
      %s240 = scalar_lea.vmem %s230, 216
      %v241 = vld [vmem:[%s240 + $0x4] sm:$0xc]
      %v242 = vld [vmem:[%s240 + $0x8] sm:$0xf]
      %v243 = vld [vmem:[%s240 + $0xc] sm:$0xf]
      %v244 = vld [vmem:[%s240 + $0x10] sm:$0xf]
      %v245 = vld [vmem:[%s240 + $0x14] sm:$0xf]
      %v246 = vld [vmem:[%s240 + $0x18] sm:$0xf]
      %v247 = vld [vmem:[%s240 + $0x1c] sm:$0xf]
      %v248 = vld [vmem:[%s240 + $0x20] sm:$0xf]
      %v249 = vld [vmem:[%s240 + $0x24] sm:$0xf]
      %v250 = vld [vmem:[%s240 + $0x28] sm:$0xf]
      %v251 = vld [vmem:[%s240 + $0x2c] sm:$0xf]
      %v252 = vld [vmem:[%s240 + $0x30] sm:$0xf]
      %v253 = vld [vmem:[%s240 + $0x34] sm:$0x1]
      %v254 = vld [vmem:[%s1] sm:$0x3]
      %s255 = scalar_lea.vmem %s230, 144
      %v256 = vld [vmem:[%s255 + $0x4] sm:$0x8]
      %v257 = vld [vmem:[%s255 + $0x8] sm:$0xf]
      %v258 = vld [vmem:[%s255 + $0xc] sm:$0xf]
      %v259 = vld [vmem:[%s255 + $0x10] sm:$0xf]
      %v260 = vld [vmem:[%s255 + $0x14] sm:$0xf]
      %v261 = vld [vmem:[%s255 + $0x18] sm:$0xf]
      %v262 = vld [vmem:[%s255 + $0x1c] sm:$0xf]
      %v263 = vld [vmem:[%s255 + $0x20] sm:$0xf]
      %v264 = vld [vmem:[%s255 + $0x24] sm:$0xf]
      %v265 = vld [vmem:[%s255 + $0x28] sm:$0xf]
      %v266 = vld [vmem:[%s255 + $0x2c] sm:$0xf]
      %v267 = vld [vmem:[%s255 + $0x30] sm:$0xf]
      %v268 = vld [vmem:[%s255 + $0x34] sm:$0x1]
      %s269 = scalar_lea.vmem %s1, 2
      %v270 = vld [vmem:[%s269] sm:$0x3]
      %v284 = vunpack.c.l.b16 %v256
      %v285 = vunpack.c.l.b16 %v257
      %v286 = vunpack.c.l.b16 %v258
      %v287 = vunpack.c.l.b16 %v259
      %v288 = vunpack.c.l.b16 %v260
      %v289 = vunpack.c.l.b16 %v261
      %v290 = vunpack.c.l.b16 %v262
      %v291 = vunpack.c.l.b16 %v263
      %v292 = vunpack.c.l.b16 %v264
      %v293 = vunpack.c.l.b16 %v265
      %v294 = vunpack.c.l.b16 %v266
      %v295 = vunpack.c.l.b16 %v267
      %v296 = vunpack.c.l.b16 %v268
      %v297 = vpack.c.b16 %v285, %v284
      %v298 = vpack.c.b16 %v287, %v286
      %v299 = vpack.c.b16 %v289, %v288
      %v300 = vpack.c.b16 %v291, %v290
      %v301 = vpack.c.b16 %v293, %v292
      %v302 = vpack.c.b16 %v295, %v294
      %v303 = vpack.c.b16 %v296, %v296
      %vm304 = vcmask 1044480
      %v305 = vrot.slane %v297, 3
      %v306 = vrot.slane %v298, 3
      %v307 = vsel %vm304, %v305, %v306
      %v308 = vrot.slane %v299, 3
      %v309 = vsel %vm304, %v306, %v308
      %v310 = vrot.slane %v300, 3
      %v311 = vsel %vm304, %v308, %v310
      %v312 = vrot.slane %v301, 3
      %v313 = vsel %vm304, %v310, %v312
      %v314 = vrot.slane %v302, 3
      %v315 = vsel %vm304, %v312, %v314
      %v316 = vrot.slane %v303, 3
      %v317 = vsel %vm304, %v314, %v316
      %vm318 = vcmask 31744
      %v320 = vsel %vm318, %v307, 0
      %v323 = vsel %vm318, %v309, 0
      %v326 = vsel %vm318, %v311, 0
      %v329 = vsel %vm318, %v313, 0
      %v332 = vsel %vm318, %v315, 0
      %v335 = vsel %vm318, %v317, 0
      %vm337 = vcmask 1041408
      %v339 = vsel %vm337, %v270, 0
      %341 = vmatprep.subr.bf16.mxu0 0
      %342 = vmatpush1.bf16.msra.mxu0 %v339
      %343 = vmatprep.subr.bf16.mxu0 0
      %344 = vmatpush1.bf16.msra.mxu0 0
      %345 = vmatprep.subr.bf16.mxu0 0
      %346 = vmatpush1.bf16.msra.mxu0 0
      %347 = vmatprep.subr.bf16.mxu0 0
      %348 = vmatpush1.bf16.msra.mxu0 0
      %349 = vmatprep.subr.bf16.mxu0 0
      %350 = vmatpush1.bf16.msra.mxu0 0
      %351 = vmatprep.subr.bf16.mxu0 0
      %352 = vmatpush1.bf16.msra.mxu0 0
      %353 = vmatprep.subr.bf16.mxu0 0
      %354 = vmatpush1.bf16.msra.mxu0 0
      %355 = vmatprep.subr.bf16.mxu0 0
      %356 = vmatpush1.bf16.msra.mxu0 0
      %357 = vmatprep.subr.bf16.mxu0 0
      %358 = vmatpush1.bf16.msra.mxu0 0
      %359 = vmatprep.subr.bf16.mxu0 0
      %360 = vmatpush1.bf16.msra.mxu0 0
      %361 = vmatprep.subr.bf16.mxu0 0
      %362 = vmatpush1.bf16.msra.mxu0 0
      %363 = vmatprep.subr.bf16.mxu0 0
      %364 = vmatpush1.bf16.msra.mxu0 0
      %365 = vmatprep.subr.bf16.mxu0 0
      %366 = vmatpush1.bf16.msra.mxu0 0
      %367 = vmatprep.subr.bf16.mxu0 0
      %368 = vmatpush1.bf16.msra.mxu0 0
      %369 = vmatprep.subr.bf16.mxu0 0
      %370 = vmatpush1.bf16.msra.mxu0 0
      %371 = vmatprep.subr.bf16.mxu0 0
      %372 = vmatpush1.bf16.msra.mxu0 0
      %373 = vmatprep.mubr.bf16.mxu0 0
      %374 = vmatmul.mubr.bf16.gmra.mrb[0].mxu0 %v320
      %v375 = vpop.f32.mrb[0].mxu0
      %v376 = vadd.f32 0.0, %v375
      %v377 = vpop.f32.mrb[0].mxu0
      %v378 = vpop.f32.mrb[0].mxu0
      %v379 = vadd.f32 0.0, %v378
      %v380 = vpop.f32.mrb[0].mxu0
      %381 = vmatprep.mubr.bf16.mxu0 0
      %382 = vmatmul.mubr.bf16.gmra.mrb[0].mxu0 %v323
      %v383 = vpop.f32.mrb[0].mxu0
      %v384 = vadd.f32 0.0, %v383
      %v385 = vpop.f32.mrb[0].mxu0
      %v386 = vpop.f32.mrb[0].mxu0
      %v387 = vadd.f32 0.0, %v386
      %v388 = vpop.f32.mrb[0].mxu0
      %389 = vmatprep.mubr.bf16.mxu0 0
      %390 = vmatmul.mubr.bf16.gmra.mrb[0].mxu0 %v326
      %v391 = vpop.f32.mrb[0].mxu0
      %v392 = vadd.f32 0.0, %v391
      %v393 = vpop.f32.mrb[0].mxu0
      %v394 = vpop.f32.mrb[0].mxu0
      %v395 = vadd.f32 0.0, %v394
      %v396 = vpop.f32.mrb[0].mxu0
      %397 = vmatprep.mubr.bf16.mxu0 0
      %398 = vmatmul.mubr.bf16.gmra.mrb[0].mxu0 %v329
      %v399 = vpop.f32.mrb[0].mxu0
      %v400 = vadd.f32 0.0, %v399
      %v401 = vpop.f32.mrb[0].mxu0
      %v402 = vpop.f32.mrb[0].mxu0
      %v403 = vadd.f32 0.0, %v402
      %v404 = vpop.f32.mrb[0].mxu0
      %405 = vmatprep.mubr.bf16.mxu0 0
      %406 = vmatmul.mubr.bf16.gmra.mrb[0].mxu0 %v332
      %v407 = vpop.f32.mrb[0].mxu0
      %v408 = vadd.f32 0.0, %v407
      %v409 = vpop.f32.mrb[0].mxu0
      %v410 = vpop.f32.mrb[0].mxu0
      %v411 = vadd.f32 0.0, %v410
      %v412 = vpop.f32.mrb[0].mxu0
      %413 = vmatprep.mubr.bf16.mxu0 0
      %414 = vmatmul.mubr.bf16.gmra.mrb[0].mxu0 %v335
      %v415 = vpop.f32.mrb[0].mxu0
      %v416 = vadd.f32 0.0, %v415
      %v417 = vpop.f32.mrb[0].mxu0
      %v418 = vpop.f32.mrb[0].mxu0
      %v419 = vadd.f32 0.0, %v418
      %v420 = vpop.f32.mrb[0].mxu0
      %421 = vdwg.mxu0
      %v435 = vunpack.c.l.b16 %v241
      %v436 = vunpack.c.l.b16 %v242
      %v437 = vunpack.c.l.b16 %v243
      %v438 = vunpack.c.l.b16 %v244
      %v439 = vunpack.c.l.b16 %v245
      %v440 = vunpack.c.l.b16 %v246
      %v441 = vunpack.c.l.b16 %v247
      %v442 = vunpack.c.l.b16 %v248
      %v443 = vunpack.c.l.b16 %v249
      %v444 = vunpack.c.l.b16 %v250
      %v445 = vunpack.c.l.b16 %v251
      %v446 = vunpack.c.l.b16 %v252
      %v447 = vunpack.c.l.b16 %v253
      %v448 = vpack.c.b16 %v436, %v435
      %v449 = vpack.c.b16 %v438, %v437
      %v450 = vpack.c.b16 %v440, %v439
      %v451 = vpack.c.b16 %v442, %v441
      %v452 = vpack.c.b16 %v444, %v443
      %v453 = vpack.c.b16 %v446, %v445
      %v454 = vpack.c.b16 %v447, %v447
      %vm455 = vsmask.f32 5376
      %v457 = vshrl.u32 %v448, 16
      %v459 = vrot.slane %v457, 2
      %v460 = vshll.u32 %v448, 16
      %v462 = vrot.slane %v460, 3
      %v463 = vor.u32 %v459, %v462
      %v465 = vshrl.u32 %v449, 16
      %v467 = vrot.slane %v465, 2
      %v468 = vshll.u32 %v449, 16
      %v470 = vrot.slane %v468, 3
      %v471 = vor.u32 %v467, %v470
      %v472 = vsel %vm455, %v463, %v471
      %v474 = vshrl.u32 %v450, 16
      %v476 = vrot.slane %v474, 2
      %v477 = vshll.u32 %v450, 16
      %v479 = vrot.slane %v477, 3
      %v480 = vor.u32 %v476, %v479
      %v481 = vsel %vm455, %v471, %v480
      %v483 = vshrl.u32 %v451, 16
      %v485 = vrot.slane %v483, 2
      %v486 = vshll.u32 %v451, 16
      %v488 = vrot.slane %v486, 3
      %v489 = vor.u32 %v485, %v488
      %v490 = vsel %vm455, %v480, %v489
      %v492 = vshrl.u32 %v452, 16
      %v494 = vrot.slane %v492, 2
      %v495 = vshll.u32 %v452, 16
      %v497 = vrot.slane %v495, 3
      %v498 = vor.u32 %v494, %v497
      %v499 = vsel %vm455, %v489, %v498
      %v501 = vshrl.u32 %v453, 16
      %v503 = vrot.slane %v501, 2
      %v504 = vshll.u32 %v453, 16
      %v506 = vrot.slane %v504, 3
      %v507 = vor.u32 %v503, %v506
      %v508 = vsel %vm455, %v498, %v507
      %v510 = vshll.u32 %v454, 16
      %v512 = vrot.slane %v510, 3
      %v513 = vsel %vm455, %v507, %v512
      %v515 = vsel %vm318, %v472, 0
      %v518 = vsel %vm318, %v481, 0
      %v521 = vsel %vm318, %v490, 0
      %v524 = vsel %vm318, %v499, 0
      %v527 = vsel %vm318, %v508, 0
      %v530 = vsel %vm318, %v513, 0
      %v533 = vsel %vm337, %v254, 0
      %535 = vmatprep.subr.bf16.mxu0 0
      %536 = vmatpush1.bf16.msra.mxu0 %v533
      %537 = vmatprep.subr.bf16.mxu0 0
      %538 = vmatpush1.bf16.msra.mxu0 0
      %539 = vmatprep.subr.bf16.mxu0 0
      %540 = vmatpush1.bf16.msra.mxu0 0
      %541 = vmatprep.subr.bf16.mxu0 0
      %542 = vmatpush1.bf16.msra.mxu0 0
      %543 = vmatprep.subr.bf16.mxu0 0
      %544 = vmatpush1.bf16.msra.mxu0 0
      %545 = vmatprep.subr.bf16.mxu0 0
      %546 = vmatpush1.bf16.msra.mxu0 0
      %547 = vmatprep.subr.bf16.mxu0 0
      %548 = vmatpush1.bf16.msra.mxu0 0
      %549 = vmatprep.subr.bf16.mxu0 0
      %550 = vmatpush1.bf16.msra.mxu0 0
      %551 = vmatprep.subr.bf16.mxu0 0
      %552 = vmatpush1.bf16.msra.mxu0 0
      %553 = vmatprep.subr.bf16.mxu0 0
      %554 = vmatpush1.bf16.msra.mxu0 0
      %555 = vmatprep.subr.bf16.mxu0 0
      %556 = vmatpush1.bf16.msra.mxu0 0
      %557 = vmatprep.subr.bf16.mxu0 0
      %558 = vmatpush1.bf16.msra.mxu0 0
      %559 = vmatprep.subr.bf16.mxu0 0
      %560 = vmatpush1.bf16.msra.mxu0 0
      %561 = vmatprep.subr.bf16.mxu0 0
      %562 = vmatpush1.bf16.msra.mxu0 0
      %563 = vmatprep.subr.bf16.mxu0 0
      %564 = vmatpush1.bf16.msra.mxu0 0
      %565 = vmatprep.subr.bf16.mxu0 0
      %566 = vmatpush1.bf16.msra.mxu0 0
      %567 = vmatprep.mubr.bf16.mxu0 0
      %568 = vmatmul.mubr.bf16.gmra.mrb[0].mxu0 %v515
      %v569 = vpop.f32.mrb[0].mxu0
      %v570 = vadd.f32 %v376, %v569
      %v571 = vpop.f32.mrb[0].mxu0
      %v572 = vpop.f32.mrb[0].mxu0
      %v573 = vadd.f32 %v379, %v572
      %v574 = vpop.f32.mrb[0].mxu0
      %575 = vmatprep.mubr.bf16.mxu0 0
      %576 = vmatmul.mubr.bf16.gmra.mrb[0].mxu0 %v518
      %v577 = vpop.f32.mrb[0].mxu0
      %v578 = vadd.f32 %v384, %v577
      %v579 = vpop.f32.mrb[0].mxu0
      %v580 = vpop.f32.mrb[0].mxu0
      %v581 = vadd.f32 %v387, %v580
      %v582 = vpop.f32.mrb[0].mxu0
      %583 = vmatprep.mubr.bf16.mxu0 0
      %584 = vmatmul.mubr.bf16.gmra.mrb[0].mxu0 %v521
      %v585 = vpop.f32.mrb[0].mxu0
      %v586 = vadd.f32 %v392, %v585
      %v587 = vpop.f32.mrb[0].mxu0
      %v588 = vpop.f32.mrb[0].mxu0
      %v589 = vadd.f32 %v395, %v588
      %v590 = vpop.f32.mrb[0].mxu0
      %591 = vmatprep.mubr.bf16.mxu0 0
      %592 = vmatmul.mubr.bf16.gmra.mrb[0].mxu0 %v524
      %v593 = vpop.f32.mrb[0].mxu0
      %v594 = vadd.f32 %v400, %v593
      %v595 = vpop.f32.mrb[0].mxu0
      %v596 = vpop.f32.mrb[0].mxu0
      %v597 = vadd.f32 %v403, %v596
      %v598 = vpop.f32.mrb[0].mxu0
      %599 = vmatprep.mubr.bf16.mxu0 0
      %600 = vmatmul.mubr.bf16.gmra.mrb[0].mxu0 %v527
      %v601 = vpop.f32.mrb[0].mxu0
      %v602 = vadd.f32 %v408, %v601
      %v603 = vpop.f32.mrb[0].mxu0
      %v604 = vpop.f32.mrb[0].mxu0
      %v605 = vadd.f32 %v411, %v604
      %v606 = vpop.f32.mrb[0].mxu0
      %607 = vmatprep.mubr.bf16.mxu0 0
      %608 = vmatmul.mubr.bf16.gmra.mrb[0].mxu0 %v530
      %v609 = vpop.f32.mrb[0].mxu0
      %v610 = vadd.f32 %v416, %v609
      %v611 = vpop.f32.mrb[0].mxu0
      %v612 = vpop.f32.mrb[0].mxu0
      %v613 = vadd.f32 %v419, %v612
      %v614 = vpop.f32.mrb[0].mxu0
      %615 = vdwg.mxu0
      %v616 = vld [vmem:[%s240 + $0x4] sm:$0x8]
      %s617 = scalar_lea.vmem %s1, 4
      %v618 = vld [vmem:[%s617] sm:$0x3]
      %v620 = vunpack.c.l.b16 %v616
      %v621 = vpack.c.b16 %v436, %v620
      %v622 = vrot.slane %v621, 3
      %v623 = vrot.slane %v449, 3
      %v624 = vsel %vm304, %v622, %v623
      %v625 = vrot.slane %v450, 3
      %v626 = vsel %vm304, %v623, %v625
      %v627 = vrot.slane %v451, 3
      %v628 = vsel %vm304, %v625, %v627
      %v629 = vrot.slane %v452, 3
      %v630 = vsel %vm304, %v627, %v629
      %v631 = vrot.slane %v453, 3
      %v632 = vsel %vm304, %v629, %v631
      %v633 = vrot.slane %v454, 3
      %v634 = vsel %vm304, %v631, %v633
      %v636 = vsel %vm318, %v624, 0
      %v639 = vsel %vm318, %v626, 0
      %v642 = vsel %vm318, %v628, 0
      %v645 = vsel %vm318, %v630, 0
      %v648 = vsel %vm318, %v632, 0
      %v651 = vsel %vm318, %v634, 0
      %v654 = vsel %vm337, %v618, 0
      %656 = vmatprep.subr.bf16.mxu0 0
      %657 = vmatpush1.bf16.msra.mxu0 %v654
      %658 = vmatprep.subr.bf16.mxu0 0
      %659 = vmatpush1.bf16.msra.mxu0 0
      %660 = vmatprep.subr.bf16.mxu0 0
      %661 = vmatpush1.bf16.msra.mxu0 0
      %662 = vmatprep.subr.bf16.mxu0 0
      %663 = vmatpush1.bf16.msra.mxu0 0
      %664 = vmatprep.subr.bf16.mxu0 0
      %665 = vmatpush1.bf16.msra.mxu0 0
      %666 = vmatprep.subr.bf16.mxu0 0
      %667 = vmatpush1.bf16.msra.mxu0 0
      %668 = vmatprep.subr.bf16.mxu0 0
      %669 = vmatpush1.bf16.msra.mxu0 0
      %670 = vmatprep.subr.bf16.mxu0 0
      %671 = vmatpush1.bf16.msra.mxu0 0
      %672 = vmatprep.subr.bf16.mxu0 0
      %673 = vmatpush1.bf16.msra.mxu0 0
      %674 = vmatprep.subr.bf16.mxu0 0
      %675 = vmatpush1.bf16.msra.mxu0 0
      %676 = vmatprep.subr.bf16.mxu0 0
      %677 = vmatpush1.bf16.msra.mxu0 0
      %678 = vmatprep.subr.bf16.mxu0 0
      %679 = vmatpush1.bf16.msra.mxu0 0
      %680 = vmatprep.subr.bf16.mxu0 0
      %681 = vmatpush1.bf16.msra.mxu0 0
      %682 = vmatprep.subr.bf16.mxu0 0
      %683 = vmatpush1.bf16.msra.mxu0 0
      %684 = vmatprep.subr.bf16.mxu0 0
      %685 = vmatpush1.bf16.msra.mxu0 0
      %686 = vmatprep.subr.bf16.mxu0 0
      %687 = vmatpush1.bf16.msra.mxu0 0
      %688 = vmatprep.mubr.bf16.mxu0 0
      %689 = vmatmul.mubr.bf16.gmra.mrb[0].mxu0 %v636
      %v690 = vpop.f32.mrb[0].mxu0
      %v691 = vadd.f32 0.0, %v690
      %v692 = vpop.f32.mrb[0].mxu0
      %v693 = vpop.f32.mrb[0].mxu0
      %v694 = vadd.f32 0.0, %v693
      %v695 = vpop.f32.mrb[0].mxu0
      %696 = vmatprep.mubr.bf16.mxu0 0
      %697 = vmatmul.mubr.bf16.gmra.mrb[0].mxu0 %v639
      %v698 = vpop.f32.mrb[0].mxu0
      %v699 = vadd.f32 0.0, %v698
      %v700 = vpop.f32.mrb[0].mxu0
      %v701 = vpop.f32.mrb[0].mxu0
      %v702 = vadd.f32 0.0, %v701
      %v703 = vpop.f32.mrb[0].mxu0
      %704 = vmatprep.mubr.bf16.mxu0 0
      %705 = vmatmul.mubr.bf16.gmra.mrb[0].mxu0 %v642
      %v706 = vpop.f32.mrb[0].mxu0
      %v707 = vadd.f32 0.0, %v706
      %v708 = vpop.f32.mrb[0].mxu0
      %v709 = vpop.f32.mrb[0].mxu0
      %v710 = vadd.f32 0.0, %v709
      %v711 = vpop.f32.mrb[0].mxu0
      %712 = vmatprep.mubr.bf16.mxu0 0
      %713 = vmatmul.mubr.bf16.gmra.mrb[0].mxu0 %v645
      %v714 = vpop.f32.mrb[0].mxu0
      %v715 = vadd.f32 0.0, %v714
      %v716 = vpop.f32.mrb[0].mxu0
      %v717 = vpop.f32.mrb[0].mxu0
      %v718 = vadd.f32 0.0, %v717
      %v719 = vpop.f32.mrb[0].mxu0
      %720 = vmatprep.mubr.bf16.mxu0 0
      %721 = vmatmul.mubr.bf16.gmra.mrb[0].mxu0 %v648
      %v722 = vpop.f32.mrb[0].mxu0
      %v723 = vadd.f32 0.0, %v722
      %v724 = vpop.f32.mrb[0].mxu0
      %v725 = vpop.f32.mrb[0].mxu0
      %v726 = vadd.f32 0.0, %v725
      %v727 = vpop.f32.mrb[0].mxu0
      %728 = vmatprep.mubr.bf16.mxu0 0
      %729 = vmatmul.mubr.bf16.gmra.mrb[0].mxu0 %v651
      %v730 = vpop.f32.mrb[0].mxu0
      %v731 = vadd.f32 0.0, %v730
      %v732 = vpop.f32.mrb[0].mxu0
      %v733 = vpop.f32.mrb[0].mxu0
      %v734 = vadd.f32 0.0, %v733
      %v735 = vpop.f32.mrb[0].mxu0
      %736 = vdwg.mxu0
      %v737 = vadd.f32 %v570, %v691
      %v738 = vadd.f32 %v573, %v694
      %v739 = vadd.f32 %v578, %v699
      %v740 = vadd.f32 %v581, %v702
      %v741 = vadd.f32 %v586, %v707
      %v742 = vadd.f32 %v589, %v710
      %v743 = vadd.f32 %v594, %v715
      %v744 = vadd.f32 %v597, %v718
      %v745 = vadd.f32 %v602, %v723
      %v746 = vadd.f32 %v605, %v726
      %v747 = vadd.f32 %v610, %v731
      %v748 = vadd.f32 %v613, %v734
      %s749 = scalar_lea.vmem %s230, 72
      %v750 = vld [vmem:[%s749 + $0xc] sm:$0xf]
      %v751 = vld [vmem:[%s749 + $0x10] sm:$0xf]
      %v752 = vld [vmem:[%s749 + $0x14] sm:$0xf]
      %v753 = vld [vmem:[%s749 + $0x18] sm:$0xf]
      %v754 = vld [vmem:[%s749 + $0x1c] sm:$0xf]
      %v755 = vld [vmem:[%s749 + $0x20] sm:$0xf]
      %v756 = vld [vmem:[%s749 + $0x24] sm:$0xf]
      %v757 = vld [vmem:[%s749 + $0x28] sm:$0xf]
      %v758 = vld [vmem:[%s749 + $0x2c] sm:$0xf]
      %v759 = vld [vmem:[%s749 + $0x30] sm:$0xf]
      %v760 = vld [vmem:[%s749 + $0x34] sm:$0xf]
      %v761 = vld [vmem:[%s749 + $0x38] sm:$0x7]
      %s762 = scalar_lea.vmem %s1, 6
      %v763 = vld [vmem:[%s762] sm:$0x3]
      %v776 = vunpack.c.l.b16 %v750
      %v777 = vunpack.c.l.b16 %v751
      %v778 = vunpack.c.l.b16 %v752
      %v779 = vunpack.c.l.b16 %v753
      %v780 = vunpack.c.l.b16 %v754
      %v781 = vunpack.c.l.b16 %v755
      %v782 = vunpack.c.l.b16 %v756
      %v783 = vunpack.c.l.b16 %v757
      %v784 = vunpack.c.l.b16 %v758
      %v785 = vunpack.c.l.b16 %v759
      %v786 = vunpack.c.l.b16 %v760
      %v787 = vunpack.c.l.b16 %v761
      %v788 = vpack.c.b16 %v777, %v776
      %v789 = vpack.c.b16 %v779, %v778
      %v790 = vpack.c.b16 %v781, %v780
      %v791 = vpack.c.b16 %v783, %v782
      %v792 = vpack.c.b16 %v785, %v784
      %v793 = vpack.c.b16 %v787, %v786
      %vm794 = vsmask.f32 7424
      %v796 = vshrl.u32 %v788, 16
      %v798 = vshll.u32 %v788, 16
      %v800 = vrot.slane %v798, 1
      %v801 = vor.u32 %v796, %v800
      %v803 = vshll.u32 %v789, 16
      %v805 = vrot.slane %v803, 1
      %v806 = vsel %vm794, %v801, %v805
      %v807 = vshrl.u32 %v789, 16
      %v809 = vor.u32 %v807, %v805
      %v811 = vshll.u32 %v790, 16
      %v813 = vrot.slane %v811, 1
      %v814 = vsel %vm794, %v809, %v813
      %v815 = vshrl.u32 %v790, 16
      %v817 = vor.u32 %v815, %v813
      %v819 = vshll.u32 %v791, 16
      %v821 = vrot.slane %v819, 1
      %v822 = vsel %vm794, %v817, %v821
      %v823 = vshrl.u32 %v791, 16
      %v825 = vor.u32 %v823, %v821
      %v827 = vshll.u32 %v792, 16
      %v829 = vrot.slane %v827, 1
      %v830 = vsel %vm794, %v825, %v829
      %v831 = vshrl.u32 %v792, 16
      %v833 = vor.u32 %v831, %v829
      %v835 = vshll.u32 %v793, 16
      %v837 = vrot.slane %v835, 1
      %v838 = vsel %vm794, %v833, %v837
      %v839 = vshrl.u32 %v793, 16
      %v841 = vor.u32 %v839, %v837
      %v843 = vsel %vm318, %v806, 0
      %v846 = vsel %vm318, %v814, 0
      %v849 = vsel %vm318, %v822, 0
      %v852 = vsel %vm318, %v830, 0
      %v855 = vsel %vm318, %v838, 0
      %v858 = vsel %vm318, %v841, 0
      %v861 = vsel %vm337, %v763, 0
      %863 = vmatprep.subr.bf16.mxu0 0
      %864 = vmatpush1.bf16.msra.mxu0 %v861
      %865 = vmatprep.subr.bf16.mxu0 0
      %866 = vmatpush1.bf16.msra.mxu0 0
      %867 = vmatprep.subr.bf16.mxu0 0
      %868 = vmatpush1.bf16.msra.mxu0 0
      %869 = vmatprep.subr.bf16.mxu0 0
      %870 = vmatpush1.bf16.msra.mxu0 0
      %871 = vmatprep.subr.bf16.mxu0 0
      %872 = vmatpush1.bf16.msra.mxu0 0
      %873 = vmatprep.subr.bf16.mxu0 0
      %874 = vmatpush1.bf16.msra.mxu0 0
      %875 = vmatprep.subr.bf16.mxu0 0
      %876 = vmatpush1.bf16.msra.mxu0 0
      %877 = vmatprep.subr.bf16.mxu0 0
      %878 = vmatpush1.bf16.msra.mxu0 0
      %879 = vmatprep.subr.bf16.mxu0 0
      %880 = vmatpush1.bf16.msra.mxu0 0
      %881 = vmatprep.subr.bf16.mxu0 0
      %882 = vmatpush1.bf16.msra.mxu0 0
      %883 = vmatprep.subr.bf16.mxu0 0
      %884 = vmatpush1.bf16.msra.mxu0 0
      %885 = vmatprep.subr.bf16.mxu0 0
      %886 = vmatpush1.bf16.msra.mxu0 0
      %887 = vmatprep.subr.bf16.mxu0 0
      %888 = vmatpush1.bf16.msra.mxu0 0
      %889 = vmatprep.subr.bf16.mxu0 0
      %890 = vmatpush1.bf16.msra.mxu0 0
      %891 = vmatprep.subr.bf16.mxu0 0
      %892 = vmatpush1.bf16.msra.mxu0 0
      %893 = vmatprep.subr.bf16.mxu0 0
      %894 = vmatpush1.bf16.msra.mxu0 0
      %895 = vmatprep.mubr.bf16.mxu0 0
      %896 = vmatmul.mubr.bf16.gmra.mrb[0].mxu0 %v843
      %v897 = vpop.f32.mrb[0].mxu0
      %v898 = vadd.f32 0.0, %v897
      %v899 = vpop.f32.mrb[0].mxu0
      %v900 = vpop.f32.mrb[0].mxu0
      %v901 = vadd.f32 0.0, %v900
      %v902 = vpop.f32.mrb[0].mxu0
      %903 = vmatprep.mubr.bf16.mxu0 0
      %904 = vmatmul.mubr.bf16.gmra.mrb[0].mxu0 %v846
      %v905 = vpop.f32.mrb[0].mxu0
      %v906 = vadd.f32 0.0, %v905
      %v907 = vpop.f32.mrb[0].mxu0
      %v908 = vpop.f32.mrb[0].mxu0
      %v909 = vadd.f32 0.0, %v908
      %v910 = vpop.f32.mrb[0].mxu0
      %911 = vmatprep.mubr.bf16.mxu0 0
      %912 = vmatmul.mubr.bf16.gmra.mrb[0].mxu0 %v849
      %v913 = vpop.f32.mrb[0].mxu0
      %v914 = vadd.f32 0.0, %v913
      %v915 = vpop.f32.mrb[0].mxu0
      %v916 = vpop.f32.mrb[0].mxu0
      %v917 = vadd.f32 0.0, %v916
      %v918 = vpop.f32.mrb[0].mxu0
      %919 = vmatprep.mubr.bf16.mxu0 0
      %920 = vmatmul.mubr.bf16.gmra.mrb[0].mxu0 %v852
      %v921 = vpop.f32.mrb[0].mxu0
      %v922 = vadd.f32 0.0, %v921
      %v923 = vpop.f32.mrb[0].mxu0
      %v924 = vpop.f32.mrb[0].mxu0
      %v925 = vadd.f32 0.0, %v924
      %v926 = vpop.f32.mrb[0].mxu0
      %927 = vmatprep.mubr.bf16.mxu0 0
      %928 = vmatmul.mubr.bf16.gmra.mrb[0].mxu0 %v855
      %v929 = vpop.f32.mrb[0].mxu0
      %v930 = vadd.f32 0.0, %v929
      %v931 = vpop.f32.mrb[0].mxu0
      %v932 = vpop.f32.mrb[0].mxu0
      %v933 = vadd.f32 0.0, %v932
      %v934 = vpop.f32.mrb[0].mxu0
      %935 = vmatprep.mubr.bf16.mxu0 0
      %936 = vmatmul.mubr.bf16.gmra.mrb[0].mxu0 %v858
      %v937 = vpop.f32.mrb[0].mxu0
      %v938 = vadd.f32 0.0, %v937
      %v939 = vpop.f32.mrb[0].mxu0
      %v940 = vpop.f32.mrb[0].mxu0
      %v941 = vadd.f32 0.0, %v940
      %v942 = vpop.f32.mrb[0].mxu0
      %943 = vdwg.mxu0
      %v944 = vadd.f32 %v737, %v898
      %v945 = vadd.f32 %v738, %v901
      %v946 = vadd.f32 %v739, %v906
      %v947 = vadd.f32 %v740, %v909
      %v948 = vadd.f32 %v741, %v914
      %v949 = vadd.f32 %v742, %v917
      %v950 = vadd.f32 %v743, %v922
      %v951 = vadd.f32 %v744, %v925
      %v952 = vadd.f32 %v745, %v930
      %v953 = vadd.f32 %v746, %v933
      %v954 = vadd.f32 %v747, %v938
      %v955 = vadd.f32 %v748, %v941
      %v956 = vld [vmem:[%s230 + $0xc] sm:$0xe]
      %v957 = vld [vmem:[%s230 + $0x10] sm:$0xf]
      %v958 = vld [vmem:[%s230 + $0x14] sm:$0xf]
      %v959 = vld [vmem:[%s230 + $0x18] sm:$0xf]
      %v960 = vld [vmem:[%s230 + $0x1c] sm:$0xf]
      %v961 = vld [vmem:[%s230 + $0x20] sm:$0xf]
      %v962 = vld [vmem:[%s230 + $0x24] sm:$0xf]
      %v963 = vld [vmem:[%s230 + $0x28] sm:$0xf]
      %v964 = vld [vmem:[%s230 + $0x2c] sm:$0xf]
      %v965 = vld [vmem:[%s230 + $0x30] sm:$0xf]
      %v966 = vld [vmem:[%s230 + $0x34] sm:$0xf]
      %v967 = vld [vmem:[%s230 + $0x38] sm:$0x7]
      %s968 = scalar_lea.vmem %s1, 8
      %v969 = vld [vmem:[%s968] sm:$0x3]
      %v982 = vunpack.c.l.b16 %v956
      %v983 = vunpack.c.l.b16 %v957
      %v984 = vunpack.c.l.b16 %v958
      %v985 = vunpack.c.l.b16 %v959
      %v986 = vunpack.c.l.b16 %v960
      %v987 = vunpack.c.l.b16 %v961
      %v988 = vunpack.c.l.b16 %v962
      %v989 = vunpack.c.l.b16 %v963
      %v990 = vunpack.c.l.b16 %v964
      %v991 = vunpack.c.l.b16 %v965
      %v992 = vunpack.c.l.b16 %v966
      %v993 = vunpack.c.l.b16 %v967
      %v994 = vpack.c.b16 %v983, %v982
      %v995 = vpack.c.b16 %v985, %v984
      %v996 = vpack.c.b16 %v987, %v986
      %v997 = vpack.c.b16 %v989, %v988
      %v998 = vpack.c.b16 %v991, %v990
      %v999 = vpack.c.b16 %v993, %v992
      %vm1000 = vcmask 1046528
      %v1001 = vrot.slane %v994, 1
      %v1002 = vrot.slane %v995, 1
      %v1003 = vsel %vm1000, %v1001, %v1002
      %v1004 = vrot.slane %v996, 1
      %v1005 = vsel %vm1000, %v1002, %v1004
      %v1006 = vrot.slane %v997, 1
      %v1007 = vsel %vm1000, %v1004, %v1006
      %v1008 = vrot.slane %v998, 1
      %v1009 = vsel %vm1000, %v1006, %v1008
      %v1010 = vrot.slane %v999, 1
      %v1011 = vsel %vm1000, %v1008, %v1010
      %v1013 = vsel %vm318, %v1003, 0
      %v1016 = vsel %vm318, %v1005, 0
      %v1019 = vsel %vm318, %v1007, 0
      %v1022 = vsel %vm318, %v1009, 0
      %v1025 = vsel %vm318, %v1011, 0
      %v1028 = vsel %vm318, %v1010, 0
      %v1031 = vsel %vm337, %v969, 0
      %1033 = vmatprep.subr.bf16.mxu0 0
      %1034 = vmatpush1.bf16.msra.mxu0 %v1031
      %1035 = vmatprep.subr.bf16.mxu0 0
      %1036 = vmatpush1.bf16.msra.mxu0 0
      %1037 = vmatprep.subr.bf16.mxu0 0
      %1038 = vmatpush1.bf16.msra.mxu0 0
      %1039 = vmatprep.subr.bf16.mxu0 0
      %1040 = vmatpush1.bf16.msra.mxu0 0
      %1041 = vmatprep.subr.bf16.mxu0 0
      %1042 = vmatpush1.bf16.msra.mxu0 0
      %1043 = vmatprep.subr.bf16.mxu0 0
      %1044 = vmatpush1.bf16.msra.mxu0 0
      %1045 = vmatprep.subr.bf16.mxu0 0
      %1046 = vmatpush1.bf16.msra.mxu0 0
      %1047 = vmatprep.subr.bf16.mxu0 0
      %1048 = vmatpush1.bf16.msra.mxu0 0
      %1049 = vmatprep.subr.bf16.mxu0 0
      %1050 = vmatpush1.bf16.msra.mxu0 0
      %1051 = vmatprep.subr.bf16.mxu0 0
      %1052 = vmatpush1.bf16.msra.mxu0 0
      %1053 = vmatprep.subr.bf16.mxu0 0
      %1054 = vmatpush1.bf16.msra.mxu0 0
      %1055 = vmatprep.subr.bf16.mxu0 0
      %1056 = vmatpush1.bf16.msra.mxu0 0
      %1057 = vmatprep.subr.bf16.mxu0 0
      %1058 = vmatpush1.bf16.msra.mxu0 0
      %1059 = vmatprep.subr.bf16.mxu0 0
      %1060 = vmatpush1.bf16.msra.mxu0 0
      %1061 = vmatprep.subr.bf16.mxu0 0
      %1062 = vmatpush1.bf16.msra.mxu0 0
      %1063 = vmatprep.subr.bf16.mxu0 0
      %1064 = vmatpush1.bf16.msra.mxu0 0
      %1065 = vmatprep.mubr.bf16.mxu0 0
      %1066 = vmatmul.mubr.bf16.gmra.mrb[0].mxu0 %v1013
      %v1067 = vpop.f32.mrb[0].mxu0
      %v1068 = vadd.f32 0.0, %v1067
      %v1069 = vpop.f32.mrb[0].mxu0
      %v1070 = vpop.f32.mrb[0].mxu0
      %v1071 = vadd.f32 0.0, %v1070
      %v1072 = vpop.f32.mrb[0].mxu0
      %1073 = vmatprep.mubr.bf16.mxu0 0
      %1074 = vmatmul.mubr.bf16.gmra.mrb[0].mxu0 %v1016
      %v1075 = vpop.f32.mrb[0].mxu0
      %v1076 = vadd.f32 0.0, %v1075
      %v1077 = vpop.f32.mrb[0].mxu0
      %v1078 = vpop.f32.mrb[0].mxu0
      %v1079 = vadd.f32 0.0, %v1078
      %v1080 = vpop.f32.mrb[0].mxu0
      %1081 = vmatprep.mubr.bf16.mxu0 0
      %1082 = vmatmul.mubr.bf16.gmra.mrb[0].mxu0 %v1019
      %v1083 = vpop.f32.mrb[0].mxu0
      %v1084 = vadd.f32 0.0, %v1083
      %v1085 = vpop.f32.mrb[0].mxu0
      %v1086 = vpop.f32.mrb[0].mxu0
      %v1087 = vadd.f32 0.0, %v1086
      %v1088 = vpop.f32.mrb[0].mxu0
      %1089 = vmatprep.mubr.bf16.mxu0 0
      %1090 = vmatmul.mubr.bf16.gmra.mrb[0].mxu0 %v1022
      %v1091 = vpop.f32.mrb[0].mxu0
      %v1092 = vadd.f32 0.0, %v1091
      %v1093 = vpop.f32.mrb[0].mxu0
      %v1094 = vpop.f32.mrb[0].mxu0
      %v1095 = vadd.f32 0.0, %v1094
      %v1096 = vpop.f32.mrb[0].mxu0
      %1097 = vmatprep.mubr.bf16.mxu0 0
      %1098 = vmatmul.mubr.bf16.gmra.mrb[0].mxu0 %v1025
      %v1099 = vpop.f32.mrb[0].mxu0
      %v1100 = vadd.f32 0.0, %v1099
      %v1101 = vpop.f32.mrb[0].mxu0
      %v1102 = vpop.f32.mrb[0].mxu0
      %v1103 = vadd.f32 0.0, %v1102
      %v1104 = vpop.f32.mrb[0].mxu0
      %1105 = vmatprep.mubr.bf16.mxu0 0
      %1106 = vmatmul.mubr.bf16.gmra.mrb[0].mxu0 %v1028
      %v1107 = vpop.f32.mrb[0].mxu0
      %v1108 = vadd.f32 0.0, %v1107
      %v1109 = vpop.f32.mrb[0].mxu0
      %v1110 = vpop.f32.mrb[0].mxu0
      %v1111 = vadd.f32 0.0, %v1110
      %v1112 = vpop.f32.mrb[0].mxu0
      %1113 = vdwg.mxu0
      %v1114 = vadd.f32 %v944, %v1068
      %v1115 = vadd.f32 %v945, %v1071
      %v1116 = vadd.f32 %v946, %v1076
      %v1117 = vadd.f32 %v947, %v1079
      %v1118 = vadd.f32 %v948, %v1084
      %v1119 = vadd.f32 %v949, %v1087
      %v1120 = vadd.f32 %v950, %v1092
      %v1121 = vadd.f32 %v951, %v1095
      %v1122 = vadd.f32 %v952, %v1100
      %v1123 = vadd.f32 %v953, %v1103
      %v1124 = vadd.f32 %v954, %v1108
      %v1125 = vadd.f32 %v955, %v1111
      %v1126 = vld [vmem:[%s749 + $0xc] sm:$0xe]
      %s1127 = scalar_lea.vmem %s1, 10
      %v1128 = vld [vmem:[%s1127] sm:$0x3]
      %v1130 = vunpack.c.l.b16 %v1126
      %v1131 = vpack.c.b16 %v777, %v1130
      %v1132 = vrot.slane %v1131, 1
      %v1133 = vrot.slane %v789, 1
      %v1134 = vsel %vm1000, %v1132, %v1133
      %v1135 = vrot.slane %v790, 1
      %v1136 = vsel %vm1000, %v1133, %v1135
      %v1137 = vrot.slane %v791, 1
      %v1138 = vsel %vm1000, %v1135, %v1137
      %v1139 = vrot.slane %v792, 1
      %v1140 = vsel %vm1000, %v1137, %v1139
      %v1141 = vrot.slane %v793, 1
      %v1142 = vsel %vm1000, %v1139, %v1141
      %v1144 = vsel %vm318, %v1134, 0
      %v1147 = vsel %vm318, %v1136, 0
      %v1150 = vsel %vm318, %v1138, 0
      %v1153 = vsel %vm318, %v1140, 0
      %v1156 = vsel %vm318, %v1142, 0
      %v1159 = vsel %vm318, %v1141, 0
      %v1162 = vsel %vm337, %v1128, 0
      %1164 = vmatprep.subr.bf16.mxu0 0
      %1165 = vmatpush1.bf16.msra.mxu0 %v1162
      %1166 = vmatprep.subr.bf16.mxu0 0
      %1167 = vmatpush1.bf16.msra.mxu0 0
      %1168 = vmatprep.subr.bf16.mxu0 0
      %1169 = vmatpush1.bf16.msra.mxu0 0
      %1170 = vmatprep.subr.bf16.mxu0 0
      %1171 = vmatpush1.bf16.msra.mxu0 0
      %1172 = vmatprep.subr.bf16.mxu0 0
      %1173 = vmatpush1.bf16.msra.mxu0 0
      %1174 = vmatprep.subr.bf16.mxu0 0
      %1175 = vmatpush1.bf16.msra.mxu0 0
      %1176 = vmatprep.subr.bf16.mxu0 0
      %1177 = vmatpush1.bf16.msra.mxu0 0
      %1178 = vmatprep.subr.bf16.mxu0 0
      %1179 = vmatpush1.bf16.msra.mxu0 0
      %1180 = vmatprep.subr.bf16.mxu0 0
      %1181 = vmatpush1.bf16.msra.mxu0 0
      %1182 = vmatprep.subr.bf16.mxu0 0
      %1183 = vmatpush1.bf16.msra.mxu0 0
      %1184 = vmatprep.subr.bf16.mxu0 0
      %1185 = vmatpush1.bf16.msra.mxu0 0
      %1186 = vmatprep.subr.bf16.mxu0 0
      %1187 = vmatpush1.bf16.msra.mxu0 0
      %1188 = vmatprep.subr.bf16.mxu0 0
      %1189 = vmatpush1.bf16.msra.mxu0 0
      %1190 = vmatprep.subr.bf16.mxu0 0
      %1191 = vmatpush1.bf16.msra.mxu0 0
      %1192 = vmatprep.subr.bf16.mxu0 0
      %1193 = vmatpush1.bf16.msra.mxu0 0
      %1194 = vmatprep.subr.bf16.mxu0 0
      %1195 = vmatpush1.bf16.msra.mxu0 0
      %1196 = vmatprep.mubr.bf16.mxu0 0
      %1197 = vmatmul.mubr.bf16.gmra.mrb[0].mxu0 %v1144
      %v1198 = vpop.f32.mrb[0].mxu0
      %v1199 = vadd.f32 0.0, %v1198
      %v1200 = vpop.f32.mrb[0].mxu0
      %v1201 = vpop.f32.mrb[0].mxu0
      %v1202 = vadd.f32 0.0, %v1201
      %v1203 = vpop.f32.mrb[0].mxu0
      %1204 = vmatprep.mubr.bf16.mxu0 0
      %1205 = vmatmul.mubr.bf16.gmra.mrb[0].mxu0 %v1147
      %v1206 = vpop.f32.mrb[0].mxu0
      %v1207 = vadd.f32 0.0, %v1206
      %v1208 = vpop.f32.mrb[0].mxu0
      %v1209 = vpop.f32.mrb[0].mxu0
      %v1210 = vadd.f32 0.0, %v1209
      %v1211 = vpop.f32.mrb[0].mxu0
      %1212 = vmatprep.mubr.bf16.mxu0 0
      %1213 = vmatmul.mubr.bf16.gmra.mrb[0].mxu0 %v1150
      %v1214 = vpop.f32.mrb[0].mxu0
      %v1215 = vadd.f32 0.0, %v1214
      %v1216 = vpop.f32.mrb[0].mxu0
      %v1217 = vpop.f32.mrb[0].mxu0
      %v1218 = vadd.f32 0.0, %v1217
      %v1219 = vpop.f32.mrb[0].mxu0
      %1220 = vmatprep.mubr.bf16.mxu0 0
      %1221 = vmatmul.mubr.bf16.gmra.mrb[0].mxu0 %v1153
      %v1222 = vpop.f32.mrb[0].mxu0
      %v1223 = vadd.f32 0.0, %v1222
      %v1224 = vpop.f32.mrb[0].mxu0
      %v1225 = vpop.f32.mrb[0].mxu0
      %v1226 = vadd.f32 0.0, %v1225
      %v1227 = vpop.f32.mrb[0].mxu0
      %1228 = vmatprep.mubr.bf16.mxu0 0
      %1229 = vmatmul.mubr.bf16.gmra.mrb[0].mxu0 %v1156
      %v1230 = vpop.f32.mrb[0].mxu0
      %v1231 = vadd.f32 0.0, %v1230
      %v1232 = vpop.f32.mrb[0].mxu0
      %v1233 = vpop.f32.mrb[0].mxu0
      %v1234 = vadd.f32 0.0, %v1233
      %v1235 = vpop.f32.mrb[0].mxu0
      %1236 = vmatprep.mubr.bf16.mxu0 0
      %1237 = vmatmul.mubr.bf16.gmra.mrb[0].mxu0 %v1159
      %v1238 = vpop.f32.mrb[0].mxu0
      %v1239 = vadd.f32 0.0, %v1238
      %v1240 = vpop.f32.mrb[0].mxu0
      %v1241 = vpop.f32.mrb[0].mxu0
      %v1242 = vadd.f32 0.0, %v1241
      %v1243 = vpop.f32.mrb[0].mxu0
      %1244 = vdwg.mxu0
      %v1245 = vadd.f32 %v1114, %v1199
      %v1246 = vadd.f32 %v1115, %v1202
      %v1247 = vadd.f32 %v1116, %v1207
      %v1248 = vadd.f32 %v1117, %v1210
      %v1249 = vadd.f32 %v1118, %v1215
      %v1250 = vadd.f32 %v1119, %v1218
      %v1251 = vadd.f32 %v1120, %v1223
      %v1252 = vadd.f32 %v1121, %v1226
      %v1253 = vadd.f32 %v1122, %v1231
      %v1254 = vadd.f32 %v1123, %v1234
      %v1255 = vadd.f32 %v1124, %v1239
      %v1256 = vadd.f32 %v1125, %v1242
      %v1257 = vld [vmem:[%s240 + $0xc] sm:$0xf]
      %v1258 = vld [vmem:[%s240 + $0x10] sm:$0xf]
      %v1259 = vld [vmem:[%s240 + $0x14] sm:$0xf]
      %v1260 = vld [vmem:[%s240 + $0x18] sm:$0xf]
      %v1261 = vld [vmem:[%s240 + $0x1c] sm:$0xf]
      %v1262 = vld [vmem:[%s240 + $0x20] sm:$0xf]
      %v1263 = vld [vmem:[%s240 + $0x24] sm:$0xf]
      %v1264 = vld [vmem:[%s240 + $0x28] sm:$0xf]
      %v1265 = vld [vmem:[%s240 + $0x2c] sm:$0xf]
      %v1266 = vld [vmem:[%s240 + $0x30] sm:$0xf]
      %v1267 = vld [vmem:[%s240 + $0x34] sm:$0xf]
      %v1268 = vld [vmem:[%s240 + $0x38] sm:$0x7]
      %s1269 = scalar_lea.vmem %s1, 12
      %v1270 = vld [vmem:[%s1269] sm:$0x3]
      %v1283 = vunpack.c.l.b16 %v1257
      %v1284 = vunpack.c.l.b16 %v1258
      %v1285 = vunpack.c.l.b16 %v1259
      %v1286 = vunpack.c.l.b16 %v1260
      %v1287 = vunpack.c.l.b16 %v1261
      %v1288 = vunpack.c.l.b16 %v1262
      %v1289 = vunpack.c.l.b16 %v1263
      %v1290 = vunpack.c.l.b16 %v1264
      %v1291 = vunpack.c.l.b16 %v1265
      %v1292 = vunpack.c.l.b16 %v1266
      %v1293 = vunpack.c.l.b16 %v1267
      %v1294 = vunpack.c.l.b16 %v1268
      %v1295 = vpack.c.b16 %v1284, %v1283
      %v1296 = vpack.c.b16 %v1286, %v1285
      %v1297 = vpack.c.b16 %v1288, %v1287
      %v1298 = vpack.c.b16 %v1290, %v1289
      %v1299 = vpack.c.b16 %v1292, %v1291
      %v1300 = vpack.c.b16 %v1294, %v1293
      %v1302 = vshrl.u32 %v1295, 16
      %v1304 = vshll.u32 %v1295, 16
      %v1306 = vrot.slane %v1304, 1
      %v1307 = vor.u32 %v1302, %v1306
      %v1309 = vshll.u32 %v1296, 16
      %v1311 = vrot.slane %v1309, 1
      %v1312 = vsel %vm794, %v1307, %v1311
      %v1313 = vshrl.u32 %v1296, 16
      %v1315 = vor.u32 %v1313, %v1311
      %v1317 = vshll.u32 %v1297, 16
      %v1319 = vrot.slane %v1317, 1
      %v1320 = vsel %vm794, %v1315, %v1319
      %v1321 = vshrl.u32 %v1297, 16
      %v1323 = vor.u32 %v1321, %v1319
      %v1325 = vshll.u32 %v1298, 16
      %v1327 = vrot.slane %v1325, 1
      %v1328 = vsel %vm794, %v1323, %v1327
      %v1329 = vshrl.u32 %v1298, 16
      %v1331 = vor.u32 %v1329, %v1327
      %v1333 = vshll.u32 %v1299, 16
      %v1335 = vrot.slane %v1333, 1
      %v1336 = vsel %vm794, %v1331, %v1335
      %v1337 = vshrl.u32 %v1299, 16
      %v1339 = vor.u32 %v1337, %v1335
      %v1341 = vshll.u32 %v1300, 16
      %v1343 = vrot.slane %v1341, 1
      %v1344 = vsel %vm794, %v1339, %v1343
      %v1345 = vshrl.u32 %v1300, 16
      %v1347 = vor.u32 %v1345, %v1343
      %v1349 = vsel %vm318, %v1312, 0
      %v1352 = vsel %vm318, %v1320, 0
      %v1355 = vsel %vm318, %v1328, 0
      %v1358 = vsel %vm318, %v1336, 0
      %v1361 = vsel %vm318, %v1344, 0
      %v1364 = vsel %vm318, %v1347, 0
      %v1367 = vsel %vm337, %v1270, 0
      %1369 = vmatprep.subr.bf16.mxu0 0
      %1370 = vmatpush1.bf16.msra.mxu0 %v1367
      %1371 = vmatprep.subr.bf16.mxu0 0
      %1372 = vmatpush1.bf16.msra.mxu0 0
      %1373 = vmatprep.subr.bf16.mxu0 0
      %1374 = vmatpush1.bf16.msra.mxu0 0
      %1375 = vmatprep.subr.bf16.mxu0 0
      %1376 = vmatpush1.bf16.msra.mxu0 0
      %1377 = vmatprep.subr.bf16.mxu0 0
      %1378 = vmatpush1.bf16.msra.mxu0 0
      %1379 = vmatprep.subr.bf16.mxu0 0
      %1380 = vmatpush1.bf16.msra.mxu0 0
      %1381 = vmatprep.subr.bf16.mxu0 0
      %1382 = vmatpush1.bf16.msra.mxu0 0
      %1383 = vmatprep.subr.bf16.mxu0 0
      %1384 = vmatpush1.bf16.msra.mxu0 0
      %1385 = vmatprep.subr.bf16.mxu0 0
      %1386 = vmatpush1.bf16.msra.mxu0 0
      %1387 = vmatprep.subr.bf16.mxu0 0
      %1388 = vmatpush1.bf16.msra.mxu0 0
      %1389 = vmatprep.subr.bf16.mxu0 0
      %1390 = vmatpush1.bf16.msra.mxu0 0
      %1391 = vmatprep.subr.bf16.mxu0 0
      %1392 = vmatpush1.bf16.msra.mxu0 0
      %1393 = vmatprep.subr.bf16.mxu0 0
      %1394 = vmatpush1.bf16.msra.mxu0 0
      %1395 = vmatprep.subr.bf16.mxu0 0
      %1396 = vmatpush1.bf16.msra.mxu0 0
      %1397 = vmatprep.subr.bf16.mxu0 0
      %1398 = vmatpush1.bf16.msra.mxu0 0
      %1399 = vmatprep.subr.bf16.mxu0 0
      %1400 = vmatpush1.bf16.msra.mxu0 0
      %1401 = vmatprep.mubr.bf16.mxu0 0
      %1402 = vmatmul.mubr.bf16.gmra.mrb[0].mxu0 %v1349
      %v1403 = vpop.f32.mrb[0].mxu0
      %v1404 = vadd.f32 0.0, %v1403
      %v1405 = vpop.f32.mrb[0].mxu0
      %v1406 = vpop.f32.mrb[0].mxu0
      %v1407 = vadd.f32 0.0, %v1406
      %v1408 = vpop.f32.mrb[0].mxu0
      %1409 = vmatprep.mubr.bf16.mxu0 0
      %1410 = vmatmul.mubr.bf16.gmra.mrb[0].mxu0 %v1352
      %v1411 = vpop.f32.mrb[0].mxu0
      %v1412 = vadd.f32 0.0, %v1411
      %v1413 = vpop.f32.mrb[0].mxu0
      %v1414 = vpop.f32.mrb[0].mxu0
      %v1415 = vadd.f32 0.0, %v1414
      %v1416 = vpop.f32.mrb[0].mxu0
      %1417 = vmatprep.mubr.bf16.mxu0 0
      %1418 = vmatmul.mubr.bf16.gmra.mrb[0].mxu0 %v1355
      %v1419 = vpop.f32.mrb[0].mxu0
      %v1420 = vadd.f32 0.0, %v1419
      %v1421 = vpop.f32.mrb[0].mxu0
      %v1422 = vpop.f32.mrb[0].mxu0
      %v1423 = vadd.f32 0.0, %v1422
      %v1424 = vpop.f32.mrb[0].mxu0
      %1425 = vmatprep.mubr.bf16.mxu0 0
      %1426 = vmatmul.mubr.bf16.gmra.mrb[0].mxu0 %v1358
      %v1427 = vpop.f32.mrb[0].mxu0
      %v1428 = vadd.f32 0.0, %v1427
      %v1429 = vpop.f32.mrb[0].mxu0
      %v1430 = vpop.f32.mrb[0].mxu0
      %v1431 = vadd.f32 0.0, %v1430
      %v1432 = vpop.f32.mrb[0].mxu0
      %1433 = vmatprep.mubr.bf16.mxu0 0
      %1434 = vmatmul.mubr.bf16.gmra.mrb[0].mxu0 %v1361
      %v1435 = vpop.f32.mrb[0].mxu0
      %v1436 = vadd.f32 0.0, %v1435
      %v1437 = vpop.f32.mrb[0].mxu0
      %v1438 = vpop.f32.mrb[0].mxu0
      %v1439 = vadd.f32 0.0, %v1438
      %v1440 = vpop.f32.mrb[0].mxu0
      %1441 = vmatprep.mubr.bf16.mxu0 0
      %1442 = vmatmul.mubr.bf16.gmra.mrb[0].mxu0 %v1364
      %v1443 = vpop.f32.mrb[0].mxu0
      %v1444 = vadd.f32 0.0, %v1443
      %v1445 = vpop.f32.mrb[0].mxu0
      %v1446 = vpop.f32.mrb[0].mxu0
      %v1447 = vadd.f32 0.0, %v1446
      %v1448 = vpop.f32.mrb[0].mxu0
      %1449 = vdwg.mxu0
      %v1450 = vadd.f32 %v1245, %v1404
      %v1451 = vadd.f32 %v1246, %v1407
      %v1452 = vadd.f32 %v1247, %v1412
      %v1453 = vadd.f32 %v1248, %v1415
      %v1454 = vadd.f32 %v1249, %v1420
      %v1455 = vadd.f32 %v1250, %v1423
      %v1456 = vadd.f32 %v1251, %v1428
      %v1457 = vadd.f32 %v1252, %v1431
      %v1458 = vadd.f32 %v1253, %v1436
      %v1459 = vadd.f32 %v1254, %v1439
      %v1460 = vadd.f32 %v1255, %v1444
      %v1461 = vadd.f32 %v1256, %v1447
      %v1462 = vld [vmem:[%s255 + $0xc] sm:$0xe]
      %v1463 = vld [vmem:[%s255 + $0x10] sm:$0xf]
      %v1464 = vld [vmem:[%s255 + $0x14] sm:$0xf]
      %v1465 = vld [vmem:[%s255 + $0x18] sm:$0xf]
      %v1466 = vld [vmem:[%s255 + $0x1c] sm:$0xf]
      %v1467 = vld [vmem:[%s255 + $0x20] sm:$0xf]
      %v1468 = vld [vmem:[%s255 + $0x24] sm:$0xf]
      %v1469 = vld [vmem:[%s255 + $0x28] sm:$0xf]
      %v1470 = vld [vmem:[%s255 + $0x2c] sm:$0xf]
      %v1471 = vld [vmem:[%s255 + $0x30] sm:$0xf]
      %v1472 = vld [vmem:[%s255 + $0x34] sm:$0xf]
      %v1473 = vld [vmem:[%s255 + $0x38] sm:$0x7]
      %s1474 = scalar_lea.vmem %s1, 14
      %v1475 = vld [vmem:[%s1474] sm:$0x3]
      %v1488 = vunpack.c.l.b16 %v1462
      %v1489 = vunpack.c.l.b16 %v1463
      %v1490 = vunpack.c.l.b16 %v1464
      %v1491 = vunpack.c.l.b16 %v1465
      %v1492 = vunpack.c.l.b16 %v1466
      %v1493 = vunpack.c.l.b16 %v1467
      %v1494 = vunpack.c.l.b16 %v1468
      %v1495 = vunpack.c.l.b16 %v1469
      %v1496 = vunpack.c.l.b16 %v1470
      %v1497 = vunpack.c.l.b16 %v1471
      %v1498 = vunpack.c.l.b16 %v1472
      %v1499 = vunpack.c.l.b16 %v1473
      %v1500 = vpack.c.b16 %v1489, %v1488
      %v1501 = vpack.c.b16 %v1491, %v1490
      %v1502 = vpack.c.b16 %v1493, %v1492
      %v1503 = vpack.c.b16 %v1495, %v1494
      %v1504 = vpack.c.b16 %v1497, %v1496
      %v1505 = vpack.c.b16 %v1499, %v1498
      %v1506 = vrot.slane %v1500, 1
      %v1507 = vrot.slane %v1501, 1
      %v1508 = vsel %vm1000, %v1506, %v1507
      %v1509 = vrot.slane %v1502, 1
      %v1510 = vsel %vm1000, %v1507, %v1509
      %v1511 = vrot.slane %v1503, 1
      %v1512 = vsel %vm1000, %v1509, %v1511
      %v1513 = vrot.slane %v1504, 1
      %v1514 = vsel %vm1000, %v1511, %v1513
      %v1515 = vrot.slane %v1505, 1
      %v1516 = vsel %vm1000, %v1513, %v1515
      %v1518 = vsel %vm318, %v1508, 0
      %v1521 = vsel %vm318, %v1510, 0
      %v1524 = vsel %vm318, %v1512, 0
      %v1527 = vsel %vm318, %v1514, 0
      %v1530 = vsel %vm318, %v1516, 0
      %v1533 = vsel %vm318, %v1515, 0
      %v1536 = vsel %vm337, %v1475, 0
      %1538 = vmatprep.subr.bf16.mxu0 0
      %1539 = vmatpush1.bf16.msra.mxu0 %v1536
      %1540 = vmatprep.subr.bf16.mxu0 0
      %1541 = vmatpush1.bf16.msra.mxu0 0
      %1542 = vmatprep.subr.bf16.mxu0 0
      %1543 = vmatpush1.bf16.msra.mxu0 0
      %1544 = vmatprep.subr.bf16.mxu0 0
      %1545 = vmatpush1.bf16.msra.mxu0 0
      %1546 = vmatprep.subr.bf16.mxu0 0
      %1547 = vmatpush1.bf16.msra.mxu0 0
      %1548 = vmatprep.subr.bf16.mxu0 0
      %1549 = vmatpush1.bf16.msra.mxu0 0
      %1550 = vmatprep.subr.bf16.mxu0 0
      %1551 = vmatpush1.bf16.msra.mxu0 0
      %1552 = vmatprep.subr.bf16.mxu0 0
      %1553 = vmatpush1.bf16.msra.mxu0 0
      %1554 = vmatprep.subr.bf16.mxu0 0
      %1555 = vmatpush1.bf16.msra.mxu0 0
      %1556 = vmatprep.subr.bf16.mxu0 0
      %1557 = vmatpush1.bf16.msra.mxu0 0
      %1558 = vmatprep.subr.bf16.mxu0 0
      %1559 = vmatpush1.bf16.msra.mxu0 0
      %1560 = vmatprep.subr.bf16.mxu0 0
      %1561 = vmatpush1.bf16.msra.mxu0 0
      %1562 = vmatprep.subr.bf16.mxu0 0
      %1563 = vmatpush1.bf16.msra.mxu0 0
      %1564 = vmatprep.subr.bf16.mxu0 0
      %1565 = vmatpush1.bf16.msra.mxu0 0
      %1566 = vmatprep.subr.bf16.mxu0 0
      %1567 = vmatpush1.bf16.msra.mxu0 0
      %1568 = vmatprep.subr.bf16.mxu0 0
      %1569 = vmatpush1.bf16.msra.mxu0 0
      %1570 = vmatprep.mubr.bf16.mxu0 0
      %1571 = vmatmul.mubr.bf16.gmra.mrb[0].mxu0 %v1518
      %v1572 = vpop.f32.mrb[0].mxu0
      %v1573 = vadd.f32 0.0, %v1572
      %v1574 = vpop.f32.mrb[0].mxu0
      %v1575 = vpop.f32.mrb[0].mxu0
      %v1576 = vadd.f32 0.0, %v1575
      %v1577 = vpop.f32.mrb[0].mxu0
      %1578 = vmatprep.mubr.bf16.mxu0 0
      %1579 = vmatmul.mubr.bf16.gmra.mrb[0].mxu0 %v1521
      %v1580 = vpop.f32.mrb[0].mxu0
      %v1581 = vadd.f32 0.0, %v1580
      %v1582 = vpop.f32.mrb[0].mxu0
      %v1583 = vpop.f32.mrb[0].mxu0
      %v1584 = vadd.f32 0.0, %v1583
      %v1585 = vpop.f32.mrb[0].mxu0
      %1586 = vmatprep.mubr.bf16.mxu0 0
      %1587 = vmatmul.mubr.bf16.gmra.mrb[0].mxu0 %v1524
      %v1588 = vpop.f32.mrb[0].mxu0
      %v1589 = vadd.f32 0.0, %v1588
      %v1590 = vpop.f32.mrb[0].mxu0
      %v1591 = vpop.f32.mrb[0].mxu0
      %v1592 = vadd.f32 0.0, %v1591
      %v1593 = vpop.f32.mrb[0].mxu0
      %1594 = vmatprep.mubr.bf16.mxu0 0
      %1595 = vmatmul.mubr.bf16.gmra.mrb[0].mxu0 %v1527
      %v1596 = vpop.f32.mrb[0].mxu0
      %v1597 = vadd.f32 0.0, %v1596
      %v1598 = vpop.f32.mrb[0].mxu0
      %v1599 = vpop.f32.mrb[0].mxu0
      %v1600 = vadd.f32 0.0, %v1599
      %v1601 = vpop.f32.mrb[0].mxu0
      %1602 = vmatprep.mubr.bf16.mxu0 0
      %1603 = vmatmul.mubr.bf16.gmra.mrb[0].mxu0 %v1530
      %v1604 = vpop.f32.mrb[0].mxu0
      %v1605 = vadd.f32 0.0, %v1604
      %v1606 = vpop.f32.mrb[0].mxu0
      %v1607 = vpop.f32.mrb[0].mxu0
      %v1608 = vadd.f32 0.0, %v1607
      %v1609 = vpop.f32.mrb[0].mxu0
      %1610 = vmatprep.mubr.bf16.mxu0 0
      %1611 = vmatmul.mubr.bf16.gmra.mrb[0].mxu0 %v1533
      %v1612 = vpop.f32.mrb[0].mxu0
      %v1613 = vadd.f32 0.0, %v1612
      %v1614 = vpop.f32.mrb[0].mxu0
      %v1615 = vpop.f32.mrb[0].mxu0
      %v1616 = vadd.f32 0.0, %v1615
      %v1617 = vpop.f32.mrb[0].mxu0
      %1618 = vdwg.mxu0
      %v1619 = vadd.f32 %v1450, %v1573
      %v1620 = vadd.f32 %v1451, %v1576
      %v1621 = vadd.f32 %v1452, %v1581
      %v1622 = vadd.f32 %v1453, %v1584
      %v1623 = vadd.f32 %v1454, %v1589
      %v1624 = vadd.f32 %v1455, %v1592
      %v1625 = vadd.f32 %v1456, %v1597
      %v1626 = vadd.f32 %v1457, %v1600
      %v1627 = vadd.f32 %v1458, %v1605
      %v1628 = vadd.f32 %v1459, %v1608
      %v1629 = vadd.f32 %v1460, %v1613
      %v1630 = vadd.f32 %v1461, %v1616
      %v1631 = vld [vmem:[%s240 + $0xc] sm:$0xe]
      %s1632 = scalar_lea.vmem %s1, 16
      %v1633 = vld [vmem:[%s1632] sm:$0x3]
      %v1635 = vunpack.c.l.b16 %v1631
      %v1636 = vpack.c.b16 %v1284, %v1635
      %v1637 = vrot.slane %v1636, 1
      %v1638 = vrot.slane %v1296, 1
      %v1639 = vsel %vm1000, %v1637, %v1638
      %v1640 = vrot.slane %v1297, 1
      %v1641 = vsel %vm1000, %v1638, %v1640
      %v1642 = vrot.slane %v1298, 1
      %v1643 = vsel %vm1000, %v1640, %v1642
      %v1644 = vrot.slane %v1299, 1
      %v1645 = vsel %vm1000, %v1642, %v1644
      %v1646 = vrot.slane %v1300, 1
      %v1647 = vsel %vm1000, %v1644, %v1646
      %v1649 = vsel %vm318, %v1639, 0
      %v1652 = vsel %vm318, %v1641, 0
      %v1655 = vsel %vm318, %v1643, 0
      %v1658 = vsel %vm318, %v1645, 0
      %v1661 = vsel %vm318, %v1647, 0
      %v1664 = vsel %vm318, %v1646, 0
      %v1667 = vsel %vm337, %v1633, 0
      %1669 = vmatprep.subr.bf16.mxu0 0
      %1670 = vmatpush1.bf16.msra.mxu0 %v1667
      %1671 = vmatprep.subr.bf16.mxu0 0
      %1672 = vmatpush1.bf16.msra.mxu0 0
      %1673 = vmatprep.subr.bf16.mxu0 0
      %1674 = vmatpush1.bf16.msra.mxu0 0
      %1675 = vmatprep.subr.bf16.mxu0 0
      %1676 = vmatpush1.bf16.msra.mxu0 0
      %1677 = vmatprep.subr.bf16.mxu0 0
      %1678 = vmatpush1.bf16.msra.mxu0 0
      %1679 = vmatprep.subr.bf16.mxu0 0
      %1680 = vmatpush1.bf16.msra.mxu0 0
      %1681 = vmatprep.subr.bf16.mxu0 0
      %1682 = vmatpush1.bf16.msra.mxu0 0
      %1683 = vmatprep.subr.bf16.mxu0 0
      %1684 = vmatpush1.bf16.msra.mxu0 0
      %1685 = vmatprep.subr.bf16.mxu0 0
      %1686 = vmatpush1.bf16.msra.mxu0 0
      %1687 = vmatprep.subr.bf16.mxu0 0
      %1688 = vmatpush1.bf16.msra.mxu0 0
      %1689 = vmatprep.subr.bf16.mxu0 0
      %1690 = vmatpush1.bf16.msra.mxu0 0
      %1691 = vmatprep.subr.bf16.mxu0 0
      %1692 = vmatpush1.bf16.msra.mxu0 0
      %1693 = vmatprep.subr.bf16.mxu0 0
      %1694 = vmatpush1.bf16.msra.mxu0 0
      %1695 = vmatprep.subr.bf16.mxu0 0
      %1696 = vmatpush1.bf16.msra.mxu0 0
      %1697 = vmatprep.subr.bf16.mxu0 0
      %1698 = vmatpush1.bf16.msra.mxu0 0
      %1699 = vmatprep.subr.bf16.mxu0 0
      %1700 = vmatpush1.bf16.msra.mxu0 0
      %1701 = vmatprep.mubr.bf16.mxu0 0
      %1702 = vmatmul.mubr.bf16.gmra.mrb[0].mxu0 %v1649
      %v1703 = vpop.f32.mrb[0].mxu0
      %v1704 = vadd.f32 0.0, %v1703
      %v1705 = vpop.f32.mrb[0].mxu0
      %v1706 = vpop.f32.mrb[0].mxu0
      %v1707 = vadd.f32 0.0, %v1706
      %v1708 = vpop.f32.mrb[0].mxu0
      %1709 = vmatprep.mubr.bf16.mxu0 0
      %1710 = vmatmul.mubr.bf16.gmra.mrb[0].mxu0 %v1652
      %v1711 = vpop.f32.mrb[0].mxu0
      %v1712 = vadd.f32 0.0, %v1711
      %v1713 = vpop.f32.mrb[0].mxu0
      %v1714 = vpop.f32.mrb[0].mxu0
      %v1715 = vadd.f32 0.0, %v1714
      %v1716 = vpop.f32.mrb[0].mxu0
      %1717 = vmatprep.mubr.bf16.mxu0 0
      %1718 = vmatmul.mubr.bf16.gmra.mrb[0].mxu0 %v1655
      %v1719 = vpop.f32.mrb[0].mxu0
      %v1720 = vadd.f32 0.0, %v1719
      %v1721 = vpop.f32.mrb[0].mxu0
      %v1722 = vpop.f32.mrb[0].mxu0
      %v1723 = vadd.f32 0.0, %v1722
      %v1724 = vpop.f32.mrb[0].mxu0
      %1725 = vmatprep.mubr.bf16.mxu0 0
      %1726 = vmatmul.mubr.bf16.gmra.mrb[0].mxu0 %v1658
      %v1727 = vpop.f32.mrb[0].mxu0
      %v1728 = vadd.f32 0.0, %v1727
      %v1729 = vpop.f32.mrb[0].mxu0
      %v1730 = vpop.f32.mrb[0].mxu0
      %v1731 = vadd.f32 0.0, %v1730
      %v1732 = vpop.f32.mrb[0].mxu0
      %1733 = vmatprep.mubr.bf16.mxu0 0
      %1734 = vmatmul.mubr.bf16.gmra.mrb[0].mxu0 %v1661
      %v1735 = vpop.f32.mrb[0].mxu0
      %v1736 = vadd.f32 0.0, %v1735
      %v1737 = vpop.f32.mrb[0].mxu0
      %v1738 = vpop.f32.mrb[0].mxu0
      %v1739 = vadd.f32 0.0, %v1738
      %v1740 = vpop.f32.mrb[0].mxu0
      %1741 = vmatprep.mubr.bf16.mxu0 0
      %1742 = vmatmul.mubr.bf16.gmra.mrb[0].mxu0 %v1664
      %v1743 = vpop.f32.mrb[0].mxu0
      %v1744 = vadd.f32 0.0, %v1743
      %v1745 = vpop.f32.mrb[0].mxu0
      %v1746 = vpop.f32.mrb[0].mxu0
      %v1747 = vadd.f32 0.0, %v1746
      %v1748 = vpop.f32.mrb[0].mxu0
      %1749 = vdwg.mxu0
      %v1750 = vadd.f32 %v1619, %v1704
      %v1751 = vadd.f32 %v1620, %v1707
      %v1752 = vadd.f32 %v1621, %v1712
      %v1753 = vadd.f32 %v1622, %v1715
      %v1754 = vadd.f32 %v1623, %v1720
      %v1755 = vadd.f32 %v1624, %v1723
      %v1756 = vadd.f32 %v1625, %v1728
      %v1757 = vadd.f32 %v1626, %v1731
      %v1758 = vadd.f32 %v1627, %v1736
      %v1759 = vadd.f32 %v1628, %v1739
      %v1760 = vadd.f32 %v1629, %v1744
      %v1761 = vadd.f32 %v1630, %v1747
      %v1762 = vld [vmem:[%s2] sm:$0x1]
      %v1764 = vlaneseq
      %v1765 = vshrl.u32 %v1764, 7
      %v1766 = vsub.s32 0, %v1765
      %v1767 = vrot.slane %v1762, %v1766
      %v1769 = vadd.f32 %v1750, %v1767
      %v1770 = vadd.f32 %v1751, %v1767
      %v1771 = vadd.f32 %v1752, %v1767
      %v1772 = vadd.f32 %v1753, %v1767
      %v1773 = vadd.f32 %v1754, %v1767
      %v1774 = vadd.f32 %v1755, %v1767
      %v1775 = vadd.f32 %v1756, %v1767
      %v1776 = vadd.f32 %v1757, %v1767
      %v1777 = vadd.f32 %v1758, %v1767
      %v1778 = vadd.f32 %v1759, %v1767
      %v1779 = vadd.f32 %v1760, %v1767
      %v1780 = vadd.f32 %v1761, %v1767
      %v1781 = vmax.f32 %v1769, 0.0
      %v1782 = vmax.f32 %v1770, 0.0
      %v1783 = vmax.f32 %v1771, 0.0
      %v1784 = vmax.f32 %v1772, 0.0
      %v1785 = vmax.f32 %v1773, 0.0
      %v1786 = vmax.f32 %v1774, 0.0
      %v1787 = vmax.f32 %v1775, 0.0
      %v1788 = vmax.f32 %v1776, 0.0
      %v1789 = vmax.f32 %v1777, 0.0
      %v1790 = vmax.f32 %v1778, 0.0
      %v1791 = vmax.f32 %v1779, 0.0
      %v1792 = vmax.f32 %v1780, 0.0
      %v1793 = vpack.c.bf16 %v1782, %v1781
      %v1794 = vpack.c.bf16 %v1784, %v1783
      %v1795 = vpack.c.bf16 %v1786, %v1785
      %v1796 = vpack.c.bf16 %v1788, %v1787
      %v1797 = vpack.c.bf16 %v1790, %v1789
      %v1798 = vpack.c.bf16 %v1792, %v1791
      %v1799 = vld [vmem:[%s230 + $0x4] sm:$0xc]
      %v1800 = vld [vmem:[%s230 + $0x8] sm:$0xf]
      %v1801 = vld [vmem:[%s230 + $0xc] sm:$0xf]
      %v1802 = vld [vmem:[%s230 + $0x10] sm:$0xf]
      %v1803 = vld [vmem:[%s230 + $0x14] sm:$0xf]
      %v1804 = vld [vmem:[%s230 + $0x18] sm:$0xf]
      %v1805 = vld [vmem:[%s230 + $0x1c] sm:$0xf]
      %v1806 = vld [vmem:[%s230 + $0x20] sm:$0xf]
      %v1807 = vld [vmem:[%s230 + $0x24] sm:$0xf]
      %v1808 = vld [vmem:[%s230 + $0x28] sm:$0xf]
      %v1809 = vld [vmem:[%s230 + $0x2c] sm:$0xf]
      %v1810 = vld [vmem:[%s230 + $0x30] sm:$0xf]
      %v1811 = vld [vmem:[%s230 + $0x34] sm:$0x1]
      %s1812 = scalar_lea.vmem %s1, 18
      %v1813 = vld [vmem:[%s1812] sm:$0x3]
      %v1814 = vld [vmem:[%s230 + $0x4] sm:$0x8]
      %s1815 = scalar_lea.vmem %s1, 20
      %v1816 = vld [vmem:[%s1815] sm:$0x3]
      %v1830 = vunpack.c.l.b16 %v1814
      %v1831 = vunpack.c.l.b16 %v1800
      %v1832 = vunpack.c.l.b16 %v1801
      %v1833 = vunpack.c.l.b16 %v1802
      %v1834 = vunpack.c.l.b16 %v1803
      %v1835 = vunpack.c.l.b16 %v1804
      %v1836 = vunpack.c.l.b16 %v1805
      %v1837 = vunpack.c.l.b16 %v1806
      %v1838 = vunpack.c.l.b16 %v1807
      %v1839 = vunpack.c.l.b16 %v1808
      %v1840 = vunpack.c.l.b16 %v1809
      %v1841 = vunpack.c.l.b16 %v1810
      %v1842 = vunpack.c.l.b16 %v1811
      %v1843 = vpack.c.b16 %v1831, %v1830
      %v1844 = vpack.c.b16 %v1833, %v1832
      %v1845 = vpack.c.b16 %v1835, %v1834
      %v1846 = vpack.c.b16 %v1837, %v1836
      %v1847 = vpack.c.b16 %v1839, %v1838
      %v1848 = vpack.c.b16 %v1841, %v1840
      %v1849 = vpack.c.b16 %v1842, %v1842
      %v1850 = vrot.slane %v1843, 3
      %v1851 = vrot.slane %v1844, 3
      %v1852 = vsel %vm304, %v1850, %v1851
      %v1853 = vrot.slane %v1845, 3
      %v1854 = vsel %vm304, %v1851, %v1853
      %v1855 = vrot.slane %v1846, 3
      %v1856 = vsel %vm304, %v1853, %v1855
      %v1857 = vrot.slane %v1847, 3
      %v1858 = vsel %vm304, %v1855, %v1857
      %v1859 = vrot.slane %v1848, 3
      %v1860 = vsel %vm304, %v1857, %v1859
      %v1861 = vrot.slane %v1849, 3
      %v1862 = vsel %vm304, %v1859, %v1861
      %v1864 = vsel %vm318, %v1852, 0
      %v1867 = vsel %vm318, %v1854, 0
      %v1870 = vsel %vm318, %v1856, 0
      %v1873 = vsel %vm318, %v1858, 0
      %v1876 = vsel %vm318, %v1860, 0
      %v1879 = vsel %vm318, %v1862, 0
      %v1882 = vsel %vm337, %v1816, 0
      %1884 = vmatprep.subr.bf16.mxu0 0
      %1885 = vmatpush1.bf16.msra.mxu0 %v1882
      %1886 = vmatprep.subr.bf16.mxu0 0
      %1887 = vmatpush1.bf16.msra.mxu0 0
      %1888 = vmatprep.subr.bf16.mxu0 0
      %1889 = vmatpush1.bf16.msra.mxu0 0
      %1890 = vmatprep.subr.bf16.mxu0 0
      %1891 = vmatpush1.bf16.msra.mxu0 0
      %1892 = vmatprep.subr.bf16.mxu0 0
      %1893 = vmatpush1.bf16.msra.mxu0 0
      %1894 = vmatprep.subr.bf16.mxu0 0
      %1895 = vmatpush1.bf16.msra.mxu0 0
      %1896 = vmatprep.subr.bf16.mxu0 0
      %1897 = vmatpush1.bf16.msra.mxu0 0
      %1898 = vmatprep.subr.bf16.mxu0 0
      %1899 = vmatpush1.bf16.msra.mxu0 0
      %1900 = vmatprep.subr.bf16.mxu0 0
      %1901 = vmatpush1.bf16.msra.mxu0 0
      %1902 = vmatprep.subr.bf16.mxu0 0
      %1903 = vmatpush1.bf16.msra.mxu0 0
      %1904 = vmatprep.subr.bf16.mxu0 0
      %1905 = vmatpush1.bf16.msra.mxu0 0
      %1906 = vmatprep.subr.bf16.mxu0 0
      %1907 = vmatpush1.bf16.msra.mxu0 0
      %1908 = vmatprep.subr.bf16.mxu0 0
      %1909 = vmatpush1.bf16.msra.mxu0 0
      %1910 = vmatprep.subr.bf16.mxu0 0
      %1911 = vmatpush1.bf16.msra.mxu0 0
      %1912 = vmatprep.subr.bf16.mxu0 0
      %1913 = vmatpush1.bf16.msra.mxu0 0
      %1914 = vmatprep.subr.bf16.mxu0 0
      %1915 = vmatpush1.bf16.msra.mxu0 0
      %1916 = vmatprep.mubr.bf16.mxu0 0
      %1917 = vmatmul.mubr.bf16.gmra.mrb[0].mxu0 %v1864
      %v1918 = vpop.f32.mrb[0].mxu0
      %v1919 = vadd.f32 0.0, %v1918
      %v1920 = vpop.f32.mrb[0].mxu0
      %v1921 = vpop.f32.mrb[0].mxu0
      %v1922 = vadd.f32 0.0, %v1921
      %v1923 = vpop.f32.mrb[0].mxu0
      %1924 = vmatprep.mubr.bf16.mxu0 0
      %1925 = vmatmul.mubr.bf16.gmra.mrb[0].mxu0 %v1867
      %v1926 = vpop.f32.mrb[0].mxu0
      %v1927 = vadd.f32 0.0, %v1926
      %v1928 = vpop.f32.mrb[0].mxu0
      %v1929 = vpop.f32.mrb[0].mxu0
      %v1930 = vadd.f32 0.0, %v1929
      %v1931 = vpop.f32.mrb[0].mxu0
      %1932 = vmatprep.mubr.bf16.mxu0 0
      %1933 = vmatmul.mubr.bf16.gmra.mrb[0].mxu0 %v1870
      %v1934 = vpop.f32.mrb[0].mxu0
      %v1935 = vadd.f32 0.0, %v1934
      %v1936 = vpop.f32.mrb[0].mxu0
      %v1937 = vpop.f32.mrb[0].mxu0
      %v1938 = vadd.f32 0.0, %v1937
      %v1939 = vpop.f32.mrb[0].mxu0
      %1940 = vmatprep.mubr.bf16.mxu0 0
      %1941 = vmatmul.mubr.bf16.gmra.mrb[0].mxu0 %v1873
      %v1942 = vpop.f32.mrb[0].mxu0
      %v1943 = vadd.f32 0.0, %v1942
      %v1944 = vpop.f32.mrb[0].mxu0
      %v1945 = vpop.f32.mrb[0].mxu0
      %v1946 = vadd.f32 0.0, %v1945
      %v1947 = vpop.f32.mrb[0].mxu0
      %1948 = vmatprep.mubr.bf16.mxu0 0
      %1949 = vmatmul.mubr.bf16.gmra.mrb[0].mxu0 %v1876
      %v1950 = vpop.f32.mrb[0].mxu0
      %v1951 = vadd.f32 0.0, %v1950
      %v1952 = vpop.f32.mrb[0].mxu0
      %v1953 = vpop.f32.mrb[0].mxu0
      %v1954 = vadd.f32 0.0, %v1953
      %v1955 = vpop.f32.mrb[0].mxu0
      %1956 = vmatprep.mubr.bf16.mxu0 0
      %1957 = vmatmul.mubr.bf16.gmra.mrb[0].mxu0 %v1879
      %v1958 = vpop.f32.mrb[0].mxu0
      %v1959 = vadd.f32 0.0, %v1958
      %v1960 = vpop.f32.mrb[0].mxu0
      %v1961 = vpop.f32.mrb[0].mxu0
      %v1962 = vadd.f32 0.0, %v1961
      %v1963 = vpop.f32.mrb[0].mxu0
      %1964 = vdwg.mxu0
      %v1966 = vunpack.c.l.b16 %v1799
      %v1967 = vpack.c.b16 %v1831, %v1966
      %v1969 = vshrl.u32 %v1967, 16
      %v1971 = vrot.slane %v1969, 2
      %v1972 = vshll.u32 %v1967, 16
      %v1974 = vrot.slane %v1972, 3
      %v1975 = vor.u32 %v1971, %v1974
      %v1977 = vshrl.u32 %v1844, 16
      %v1979 = vrot.slane %v1977, 2
      %v1980 = vshll.u32 %v1844, 16
      %v1982 = vrot.slane %v1980, 3
      %v1983 = vor.u32 %v1979, %v1982
      %v1984 = vsel %vm455, %v1975, %v1983
      %v1986 = vshrl.u32 %v1845, 16
      %v1988 = vrot.slane %v1986, 2
      %v1989 = vshll.u32 %v1845, 16
      %v1991 = vrot.slane %v1989, 3
      %v1992 = vor.u32 %v1988, %v1991
      %v1993 = vsel %vm455, %v1983, %v1992
      %v1995 = vshrl.u32 %v1846, 16
      %v1997 = vrot.slane %v1995, 2
      %v1998 = vshll.u32 %v1846, 16
      %v2000 = vrot.slane %v1998, 3
      %v2001 = vor.u32 %v1997, %v2000
      %v2002 = vsel %vm455, %v1992, %v2001
      %v2004 = vshrl.u32 %v1847, 16
      %v2006 = vrot.slane %v2004, 2
      %v2007 = vshll.u32 %v1847, 16
      %v2009 = vrot.slane %v2007, 3
      %v2010 = vor.u32 %v2006, %v2009
      %v2011 = vsel %vm455, %v2001, %v2010
      %v2013 = vshrl.u32 %v1848, 16
      %v2015 = vrot.slane %v2013, 2
      %v2016 = vshll.u32 %v1848, 16
      %v2018 = vrot.slane %v2016, 3
      %v2019 = vor.u32 %v2015, %v2018
      %v2020 = vsel %vm455, %v2010, %v2019
      %v2022 = vshll.u32 %v1849, 16
      %v2024 = vrot.slane %v2022, 3
      %v2025 = vsel %vm455, %v2019, %v2024
      %v2027 = vsel %vm318, %v1984, 0
      %v2030 = vsel %vm318, %v1993, 0
      %v2033 = vsel %vm318, %v2002, 0
      %v2036 = vsel %vm318, %v2011, 0
      %v2039 = vsel %vm318, %v2020, 0
      %v2042 = vsel %vm318, %v2025, 0
      %v2045 = vsel %vm337, %v1813, 0
      %2047 = vmatprep.subr.bf16.mxu0 0
      %2048 = vmatpush1.bf16.msra.mxu0 %v2045
      %2049 = vmatprep.subr.bf16.mxu0 0
      %2050 = vmatpush1.bf16.msra.mxu0 0
      %2051 = vmatprep.subr.bf16.mxu0 0
      %2052 = vmatpush1.bf16.msra.mxu0 0
      %2053 = vmatprep.subr.bf16.mxu0 0
      %2054 = vmatpush1.bf16.msra.mxu0 0
      %2055 = vmatprep.subr.bf16.mxu0 0
      %2056 = vmatpush1.bf16.msra.mxu0 0
      %2057 = vmatprep.subr.bf16.mxu0 0
      %2058 = vmatpush1.bf16.msra.mxu0 0
      %2059 = vmatprep.subr.bf16.mxu0 0
      %2060 = vmatpush1.bf16.msra.mxu0 0
      %2061 = vmatprep.subr.bf16.mxu0 0
      %2062 = vmatpush1.bf16.msra.mxu0 0
      %2063 = vmatprep.subr.bf16.mxu0 0
      %2064 = vmatpush1.bf16.msra.mxu0 0
      %2065 = vmatprep.subr.bf16.mxu0 0
      %2066 = vmatpush1.bf16.msra.mxu0 0
      %2067 = vmatprep.subr.bf16.mxu0 0
      %2068 = vmatpush1.bf16.msra.mxu0 0
      %2069 = vmatprep.subr.bf16.mxu0 0
      %2070 = vmatpush1.bf16.msra.mxu0 0
      %2071 = vmatprep.subr.bf16.mxu0 0
      %2072 = vmatpush1.bf16.msra.mxu0 0
      %2073 = vmatprep.subr.bf16.mxu0 0
      %2074 = vmatpush1.bf16.msra.mxu0 0
      %2075 = vmatprep.subr.bf16.mxu0 0
      %2076 = vmatpush1.bf16.msra.mxu0 0
      %2077 = vmatprep.subr.bf16.mxu0 0
      %2078 = vmatpush1.bf16.msra.mxu0 0
      %2079 = vmatprep.mubr.bf16.mxu0 0
      %2080 = vmatmul.mubr.bf16.gmra.mrb[0].mxu0 %v2027
      %v2081 = vpop.f32.mrb[0].mxu0
      %v2082 = vadd.f32 %v1919, %v2081
      %v2083 = vpop.f32.mrb[0].mxu0
      %v2084 = vpop.f32.mrb[0].mxu0
      %v2085 = vadd.f32 %v1922, %v2084
      %v2086 = vpop.f32.mrb[0].mxu0
      %2087 = vmatprep.mubr.bf16.mxu0 0
      %2088 = vmatmul.mubr.bf16.gmra.mrb[0].mxu0 %v2030
      %v2089 = vpop.f32.mrb[0].mxu0
      %v2090 = vadd.f32 %v1927, %v2089
      %v2091 = vpop.f32.mrb[0].mxu0
      %v2092 = vpop.f32.mrb[0].mxu0
      %v2093 = vadd.f32 %v1930, %v2092
      %v2094 = vpop.f32.mrb[0].mxu0
      %2095 = vmatprep.mubr.bf16.mxu0 0
      %2096 = vmatmul.mubr.bf16.gmra.mrb[0].mxu0 %v2033
      %v2097 = vpop.f32.mrb[0].mxu0
      %v2098 = vadd.f32 %v1935, %v2097
      %v2099 = vpop.f32.mrb[0].mxu0
      %v2100 = vpop.f32.mrb[0].mxu0
      %v2101 = vadd.f32 %v1938, %v2100
      %v2102 = vpop.f32.mrb[0].mxu0
      %2103 = vmatprep.mubr.bf16.mxu0 0
      %2104 = vmatmul.mubr.bf16.gmra.mrb[0].mxu0 %v2036
      %v2105 = vpop.f32.mrb[0].mxu0
      %v2106 = vadd.f32 %v1943, %v2105
      %v2107 = vpop.f32.mrb[0].mxu0
      %v2108 = vpop.f32.mrb[0].mxu0
      %v2109 = vadd.f32 %v1946, %v2108
      %v2110 = vpop.f32.mrb[0].mxu0
      %2111 = vmatprep.mubr.bf16.mxu0 0
      %2112 = vmatmul.mubr.bf16.gmra.mrb[0].mxu0 %v2039
      %v2113 = vpop.f32.mrb[0].mxu0
      %v2114 = vadd.f32 %v1951, %v2113
      %v2115 = vpop.f32.mrb[0].mxu0
      %v2116 = vpop.f32.mrb[0].mxu0
      %v2117 = vadd.f32 %v1954, %v2116
      %v2118 = vpop.f32.mrb[0].mxu0
      %2119 = vmatprep.mubr.bf16.mxu0 0
      %2120 = vmatmul.mubr.bf16.gmra.mrb[0].mxu0 %v2042
      %v2121 = vpop.f32.mrb[0].mxu0
      %v2122 = vadd.f32 %v1959, %v2121
      %v2123 = vpop.f32.mrb[0].mxu0
      %v2124 = vpop.f32.mrb[0].mxu0
      %v2125 = vadd.f32 %v1962, %v2124
      %v2126 = vpop.f32.mrb[0].mxu0
      %2127 = vdwg.mxu0
      %v2128 = vld [vmem:[%s230 + $0x34] sm:$0x3]
      %s2129 = scalar_lea.vmem %s1, 22
      %v2130 = vld [vmem:[%s2129] sm:$0x3]
      %v2132 = vunpack.c.l.b16 %v2128
      %v2133 = vpack.c.b16 %v2132, %v2132
      %vm2134 = vsmask.f32 4352
      %v2136 = vshrl.u32 %v1843, 16
      %v2138 = vrot.slane %v2136, 3
      %v2139 = vshll.u32 %v1843, 16
      %v2141 = vrot.slane %v2139, 4
      %v2142 = vor.u32 %v2138, %v2141
      %v2143 = vrot.slane %v1977, 3
      %v2144 = vrot.slane %v1980, 4
      %v2145 = vor.u32 %v2143, %v2144
      %v2146 = vsel %vm2134, %v2142, %v2145
      %v2147 = vrot.slane %v1986, 3
      %v2148 = vrot.slane %v1989, 4
      %v2149 = vor.u32 %v2147, %v2148
      %v2150 = vsel %vm2134, %v2145, %v2149
      %v2151 = vrot.slane %v1995, 3
      %v2152 = vrot.slane %v1998, 4
      %v2153 = vor.u32 %v2151, %v2152
      %v2154 = vsel %vm2134, %v2149, %v2153
      %v2155 = vrot.slane %v2004, 3
      %v2156 = vrot.slane %v2007, 4
      %v2157 = vor.u32 %v2155, %v2156
      %v2158 = vsel %vm2134, %v2153, %v2157
      %v2159 = vrot.slane %v2013, 3
      %v2160 = vrot.slane %v2016, 4
      %v2161 = vor.u32 %v2159, %v2160
      %v2162 = vsel %vm2134, %v2157, %v2161
      %v2164 = vshrl.u32 %v2133, 16
      %v2166 = vrot.slane %v2164, 3
      %v2167 = vshll.u32 %v2133, 16
      %v2169 = vrot.slane %v2167, 4
      %v2170 = vor.u32 %v2166, %v2169
      %v2171 = vsel %vm2134, %v2161, %v2170
      %v2173 = vsel %vm318, %v2146, 0
      %v2176 = vsel %vm318, %v2150, 0
      %v2179 = vsel %vm318, %v2154, 0
      %v2182 = vsel %vm318, %v2158, 0
      %v2185 = vsel %vm318, %v2162, 0
      %v2188 = vsel %vm318, %v2171, 0
      %v2191 = vsel %vm337, %v2130, 0
      %2193 = vmatprep.subr.bf16.mxu0 0
      %2194 = vmatpush1.bf16.msra.mxu0 %v2191
      %2195 = vmatprep.subr.bf16.mxu0 0
      %2196 = vmatpush1.bf16.msra.mxu0 0
      %2197 = vmatprep.subr.bf16.mxu0 0
      %2198 = vmatpush1.bf16.msra.mxu0 0
      %2199 = vmatprep.subr.bf16.mxu0 0
      %2200 = vmatpush1.bf16.msra.mxu0 0
      %2201 = vmatprep.subr.bf16.mxu0 0
      %2202 = vmatpush1.bf16.msra.mxu0 0
      %2203 = vmatprep.subr.bf16.mxu0 0
      %2204 = vmatpush1.bf16.msra.mxu0 0
      %2205 = vmatprep.subr.bf16.mxu0 0
      %2206 = vmatpush1.bf16.msra.mxu0 0
      %2207 = vmatprep.subr.bf16.mxu0 0
      %2208 = vmatpush1.bf16.msra.mxu0 0
      %2209 = vmatprep.subr.bf16.mxu0 0
      %2210 = vmatpush1.bf16.msra.mxu0 0
      %2211 = vmatprep.subr.bf16.mxu0 0
      %2212 = vmatpush1.bf16.msra.mxu0 0
      %2213 = vmatprep.subr.bf16.mxu0 0
      %2214 = vmatpush1.bf16.msra.mxu0 0
      %2215 = vmatprep.subr.bf16.mxu0 0
      %2216 = vmatpush1.bf16.msra.mxu0 0
      %2217 = vmatprep.subr.bf16.mxu0 0
      %2218 = vmatpush1.bf16.msra.mxu0 0
      %2219 = vmatprep.subr.bf16.mxu0 0
      %2220 = vmatpush1.bf16.msra.mxu0 0
      %2221 = vmatprep.subr.bf16.mxu0 0
      %2222 = vmatpush1.bf16.msra.mxu0 0
      %2223 = vmatprep.subr.bf16.mxu0 0
      %2224 = vmatpush1.bf16.msra.mxu0 0
      %2225 = vmatprep.mubr.bf16.mxu0 0
      %2226 = vmatmul.mubr.bf16.gmra.mrb[0].mxu0 %v2173
      %v2227 = vpop.f32.mrb[0].mxu0
      %v2228 = vadd.f32 0.0, %v2227
      %v2229 = vpop.f32.mrb[0].mxu0
      %v2230 = vpop.f32.mrb[0].mxu0
      %v2231 = vadd.f32 0.0, %v2230
      %v2232 = vpop.f32.mrb[0].mxu0
      %2233 = vmatprep.mubr.bf16.mxu0 0
      %2234 = vmatmul.mubr.bf16.gmra.mrb[0].mxu0 %v2176
      %v2235 = vpop.f32.mrb[0].mxu0
      %v2236 = vadd.f32 0.0, %v2235
      %v2237 = vpop.f32.mrb[0].mxu0
      %v2238 = vpop.f32.mrb[0].mxu0
      %v2239 = vadd.f32 0.0, %v2238
      %v2240 = vpop.f32.mrb[0].mxu0
      %2241 = vmatprep.mubr.bf16.mxu0 0
      %2242 = vmatmul.mubr.bf16.gmra.mrb[0].mxu0 %v2179
      %v2243 = vpop.f32.mrb[0].mxu0
      %v2244 = vadd.f32 0.0, %v2243
      %v2245 = vpop.f32.mrb[0].mxu0
      %v2246 = vpop.f32.mrb[0].mxu0
      %v2247 = vadd.f32 0.0, %v2246
      %v2248 = vpop.f32.mrb[0].mxu0
      %2249 = vmatprep.mubr.bf16.mxu0 0
      %2250 = vmatmul.mubr.bf16.gmra.mrb[0].mxu0 %v2182
      %v2251 = vpop.f32.mrb[0].mxu0
      %v2252 = vadd.f32 0.0, %v2251
      %v2253 = vpop.f32.mrb[0].mxu0
      %v2254 = vpop.f32.mrb[0].mxu0
      %v2255 = vadd.f32 0.0, %v2254
      %v2256 = vpop.f32.mrb[0].mxu0
      %2257 = vmatprep.mubr.bf16.mxu0 0
      %2258 = vmatmul.mubr.bf16.gmra.mrb[0].mxu0 %v2185
      %v2259 = vpop.f32.mrb[0].mxu0
      %v2260 = vadd.f32 0.0, %v2259
      %v2261 = vpop.f32.mrb[0].mxu0
      %v2262 = vpop.f32.mrb[0].mxu0
      %v2263 = vadd.f32 0.0, %v2262
      %v2264 = vpop.f32.mrb[0].mxu0
      %2265 = vmatprep.mubr.bf16.mxu0 0
      %2266 = vmatmul.mubr.bf16.gmra.mrb[0].mxu0 %v2188
      %v2267 = vpop.f32.mrb[0].mxu0
      %v2268 = vadd.f32 0.0, %v2267
      %v2269 = vpop.f32.mrb[0].mxu0
      %v2270 = vpop.f32.mrb[0].mxu0
      %v2271 = vadd.f32 0.0, %v2270
      %v2272 = vpop.f32.mrb[0].mxu0
      %2273 = vdwg.mxu0
      %v2274 = vadd.f32 %v2082, %v2228
      %v2275 = vadd.f32 %v2085, %v2231
      %v2276 = vadd.f32 %v2090, %v2236
      %v2277 = vadd.f32 %v2093, %v2239
      %v2278 = vadd.f32 %v2098, %v2244
      %v2279 = vadd.f32 %v2101, %v2247
      %v2280 = vadd.f32 %v2106, %v2252
      %v2281 = vadd.f32 %v2109, %v2255
      %v2282 = vadd.f32 %v2114, %v2260
      %v2283 = vadd.f32 %v2117, %v2263
      %v2284 = vadd.f32 %v2122, %v2268
      %v2285 = vadd.f32 %v2125, %v2271
      %v2286 = vld [vmem:[%s230 + $0xc] sm:$0xf]
      %s2287 = scalar_lea.vmem %s1, 24
      %v2288 = vld [vmem:[%s2287] sm:$0x3]
      %v2290 = vunpack.c.l.b16 %v2286
      %v2291 = vpack.c.b16 %v983, %v2290
      %v2293 = vshrl.u32 %v2291, 16
      %v2295 = vshll.u32 %v2291, 16
      %v2297 = vrot.slane %v2295, 1
      %v2298 = vor.u32 %v2293, %v2297
      %v2300 = vshll.u32 %v995, 16
      %v2302 = vrot.slane %v2300, 1
      %v2303 = vsel %vm794, %v2298, %v2302
      %v2304 = vshrl.u32 %v995, 16
      %v2306 = vor.u32 %v2304, %v2302
      %v2308 = vshll.u32 %v996, 16
      %v2310 = vrot.slane %v2308, 1
      %v2311 = vsel %vm794, %v2306, %v2310
      %v2312 = vshrl.u32 %v996, 16
      %v2314 = vor.u32 %v2312, %v2310
      %v2316 = vshll.u32 %v997, 16
      %v2318 = vrot.slane %v2316, 1
      %v2319 = vsel %vm794, %v2314, %v2318
      %v2320 = vshrl.u32 %v997, 16
      %v2322 = vor.u32 %v2320, %v2318
      %v2324 = vshll.u32 %v998, 16
      %v2326 = vrot.slane %v2324, 1
      %v2327 = vsel %vm794, %v2322, %v2326
      %v2328 = vshrl.u32 %v998, 16
      %v2330 = vor.u32 %v2328, %v2326
      %v2332 = vshll.u32 %v999, 16
      %v2334 = vrot.slane %v2332, 1
      %v2335 = vsel %vm794, %v2330, %v2334
      %v2336 = vshrl.u32 %v999, 16
      %v2338 = vor.u32 %v2336, %v2334
      %v2340 = vsel %vm318, %v2303, 0
      %v2343 = vsel %vm318, %v2311, 0
      %v2346 = vsel %vm318, %v2319, 0
      %v2349 = vsel %vm318, %v2327, 0
      %v2352 = vsel %vm318, %v2335, 0
      %v2355 = vsel %vm318, %v2338, 0
      %v2358 = vsel %vm337, %v2288, 0
      %2360 = vmatprep.subr.bf16.mxu0 0
      %2361 = vmatpush1.bf16.msra.mxu0 %v2358
      %2362 = vmatprep.subr.bf16.mxu0 0
      %2363 = vmatpush1.bf16.msra.mxu0 0
      %2364 = vmatprep.subr.bf16.mxu0 0
      %2365 = vmatpush1.bf16.msra.mxu0 0
      %2366 = vmatprep.subr.bf16.mxu0 0
      %2367 = vmatpush1.bf16.msra.mxu0 0
      %2368 = vmatprep.subr.bf16.mxu0 0
      %2369 = vmatpush1.bf16.msra.mxu0 0
      %2370 = vmatprep.subr.bf16.mxu0 0
      %2371 = vmatpush1.bf16.msra.mxu0 0
      %2372 = vmatprep.subr.bf16.mxu0 0
      %2373 = vmatpush1.bf16.msra.mxu0 0
      %2374 = vmatprep.subr.bf16.mxu0 0
      %2375 = vmatpush1.bf16.msra.mxu0 0
      %2376 = vmatprep.subr.bf16.mxu0 0
      %2377 = vmatpush1.bf16.msra.mxu0 0
      %2378 = vmatprep.subr.bf16.mxu0 0
      %2379 = vmatpush1.bf16.msra.mxu0 0
      %2380 = vmatprep.subr.bf16.mxu0 0
      %2381 = vmatpush1.bf16.msra.mxu0 0
      %2382 = vmatprep.subr.bf16.mxu0 0
      %2383 = vmatpush1.bf16.msra.mxu0 0
      %2384 = vmatprep.subr.bf16.mxu0 0
      %2385 = vmatpush1.bf16.msra.mxu0 0
      %2386 = vmatprep.subr.bf16.mxu0 0
      %2387 = vmatpush1.bf16.msra.mxu0 0
      %2388 = vmatprep.subr.bf16.mxu0 0
      %2389 = vmatpush1.bf16.msra.mxu0 0
      %2390 = vmatprep.subr.bf16.mxu0 0
      %2391 = vmatpush1.bf16.msra.mxu0 0
      %2392 = vmatprep.mubr.bf16.mxu0 0
      %2393 = vmatmul.mubr.bf16.gmra.mrb[0].mxu0 %v2340
      %v2394 = vpop.f32.mrb[0].mxu0
      %v2395 = vadd.f32 0.0, %v2394
      %v2396 = vpop.f32.mrb[0].mxu0
      %v2397 = vpop.f32.mrb[0].mxu0
      %v2398 = vadd.f32 0.0, %v2397
      %v2399 = vpop.f32.mrb[0].mxu0
      %2400 = vmatprep.mubr.bf16.mxu0 0
      %2401 = vmatmul.mubr.bf16.gmra.mrb[0].mxu0 %v2343
      %v2402 = vpop.f32.mrb[0].mxu0
      %v2403 = vadd.f32 0.0, %v2402
      %v2404 = vpop.f32.mrb[0].mxu0
      %v2405 = vpop.f32.mrb[0].mxu0
      %v2406 = vadd.f32 0.0, %v2405
      %v2407 = vpop.f32.mrb[0].mxu0
      %2408 = vmatprep.mubr.bf16.mxu0 0
      %2409 = vmatmul.mubr.bf16.gmra.mrb[0].mxu0 %v2346
      %v2410 = vpop.f32.mrb[0].mxu0
      %v2411 = vadd.f32 0.0, %v2410
      %v2412 = vpop.f32.mrb[0].mxu0
      %v2413 = vpop.f32.mrb[0].mxu0
      %v2414 = vadd.f32 0.0, %v2413
      %v2415 = vpop.f32.mrb[0].mxu0
      %2416 = vmatprep.mubr.bf16.mxu0 0
      %2417 = vmatmul.mubr.bf16.gmra.mrb[0].mxu0 %v2349
      %v2418 = vpop.f32.mrb[0].mxu0
      %v2419 = vadd.f32 0.0, %v2418
      %v2420 = vpop.f32.mrb[0].mxu0
      %v2421 = vpop.f32.mrb[0].mxu0
      %v2422 = vadd.f32 0.0, %v2421
      %v2423 = vpop.f32.mrb[0].mxu0
      %2424 = vmatprep.mubr.bf16.mxu0 0
      %2425 = vmatmul.mubr.bf16.gmra.mrb[0].mxu0 %v2352
      %v2426 = vpop.f32.mrb[0].mxu0
      %v2427 = vadd.f32 0.0, %v2426
      %v2428 = vpop.f32.mrb[0].mxu0
      %v2429 = vpop.f32.mrb[0].mxu0
      %v2430 = vadd.f32 0.0, %v2429
      %v2431 = vpop.f32.mrb[0].mxu0
      %2432 = vmatprep.mubr.bf16.mxu0 0
      %2433 = vmatmul.mubr.bf16.gmra.mrb[0].mxu0 %v2355
      %v2434 = vpop.f32.mrb[0].mxu0
      %v2435 = vadd.f32 0.0, %v2434
      %v2436 = vpop.f32.mrb[0].mxu0
      %v2437 = vpop.f32.mrb[0].mxu0
      %v2438 = vadd.f32 0.0, %v2437
      %v2439 = vpop.f32.mrb[0].mxu0
      %2440 = vdwg.mxu0
      %v2441 = vadd.f32 %v2274, %v2395
      %v2442 = vadd.f32 %v2275, %v2398
      %v2443 = vadd.f32 %v2276, %v2403
      %v2444 = vadd.f32 %v2277, %v2406
      %v2445 = vadd.f32 %v2278, %v2411
      %v2446 = vadd.f32 %v2279, %v2414
      %v2447 = vadd.f32 %v2280, %v2419
      %v2448 = vadd.f32 %v2281, %v2422
      %v2449 = vadd.f32 %v2282, %v2427
      %v2450 = vadd.f32 %v2283, %v2430
      %v2451 = vadd.f32 %v2284, %v2435
      %v2452 = vadd.f32 %v2285, %v2438
      %s2453 = scalar_lea.vmem %s1, 26
      %v2454 = vld [vmem:[%s2453] sm:$0x3]
      %v2456 = vsel %vm337, %v2454, 0
      %2458 = vmatprep.subr.bf16.mxu0 0
      %2459 = vmatpush1.bf16.msra.mxu0 %v2456
      %2460 = vmatprep.subr.bf16.mxu0 0
      %2461 = vmatpush1.bf16.msra.mxu0 0
      %2462 = vmatprep.subr.bf16.mxu0 0
      %2463 = vmatpush1.bf16.msra.mxu0 0
      %2464 = vmatprep.subr.bf16.mxu0 0
      %2465 = vmatpush1.bf16.msra.mxu0 0
      %2466 = vmatprep.subr.bf16.mxu0 0
      %2467 = vmatpush1.bf16.msra.mxu0 0
      %2468 = vmatprep.subr.bf16.mxu0 0
      %2469 = vmatpush1.bf16.msra.mxu0 0
      %2470 = vmatprep.subr.bf16.mxu0 0
      %2471 = vmatpush1.bf16.msra.mxu0 0
      %2472 = vmatprep.subr.bf16.mxu0 0
      %2473 = vmatpush1.bf16.msra.mxu0 0
      %2474 = vmatprep.subr.bf16.mxu0 0
      %2475 = vmatpush1.bf16.msra.mxu0 0
      %2476 = vmatprep.subr.bf16.mxu0 0
      %2477 = vmatpush1.bf16.msra.mxu0 0
      %2478 = vmatprep.subr.bf16.mxu0 0
      %2479 = vmatpush1.bf16.msra.mxu0 0
      %2480 = vmatprep.subr.bf16.mxu0 0
      %2481 = vmatpush1.bf16.msra.mxu0 0
      %2482 = vmatprep.subr.bf16.mxu0 0
      %2483 = vmatpush1.bf16.msra.mxu0 0
      %2484 = vmatprep.subr.bf16.mxu0 0
      %2485 = vmatpush1.bf16.msra.mxu0 0
      %2486 = vmatprep.subr.bf16.mxu0 0
      %2487 = vmatpush1.bf16.msra.mxu0 0
      %2488 = vmatprep.subr.bf16.mxu0 0
      %2489 = vmatpush1.bf16.msra.mxu0 0
      %2490 = vmatprep.mubr.bf16.mxu0 0
      %2491 = vmatmul.mubr.bf16.gmra.mrb[0].mxu0 %v1013
      %v2492 = vpop.f32.mrb[0].mxu0
      %v2493 = vadd.f32 0.0, %v2492
      %v2494 = vpop.f32.mrb[0].mxu0
      %v2495 = vpop.f32.mrb[0].mxu0
      %v2496 = vadd.f32 0.0, %v2495
      %v2497 = vpop.f32.mrb[0].mxu0
      %2498 = vmatprep.mubr.bf16.mxu0 0
      %2499 = vmatmul.mubr.bf16.gmra.mrb[0].mxu0 %v1016
      %v2500 = vpop.f32.mrb[0].mxu0
      %v2501 = vadd.f32 0.0, %v2500
      %v2502 = vpop.f32.mrb[0].mxu0
      %v2503 = vpop.f32.mrb[0].mxu0
      %v2504 = vadd.f32 0.0, %v2503
      %v2505 = vpop.f32.mrb[0].mxu0
      %2506 = vmatprep.mubr.bf16.mxu0 0
      %2507 = vmatmul.mubr.bf16.gmra.mrb[0].mxu0 %v1019
      %v2508 = vpop.f32.mrb[0].mxu0
      %v2509 = vadd.f32 0.0, %v2508
      %v2510 = vpop.f32.mrb[0].mxu0
      %v2511 = vpop.f32.mrb[0].mxu0
      %v2512 = vadd.f32 0.0, %v2511
      %v2513 = vpop.f32.mrb[0].mxu0
      %2514 = vmatprep.mubr.bf16.mxu0 0
      %2515 = vmatmul.mubr.bf16.gmra.mrb[0].mxu0 %v1022
      %v2516 = vpop.f32.mrb[0].mxu0
      %v2517 = vadd.f32 0.0, %v2516
      %v2518 = vpop.f32.mrb[0].mxu0
      %v2519 = vpop.f32.mrb[0].mxu0
      %v2520 = vadd.f32 0.0, %v2519
      %v2521 = vpop.f32.mrb[0].mxu0
      %2522 = vmatprep.mubr.bf16.mxu0 0
      %2523 = vmatmul.mubr.bf16.gmra.mrb[0].mxu0 %v1025
      %v2524 = vpop.f32.mrb[0].mxu0
      %v2525 = vadd.f32 0.0, %v2524
      %v2526 = vpop.f32.mrb[0].mxu0
      %v2527 = vpop.f32.mrb[0].mxu0
      %v2528 = vadd.f32 0.0, %v2527
      %v2529 = vpop.f32.mrb[0].mxu0
      %2530 = vmatprep.mubr.bf16.mxu0 0
      %2531 = vmatmul.mubr.bf16.gmra.mrb[0].mxu0 %v1028
      %v2532 = vpop.f32.mrb[0].mxu0
      %v2533 = vadd.f32 0.0, %v2532
      %v2534 = vpop.f32.mrb[0].mxu0
      %v2535 = vpop.f32.mrb[0].mxu0
      %v2536 = vadd.f32 0.0, %v2535
      %v2537 = vpop.f32.mrb[0].mxu0
      %2538 = vdwg.mxu0
      %v2539 = vadd.f32 %v2441, %v2493
      %v2540 = vadd.f32 %v2442, %v2496
      %v2541 = vadd.f32 %v2443, %v2501
      %v2542 = vadd.f32 %v2444, %v2504
      %v2543 = vadd.f32 %v2445, %v2509
      %v2544 = vadd.f32 %v2446, %v2512
      %v2545 = vadd.f32 %v2447, %v2517
      %v2546 = vadd.f32 %v2448, %v2520
      %v2547 = vadd.f32 %v2449, %v2525
      %v2548 = vadd.f32 %v2450, %v2528
      %v2549 = vadd.f32 %v2451, %v2533
      %v2550 = vadd.f32 %v2452, %v2536
      %v2551 = vld [vmem:[%s230 + $0x38] sm:$0xf]
      %s2552 = scalar_lea.vmem %s1, 28
      %v2553 = vld [vmem:[%s2552] sm:$0x3]
      %v2555 = vunpack.c.l.b16 %v2551
      %v2556 = vpack.c.b16 %v2555, %v992
      %vm2557 = vsmask.f32 6400
      %v2559 = vshrl.u32 %v994, 16
      %v2561 = vrot.slane %v2559, 1
      %v2562 = vshll.u32 %v994, 16
      %v2564 = vrot.slane %v2562, 2
      %v2565 = vor.u32 %v2561, %v2564
      %v2566 = vrot.slane %v2304, 1
      %v2567 = vrot.slane %v2300, 2
      %v2568 = vor.u32 %v2566, %v2567
      %v2569 = vsel %vm2557, %v2565, %v2568
      %v2570 = vrot.slane %v2312, 1
      %v2571 = vrot.slane %v2308, 2
      %v2572 = vor.u32 %v2570, %v2571
      %v2573 = vsel %vm2557, %v2568, %v2572
      %v2574 = vrot.slane %v2320, 1
      %v2575 = vrot.slane %v2316, 2
      %v2576 = vor.u32 %v2574, %v2575
      %v2577 = vsel %vm2557, %v2572, %v2576
      %v2578 = vrot.slane %v2328, 1
      %v2579 = vrot.slane %v2324, 2
      %v2580 = vor.u32 %v2578, %v2579
      %v2581 = vsel %vm2557, %v2576, %v2580
      %v2583 = vshrl.u32 %v2556, 16
      %v2585 = vrot.slane %v2583, 1
      %v2586 = vshll.u32 %v2556, 16
      %v2588 = vrot.slane %v2586, 2
      %v2589 = vor.u32 %v2585, %v2588
      %v2590 = vsel %vm2557, %v2580, %v2589
      %v2592 = vsel %vm318, %v2569, 0
      %v2595 = vsel %vm318, %v2573, 0
      %v2598 = vsel %vm318, %v2577, 0
      %v2601 = vsel %vm318, %v2581, 0
      %v2604 = vsel %vm318, %v2590, 0
      %v2607 = vsel %vm318, %v2589, 0
      %v2610 = vsel %vm337, %v2553, 0
      %2612 = vmatprep.subr.bf16.mxu0 0
      %2613 = vmatpush1.bf16.msra.mxu0 %v2610
      %2614 = vmatprep.subr.bf16.mxu0 0
      %2615 = vmatpush1.bf16.msra.mxu0 0
      %2616 = vmatprep.subr.bf16.mxu0 0
      %2617 = vmatpush1.bf16.msra.mxu0 0
      %2618 = vmatprep.subr.bf16.mxu0 0
      %2619 = vmatpush1.bf16.msra.mxu0 0
      %2620 = vmatprep.subr.bf16.mxu0 0
      %2621 = vmatpush1.bf16.msra.mxu0 0
      %2622 = vmatprep.subr.bf16.mxu0 0
      %2623 = vmatpush1.bf16.msra.mxu0 0
      %2624 = vmatprep.subr.bf16.mxu0 0
      %2625 = vmatpush1.bf16.msra.mxu0 0
      %2626 = vmatprep.subr.bf16.mxu0 0
      %2627 = vmatpush1.bf16.msra.mxu0 0
      %2628 = vmatprep.subr.bf16.mxu0 0
      %2629 = vmatpush1.bf16.msra.mxu0 0
      %2630 = vmatprep.subr.bf16.mxu0 0
      %2631 = vmatpush1.bf16.msra.mxu0 0
      %2632 = vmatprep.subr.bf16.mxu0 0
      %2633 = vmatpush1.bf16.msra.mxu0 0
      %2634 = vmatprep.subr.bf16.mxu0 0
      %2635 = vmatpush1.bf16.msra.mxu0 0
      %2636 = vmatprep.subr.bf16.mxu0 0
      %2637 = vmatpush1.bf16.msra.mxu0 0
      %2638 = vmatprep.subr.bf16.mxu0 0
      %2639 = vmatpush1.bf16.msra.mxu0 0
      %2640 = vmatprep.subr.bf16.mxu0 0
      %2641 = vmatpush1.bf16.msra.mxu0 0
      %2642 = vmatprep.subr.bf16.mxu0 0
      %2643 = vmatpush1.bf16.msra.mxu0 0
      %2644 = vmatprep.mubr.bf16.mxu0 0
      %2645 = vmatmul.mubr.bf16.gmra.mrb[0].mxu0 %v2592
      %v2646 = vpop.f32.mrb[0].mxu0
      %v2647 = vadd.f32 0.0, %v2646
      %v2648 = vpop.f32.mrb[0].mxu0
      %v2649 = vpop.f32.mrb[0].mxu0
      %v2650 = vadd.f32 0.0, %v2649
      %v2651 = vpop.f32.mrb[0].mxu0
      %2652 = vmatprep.mubr.bf16.mxu0 0
      %2653 = vmatmul.mubr.bf16.gmra.mrb[0].mxu0 %v2595
      %v2654 = vpop.f32.mrb[0].mxu0
      %v2655 = vadd.f32 0.0, %v2654
      %v2656 = vpop.f32.mrb[0].mxu0
      %v2657 = vpop.f32.mrb[0].mxu0
      %v2658 = vadd.f32 0.0, %v2657
      %v2659 = vpop.f32.mrb[0].mxu0
      %2660 = vmatprep.mubr.bf16.mxu0 0
      %2661 = vmatmul.mubr.bf16.gmra.mrb[0].mxu0 %v2598
      %v2662 = vpop.f32.mrb[0].mxu0
      %v2663 = vadd.f32 0.0, %v2662
      %v2664 = vpop.f32.mrb[0].mxu0
      %v2665 = vpop.f32.mrb[0].mxu0
      %v2666 = vadd.f32 0.0, %v2665
      %v2667 = vpop.f32.mrb[0].mxu0
      %2668 = vmatprep.mubr.bf16.mxu0 0
      %2669 = vmatmul.mubr.bf16.gmra.mrb[0].mxu0 %v2601
      %v2670 = vpop.f32.mrb[0].mxu0
      %v2671 = vadd.f32 0.0, %v2670
      %v2672 = vpop.f32.mrb[0].mxu0
      %v2673 = vpop.f32.mrb[0].mxu0
      %v2674 = vadd.f32 0.0, %v2673
      %v2675 = vpop.f32.mrb[0].mxu0
      %2676 = vmatprep.mubr.bf16.mxu0 0
      %2677 = vmatmul.mubr.bf16.gmra.mrb[0].mxu0 %v2604
      %v2678 = vpop.f32.mrb[0].mxu0
      %v2679 = vadd.f32 0.0, %v2678
      %v2680 = vpop.f32.mrb[0].mxu0
      %v2681 = vpop.f32.mrb[0].mxu0
      %v2682 = vadd.f32 0.0, %v2681
      %v2683 = vpop.f32.mrb[0].mxu0
      %2684 = vmatprep.mubr.bf16.mxu0 0
      %2685 = vmatmul.mubr.bf16.gmra.mrb[0].mxu0 %v2607
      %v2686 = vpop.f32.mrb[0].mxu0
      %v2687 = vadd.f32 0.0, %v2686
      %v2688 = vpop.f32.mrb[0].mxu0
      %v2689 = vpop.f32.mrb[0].mxu0
      %v2690 = vadd.f32 0.0, %v2689
      %v2691 = vpop.f32.mrb[0].mxu0
      %2692 = vdwg.mxu0
      %v2693 = vadd.f32 %v2539, %v2647
      %v2694 = vadd.f32 %v2540, %v2650
      %v2695 = vadd.f32 %v2541, %v2655
      %v2696 = vadd.f32 %v2542, %v2658
      %v2697 = vadd.f32 %v2543, %v2663
      %v2698 = vadd.f32 %v2544, %v2666
      %v2699 = vadd.f32 %v2545, %v2671
      %v2700 = vadd.f32 %v2546, %v2674
      %v2701 = vadd.f32 %v2547, %v2679
      %v2702 = vadd.f32 %v2548, %v2682
      %v2703 = vadd.f32 %v2549, %v2687
      %v2704 = vadd.f32 %v2550, %v2690
      %v2705 = vld [vmem:[%s230 + $0x10] sm:$0xc]
      %v2706 = vld [vmem:[%s230 + $0x14] sm:$0xf]
      %v2707 = vld [vmem:[%s230 + $0x18] sm:$0xf]
      %v2708 = vld [vmem:[%s230 + $0x1c] sm:$0xf]
      %v2709 = vld [vmem:[%s230 + $0x20] sm:$0xf]
      %v2710 = vld [vmem:[%s230 + $0x24] sm:$0xf]
      %v2711 = vld [vmem:[%s230 + $0x28] sm:$0xf]
      %v2712 = vld [vmem:[%s230 + $0x2c] sm:$0xf]
      %v2713 = vld [vmem:[%s230 + $0x30] sm:$0xf]
      %v2714 = vld [vmem:[%s230 + $0x34] sm:$0xf]
      %v2715 = vld [vmem:[%s230 + $0x38] sm:$0xf]
      %v2716 = vld [vmem:[%s230 + $0x3c] sm:$0xf]
      %v2717 = vld [vmem:[%s230 + $0x40] sm:$0x1]
      %s2718 = scalar_lea.vmem %s1, 30
      %v2719 = vld [vmem:[%s2718] sm:$0x3]
      %v2733 = vunpack.c.l.b16 %v2705
      %v2734 = vunpack.c.l.b16 %v2706
      %v2735 = vunpack.c.l.b16 %v2707
      %v2736 = vunpack.c.l.b16 %v2708
      %v2737 = vunpack.c.l.b16 %v2709
      %v2738 = vunpack.c.l.b16 %v2710
      %v2739 = vunpack.c.l.b16 %v2711
      %v2740 = vunpack.c.l.b16 %v2712
      %v2741 = vunpack.c.l.b16 %v2713
      %v2742 = vunpack.c.l.b16 %v2714
      %v2743 = vunpack.c.l.b16 %v2715
      %v2744 = vunpack.c.l.b16 %v2716
      %v2745 = vunpack.c.l.b16 %v2717
      %v2746 = vpack.c.b16 %v2734, %v2733
      %v2747 = vpack.c.b16 %v2736, %v2735
      %v2748 = vpack.c.b16 %v2738, %v2737
      %v2749 = vpack.c.b16 %v2740, %v2739
      %v2750 = vpack.c.b16 %v2742, %v2741
      %v2751 = vpack.c.b16 %v2744, %v2743
      %v2752 = vpack.c.b16 %v2745, %v2745
      %v2754 = vshrl.u32 %v2746, 16
      %v2756 = vrot.slane %v2754, 2
      %v2757 = vshll.u32 %v2746, 16
      %v2759 = vrot.slane %v2757, 3
      %v2760 = vor.u32 %v2756, %v2759
      %v2762 = vshrl.u32 %v2747, 16
      %v2764 = vrot.slane %v2762, 2
      %v2765 = vshll.u32 %v2747, 16
      %v2767 = vrot.slane %v2765, 3
      %v2768 = vor.u32 %v2764, %v2767
      %v2769 = vsel %vm455, %v2760, %v2768
      %v2771 = vshrl.u32 %v2748, 16
      %v2773 = vrot.slane %v2771, 2
      %v2774 = vshll.u32 %v2748, 16
      %v2776 = vrot.slane %v2774, 3
      %v2777 = vor.u32 %v2773, %v2776
      %v2778 = vsel %vm455, %v2768, %v2777
      %v2780 = vshrl.u32 %v2749, 16
      %v2782 = vrot.slane %v2780, 2
      %v2783 = vshll.u32 %v2749, 16
      %v2785 = vrot.slane %v2783, 3
      %v2786 = vor.u32 %v2782, %v2785
      %v2787 = vsel %vm455, %v2777, %v2786
      %v2789 = vshrl.u32 %v2750, 16
      %v2791 = vrot.slane %v2789, 2
      %v2792 = vshll.u32 %v2750, 16
      %v2794 = vrot.slane %v2792, 3
      %v2795 = vor.u32 %v2791, %v2794
      %v2796 = vsel %vm455, %v2786, %v2795
      %v2798 = vshrl.u32 %v2751, 16
      %v2800 = vrot.slane %v2798, 2
      %v2801 = vshll.u32 %v2751, 16
      %v2803 = vrot.slane %v2801, 3
      %v2804 = vor.u32 %v2800, %v2803
      %v2805 = vsel %vm455, %v2795, %v2804
      %v2807 = vshll.u32 %v2752, 16
      %v2809 = vrot.slane %v2807, 3
      %v2810 = vsel %vm455, %v2804, %v2809
      %v2812 = vsel %vm318, %v2769, 0
      %v2815 = vsel %vm318, %v2778, 0
      %v2818 = vsel %vm318, %v2787, 0
      %v2821 = vsel %vm318, %v2796, 0
      %v2824 = vsel %vm318, %v2805, 0
      %v2827 = vsel %vm318, %v2810, 0
      %v2830 = vsel %vm337, %v2719, 0
      %2832 = vmatprep.subr.bf16.mxu0 0
      %2833 = vmatpush1.bf16.msra.mxu0 %v2830
      %2834 = vmatprep.subr.bf16.mxu0 0
      %2835 = vmatpush1.bf16.msra.mxu0 0
      %2836 = vmatprep.subr.bf16.mxu0 0
      %2837 = vmatpush1.bf16.msra.mxu0 0
      %2838 = vmatprep.subr.bf16.mxu0 0
      %2839 = vmatpush1.bf16.msra.mxu0 0
      %2840 = vmatprep.subr.bf16.mxu0 0
      %2841 = vmatpush1.bf16.msra.mxu0 0
      %2842 = vmatprep.subr.bf16.mxu0 0
      %2843 = vmatpush1.bf16.msra.mxu0 0
      %2844 = vmatprep.subr.bf16.mxu0 0
      %2845 = vmatpush1.bf16.msra.mxu0 0
      %2846 = vmatprep.subr.bf16.mxu0 0
      %2847 = vmatpush1.bf16.msra.mxu0 0
      %2848 = vmatprep.subr.bf16.mxu0 0
      %2849 = vmatpush1.bf16.msra.mxu0 0
      %2850 = vmatprep.subr.bf16.mxu0 0
      %2851 = vmatpush1.bf16.msra.mxu0 0
      %2852 = vmatprep.subr.bf16.mxu0 0
      %2853 = vmatpush1.bf16.msra.mxu0 0
      %2854 = vmatprep.subr.bf16.mxu0 0
      %2855 = vmatpush1.bf16.msra.mxu0 0
      %2856 = vmatprep.subr.bf16.mxu0 0
      %2857 = vmatpush1.bf16.msra.mxu0 0
      %2858 = vmatprep.subr.bf16.mxu0 0
      %2859 = vmatpush1.bf16.msra.mxu0 0
      %2860 = vmatprep.subr.bf16.mxu0 0
      %2861 = vmatpush1.bf16.msra.mxu0 0
      %2862 = vmatprep.subr.bf16.mxu0 0
      %2863 = vmatpush1.bf16.msra.mxu0 0
      %2864 = vmatprep.mubr.bf16.mxu0 0
      %2865 = vmatmul.mubr.bf16.gmra.mrb[0].mxu0 %v2812
      %v2866 = vpop.f32.mrb[0].mxu0
      %v2867 = vadd.f32 0.0, %v2866
      %v2868 = vpop.f32.mrb[0].mxu0
      %v2869 = vpop.f32.mrb[0].mxu0
      %v2870 = vadd.f32 0.0, %v2869
      %v2871 = vpop.f32.mrb[0].mxu0
      %2872 = vmatprep.mubr.bf16.mxu0 0
      %2873 = vmatmul.mubr.bf16.gmra.mrb[0].mxu0 %v2815
      %v2874 = vpop.f32.mrb[0].mxu0
      %v2875 = vadd.f32 0.0, %v2874
      %v2876 = vpop.f32.mrb[0].mxu0
      %v2877 = vpop.f32.mrb[0].mxu0
      %v2878 = vadd.f32 0.0, %v2877
      %v2879 = vpop.f32.mrb[0].mxu0
      %2880 = vmatprep.mubr.bf16.mxu0 0
      %2881 = vmatmul.mubr.bf16.gmra.mrb[0].mxu0 %v2818
      %v2882 = vpop.f32.mrb[0].mxu0
      %v2883 = vadd.f32 0.0, %v2882
      %v2884 = vpop.f32.mrb[0].mxu0
      %v2885 = vpop.f32.mrb[0].mxu0
      %v2886 = vadd.f32 0.0, %v2885
      %v2887 = vpop.f32.mrb[0].mxu0
      %2888 = vmatprep.mubr.bf16.mxu0 0
      %2889 = vmatmul.mubr.bf16.gmra.mrb[0].mxu0 %v2821
      %v2890 = vpop.f32.mrb[0].mxu0
      %v2891 = vadd.f32 0.0, %v2890
      %v2892 = vpop.f32.mrb[0].mxu0
      %v2893 = vpop.f32.mrb[0].mxu0
      %v2894 = vadd.f32 0.0, %v2893
      %v2895 = vpop.f32.mrb[0].mxu0
      %2896 = vmatprep.mubr.bf16.mxu0 0
      %2897 = vmatmul.mubr.bf16.gmra.mrb[0].mxu0 %v2824
      %v2898 = vpop.f32.mrb[0].mxu0
      %v2899 = vadd.f32 0.0, %v2898
      %v2900 = vpop.f32.mrb[0].mxu0
      %v2901 = vpop.f32.mrb[0].mxu0
      %v2902 = vadd.f32 0.0, %v2901
      %v2903 = vpop.f32.mrb[0].mxu0
      %2904 = vmatprep.mubr.bf16.mxu0 0
      %2905 = vmatmul.mubr.bf16.gmra.mrb[0].mxu0 %v2827
      %v2906 = vpop.f32.mrb[0].mxu0
      %v2907 = vadd.f32 0.0, %v2906
      %v2908 = vpop.f32.mrb[0].mxu0
      %v2909 = vpop.f32.mrb[0].mxu0
      %v2910 = vadd.f32 0.0, %v2909
      %v2911 = vpop.f32.mrb[0].mxu0
      %2912 = vdwg.mxu0
      %v2913 = vadd.f32 %v2693, %v2867
      %v2914 = vadd.f32 %v2694, %v2870
      %v2915 = vadd.f32 %v2695, %v2875
      %v2916 = vadd.f32 %v2696, %v2878
      %v2917 = vadd.f32 %v2697, %v2883
      %v2918 = vadd.f32 %v2698, %v2886
      %v2919 = vadd.f32 %v2699, %v2891
      %v2920 = vadd.f32 %v2700, %v2894
      %v2921 = vadd.f32 %v2701, %v2899
      %v2922 = vadd.f32 %v2702, %v2902
      %v2923 = vadd.f32 %v2703, %v2907
      %v2924 = vadd.f32 %v2704, %v2910
      %v2925 = vld [vmem:[%s230 + $0x10] sm:$0x8]
      %s2926 = scalar_lea.vmem %s1, 32
      %v2927 = vld [vmem:[%s2926] sm:$0x3]
      %v2929 = vunpack.c.l.b16 %v2925
      %v2930 = vpack.c.b16 %v2734, %v2929
      %v2931 = vrot.slane %v2930, 3
      %v2932 = vrot.slane %v2747, 3
      %v2933 = vsel %vm304, %v2931, %v2932
      %v2934 = vrot.slane %v2748, 3
      %v2935 = vsel %vm304, %v2932, %v2934
      %v2936 = vrot.slane %v2749, 3
      %v2937 = vsel %vm304, %v2934, %v2936
      %v2938 = vrot.slane %v2750, 3
      %v2939 = vsel %vm304, %v2936, %v2938
      %v2940 = vrot.slane %v2751, 3
      %v2941 = vsel %vm304, %v2938, %v2940
      %v2942 = vrot.slane %v2752, 3
      %v2943 = vsel %vm304, %v2940, %v2942
      %v2945 = vsel %vm318, %v2933, 0
      %v2948 = vsel %vm318, %v2935, 0
      %v2951 = vsel %vm318, %v2937, 0
      %v2954 = vsel %vm318, %v2939, 0
      %v2957 = vsel %vm318, %v2941, 0
      %v2960 = vsel %vm318, %v2943, 0
      %v2963 = vsel %vm337, %v2927, 0
      %2965 = vmatprep.subr.bf16.mxu0 0
      %2966 = vmatpush1.bf16.msra.mxu0 %v2963
      %2967 = vmatprep.subr.bf16.mxu0 0
      %2968 = vmatpush1.bf16.msra.mxu0 0
      %2969 = vmatprep.subr.bf16.mxu0 0
      %2970 = vmatpush1.bf16.msra.mxu0 0
      %2971 = vmatprep.subr.bf16.mxu0 0
      %2972 = vmatpush1.bf16.msra.mxu0 0
      %2973 = vmatprep.subr.bf16.mxu0 0
      %2974 = vmatpush1.bf16.msra.mxu0 0
      %2975 = vmatprep.subr.bf16.mxu0 0
      %2976 = vmatpush1.bf16.msra.mxu0 0
      %2977 = vmatprep.subr.bf16.mxu0 0
      %2978 = vmatpush1.bf16.msra.mxu0 0
      %2979 = vmatprep.subr.bf16.mxu0 0
      %2980 = vmatpush1.bf16.msra.mxu0 0
      %2981 = vmatprep.subr.bf16.mxu0 0
      %2982 = vmatpush1.bf16.msra.mxu0 0
      %2983 = vmatprep.subr.bf16.mxu0 0
      %2984 = vmatpush1.bf16.msra.mxu0 0
      %2985 = vmatprep.subr.bf16.mxu0 0
      %2986 = vmatpush1.bf16.msra.mxu0 0
      %2987 = vmatprep.subr.bf16.mxu0 0
      %2988 = vmatpush1.bf16.msra.mxu0 0
      %2989 = vmatprep.subr.bf16.mxu0 0
      %2990 = vmatpush1.bf16.msra.mxu0 0
      %2991 = vmatprep.subr.bf16.mxu0 0
      %2992 = vmatpush1.bf16.msra.mxu0 0
      %2993 = vmatprep.subr.bf16.mxu0 0
      %2994 = vmatpush1.bf16.msra.mxu0 0
      %2995 = vmatprep.subr.bf16.mxu0 0
      %2996 = vmatpush1.bf16.msra.mxu0 0
      %2997 = vmatprep.mubr.bf16.mxu0 0
      %2998 = vmatmul.mubr.bf16.gmra.mrb[0].mxu0 %v2945
      %v2999 = vpop.f32.mrb[0].mxu0
      %v3000 = vadd.f32 0.0, %v2999
      %v3001 = vpop.f32.mrb[0].mxu0
      %v3002 = vpop.f32.mrb[0].mxu0
      %v3003 = vadd.f32 0.0, %v3002
      %v3004 = vpop.f32.mrb[0].mxu0
      %3005 = vmatprep.mubr.bf16.mxu0 0
      %3006 = vmatmul.mubr.bf16.gmra.mrb[0].mxu0 %v2948
      %v3007 = vpop.f32.mrb[0].mxu0
      %v3008 = vadd.f32 0.0, %v3007
      %v3009 = vpop.f32.mrb[0].mxu0
      %v3010 = vpop.f32.mrb[0].mxu0
      %v3011 = vadd.f32 0.0, %v3010
      %v3012 = vpop.f32.mrb[0].mxu0
      %3013 = vmatprep.mubr.bf16.mxu0 0
      %3014 = vmatmul.mubr.bf16.gmra.mrb[0].mxu0 %v2951
      %v3015 = vpop.f32.mrb[0].mxu0
      %v3016 = vadd.f32 0.0, %v3015
      %v3017 = vpop.f32.mrb[0].mxu0
      %v3018 = vpop.f32.mrb[0].mxu0
      %v3019 = vadd.f32 0.0, %v3018
      %v3020 = vpop.f32.mrb[0].mxu0
      %3021 = vmatprep.mubr.bf16.mxu0 0
      %3022 = vmatmul.mubr.bf16.gmra.mrb[0].mxu0 %v2954
      %v3023 = vpop.f32.mrb[0].mxu0
      %v3024 = vadd.f32 0.0, %v3023
      %v3025 = vpop.f32.mrb[0].mxu0
      %v3026 = vpop.f32.mrb[0].mxu0
      %v3027 = vadd.f32 0.0, %v3026
      %v3028 = vpop.f32.mrb[0].mxu0
      %3029 = vmatprep.mubr.bf16.mxu0 0
      %3030 = vmatmul.mubr.bf16.gmra.mrb[0].mxu0 %v2957
      %v3031 = vpop.f32.mrb[0].mxu0
      %v3032 = vadd.f32 0.0, %v3031
      %v3033 = vpop.f32.mrb[0].mxu0
      %v3034 = vpop.f32.mrb[0].mxu0
      %v3035 = vadd.f32 0.0, %v3034
      %v3036 = vpop.f32.mrb[0].mxu0
      %3037 = vmatprep.mubr.bf16.mxu0 0
      %3038 = vmatmul.mubr.bf16.gmra.mrb[0].mxu0 %v2960
      %v3039 = vpop.f32.mrb[0].mxu0
      %v3040 = vadd.f32 0.0, %v3039
      %v3041 = vpop.f32.mrb[0].mxu0
      %v3042 = vpop.f32.mrb[0].mxu0
      %v3043 = vadd.f32 0.0, %v3042
      %v3044 = vpop.f32.mrb[0].mxu0
      %3045 = vdwg.mxu0
      %v3046 = vadd.f32 %v2913, %v3000
      %v3047 = vadd.f32 %v2914, %v3003
      %v3048 = vadd.f32 %v2915, %v3008
      %v3049 = vadd.f32 %v2916, %v3011
      %v3050 = vadd.f32 %v2917, %v3016
      %v3051 = vadd.f32 %v2918, %v3019
      %v3052 = vadd.f32 %v2919, %v3024
      %v3053 = vadd.f32 %v2920, %v3027
      %v3054 = vadd.f32 %v2921, %v3032
      %v3055 = vadd.f32 %v2922, %v3035
      %v3056 = vadd.f32 %v2923, %v3040
      %v3057 = vadd.f32 %v2924, %v3043
      %v3058 = vld [vmem:[%s230 + $0x40] sm:$0x3]
      %s3059 = scalar_lea.vmem %s1, 34
      %v3060 = vld [vmem:[%s3059] sm:$0x3]
      %v3062 = vunpack.c.l.b16 %v3058
      %v3063 = vpack.c.b16 %v3062, %v3062
      %v3065 = vshrl.u32 %v2930, 16
      %v3067 = vrot.slane %v3065, 3
      %v3068 = vshll.u32 %v2930, 16
      %v3070 = vrot.slane %v3068, 4
      %v3071 = vor.u32 %v3067, %v3070
      %v3072 = vrot.slane %v2762, 3
      %v3073 = vrot.slane %v2765, 4
      %v3074 = vor.u32 %v3072, %v3073
      %v3075 = vsel %vm2134, %v3071, %v3074
      %v3076 = vrot.slane %v2771, 3
      %v3077 = vrot.slane %v2774, 4
      %v3078 = vor.u32 %v3076, %v3077
      %v3079 = vsel %vm2134, %v3074, %v3078
      %v3080 = vrot.slane %v2780, 3
      %v3081 = vrot.slane %v2783, 4
      %v3082 = vor.u32 %v3080, %v3081
      %v3083 = vsel %vm2134, %v3078, %v3082
      %v3084 = vrot.slane %v2789, 3
      %v3085 = vrot.slane %v2792, 4
      %v3086 = vor.u32 %v3084, %v3085
      %v3087 = vsel %vm2134, %v3082, %v3086
      %v3088 = vrot.slane %v2798, 3
      %v3089 = vrot.slane %v2801, 4
      %v3090 = vor.u32 %v3088, %v3089
      %v3091 = vsel %vm2134, %v3086, %v3090
      %v3093 = vshrl.u32 %v3063, 16
      %v3095 = vrot.slane %v3093, 3
      %v3096 = vshll.u32 %v3063, 16
      %v3098 = vrot.slane %v3096, 4
      %v3099 = vor.u32 %v3095, %v3098
      %v3100 = vsel %vm2134, %v3090, %v3099
      %v3102 = vsel %vm318, %v3075, 0
      %v3105 = vsel %vm318, %v3079, 0
      %v3108 = vsel %vm318, %v3083, 0
      %v3111 = vsel %vm318, %v3087, 0
      %v3114 = vsel %vm318, %v3091, 0
      %v3117 = vsel %vm318, %v3100, 0
      %v3120 = vsel %vm337, %v3060, 0
      %3122 = vmatprep.subr.bf16.mxu0 0
      %3123 = vmatpush1.bf16.msra.mxu0 %v3120
      %3124 = vmatprep.subr.bf16.mxu0 0
      %3125 = vmatpush1.bf16.msra.mxu0 0
      %3126 = vmatprep.subr.bf16.mxu0 0
      %3127 = vmatpush1.bf16.msra.mxu0 0
      %3128 = vmatprep.subr.bf16.mxu0 0
      %3129 = vmatpush1.bf16.msra.mxu0 0
      %3130 = vmatprep.subr.bf16.mxu0 0
      %3131 = vmatpush1.bf16.msra.mxu0 0
      %3132 = vmatprep.subr.bf16.mxu0 0
      %3133 = vmatpush1.bf16.msra.mxu0 0
      %3134 = vmatprep.subr.bf16.mxu0 0
      %3135 = vmatpush1.bf16.msra.mxu0 0
      %3136 = vmatprep.subr.bf16.mxu0 0
      %3137 = vmatpush1.bf16.msra.mxu0 0
      %3138 = vmatprep.subr.bf16.mxu0 0
      %3139 = vmatpush1.bf16.msra.mxu0 0
      %3140 = vmatprep.subr.bf16.mxu0 0
      %3141 = vmatpush1.bf16.msra.mxu0 0
      %3142 = vmatprep.subr.bf16.mxu0 0
      %3143 = vmatpush1.bf16.msra.mxu0 0
      %3144 = vmatprep.subr.bf16.mxu0 0
      %3145 = vmatpush1.bf16.msra.mxu0 0
      %3146 = vmatprep.subr.bf16.mxu0 0
      %3147 = vmatpush1.bf16.msra.mxu0 0
      %3148 = vmatprep.subr.bf16.mxu0 0
      %3149 = vmatpush1.bf16.msra.mxu0 0
      %3150 = vmatprep.subr.bf16.mxu0 0
      %3151 = vmatpush1.bf16.msra.mxu0 0
      %3152 = vmatprep.subr.bf16.mxu0 0
      %3153 = vmatpush1.bf16.msra.mxu0 0
      %3154 = vmatprep.mubr.bf16.mxu0 0
      %3155 = vmatmul.mubr.bf16.gmra.mrb[0].mxu0 %v3102
      %v3156 = vpop.f32.mrb[0].mxu0
      %v3157 = vadd.f32 0.0, %v3156
      %v3158 = vpop.f32.mrb[0].mxu0
      %v3159 = vpop.f32.mrb[0].mxu0
      %v3160 = vadd.f32 0.0, %v3159
      %v3161 = vpop.f32.mrb[0].mxu0
      %3162 = vmatprep.mubr.bf16.mxu0 0
      %3163 = vmatmul.mubr.bf16.gmra.mrb[0].mxu0 %v3105
      %v3164 = vpop.f32.mrb[0].mxu0
      %v3165 = vadd.f32 0.0, %v3164
      %v3166 = vpop.f32.mrb[0].mxu0
      %v3167 = vpop.f32.mrb[0].mxu0
      %v3168 = vadd.f32 0.0, %v3167
      %v3169 = vpop.f32.mrb[0].mxu0
      %3170 = vmatprep.mubr.bf16.mxu0 0
      %3171 = vmatmul.mubr.bf16.gmra.mrb[0].mxu0 %v3108
      %v3172 = vpop.f32.mrb[0].mxu0
      %v3173 = vadd.f32 0.0, %v3172
      %v3174 = vpop.f32.mrb[0].mxu0
      %v3175 = vpop.f32.mrb[0].mxu0
      %v3176 = vadd.f32 0.0, %v3175
      %v3177 = vpop.f32.mrb[0].mxu0
      %3178 = vmatprep.mubr.bf16.mxu0 0
      %3179 = vmatmul.mubr.bf16.gmra.mrb[0].mxu0 %v3111
      %v3180 = vpop.f32.mrb[0].mxu0
      %v3181 = vadd.f32 0.0, %v3180
      %v3182 = vpop.f32.mrb[0].mxu0
      %v3183 = vpop.f32.mrb[0].mxu0
      %v3184 = vadd.f32 0.0, %v3183
      %v3185 = vpop.f32.mrb[0].mxu0
      %3186 = vmatprep.mubr.bf16.mxu0 0
      %3187 = vmatmul.mubr.bf16.gmra.mrb[0].mxu0 %v3114
      %v3188 = vpop.f32.mrb[0].mxu0
      %v3189 = vadd.f32 0.0, %v3188
      %v3190 = vpop.f32.mrb[0].mxu0
      %v3191 = vpop.f32.mrb[0].mxu0
      %v3192 = vadd.f32 0.0, %v3191
      %v3193 = vpop.f32.mrb[0].mxu0
      %3194 = vmatprep.mubr.bf16.mxu0 0
      %3195 = vmatmul.mubr.bf16.gmra.mrb[0].mxu0 %v3117
      %v3196 = vpop.f32.mrb[0].mxu0
      %v3197 = vadd.f32 0.0, %v3196
      %v3198 = vpop.f32.mrb[0].mxu0
      %v3199 = vpop.f32.mrb[0].mxu0
      %v3200 = vadd.f32 0.0, %v3199
      %v3201 = vpop.f32.mrb[0].mxu0
      %3202 = vdwg.mxu0
      %v3203 = vadd.f32 %v3046, %v3157
      %v3204 = vadd.f32 %v3047, %v3160
      %v3205 = vadd.f32 %v3048, %v3165
      %v3206 = vadd.f32 %v3049, %v3168
      %v3207 = vadd.f32 %v3050, %v3173
      %v3208 = vadd.f32 %v3051, %v3176
      %v3209 = vadd.f32 %v3052, %v3181
      %v3210 = vadd.f32 %v3053, %v3184
      %v3211 = vadd.f32 %v3054, %v3189
      %v3212 = vadd.f32 %v3055, %v3192
      %v3213 = vadd.f32 %v3056, %v3197
      %v3214 = vadd.f32 %v3057, %v3200
      %s3215 = scalar_lea.vmem %s2, 1
      %v3216 = vld [vmem:[%s3215] sm:$0x1]
      %v3218 = vlaneseq
      %v3219 = vshrl.u32 %v3218, 7
      %v3220 = vsub.s32 0, %v3219
      %v3221 = vrot.slane %v3216, %v3220
      %v3223 = vadd.f32 %v3203, %v3221
      %v3224 = vadd.f32 %v3204, %v3221
      %v3225 = vadd.f32 %v3205, %v3221
      %v3226 = vadd.f32 %v3206, %v3221
      %v3227 = vadd.f32 %v3207, %v3221
      %v3228 = vadd.f32 %v3208, %v3221
      %v3229 = vadd.f32 %v3209, %v3221
      %v3230 = vadd.f32 %v3210, %v3221
      %v3231 = vadd.f32 %v3211, %v3221
      %v3232 = vadd.f32 %v3212, %v3221
      %v3233 = vadd.f32 %v3213, %v3221
      %v3234 = vadd.f32 %v3214, %v3221
      %v3235 = vmax.f32 %v3223, 0.0
      %v3236 = vmax.f32 %v3224, 0.0
      %v3237 = vmax.f32 %v3225, 0.0
      %v3238 = vmax.f32 %v3226, 0.0
      %v3239 = vmax.f32 %v3227, 0.0
      %v3240 = vmax.f32 %v3228, 0.0
      %v3241 = vmax.f32 %v3229, 0.0
      %v3242 = vmax.f32 %v3230, 0.0
      %v3243 = vmax.f32 %v3231, 0.0
      %v3244 = vmax.f32 %v3232, 0.0
      %v3245 = vmax.f32 %v3233, 0.0
      %v3246 = vmax.f32 %v3234, 0.0
      %v3247 = vpack.c.bf16 %v3236, %v3235
      %v3248 = vpack.c.bf16 %v3238, %v3237
      %v3249 = vpack.c.bf16 %v3240, %v3239
      %v3250 = vpack.c.bf16 %v3242, %v3241
      %v3251 = vpack.c.bf16 %v3244, %v3243
      %v3252 = vpack.c.bf16 %v3246, %v3245
      %v3253 = vld [vmem:[%s230] sm:$0xf]
      %v3254 = vld [vmem:[%s230 + $0x4] sm:$0xf]
      %v3255 = vld [vmem:[%s230 + $0x8] sm:$0xf]
      %v3256 = vld [vmem:[%s230 + $0xc] sm:$0xf]
      %v3257 = vld [vmem:[%s230 + $0x10] sm:$0xf]
      %v3258 = vld [vmem:[%s230 + $0x14] sm:$0xf]
      %v3259 = vld [vmem:[%s230 + $0x18] sm:$0xf]
      %v3260 = vld [vmem:[%s230 + $0x1c] sm:$0xf]
      %v3261 = vld [vmem:[%s230 + $0x20] sm:$0xf]
      %v3262 = vld [vmem:[%s230 + $0x24] sm:$0xf]
      %v3263 = vld [vmem:[%s230 + $0x28] sm:$0xf]
      %v3264 = vld [vmem:[%s230 + $0x2c] sm:$0x3]
      %s3265 = scalar_lea.vmem %s1, 36
      %v3266 = vld [vmem:[%s3265] sm:$0x3]
      %v3267 = vld [vmem:[%s230] sm:$0xe]
      %v3268 = vld [vmem:[%s230 + $0x2c] sm:$0x7]
      %s3269 = scalar_lea.vmem %s1, 38
      %v3270 = vld [vmem:[%s3269] sm:$0x3]
      %v3283 = vunpack.c.l.b16 %v3267
      %v3284 = vunpack.c.l.b16 %v3254
      %v3285 = vunpack.c.l.b16 %v3255
      %v3286 = vunpack.c.l.b16 %v3256
      %v3287 = vunpack.c.l.b16 %v3257
      %v3288 = vunpack.c.l.b16 %v3258
      %v3289 = vunpack.c.l.b16 %v3259
      %v3290 = vunpack.c.l.b16 %v3260
      %v3291 = vunpack.c.l.b16 %v3261
      %v3292 = vunpack.c.l.b16 %v3262
      %v3293 = vunpack.c.l.b16 %v3263
      %v3294 = vunpack.c.l.b16 %v3268
      %v3295 = vpack.c.b16 %v3284, %v3283
      %v3296 = vpack.c.b16 %v3286, %v3285
      %v3297 = vpack.c.b16 %v3288, %v3287
      %v3298 = vpack.c.b16 %v3290, %v3289
      %v3299 = vpack.c.b16 %v3292, %v3291
      %v3300 = vpack.c.b16 %v3294, %v3293
      %v3301 = vrot.slane %v3295, 1
      %v3302 = vrot.slane %v3296, 1
      %v3303 = vsel %vm1000, %v3301, %v3302
      %v3304 = vrot.slane %v3297, 1
      %v3305 = vsel %vm1000, %v3302, %v3304
      %v3306 = vrot.slane %v3298, 1
      %v3307 = vsel %vm1000, %v3304, %v3306
      %v3308 = vrot.slane %v3299, 1
      %v3309 = vsel %vm1000, %v3306, %v3308
      %v3310 = vrot.slane %v3300, 1
      %v3311 = vsel %vm1000, %v3308, %v3310
      %v3313 = vsel %vm318, %v3303, 0
      %v3316 = vsel %vm318, %v3305, 0
      %v3319 = vsel %vm318, %v3307, 0
      %v3322 = vsel %vm318, %v3309, 0
      %v3325 = vsel %vm318, %v3311, 0
      %v3328 = vsel %vm318, %v3310, 0
      %v3331 = vsel %vm337, %v3270, 0
      %3333 = vmatprep.subr.bf16.mxu0 0
      %3334 = vmatpush1.bf16.msra.mxu0 %v3331
      %3335 = vmatprep.subr.bf16.mxu0 0
      %3336 = vmatpush1.bf16.msra.mxu0 0
      %3337 = vmatprep.subr.bf16.mxu0 0
      %3338 = vmatpush1.bf16.msra.mxu0 0
      %3339 = vmatprep.subr.bf16.mxu0 0
      %3340 = vmatpush1.bf16.msra.mxu0 0
      %3341 = vmatprep.subr.bf16.mxu0 0
      %3342 = vmatpush1.bf16.msra.mxu0 0
      %3343 = vmatprep.subr.bf16.mxu0 0
      %3344 = vmatpush1.bf16.msra.mxu0 0
      %3345 = vmatprep.subr.bf16.mxu0 0
      %3346 = vmatpush1.bf16.msra.mxu0 0
      %3347 = vmatprep.subr.bf16.mxu0 0
      %3348 = vmatpush1.bf16.msra.mxu0 0
      %3349 = vmatprep.subr.bf16.mxu0 0
      %3350 = vmatpush1.bf16.msra.mxu0 0
      %3351 = vmatprep.subr.bf16.mxu0 0
      %3352 = vmatpush1.bf16.msra.mxu0 0
      %3353 = vmatprep.subr.bf16.mxu0 0
      %3354 = vmatpush1.bf16.msra.mxu0 0
      %3355 = vmatprep.subr.bf16.mxu0 0
      %3356 = vmatpush1.bf16.msra.mxu0 0
      %3357 = vmatprep.subr.bf16.mxu0 0
      %3358 = vmatpush1.bf16.msra.mxu0 0
      %3359 = vmatprep.subr.bf16.mxu0 0
      %3360 = vmatpush1.bf16.msra.mxu0 0
      %3361 = vmatprep.subr.bf16.mxu0 0
      %3362 = vmatpush1.bf16.msra.mxu0 0
      %3363 = vmatprep.subr.bf16.mxu0 0
      %3364 = vmatpush1.bf16.msra.mxu0 0
      %3365 = vmatprep.mubr.bf16.mxu0 0
      %3366 = vmatmul.mubr.bf16.gmra.mrb[0].mxu0 %v3313
      %v3367 = vpop.f32.mrb[0].mxu0
      %v3368 = vadd.f32 0.0, %v3367
      %v3369 = vpop.f32.mrb[0].mxu0
      %v3370 = vpop.f32.mrb[0].mxu0
      %v3371 = vadd.f32 0.0, %v3370
      %v3372 = vpop.f32.mrb[0].mxu0
      %3373 = vmatprep.mubr.bf16.mxu0 0
      %3374 = vmatmul.mubr.bf16.gmra.mrb[0].mxu0 %v3316
      %v3375 = vpop.f32.mrb[0].mxu0
      %v3376 = vadd.f32 0.0, %v3375
      %v3377 = vpop.f32.mrb[0].mxu0
      %v3378 = vpop.f32.mrb[0].mxu0
      %v3379 = vadd.f32 0.0, %v3378
      %v3380 = vpop.f32.mrb[0].mxu0
      %3381 = vmatprep.mubr.bf16.mxu0 0
      %3382 = vmatmul.mubr.bf16.gmra.mrb[0].mxu0 %v3319
      %v3383 = vpop.f32.mrb[0].mxu0
      %v3384 = vadd.f32 0.0, %v3383
      %v3385 = vpop.f32.mrb[0].mxu0
      %v3386 = vpop.f32.mrb[0].mxu0
      %v3387 = vadd.f32 0.0, %v3386
      %v3388 = vpop.f32.mrb[0].mxu0
      %3389 = vmatprep.mubr.bf16.mxu0 0
      %3390 = vmatmul.mubr.bf16.gmra.mrb[0].mxu0 %v3322
      %v3391 = vpop.f32.mrb[0].mxu0
      %v3392 = vadd.f32 0.0, %v3391
      %v3393 = vpop.f32.mrb[0].mxu0
      %v3394 = vpop.f32.mrb[0].mxu0
      %v3395 = vadd.f32 0.0, %v3394
      %v3396 = vpop.f32.mrb[0].mxu0
      %3397 = vmatprep.mubr.bf16.mxu0 0
      %3398 = vmatmul.mubr.bf16.gmra.mrb[0].mxu0 %v3325
      %v3399 = vpop.f32.mrb[0].mxu0
      %v3400 = vadd.f32 0.0, %v3399
      %v3401 = vpop.f32.mrb[0].mxu0
      %v3402 = vpop.f32.mrb[0].mxu0
      %v3403 = vadd.f32 0.0, %v3402
      %v3404 = vpop.f32.mrb[0].mxu0
      %3405 = vmatprep.mubr.bf16.mxu0 0
      %3406 = vmatmul.mubr.bf16.gmra.mrb[0].mxu0 %v3328
      %v3407 = vpop.f32.mrb[0].mxu0
      %v3408 = vadd.f32 0.0, %v3407
      %v3409 = vpop.f32.mrb[0].mxu0
      %v3410 = vpop.f32.mrb[0].mxu0
      %v3411 = vadd.f32 0.0, %v3410
      %v3412 = vpop.f32.mrb[0].mxu0
      %3413 = vdwg.mxu0
      %v3416 = vunpack.c.l.b16 %v3253
      %v3417 = vunpack.c.l.b16 %v3264
      %v3418 = vpack.c.b16 %v3284, %v3416
      %v3419 = vpack.c.b16 %v3417, %v3293
      %v3421 = vsel %vm318, %v3418, 0
      %v3424 = vsel %vm318, %v3296, 0
      %v3427 = vsel %vm318, %v3297, 0
      %v3430 = vsel %vm318, %v3298, 0
      %v3433 = vsel %vm318, %v3299, 0
      %v3436 = vsel %vm318, %v3419, 0
      %v3439 = vsel %vm337, %v3266, 0
      %3441 = vmatprep.subr.bf16.mxu0 0
      %3442 = vmatpush1.bf16.msra.mxu0 %v3439
      %3443 = vmatprep.subr.bf16.mxu0 0
      %3444 = vmatpush1.bf16.msra.mxu0 0
      %3445 = vmatprep.subr.bf16.mxu0 0
      %3446 = vmatpush1.bf16.msra.mxu0 0
      %3447 = vmatprep.subr.bf16.mxu0 0
      %3448 = vmatpush1.bf16.msra.mxu0 0
      %3449 = vmatprep.subr.bf16.mxu0 0
      %3450 = vmatpush1.bf16.msra.mxu0 0
      %3451 = vmatprep.subr.bf16.mxu0 0
      %3452 = vmatpush1.bf16.msra.mxu0 0
      %3453 = vmatprep.subr.bf16.mxu0 0
      %3454 = vmatpush1.bf16.msra.mxu0 0
      %3455 = vmatprep.subr.bf16.mxu0 0
      %3456 = vmatpush1.bf16.msra.mxu0 0
      %3457 = vmatprep.subr.bf16.mxu0 0
      %3458 = vmatpush1.bf16.msra.mxu0 0
      %3459 = vmatprep.subr.bf16.mxu0 0
      %3460 = vmatpush1.bf16.msra.mxu0 0
      %3461 = vmatprep.subr.bf16.mxu0 0
      %3462 = vmatpush1.bf16.msra.mxu0 0
      %3463 = vmatprep.subr.bf16.mxu0 0
      %3464 = vmatpush1.bf16.msra.mxu0 0
      %3465 = vmatprep.subr.bf16.mxu0 0
      %3466 = vmatpush1.bf16.msra.mxu0 0
      %3467 = vmatprep.subr.bf16.mxu0 0
      %3468 = vmatpush1.bf16.msra.mxu0 0
      %3469 = vmatprep.subr.bf16.mxu0 0
      %3470 = vmatpush1.bf16.msra.mxu0 0
      %3471 = vmatprep.subr.bf16.mxu0 0
      %3472 = vmatpush1.bf16.msra.mxu0 0
      %3473 = vmatprep.mubr.bf16.mxu0 0
      %3474 = vmatmul.mubr.bf16.gmra.mrb[0].mxu0 %v3421
      %v3475 = vpop.f32.mrb[0].mxu0
      %v3476 = vadd.f32 %v3368, %v3475
      %v3477 = vpop.f32.mrb[0].mxu0
      %v3478 = vpop.f32.mrb[0].mxu0
      %v3479 = vadd.f32 %v3371, %v3478
      %v3480 = vpop.f32.mrb[0].mxu0
      %3481 = vmatprep.mubr.bf16.mxu0 0
      %3482 = vmatmul.mubr.bf16.gmra.mrb[0].mxu0 %v3424
      %v3483 = vpop.f32.mrb[0].mxu0
      %v3484 = vadd.f32 %v3376, %v3483
      %v3485 = vpop.f32.mrb[0].mxu0
      %v3486 = vpop.f32.mrb[0].mxu0
      %v3487 = vadd.f32 %v3379, %v3486
      %v3488 = vpop.f32.mrb[0].mxu0
      %3489 = vmatprep.mubr.bf16.mxu0 0
      %3490 = vmatmul.mubr.bf16.gmra.mrb[0].mxu0 %v3427
      %v3491 = vpop.f32.mrb[0].mxu0
      %v3492 = vadd.f32 %v3384, %v3491
      %v3493 = vpop.f32.mrb[0].mxu0
      %v3494 = vpop.f32.mrb[0].mxu0
      %v3495 = vadd.f32 %v3387, %v3494
      %v3496 = vpop.f32.mrb[0].mxu0
      %3497 = vmatprep.mubr.bf16.mxu0 0
      %3498 = vmatmul.mubr.bf16.gmra.mrb[0].mxu0 %v3430
      %v3499 = vpop.f32.mrb[0].mxu0
      %v3500 = vadd.f32 %v3392, %v3499
      %v3501 = vpop.f32.mrb[0].mxu0
      %v3502 = vpop.f32.mrb[0].mxu0
      %v3503 = vadd.f32 %v3395, %v3502
      %v3504 = vpop.f32.mrb[0].mxu0
      %3505 = vmatprep.mubr.bf16.mxu0 0
      %3506 = vmatmul.mubr.bf16.gmra.mrb[0].mxu0 %v3433
      %v3507 = vpop.f32.mrb[0].mxu0
      %v3508 = vadd.f32 %v3400, %v3507
      %v3509 = vpop.f32.mrb[0].mxu0
      %v3510 = vpop.f32.mrb[0].mxu0
      %v3511 = vadd.f32 %v3403, %v3510
      %v3512 = vpop.f32.mrb[0].mxu0
      %3513 = vmatprep.mubr.bf16.mxu0 0
      %3514 = vmatmul.mubr.bf16.gmra.mrb[0].mxu0 %v3436
      %v3515 = vpop.f32.mrb[0].mxu0
      %v3516 = vadd.f32 %v3408, %v3515
      %v3517 = vpop.f32.mrb[0].mxu0
      %v3518 = vpop.f32.mrb[0].mxu0
      %v3519 = vadd.f32 %v3411, %v3518
      %v3520 = vpop.f32.mrb[0].mxu0
      %3521 = vdwg.mxu0
      %v3522 = vld [vmem:[%s230] sm:$0xc]
      %v3523 = vld [vmem:[%s230 + $0x2c] sm:$0xf]
      %s3524 = scalar_lea.vmem %s1, 40
      %v3525 = vld [vmem:[%s3524] sm:$0x3]
      %v3528 = vunpack.c.l.b16 %v3522
      %v3529 = vunpack.c.l.b16 %v3523
      %v3530 = vpack.c.b16 %v3284, %v3528
      %v3531 = vpack.c.b16 %v3529, %v3293
      %vm3532 = vcmask 1045504
      %v3533 = vrot.slane %v3530, 2
      %v3534 = vrot.slane %v3296, 2
      %v3535 = vsel %vm3532, %v3533, %v3534
      %v3536 = vrot.slane %v3297, 2
      %v3537 = vsel %vm3532, %v3534, %v3536
      %v3538 = vrot.slane %v3298, 2
      %v3539 = vsel %vm3532, %v3536, %v3538
      %v3540 = vrot.slane %v3299, 2
      %v3541 = vsel %vm3532, %v3538, %v3540
      %v3542 = vrot.slane %v3531, 2
      %v3543 = vsel %vm3532, %v3540, %v3542
      %v3545 = vsel %vm318, %v3535, 0
      %v3548 = vsel %vm318, %v3537, 0
      %v3551 = vsel %vm318, %v3539, 0
      %v3554 = vsel %vm318, %v3541, 0
      %v3557 = vsel %vm318, %v3543, 0
      %v3560 = vsel %vm318, %v3542, 0
      %v3563 = vsel %vm337, %v3525, 0
      %3565 = vmatprep.subr.bf16.mxu0 0
      %3566 = vmatpush1.bf16.msra.mxu0 %v3563
      %3567 = vmatprep.subr.bf16.mxu0 0
      %3568 = vmatpush1.bf16.msra.mxu0 0
      %3569 = vmatprep.subr.bf16.mxu0 0
      %3570 = vmatpush1.bf16.msra.mxu0 0
      %3571 = vmatprep.subr.bf16.mxu0 0
      %3572 = vmatpush1.bf16.msra.mxu0 0
      %3573 = vmatprep.subr.bf16.mxu0 0
      %3574 = vmatpush1.bf16.msra.mxu0 0
      %3575 = vmatprep.subr.bf16.mxu0 0
      %3576 = vmatpush1.bf16.msra.mxu0 0
      %3577 = vmatprep.subr.bf16.mxu0 0
      %3578 = vmatpush1.bf16.msra.mxu0 0
      %3579 = vmatprep.subr.bf16.mxu0 0
      %3580 = vmatpush1.bf16.msra.mxu0 0
      %3581 = vmatprep.subr.bf16.mxu0 0
      %3582 = vmatpush1.bf16.msra.mxu0 0
      %3583 = vmatprep.subr.bf16.mxu0 0
      %3584 = vmatpush1.bf16.msra.mxu0 0
      %3585 = vmatprep.subr.bf16.mxu0 0
      %3586 = vmatpush1.bf16.msra.mxu0 0
      %3587 = vmatprep.subr.bf16.mxu0 0
      %3588 = vmatpush1.bf16.msra.mxu0 0
      %3589 = vmatprep.subr.bf16.mxu0 0
      %3590 = vmatpush1.bf16.msra.mxu0 0
      %3591 = vmatprep.subr.bf16.mxu0 0
      %3592 = vmatpush1.bf16.msra.mxu0 0
      %3593 = vmatprep.subr.bf16.mxu0 0
      %3594 = vmatpush1.bf16.msra.mxu0 0
      %3595 = vmatprep.subr.bf16.mxu0 0
      %3596 = vmatpush1.bf16.msra.mxu0 0
      %3597 = vmatprep.mubr.bf16.mxu0 0
      %3598 = vmatmul.mubr.bf16.gmra.mrb[0].mxu0 %v3545
      %v3599 = vpop.f32.mrb[0].mxu0
      %v3600 = vadd.f32 0.0, %v3599
      %v3601 = vpop.f32.mrb[0].mxu0
      %v3602 = vpop.f32.mrb[0].mxu0
      %v3603 = vadd.f32 0.0, %v3602
      %v3604 = vpop.f32.mrb[0].mxu0
      %3605 = vmatprep.mubr.bf16.mxu0 0
      %3606 = vmatmul.mubr.bf16.gmra.mrb[0].mxu0 %v3548
      %v3607 = vpop.f32.mrb[0].mxu0
      %v3608 = vadd.f32 0.0, %v3607
      %v3609 = vpop.f32.mrb[0].mxu0
      %v3610 = vpop.f32.mrb[0].mxu0
      %v3611 = vadd.f32 0.0, %v3610
      %v3612 = vpop.f32.mrb[0].mxu0
      %3613 = vmatprep.mubr.bf16.mxu0 0
      %3614 = vmatmul.mubr.bf16.gmra.mrb[0].mxu0 %v3551
      %v3615 = vpop.f32.mrb[0].mxu0
      %v3616 = vadd.f32 0.0, %v3615
      %v3617 = vpop.f32.mrb[0].mxu0
      %v3618 = vpop.f32.mrb[0].mxu0
      %v3619 = vadd.f32 0.0, %v3618
      %v3620 = vpop.f32.mrb[0].mxu0
      %3621 = vmatprep.mubr.bf16.mxu0 0
      %3622 = vmatmul.mubr.bf16.gmra.mrb[0].mxu0 %v3554
      %v3623 = vpop.f32.mrb[0].mxu0
      %v3624 = vadd.f32 0.0, %v3623
      %v3625 = vpop.f32.mrb[0].mxu0
      %v3626 = vpop.f32.mrb[0].mxu0
      %v3627 = vadd.f32 0.0, %v3626
      %v3628 = vpop.f32.mrb[0].mxu0
      %3629 = vmatprep.mubr.bf16.mxu0 0
      %3630 = vmatmul.mubr.bf16.gmra.mrb[0].mxu0 %v3557
      %v3631 = vpop.f32.mrb[0].mxu0
      %v3632 = vadd.f32 0.0, %v3631
      %v3633 = vpop.f32.mrb[0].mxu0
      %v3634 = vpop.f32.mrb[0].mxu0
      %v3635 = vadd.f32 0.0, %v3634
      %v3636 = vpop.f32.mrb[0].mxu0
      %3637 = vmatprep.mubr.bf16.mxu0 0
      %3638 = vmatmul.mubr.bf16.gmra.mrb[0].mxu0 %v3560
      %v3639 = vpop.f32.mrb[0].mxu0
      %v3640 = vadd.f32 0.0, %v3639
      %v3641 = vpop.f32.mrb[0].mxu0
      %v3642 = vpop.f32.mrb[0].mxu0
      %v3643 = vadd.f32 0.0, %v3642
      %v3644 = vpop.f32.mrb[0].mxu0
      %3645 = vdwg.mxu0
      %v3646 = vadd.f32 %v3476, %v3600
      %v3647 = vadd.f32 %v3479, %v3603
      %v3648 = vadd.f32 %v3484, %v3608
      %v3649 = vadd.f32 %v3487, %v3611
      %v3650 = vadd.f32 %v3492, %v3616
      %v3651 = vadd.f32 %v3495, %v3619
      %v3652 = vadd.f32 %v3500, %v3624
      %v3653 = vadd.f32 %v3503, %v3627
      %v3654 = vadd.f32 %v3508, %v3632
      %v3655 = vadd.f32 %v3511, %v3635
      %v3656 = vadd.f32 %v3516, %v3640
      %v3657 = vadd.f32 %v3519, %v3643
      %v3658 = vld [vmem:[%s230 + $0x38] sm:$0x3]
      %s3659 = scalar_lea.vmem %s1, 42
      %v3660 = vld [vmem:[%s3659] sm:$0x3]
      %v3662 = vunpack.c.l.b16 %v3658
      %v3663 = vpack.c.b16 %v3662, %v992
      %v3664 = vsel %vm318, %v2291, 0
      %v3666 = vsel %vm318, %v995, 0
      %v3668 = vsel %vm318, %v996, 0
      %v3670 = vsel %vm318, %v997, 0
      %v3672 = vsel %vm318, %v998, 0
      %v3675 = vsel %vm318, %v3663, 0
      %v3678 = vsel %vm337, %v3660, 0
      %3680 = vmatprep.subr.bf16.mxu0 0
      %3681 = vmatpush1.bf16.msra.mxu0 %v3678
      %3682 = vmatprep.subr.bf16.mxu0 0
      %3683 = vmatpush1.bf16.msra.mxu0 0
      %3684 = vmatprep.subr.bf16.mxu0 0
      %3685 = vmatpush1.bf16.msra.mxu0 0
      %3686 = vmatprep.subr.bf16.mxu0 0
      %3687 = vmatpush1.bf16.msra.mxu0 0
      %3688 = vmatprep.subr.bf16.mxu0 0
      %3689 = vmatpush1.bf16.msra.mxu0 0
      %3690 = vmatprep.subr.bf16.mxu0 0
      %3691 = vmatpush1.bf16.msra.mxu0 0
      %3692 = vmatprep.subr.bf16.mxu0 0
      %3693 = vmatpush1.bf16.msra.mxu0 0
      %3694 = vmatprep.subr.bf16.mxu0 0
      %3695 = vmatpush1.bf16.msra.mxu0 0
      %3696 = vmatprep.subr.bf16.mxu0 0
      %3697 = vmatpush1.bf16.msra.mxu0 0
      %3698 = vmatprep.subr.bf16.mxu0 0
      %3699 = vmatpush1.bf16.msra.mxu0 0
      %3700 = vmatprep.subr.bf16.mxu0 0
      %3701 = vmatpush1.bf16.msra.mxu0 0
      %3702 = vmatprep.subr.bf16.mxu0 0
      %3703 = vmatpush1.bf16.msra.mxu0 0
      %3704 = vmatprep.subr.bf16.mxu0 0
      %3705 = vmatpush1.bf16.msra.mxu0 0
      %3706 = vmatprep.subr.bf16.mxu0 0
      %3707 = vmatpush1.bf16.msra.mxu0 0
      %3708 = vmatprep.subr.bf16.mxu0 0
      %3709 = vmatpush1.bf16.msra.mxu0 0
      %3710 = vmatprep.subr.bf16.mxu0 0
      %3711 = vmatpush1.bf16.msra.mxu0 0
      %3712 = vmatprep.mubr.bf16.mxu0 0
      %3713 = vmatmul.mubr.bf16.gmra.mrb[0].mxu0 %v3664
      %v3714 = vpop.f32.mrb[0].mxu0
      %v3715 = vadd.f32 0.0, %v3714
      %v3716 = vpop.f32.mrb[0].mxu0
      %v3717 = vpop.f32.mrb[0].mxu0
      %v3718 = vadd.f32 0.0, %v3717
      %v3719 = vpop.f32.mrb[0].mxu0
      %3720 = vmatprep.mubr.bf16.mxu0 0
      %3721 = vmatmul.mubr.bf16.gmra.mrb[0].mxu0 %v3666
      %v3722 = vpop.f32.mrb[0].mxu0
      %v3723 = vadd.f32 0.0, %v3722
      %v3724 = vpop.f32.mrb[0].mxu0
      %v3725 = vpop.f32.mrb[0].mxu0
      %v3726 = vadd.f32 0.0, %v3725
      %v3727 = vpop.f32.mrb[0].mxu0
      %3728 = vmatprep.mubr.bf16.mxu0 0
      %3729 = vmatmul.mubr.bf16.gmra.mrb[0].mxu0 %v3668
      %v3730 = vpop.f32.mrb[0].mxu0
      %v3731 = vadd.f32 0.0, %v3730
      %v3732 = vpop.f32.mrb[0].mxu0
      %v3733 = vpop.f32.mrb[0].mxu0
      %v3734 = vadd.f32 0.0, %v3733
      %v3735 = vpop.f32.mrb[0].mxu0
      %3736 = vmatprep.mubr.bf16.mxu0 0
      %3737 = vmatmul.mubr.bf16.gmra.mrb[0].mxu0 %v3670
      %v3738 = vpop.f32.mrb[0].mxu0
      %v3739 = vadd.f32 0.0, %v3738
      %v3740 = vpop.f32.mrb[0].mxu0
      %v3741 = vpop.f32.mrb[0].mxu0
      %v3742 = vadd.f32 0.0, %v3741
      %v3743 = vpop.f32.mrb[0].mxu0
      %3744 = vmatprep.mubr.bf16.mxu0 0
      %3745 = vmatmul.mubr.bf16.gmra.mrb[0].mxu0 %v3672
      %v3746 = vpop.f32.mrb[0].mxu0
      %v3747 = vadd.f32 0.0, %v3746
      %v3748 = vpop.f32.mrb[0].mxu0
      %v3749 = vpop.f32.mrb[0].mxu0
      %v3750 = vadd.f32 0.0, %v3749
      %v3751 = vpop.f32.mrb[0].mxu0
      %3752 = vmatprep.mubr.bf16.mxu0 0
      %3753 = vmatmul.mubr.bf16.gmra.mrb[0].mxu0 %v3675
      %v3754 = vpop.f32.mrb[0].mxu0
      %v3755 = vadd.f32 0.0, %v3754
      %v3756 = vpop.f32.mrb[0].mxu0
      %v3757 = vpop.f32.mrb[0].mxu0
      %v3758 = vadd.f32 0.0, %v3757
      %v3759 = vpop.f32.mrb[0].mxu0
      %3760 = vdwg.mxu0
      %v3761 = vadd.f32 %v3646, %v3715
      %v3762 = vadd.f32 %v3647, %v3718
      %v3763 = vadd.f32 %v3648, %v3723
      %v3764 = vadd.f32 %v3649, %v3726
      %v3765 = vadd.f32 %v3650, %v3731
      %v3766 = vadd.f32 %v3651, %v3734
      %v3767 = vadd.f32 %v3652, %v3739
      %v3768 = vadd.f32 %v3653, %v3742
      %v3769 = vadd.f32 %v3654, %v3747
      %v3770 = vadd.f32 %v3655, %v3750
      %v3771 = vadd.f32 %v3656, %v3755
      %v3772 = vadd.f32 %v3657, %v3758
      %s3773 = scalar_lea.vmem %s1, 44
      %v3774 = vld [vmem:[%s3773] sm:$0x3]
      %v3776 = vsel %vm337, %v3774, 0
      %3778 = vmatprep.subr.bf16.mxu0 0
      %3779 = vmatpush1.bf16.msra.mxu0 %v3776
      %3780 = vmatprep.subr.bf16.mxu0 0
      %3781 = vmatpush1.bf16.msra.mxu0 0
      %3782 = vmatprep.subr.bf16.mxu0 0
      %3783 = vmatpush1.bf16.msra.mxu0 0
      %3784 = vmatprep.subr.bf16.mxu0 0
      %3785 = vmatpush1.bf16.msra.mxu0 0
      %3786 = vmatprep.subr.bf16.mxu0 0
      %3787 = vmatpush1.bf16.msra.mxu0 0
      %3788 = vmatprep.subr.bf16.mxu0 0
      %3789 = vmatpush1.bf16.msra.mxu0 0
      %3790 = vmatprep.subr.bf16.mxu0 0
      %3791 = vmatpush1.bf16.msra.mxu0 0
      %3792 = vmatprep.subr.bf16.mxu0 0
      %3793 = vmatpush1.bf16.msra.mxu0 0
      %3794 = vmatprep.subr.bf16.mxu0 0
      %3795 = vmatpush1.bf16.msra.mxu0 0
      %3796 = vmatprep.subr.bf16.mxu0 0
      %3797 = vmatpush1.bf16.msra.mxu0 0
      %3798 = vmatprep.subr.bf16.mxu0 0
      %3799 = vmatpush1.bf16.msra.mxu0 0
      %3800 = vmatprep.subr.bf16.mxu0 0
      %3801 = vmatpush1.bf16.msra.mxu0 0
      %3802 = vmatprep.subr.bf16.mxu0 0
      %3803 = vmatpush1.bf16.msra.mxu0 0
      %3804 = vmatprep.subr.bf16.mxu0 0
      %3805 = vmatpush1.bf16.msra.mxu0 0
      %3806 = vmatprep.subr.bf16.mxu0 0
      %3807 = vmatpush1.bf16.msra.mxu0 0
      %3808 = vmatprep.subr.bf16.mxu0 0
      %3809 = vmatpush1.bf16.msra.mxu0 0
      %3810 = vmatprep.mubr.bf16.mxu0 0
      %3811 = vmatmul.mubr.bf16.gmra.mrb[0].mxu0 %v1013
      %v3812 = vpop.f32.mrb[0].mxu0
      %v3813 = vadd.f32 0.0, %v3812
      %v3814 = vpop.f32.mrb[0].mxu0
      %v3815 = vpop.f32.mrb[0].mxu0
      %v3816 = vadd.f32 0.0, %v3815
      %v3817 = vpop.f32.mrb[0].mxu0
      %3818 = vmatprep.mubr.bf16.mxu0 0
      %3819 = vmatmul.mubr.bf16.gmra.mrb[0].mxu0 %v1016
      %v3820 = vpop.f32.mrb[0].mxu0
      %v3821 = vadd.f32 0.0, %v3820
      %v3822 = vpop.f32.mrb[0].mxu0
      %v3823 = vpop.f32.mrb[0].mxu0
      %v3824 = vadd.f32 0.0, %v3823
      %v3825 = vpop.f32.mrb[0].mxu0
      %3826 = vmatprep.mubr.bf16.mxu0 0
      %3827 = vmatmul.mubr.bf16.gmra.mrb[0].mxu0 %v1019
      %v3828 = vpop.f32.mrb[0].mxu0
      %v3829 = vadd.f32 0.0, %v3828
      %v3830 = vpop.f32.mrb[0].mxu0
      %v3831 = vpop.f32.mrb[0].mxu0
      %v3832 = vadd.f32 0.0, %v3831
      %v3833 = vpop.f32.mrb[0].mxu0
      %3834 = vmatprep.mubr.bf16.mxu0 0
      %3835 = vmatmul.mubr.bf16.gmra.mrb[0].mxu0 %v1022
      %v3836 = vpop.f32.mrb[0].mxu0
      %v3837 = vadd.f32 0.0, %v3836
      %v3838 = vpop.f32.mrb[0].mxu0
      %v3839 = vpop.f32.mrb[0].mxu0
      %v3840 = vadd.f32 0.0, %v3839
      %v3841 = vpop.f32.mrb[0].mxu0
      %3842 = vmatprep.mubr.bf16.mxu0 0
      %3843 = vmatmul.mubr.bf16.gmra.mrb[0].mxu0 %v1025
      %v3844 = vpop.f32.mrb[0].mxu0
      %v3845 = vadd.f32 0.0, %v3844
      %v3846 = vpop.f32.mrb[0].mxu0
      %v3847 = vpop.f32.mrb[0].mxu0
      %v3848 = vadd.f32 0.0, %v3847
      %v3849 = vpop.f32.mrb[0].mxu0
      %3850 = vmatprep.mubr.bf16.mxu0 0
      %3851 = vmatmul.mubr.bf16.gmra.mrb[0].mxu0 %v1028
      %v3852 = vpop.f32.mrb[0].mxu0
      %v3853 = vadd.f32 0.0, %v3852
      %v3854 = vpop.f32.mrb[0].mxu0
      %v3855 = vpop.f32.mrb[0].mxu0
      %v3856 = vadd.f32 0.0, %v3855
      %v3857 = vpop.f32.mrb[0].mxu0
      %3858 = vdwg.mxu0
      %v3859 = vadd.f32 %v3761, %v3813
      %v3860 = vadd.f32 %v3762, %v3816
      %v3861 = vadd.f32 %v3763, %v3821
      %v3862 = vadd.f32 %v3764, %v3824
      %v3863 = vadd.f32 %v3765, %v3829
      %v3864 = vadd.f32 %v3766, %v3832
      %v3865 = vadd.f32 %v3767, %v3837
      %v3866 = vadd.f32 %v3768, %v3840
      %v3867 = vadd.f32 %v3769, %v3845
      %v3868 = vadd.f32 %v3770, %v3848
      %v3869 = vadd.f32 %v3771, %v3853
      %v3870 = vadd.f32 %v3772, %v3856
      %v3871 = vld [vmem:[%s230 + $0xc] sm:$0xc]
      %s3872 = scalar_lea.vmem %s1, 46
      %v3873 = vld [vmem:[%s3872] sm:$0x3]
      %v3875 = vunpack.c.l.b16 %v3871
      %v3876 = vpack.c.b16 %v983, %v3875
      %v3877 = vrot.slane %v3876, 2
      %v3878 = vrot.slane %v995, 2
      %v3879 = vsel %vm3532, %v3877, %v3878
      %v3880 = vrot.slane %v996, 2
      %v3881 = vsel %vm3532, %v3878, %v3880
      %v3882 = vrot.slane %v997, 2
      %v3883 = vsel %vm3532, %v3880, %v3882
      %v3884 = vrot.slane %v998, 2
      %v3885 = vsel %vm3532, %v3882, %v3884
      %v3886 = vrot.slane %v2556, 2
      %v3887 = vsel %vm3532, %v3884, %v3886
      %v3889 = vsel %vm318, %v3879, 0
      %v3892 = vsel %vm318, %v3881, 0
      %v3895 = vsel %vm318, %v3883, 0
      %v3898 = vsel %vm318, %v3885, 0
      %v3901 = vsel %vm318, %v3887, 0
      %v3904 = vsel %vm318, %v3886, 0
      %v3907 = vsel %vm337, %v3873, 0
      %3909 = vmatprep.subr.bf16.mxu0 0
      %3910 = vmatpush1.bf16.msra.mxu0 %v3907
      %3911 = vmatprep.subr.bf16.mxu0 0
      %3912 = vmatpush1.bf16.msra.mxu0 0
      %3913 = vmatprep.subr.bf16.mxu0 0
      %3914 = vmatpush1.bf16.msra.mxu0 0
      %3915 = vmatprep.subr.bf16.mxu0 0
      %3916 = vmatpush1.bf16.msra.mxu0 0
      %3917 = vmatprep.subr.bf16.mxu0 0
      %3918 = vmatpush1.bf16.msra.mxu0 0
      %3919 = vmatprep.subr.bf16.mxu0 0
      %3920 = vmatpush1.bf16.msra.mxu0 0
      %3921 = vmatprep.subr.bf16.mxu0 0
      %3922 = vmatpush1.bf16.msra.mxu0 0
      %3923 = vmatprep.subr.bf16.mxu0 0
      %3924 = vmatpush1.bf16.msra.mxu0 0
      %3925 = vmatprep.subr.bf16.mxu0 0
      %3926 = vmatpush1.bf16.msra.mxu0 0
      %3927 = vmatprep.subr.bf16.mxu0 0
      %3928 = vmatpush1.bf16.msra.mxu0 0
      %3929 = vmatprep.subr.bf16.mxu0 0
      %3930 = vmatpush1.bf16.msra.mxu0 0
      %3931 = vmatprep.subr.bf16.mxu0 0
      %3932 = vmatpush1.bf16.msra.mxu0 0
      %3933 = vmatprep.subr.bf16.mxu0 0
      %3934 = vmatpush1.bf16.msra.mxu0 0
      %3935 = vmatprep.subr.bf16.mxu0 0
      %3936 = vmatpush1.bf16.msra.mxu0 0
      %3937 = vmatprep.subr.bf16.mxu0 0
      %3938 = vmatpush1.bf16.msra.mxu0 0
      %3939 = vmatprep.subr.bf16.mxu0 0
      %3940 = vmatpush1.bf16.msra.mxu0 0
      %3941 = vmatprep.mubr.bf16.mxu0 0
      %3942 = vmatmul.mubr.bf16.gmra.mrb[0].mxu0 %v3889
      %v3943 = vpop.f32.mrb[0].mxu0
      %v3944 = vadd.f32 0.0, %v3943
      %v3945 = vpop.f32.mrb[0].mxu0
      %v3946 = vpop.f32.mrb[0].mxu0
      %v3947 = vadd.f32 0.0, %v3946
      %v3948 = vpop.f32.mrb[0].mxu0
      %3949 = vmatprep.mubr.bf16.mxu0 0
      %3950 = vmatmul.mubr.bf16.gmra.mrb[0].mxu0 %v3892
      %v3951 = vpop.f32.mrb[0].mxu0
      %v3952 = vadd.f32 0.0, %v3951
      %v3953 = vpop.f32.mrb[0].mxu0
      %v3954 = vpop.f32.mrb[0].mxu0
      %v3955 = vadd.f32 0.0, %v3954
      %v3956 = vpop.f32.mrb[0].mxu0
      %3957 = vmatprep.mubr.bf16.mxu0 0
      %3958 = vmatmul.mubr.bf16.gmra.mrb[0].mxu0 %v3895
      %v3959 = vpop.f32.mrb[0].mxu0
      %v3960 = vadd.f32 0.0, %v3959
      %v3961 = vpop.f32.mrb[0].mxu0
      %v3962 = vpop.f32.mrb[0].mxu0
      %v3963 = vadd.f32 0.0, %v3962
      %v3964 = vpop.f32.mrb[0].mxu0
      %3965 = vmatprep.mubr.bf16.mxu0 0
      %3966 = vmatmul.mubr.bf16.gmra.mrb[0].mxu0 %v3898
      %v3967 = vpop.f32.mrb[0].mxu0
      %v3968 = vadd.f32 0.0, %v3967
      %v3969 = vpop.f32.mrb[0].mxu0
      %v3970 = vpop.f32.mrb[0].mxu0
      %v3971 = vadd.f32 0.0, %v3970
      %v3972 = vpop.f32.mrb[0].mxu0
      %3973 = vmatprep.mubr.bf16.mxu0 0
      %3974 = vmatmul.mubr.bf16.gmra.mrb[0].mxu0 %v3901
      %v3975 = vpop.f32.mrb[0].mxu0
      %v3976 = vadd.f32 0.0, %v3975
      %v3977 = vpop.f32.mrb[0].mxu0
      %v3978 = vpop.f32.mrb[0].mxu0
      %v3979 = vadd.f32 0.0, %v3978
      %v3980 = vpop.f32.mrb[0].mxu0
      %3981 = vmatprep.mubr.bf16.mxu0 0
      %3982 = vmatmul.mubr.bf16.gmra.mrb[0].mxu0 %v3904
      %v3983 = vpop.f32.mrb[0].mxu0
      %v3984 = vadd.f32 0.0, %v3983
      %v3985 = vpop.f32.mrb[0].mxu0
      %v3986 = vpop.f32.mrb[0].mxu0
      %v3987 = vadd.f32 0.0, %v3986
      %v3988 = vpop.f32.mrb[0].mxu0
      %3989 = vdwg.mxu0
      %v3990 = vadd.f32 %v3859, %v3944
      %v3991 = vadd.f32 %v3860, %v3947
      %v3992 = vadd.f32 %v3861, %v3952
      %v3993 = vadd.f32 %v3862, %v3955
      %v3994 = vadd.f32 %v3863, %v3960
      %v3995 = vadd.f32 %v3864, %v3963
      %v3996 = vadd.f32 %v3865, %v3968
      %v3997 = vadd.f32 %v3866, %v3971
      %v3998 = vadd.f32 %v3867, %v3976
      %v3999 = vadd.f32 %v3868, %v3979
      %v4000 = vadd.f32 %v3869, %v3984
      %v4001 = vadd.f32 %v3870, %v3987
      %v4002 = vld [vmem:[%s230 + $0x18] sm:$0xf]
      %v4003 = vld [vmem:[%s230 + $0x1c] sm:$0xf]
      %v4004 = vld [vmem:[%s230 + $0x20] sm:$0xf]
      %v4005 = vld [vmem:[%s230 + $0x24] sm:$0xf]
      %v4006 = vld [vmem:[%s230 + $0x28] sm:$0xf]
      %v4007 = vld [vmem:[%s230 + $0x2c] sm:$0xf]
      %v4008 = vld [vmem:[%s230 + $0x30] sm:$0xf]
      %v4009 = vld [vmem:[%s230 + $0x34] sm:$0xf]
      %v4010 = vld [vmem:[%s230 + $0x38] sm:$0xf]
      %v4011 = vld [vmem:[%s230 + $0x3c] sm:$0xf]
      %v4012 = vld [vmem:[%s230 + $0x40] sm:$0xf]
      %v4013 = vld [vmem:[%s230 + $0x44] sm:$0x3]
      %s4014 = scalar_lea.vmem %s1, 48
      %v4015 = vld [vmem:[%s4014] sm:$0x3]
      %v4028 = vunpack.c.l.b16 %v4002
      %v4029 = vunpack.c.l.b16 %v4003
      %v4030 = vunpack.c.l.b16 %v4004
      %v4031 = vunpack.c.l.b16 %v4005
      %v4032 = vunpack.c.l.b16 %v4006
      %v4033 = vunpack.c.l.b16 %v4007
      %v4034 = vunpack.c.l.b16 %v4008
      %v4035 = vunpack.c.l.b16 %v4009
      %v4036 = vunpack.c.l.b16 %v4010
      %v4037 = vunpack.c.l.b16 %v4011
      %v4038 = vunpack.c.l.b16 %v4012
      %v4039 = vunpack.c.l.b16 %v4013
      %v4040 = vpack.c.b16 %v4029, %v4028
      %v4041 = vpack.c.b16 %v4031, %v4030
      %v4042 = vpack.c.b16 %v4033, %v4032
      %v4043 = vpack.c.b16 %v4035, %v4034
      %v4044 = vpack.c.b16 %v4037, %v4036
      %v4045 = vpack.c.b16 %v4039, %v4038
      %v4047 = vsel %vm318, %v4040, 0
      %v4050 = vsel %vm318, %v4041, 0
      %v4053 = vsel %vm318, %v4042, 0
      %v4056 = vsel %vm318, %v4043, 0
      %v4059 = vsel %vm318, %v4044, 0
      %v4062 = vsel %vm318, %v4045, 0
      %v4065 = vsel %vm337, %v4015, 0
      %4067 = vmatprep.subr.bf16.mxu0 0
      %4068 = vmatpush1.bf16.msra.mxu0 %v4065
      %4069 = vmatprep.subr.bf16.mxu0 0
      %4070 = vmatpush1.bf16.msra.mxu0 0
      %4071 = vmatprep.subr.bf16.mxu0 0
      %4072 = vmatpush1.bf16.msra.mxu0 0
      %4073 = vmatprep.subr.bf16.mxu0 0
      %4074 = vmatpush1.bf16.msra.mxu0 0
      %4075 = vmatprep.subr.bf16.mxu0 0
      %4076 = vmatpush1.bf16.msra.mxu0 0
      %4077 = vmatprep.subr.bf16.mxu0 0
      %4078 = vmatpush1.bf16.msra.mxu0 0
      %4079 = vmatprep.subr.bf16.mxu0 0
      %4080 = vmatpush1.bf16.msra.mxu0 0
      %4081 = vmatprep.subr.bf16.mxu0 0
      %4082 = vmatpush1.bf16.msra.mxu0 0
      %4083 = vmatprep.subr.bf16.mxu0 0
      %4084 = vmatpush1.bf16.msra.mxu0 0
      %4085 = vmatprep.subr.bf16.mxu0 0
      %4086 = vmatpush1.bf16.msra.mxu0 0
      %4087 = vmatprep.subr.bf16.mxu0 0
      %4088 = vmatpush1.bf16.msra.mxu0 0
      %4089 = vmatprep.subr.bf16.mxu0 0
      %4090 = vmatpush1.bf16.msra.mxu0 0
      %4091 = vmatprep.subr.bf16.mxu0 0
      %4092 = vmatpush1.bf16.msra.mxu0 0
      %4093 = vmatprep.subr.bf16.mxu0 0
      %4094 = vmatpush1.bf16.msra.mxu0 0
      %4095 = vmatprep.subr.bf16.mxu0 0
      %4096 = vmatpush1.bf16.msra.mxu0 0
      %4097 = vmatprep.subr.bf16.mxu0 0
      %4098 = vmatpush1.bf16.msra.mxu0 0
      %4099 = vmatprep.mubr.bf16.mxu0 0
      %4100 = vmatmul.mubr.bf16.gmra.mrb[0].mxu0 %v4047
      %v4101 = vpop.f32.mrb[0].mxu0
      %v4102 = vadd.f32 0.0, %v4101
      %v4103 = vpop.f32.mrb[0].mxu0
      %v4104 = vpop.f32.mrb[0].mxu0
      %v4105 = vadd.f32 0.0, %v4104
      %v4106 = vpop.f32.mrb[0].mxu0
      %4107 = vmatprep.mubr.bf16.mxu0 0
      %4108 = vmatmul.mubr.bf16.gmra.mrb[0].mxu0 %v4050
      %v4109 = vpop.f32.mrb[0].mxu0
      %v4110 = vadd.f32 0.0, %v4109
      %v4111 = vpop.f32.mrb[0].mxu0
      %v4112 = vpop.f32.mrb[0].mxu0
      %v4113 = vadd.f32 0.0, %v4112
      %v4114 = vpop.f32.mrb[0].mxu0
      %4115 = vmatprep.mubr.bf16.mxu0 0
      %4116 = vmatmul.mubr.bf16.gmra.mrb[0].mxu0 %v4053
      %v4117 = vpop.f32.mrb[0].mxu0
      %v4118 = vadd.f32 0.0, %v4117
      %v4119 = vpop.f32.mrb[0].mxu0
      %v4120 = vpop.f32.mrb[0].mxu0
      %v4121 = vadd.f32 0.0, %v4120
      %v4122 = vpop.f32.mrb[0].mxu0
      %4123 = vmatprep.mubr.bf16.mxu0 0
      %4124 = vmatmul.mubr.bf16.gmra.mrb[0].mxu0 %v4056
      %v4125 = vpop.f32.mrb[0].mxu0
      %v4126 = vadd.f32 0.0, %v4125
      %v4127 = vpop.f32.mrb[0].mxu0
      %v4128 = vpop.f32.mrb[0].mxu0
      %v4129 = vadd.f32 0.0, %v4128
      %v4130 = vpop.f32.mrb[0].mxu0
      %4131 = vmatprep.mubr.bf16.mxu0 0
      %4132 = vmatmul.mubr.bf16.gmra.mrb[0].mxu0 %v4059
      %v4133 = vpop.f32.mrb[0].mxu0
      %v4134 = vadd.f32 0.0, %v4133
      %v4135 = vpop.f32.mrb[0].mxu0
      %v4136 = vpop.f32.mrb[0].mxu0
      %v4137 = vadd.f32 0.0, %v4136
      %v4138 = vpop.f32.mrb[0].mxu0
      %4139 = vmatprep.mubr.bf16.mxu0 0
      %4140 = vmatmul.mubr.bf16.gmra.mrb[0].mxu0 %v4062
      %v4141 = vpop.f32.mrb[0].mxu0
      %v4142 = vadd.f32 0.0, %v4141
      %v4143 = vpop.f32.mrb[0].mxu0
      %v4144 = vpop.f32.mrb[0].mxu0
      %v4145 = vadd.f32 0.0, %v4144
      %v4146 = vpop.f32.mrb[0].mxu0
      %4147 = vdwg.mxu0
      %v4148 = vadd.f32 %v3990, %v4102
      %v4149 = vadd.f32 %v3991, %v4105
      %v4150 = vadd.f32 %v3992, %v4110
      %v4151 = vadd.f32 %v3993, %v4113
      %v4152 = vadd.f32 %v3994, %v4118
      %v4153 = vadd.f32 %v3995, %v4121
      %v4154 = vadd.f32 %v3996, %v4126
      %v4155 = vadd.f32 %v3997, %v4129
      %v4156 = vadd.f32 %v3998, %v4134
      %v4157 = vadd.f32 %v3999, %v4137
      %v4158 = vadd.f32 %v4000, %v4142
      %v4159 = vadd.f32 %v4001, %v4145
      %v4160 = vld [vmem:[%s230 + $0x18] sm:$0xe]
      %v4161 = vld [vmem:[%s230 + $0x44] sm:$0x7]
      %s4162 = scalar_lea.vmem %s1, 50
      %v4163 = vld [vmem:[%s4162] sm:$0x3]
      %v4166 = vunpack.c.l.b16 %v4160
      %v4167 = vunpack.c.l.b16 %v4161
      %v4168 = vpack.c.b16 %v4029, %v4166
      %v4169 = vpack.c.b16 %v4167, %v4038
      %v4170 = vrot.slane %v4168, 1
      %v4171 = vrot.slane %v4041, 1
      %v4172 = vsel %vm1000, %v4170, %v4171
      %v4173 = vrot.slane %v4042, 1
      %v4174 = vsel %vm1000, %v4171, %v4173
      %v4175 = vrot.slane %v4043, 1
      %v4176 = vsel %vm1000, %v4173, %v4175
      %v4177 = vrot.slane %v4044, 1
      %v4178 = vsel %vm1000, %v4175, %v4177
      %v4179 = vrot.slane %v4169, 1
      %v4180 = vsel %vm1000, %v4177, %v4179
      %v4182 = vsel %vm318, %v4172, 0
      %v4185 = vsel %vm318, %v4174, 0
      %v4188 = vsel %vm318, %v4176, 0
      %v4191 = vsel %vm318, %v4178, 0
      %v4194 = vsel %vm318, %v4180, 0
      %v4197 = vsel %vm318, %v4179, 0
      %v4200 = vsel %vm337, %v4163, 0
      %4202 = vmatprep.subr.bf16.mxu0 0
      %4203 = vmatpush1.bf16.msra.mxu0 %v4200
      %4204 = vmatprep.subr.bf16.mxu0 0
      %4205 = vmatpush1.bf16.msra.mxu0 0
      %4206 = vmatprep.subr.bf16.mxu0 0
      %4207 = vmatpush1.bf16.msra.mxu0 0
      %4208 = vmatprep.subr.bf16.mxu0 0
      %4209 = vmatpush1.bf16.msra.mxu0 0
      %4210 = vmatprep.subr.bf16.mxu0 0
      %4211 = vmatpush1.bf16.msra.mxu0 0
      %4212 = vmatprep.subr.bf16.mxu0 0
      %4213 = vmatpush1.bf16.msra.mxu0 0
      %4214 = vmatprep.subr.bf16.mxu0 0
      %4215 = vmatpush1.bf16.msra.mxu0 0
      %4216 = vmatprep.subr.bf16.mxu0 0
      %4217 = vmatpush1.bf16.msra.mxu0 0
      %4218 = vmatprep.subr.bf16.mxu0 0
      %4219 = vmatpush1.bf16.msra.mxu0 0
      %4220 = vmatprep.subr.bf16.mxu0 0
      %4221 = vmatpush1.bf16.msra.mxu0 0
      %4222 = vmatprep.subr.bf16.mxu0 0
      %4223 = vmatpush1.bf16.msra.mxu0 0
      %4224 = vmatprep.subr.bf16.mxu0 0
      %4225 = vmatpush1.bf16.msra.mxu0 0
      %4226 = vmatprep.subr.bf16.mxu0 0
      %4227 = vmatpush1.bf16.msra.mxu0 0
      %4228 = vmatprep.subr.bf16.mxu0 0
      %4229 = vmatpush1.bf16.msra.mxu0 0
      %4230 = vmatprep.subr.bf16.mxu0 0
      %4231 = vmatpush1.bf16.msra.mxu0 0
      %4232 = vmatprep.subr.bf16.mxu0 0
      %4233 = vmatpush1.bf16.msra.mxu0 0
      %4234 = vmatprep.mubr.bf16.mxu0 0
      %4235 = vmatmul.mubr.bf16.gmra.mrb[0].mxu0 %v4182
      %v4236 = vpop.f32.mrb[0].mxu0
      %v4237 = vadd.f32 0.0, %v4236
      %v4238 = vpop.f32.mrb[0].mxu0
      %v4239 = vpop.f32.mrb[0].mxu0
      %v4240 = vadd.f32 0.0, %v4239
      %v4241 = vpop.f32.mrb[0].mxu0
      %4242 = vmatprep.mubr.bf16.mxu0 0
      %4243 = vmatmul.mubr.bf16.gmra.mrb[0].mxu0 %v4185
      %v4244 = vpop.f32.mrb[0].mxu0
      %v4245 = vadd.f32 0.0, %v4244
      %v4246 = vpop.f32.mrb[0].mxu0
      %v4247 = vpop.f32.mrb[0].mxu0
      %v4248 = vadd.f32 0.0, %v4247
      %v4249 = vpop.f32.mrb[0].mxu0
      %4250 = vmatprep.mubr.bf16.mxu0 0
      %4251 = vmatmul.mubr.bf16.gmra.mrb[0].mxu0 %v4188
      %v4252 = vpop.f32.mrb[0].mxu0
      %v4253 = vadd.f32 0.0, %v4252
      %v4254 = vpop.f32.mrb[0].mxu0
      %v4255 = vpop.f32.mrb[0].mxu0
      %v4256 = vadd.f32 0.0, %v4255
      %v4257 = vpop.f32.mrb[0].mxu0
      %4258 = vmatprep.mubr.bf16.mxu0 0
      %4259 = vmatmul.mubr.bf16.gmra.mrb[0].mxu0 %v4191
      %v4260 = vpop.f32.mrb[0].mxu0
      %v4261 = vadd.f32 0.0, %v4260
      %v4262 = vpop.f32.mrb[0].mxu0
      %v4263 = vpop.f32.mrb[0].mxu0
      %v4264 = vadd.f32 0.0, %v4263
      %v4265 = vpop.f32.mrb[0].mxu0
      %4266 = vmatprep.mubr.bf16.mxu0 0
      %4267 = vmatmul.mubr.bf16.gmra.mrb[0].mxu0 %v4194
      %v4268 = vpop.f32.mrb[0].mxu0
      %v4269 = vadd.f32 0.0, %v4268
      %v4270 = vpop.f32.mrb[0].mxu0
      %v4271 = vpop.f32.mrb[0].mxu0
      %v4272 = vadd.f32 0.0, %v4271
      %v4273 = vpop.f32.mrb[0].mxu0
      %4274 = vmatprep.mubr.bf16.mxu0 0
      %4275 = vmatmul.mubr.bf16.gmra.mrb[0].mxu0 %v4197
      %v4276 = vpop.f32.mrb[0].mxu0
      %v4277 = vadd.f32 0.0, %v4276
      %v4278 = vpop.f32.mrb[0].mxu0
      %v4279 = vpop.f32.mrb[0].mxu0
      %v4280 = vadd.f32 0.0, %v4279
      %v4281 = vpop.f32.mrb[0].mxu0
      %4282 = vdwg.mxu0
      %v4283 = vadd.f32 %v4148, %v4237
      %v4284 = vadd.f32 %v4149, %v4240
      %v4285 = vadd.f32 %v4150, %v4245
      %v4286 = vadd.f32 %v4151, %v4248
      %v4287 = vadd.f32 %v4152, %v4253
      %v4288 = vadd.f32 %v4153, %v4256
      %v4289 = vadd.f32 %v4154, %v4261
      %v4290 = vadd.f32 %v4155, %v4264
      %v4291 = vadd.f32 %v4156, %v4269
      %v4292 = vadd.f32 %v4157, %v4272
      %v4293 = vadd.f32 %v4158, %v4277
      %v4294 = vadd.f32 %v4159, %v4280
      %v4295 = vld [vmem:[%s230 + $0x18] sm:$0xc]
      %v4296 = vld [vmem:[%s230 + $0x44] sm:$0xf]
      %s4297 = scalar_lea.vmem %s1, 52
      %v4298 = vld [vmem:[%s4297] sm:$0x3]
      %v4301 = vunpack.c.l.b16 %v4295
      %v4302 = vunpack.c.l.b16 %v4296
      %v4303 = vpack.c.b16 %v4029, %v4301
      %v4304 = vpack.c.b16 %v4302, %v4038
      %v4305 = vrot.slane %v4303, 2
      %v4306 = vrot.slane %v4041, 2
      %v4307 = vsel %vm3532, %v4305, %v4306
      %v4308 = vrot.slane %v4042, 2
      %v4309 = vsel %vm3532, %v4306, %v4308
      %v4310 = vrot.slane %v4043, 2
      %v4311 = vsel %vm3532, %v4308, %v4310
      %v4312 = vrot.slane %v4044, 2
      %v4313 = vsel %vm3532, %v4310, %v4312
      %v4314 = vrot.slane %v4304, 2
      %v4315 = vsel %vm3532, %v4312, %v4314
      %v4317 = vsel %vm318, %v4307, 0
      %v4320 = vsel %vm318, %v4309, 0
      %v4323 = vsel %vm318, %v4311, 0
      %v4326 = vsel %vm318, %v4313, 0
      %v4329 = vsel %vm318, %v4315, 0
      %v4332 = vsel %vm318, %v4314, 0
      %v4335 = vsel %vm337, %v4298, 0
      %4337 = vmatprep.subr.bf16.mxu0 0
      %4338 = vmatpush1.bf16.msra.mxu0 %v4335
      %4339 = vmatprep.subr.bf16.mxu0 0
      %4340 = vmatpush1.bf16.msra.mxu0 0
      %4341 = vmatprep.subr.bf16.mxu0 0
      %4342 = vmatpush1.bf16.msra.mxu0 0
      %4343 = vmatprep.subr.bf16.mxu0 0
      %4344 = vmatpush1.bf16.msra.mxu0 0
      %4345 = vmatprep.subr.bf16.mxu0 0
      %4346 = vmatpush1.bf16.msra.mxu0 0
      %4347 = vmatprep.subr.bf16.mxu0 0
      %4348 = vmatpush1.bf16.msra.mxu0 0
      %4349 = vmatprep.subr.bf16.mxu0 0
      %4350 = vmatpush1.bf16.msra.mxu0 0
      %4351 = vmatprep.subr.bf16.mxu0 0
      %4352 = vmatpush1.bf16.msra.mxu0 0
      %4353 = vmatprep.subr.bf16.mxu0 0
      %4354 = vmatpush1.bf16.msra.mxu0 0
      %4355 = vmatprep.subr.bf16.mxu0 0
      %4356 = vmatpush1.bf16.msra.mxu0 0
      %4357 = vmatprep.subr.bf16.mxu0 0
      %4358 = vmatpush1.bf16.msra.mxu0 0
      %4359 = vmatprep.subr.bf16.mxu0 0
      %4360 = vmatpush1.bf16.msra.mxu0 0
      %4361 = vmatprep.subr.bf16.mxu0 0
      %4362 = vmatpush1.bf16.msra.mxu0 0
      %4363 = vmatprep.subr.bf16.mxu0 0
      %4364 = vmatpush1.bf16.msra.mxu0 0
      %4365 = vmatprep.subr.bf16.mxu0 0
      %4366 = vmatpush1.bf16.msra.mxu0 0
      %4367 = vmatprep.subr.bf16.mxu0 0
      %4368 = vmatpush1.bf16.msra.mxu0 0
      %4369 = vmatprep.mubr.bf16.mxu0 0
      %4370 = vmatmul.mubr.bf16.gmra.mrb[0].mxu0 %v4317
      %v4371 = vpop.f32.mrb[0].mxu0
      %v4372 = vadd.f32 0.0, %v4371
      %v4373 = vpop.f32.mrb[0].mxu0
      %v4374 = vpop.f32.mrb[0].mxu0
      %v4375 = vadd.f32 0.0, %v4374
      %v4376 = vpop.f32.mrb[0].mxu0
      %4377 = vmatprep.mubr.bf16.mxu0 0
      %4378 = vmatmul.mubr.bf16.gmra.mrb[0].mxu0 %v4320
      %v4379 = vpop.f32.mrb[0].mxu0
      %v4380 = vadd.f32 0.0, %v4379
      %v4381 = vpop.f32.mrb[0].mxu0
      %v4382 = vpop.f32.mrb[0].mxu0
      %v4383 = vadd.f32 0.0, %v4382
      %v4384 = vpop.f32.mrb[0].mxu0
      %4385 = vmatprep.mubr.bf16.mxu0 0
      %4386 = vmatmul.mubr.bf16.gmra.mrb[0].mxu0 %v4323
      %v4387 = vpop.f32.mrb[0].mxu0
      %v4388 = vadd.f32 0.0, %v4387
      %v4389 = vpop.f32.mrb[0].mxu0
      %v4390 = vpop.f32.mrb[0].mxu0
      %v4391 = vadd.f32 0.0, %v4390
      %v4392 = vpop.f32.mrb[0].mxu0
      %4393 = vmatprep.mubr.bf16.mxu0 0
      %4394 = vmatmul.mubr.bf16.gmra.mrb[0].mxu0 %v4326
      %v4395 = vpop.f32.mrb[0].mxu0
      %v4396 = vadd.f32 0.0, %v4395
      %v4397 = vpop.f32.mrb[0].mxu0
      %v4398 = vpop.f32.mrb[0].mxu0
      %v4399 = vadd.f32 0.0, %v4398
      %v4400 = vpop.f32.mrb[0].mxu0
      %4401 = vmatprep.mubr.bf16.mxu0 0
      %4402 = vmatmul.mubr.bf16.gmra.mrb[0].mxu0 %v4329
      %v4403 = vpop.f32.mrb[0].mxu0
      %v4404 = vadd.f32 0.0, %v4403
      %v4405 = vpop.f32.mrb[0].mxu0
      %v4406 = vpop.f32.mrb[0].mxu0
      %v4407 = vadd.f32 0.0, %v4406
      %v4408 = vpop.f32.mrb[0].mxu0
      %4409 = vmatprep.mubr.bf16.mxu0 0
      %4410 = vmatmul.mubr.bf16.gmra.mrb[0].mxu0 %v4332
      %v4411 = vpop.f32.mrb[0].mxu0
      %v4412 = vadd.f32 0.0, %v4411
      %v4413 = vpop.f32.mrb[0].mxu0
      %v4414 = vpop.f32.mrb[0].mxu0
      %v4415 = vadd.f32 0.0, %v4414
      %v4416 = vpop.f32.mrb[0].mxu0
      %4417 = vdwg.mxu0
      %v4418 = vadd.f32 %v4283, %v4372
      %v4419 = vadd.f32 %v4284, %v4375
      %v4420 = vadd.f32 %v4285, %v4380
      %v4421 = vadd.f32 %v4286, %v4383
      %v4422 = vadd.f32 %v4287, %v4388
      %v4423 = vadd.f32 %v4288, %v4391
      %v4424 = vadd.f32 %v4289, %v4396
      %v4425 = vadd.f32 %v4290, %v4399
      %v4426 = vadd.f32 %v4291, %v4404
      %v4427 = vadd.f32 %v4292, %v4407
      %v4428 = vadd.f32 %v4293, %v4412
      %v4429 = vadd.f32 %v4294, %v4415
      %s4430 = scalar_lea.vmem %s2, 2
      %v4431 = vld [vmem:[%s4430] sm:$0x1]
      %v4433 = vlaneseq
      %v4434 = vshrl.u32 %v4433, 7
      %v4435 = vsub.s32 0, %v4434
      %v4436 = vrot.slane %v4431, %v4435
      %v4438 = vadd.f32 %v4418, %v4436
      %v4439 = vadd.f32 %v4419, %v4436
      %v4440 = vadd.f32 %v4420, %v4436
      %v4441 = vadd.f32 %v4421, %v4436
      %v4442 = vadd.f32 %v4422, %v4436
      %v4443 = vadd.f32 %v4423, %v4436
      %v4444 = vadd.f32 %v4424, %v4436
      %v4445 = vadd.f32 %v4425, %v4436
      %v4446 = vadd.f32 %v4426, %v4436
      %v4447 = vadd.f32 %v4427, %v4436
      %v4448 = vadd.f32 %v4428, %v4436
      %v4449 = vadd.f32 %v4429, %v4436
      %v4450 = vmax.f32 %v4438, 0.0
      %v4451 = vmax.f32 %v4439, 0.0
      %v4452 = vmax.f32 %v4440, 0.0
      %v4453 = vmax.f32 %v4441, 0.0
      %v4454 = vmax.f32 %v4442, 0.0
      %v4455 = vmax.f32 %v4443, 0.0
      %v4456 = vmax.f32 %v4444, 0.0
      %v4457 = vmax.f32 %v4445, 0.0
      %v4458 = vmax.f32 %v4446, 0.0
      %v4459 = vmax.f32 %v4447, 0.0
      %v4460 = vmax.f32 %v4448, 0.0
      %v4461 = vmax.f32 %v4449, 0.0
      %v4462 = vpack.c.bf16 %v4451, %v4450
      %v4463 = vpack.c.bf16 %v4453, %v4452
      %v4464 = vpack.c.bf16 %v4455, %v4454
      %v4465 = vpack.c.bf16 %v4457, %v4456
      %v4466 = vpack.c.bf16 %v4459, %v4458
      %v4467 = vpack.c.bf16 %v4461, %v4460
      %v4468 = vld [vmem:[%s3] sm:$0xf]
      %v4469 = vld [vmem:[%s3 + $0x4] sm:$0xf]
      %v4470 = vld [vmem:[%s3 + $0x8] sm:$0xf]
      %v4471 = vld [vmem:[%s3 + $0xc] sm:$0xf]
      %v4472 = vld [vmem:[%s3 + $0x10] sm:$0xf]
      %v4473 = vld [vmem:[%s3 + $0x14] sm:$0xf]
      %v4474 = vld [vmem:[%s3 + $0x18] sm:$0xf]
      %v4475 = vld [vmem:[%s3 + $0x1c] sm:$0xf]
      %v4476 = vld [vmem:[%s3 + $0x20] sm:$0xf]
      %v4477 = vld [vmem:[%s3 + $0x24] sm:$0xf]
      %v4478 = vld [vmem:[%s3 + $0x28] sm:$0xf]
      %v4479 = vld [vmem:[%s3 + $0x2c] sm:$0xf]
      %v4480 = vld [vmem:[%s3 + $0x30] sm:$0xf]
      %v4481 = vld [vmem:[%s3 + $0x34] sm:$0xf]
      %v4482 = vld [vmem:[%s3 + $0x38] sm:$0xf]
      %v4483 = vld [vmem:[%s3 + $0x3c] sm:$0xf]
      %v4484 = vld [vmem:[%s3 + $0x40] sm:$0xf]
      %v4485 = vld [vmem:[%s3 + $0x44] sm:$0xf]
      %v4486 = vld [vmem:[%s3 + $0x48] sm:$0xf]
      %v4487 = vld [vmem:[%s3 + $0x4c] sm:$0xf]
      %v4488 = vld [vmem:[%s3 + $0x50] sm:$0xf]
      %v4489 = vld [vmem:[%s3 + $0x54] sm:$0xf]
      %v4490 = vld [vmem:[%s3 + $0x58] sm:$0xf]
      %v4491 = vld [vmem:[%s3 + $0x5c] sm:$0xf]
      %v4492 = vld [vmem:[%s3 + $0x60] sm:$0xf]
      %v4493 = vld [vmem:[%s3 + $0x64] sm:$0xf]
      %v4494 = vld [vmem:[%s3 + $0x68] sm:$0xf]
      %v4495 = vld [vmem:[%s3 + $0x6c] sm:$0xf]
      %v4496 = vld [vmem:[%s3 + $0x70] sm:$0xf]
      %v4497 = vld [vmem:[%s3 + $0x74] sm:$0xf]
      %v4498 = vld [vmem:[%s3 + $0x78] sm:$0xf]
      %v4499 = vld [vmem:[%s3 + $0x7c] sm:$0xf]
      %v4500 = vld [vmem:[%s3 + $0x80] sm:$0xf]
      %v4501 = vld [vmem:[%s3 + $0x84] sm:$0xf]
      %v4502 = vld [vmem:[%s3 + $0x88] sm:$0xf]
      %v4503 = vld [vmem:[%s3 + $0x8c] sm:$0xf]
      %v4504 = vld [vmem:[%s3 + $0x90] sm:$0xf]
      %v4505 = vld [vmem:[%s3 + $0x94] sm:$0xf]
      %v4506 = vld [vmem:[%s3 + $0x98] sm:$0xf]
      %v4507 = vld [vmem:[%s3 + $0x9c] sm:$0xf]
      %v4508 = vld [vmem:[%s3 + $0xa0] sm:$0xf]
      %v4509 = vld [vmem:[%s3 + $0xa4] sm:$0xf]
      %v4510 = vld [vmem:[%s3 + $0xa8] sm:$0xf]
      %v4511 = vld [vmem:[%s3 + $0xac] sm:$0xf]
      %v4512 = vld [vmem:[%s3 + $0xb0] sm:$0xf]
      %v4513 = vld [vmem:[%s3 + $0xb4] sm:$0xf]
      %v4514 = vld [vmem:[%s3 + $0xb8] sm:$0xf]
      %v4515 = vld [vmem:[%s3 + $0xbc] sm:$0xf]
      %v4516 = vld [vmem:[%s233] sm:$0x1]
      %v4518 = vlaneseq
      %v4519 = vshrl.u32 %v4518, 7
      %v4520 = vsub.s32 0, %v4519
      %v4521 = vrot.slane %v4516, %v4520
      %v4571 = vunpack.c.l.b16 %v4468
      %v4572 = vunpack.c.l.b16 %v4469
      %v4573 = vunpack.c.l.b16 %v4470
      %v4574 = vunpack.c.l.b16 %v4471
      %v4575 = vunpack.c.l.b16 %v4472
      %v4576 = vunpack.c.l.b16 %v4473
      %v4577 = vunpack.c.l.b16 %v4474
      %v4578 = vunpack.c.l.b16 %v4475
      %v4579 = vunpack.c.l.b16 %v4476
      %v4580 = vunpack.c.l.b16 %v4477
      %v4581 = vunpack.c.l.b16 %v4478
      %v4582 = vunpack.c.l.b16 %v4479
      %v4583 = vunpack.c.l.b16 %v4480
      %v4584 = vunpack.c.l.b16 %v4481
      %v4585 = vunpack.c.l.b16 %v4482
      %v4586 = vunpack.c.l.b16 %v4483
      %v4587 = vunpack.c.l.b16 %v4484
      %v4588 = vunpack.c.l.b16 %v4485
      %v4589 = vunpack.c.l.b16 %v4486
      %v4590 = vunpack.c.l.b16 %v4487
      %v4591 = vunpack.c.l.b16 %v4488
      %v4592 = vunpack.c.l.b16 %v4489
      %v4593 = vunpack.c.l.b16 %v4490
      %v4594 = vunpack.c.l.b16 %v4491
      %v4595 = vunpack.c.l.b16 %v4492
      %v4596 = vunpack.c.l.b16 %v4493
      %v4597 = vunpack.c.l.b16 %v4494
      %v4598 = vunpack.c.l.b16 %v4495
      %v4599 = vunpack.c.l.b16 %v4496
      %v4600 = vunpack.c.l.b16 %v4497
      %v4601 = vunpack.c.l.b16 %v4498
      %v4602 = vunpack.c.l.b16 %v4499
      %v4603 = vunpack.c.l.b16 %v4500
      %v4604 = vunpack.c.l.b16 %v4501
      %v4605 = vunpack.c.l.b16 %v4502
      %v4606 = vunpack.c.l.b16 %v4503
      %v4607 = vunpack.c.l.b16 %v4504
      %v4608 = vunpack.c.l.b16 %v4505
      %v4609 = vunpack.c.l.b16 %v4506
      %v4610 = vunpack.c.l.b16 %v4507
      %v4611 = vunpack.c.l.b16 %v4508
      %v4612 = vunpack.c.l.b16 %v4509
      %v4613 = vunpack.c.l.b16 %v4510
      %v4614 = vunpack.c.l.b16 %v4511
      %v4615 = vunpack.c.l.b16 %v4512
      %v4616 = vunpack.c.l.b16 %v4513
      %v4617 = vunpack.c.l.b16 %v4514
      %v4618 = vunpack.c.l.b16 %v4515
      %v4619 = vpack.c.b16 %v4572, %v4571
      %v4620 = vpack.c.b16 %v4574, %v4573
      %v4621 = vpack.c.b16 %v4576, %v4575
      %v4622 = vpack.c.b16 %v4578, %v4577
      %v4623 = vpack.c.b16 %v4580, %v4579
      %v4624 = vpack.c.b16 %v4582, %v4581
      %v4625 = vpack.c.b16 %v4584, %v4583
      %v4626 = vpack.c.b16 %v4586, %v4585
      %v4627 = vpack.c.b16 %v4588, %v4587
      %v4628 = vpack.c.b16 %v4590, %v4589
      %v4629 = vpack.c.b16 %v4592, %v4591
      %v4630 = vpack.c.b16 %v4594, %v4593
      %v4631 = vpack.c.b16 %v4596, %v4595
      %v4632 = vpack.c.b16 %v4598, %v4597
      %v4633 = vpack.c.b16 %v4600, %v4599
      %v4634 = vpack.c.b16 %v4602, %v4601
      %v4635 = vpack.c.b16 %v4604, %v4603
      %v4636 = vpack.c.b16 %v4606, %v4605
      %v4637 = vpack.c.b16 %v4608, %v4607
      %v4638 = vpack.c.b16 %v4610, %v4609
      %v4639 = vpack.c.b16 %v4612, %v4611
      %v4640 = vpack.c.b16 %v4614, %v4613
      %v4641 = vpack.c.b16 %v4616, %v4615
      %v4642 = vpack.c.b16 %v4618, %v4617
      %4667 = vmatprep.subr.bf16.mxu0 0
      %4668 = vmatpush1.bf16.msra.mxu0 %v4619
      %4669 = vmatprep.subr.bf16.mxu0 0
      %4670 = vmatpush1.bf16.msra.mxu0 %v4620
      %4671 = vmatprep.subr.bf16.mxu0 0
      %4672 = vmatpush1.bf16.msra.mxu0 %v4621
      %4673 = vmatprep.subr.bf16.mxu0 0
      %4674 = vmatpush1.bf16.msra.mxu0 %v4622
      %4675 = vmatprep.subr.bf16.mxu0 0
      %4676 = vmatpush1.bf16.msra.mxu0 %v4623
      %4677 = vmatprep.subr.bf16.mxu0 0
      %4678 = vmatpush1.bf16.msra.mxu0 %v4624
      %4679 = vmatprep.subr.bf16.mxu0 0
      %4680 = vmatpush1.bf16.msra.mxu0 %v4625
      %4681 = vmatprep.subr.bf16.mxu0 0
      %4682 = vmatpush1.bf16.msra.mxu0 %v4626
      %4683 = vmatprep.subr.bf16.mxu0 0
      %4684 = vmatpush1.bf16.msra.mxu0 %v4627
      %4685 = vmatprep.subr.bf16.mxu0 0
      %4686 = vmatpush1.bf16.msra.mxu0 %v4628
      %4687 = vmatprep.subr.bf16.mxu0 0
      %4688 = vmatpush1.bf16.msra.mxu0 %v4629
      %4689 = vmatprep.subr.bf16.mxu0 0
      %4690 = vmatpush1.bf16.msra.mxu0 %v4630
      %4691 = vmatprep.subr.bf16.mxu0 0
      %4692 = vmatpush1.bf16.msra.mxu0 %v4631
      %4693 = vmatprep.subr.bf16.mxu0 0
      %4694 = vmatpush1.bf16.msra.mxu0 %v4632
      %4695 = vmatprep.subr.bf16.mxu0 0
      %4696 = vmatpush1.bf16.msra.mxu0 %v4633
      %4697 = vmatprep.subr.bf16.mxu0 0
      %4698 = vmatpush1.bf16.msra.mxu0 %v4634
      %4699 = vmatprep.mubr.bf16.mxu0 %v3247
      %4700 = vmatmul.mubr.bf16.gmra.mrb[0].mxu0 %v1793
      %v4701 = vpop.f32.mrb[0].mxu0
      %v4702 = vadd.f32 %v4521, %v4701
      %v4703 = vpop.f32.mrb[0].mxu0
      %v4704 = vpop.f32.mrb[0].mxu0
      %v4705 = vadd.f32 %v4521, %v4704
      %v4706 = vpop.f32.mrb[0].mxu0
      %4707 = vmatprep.mubr.bf16.mxu0 %v3248
      %4708 = vmatmul.mubr.bf16.gmra.mrb[0].mxu0 %v1794
      %v4709 = vpop.f32.mrb[0].mxu0
      %v4710 = vadd.f32 %v4521, %v4709
      %v4711 = vpop.f32.mrb[0].mxu0
      %v4712 = vpop.f32.mrb[0].mxu0
      %v4713 = vadd.f32 %v4521, %v4712
      %v4714 = vpop.f32.mrb[0].mxu0
      %4715 = vmatprep.mubr.bf16.mxu0 %v3249
      %4716 = vmatmul.mubr.bf16.gmra.mrb[0].mxu0 %v1795
      %v4717 = vpop.f32.mrb[0].mxu0
      %v4718 = vadd.f32 %v4521, %v4717
      %v4719 = vpop.f32.mrb[0].mxu0
      %v4720 = vpop.f32.mrb[0].mxu0
      %v4721 = vadd.f32 %v4521, %v4720
      %v4722 = vpop.f32.mrb[0].mxu0
      %4723 = vmatprep.mubr.bf16.mxu0 %v3250
      %4724 = vmatmul.mubr.bf16.gmra.mrb[0].mxu0 %v1796
      %v4725 = vpop.f32.mrb[0].mxu0
      %v4726 = vadd.f32 %v4521, %v4725
      %v4727 = vpop.f32.mrb[0].mxu0
      %v4728 = vpop.f32.mrb[0].mxu0
      %v4729 = vadd.f32 %v4521, %v4728
      %v4730 = vpop.f32.mrb[0].mxu0
      %4731 = vmatprep.mubr.bf16.mxu0 %v3251
      %4732 = vmatmul.mubr.bf16.gmra.mrb[0].mxu0 %v1797
      %v4733 = vpop.f32.mrb[0].mxu0
      %v4734 = vadd.f32 %v4521, %v4733
      %v4735 = vpop.f32.mrb[0].mxu0
      %v4736 = vpop.f32.mrb[0].mxu0
      %v4737 = vadd.f32 %v4521, %v4736
      %v4738 = vpop.f32.mrb[0].mxu0
      %4739 = vmatprep.mubr.bf16.mxu0 %v3252
      %4740 = vmatmul.mubr.bf16.gmra.mrb[0].mxu0 %v1798
      %v4741 = vpop.f32.mrb[0].mxu0
      %v4742 = vadd.f32 %v4521, %v4741
      %v4743 = vpop.f32.mrb[0].mxu0
      %v4744 = vpop.f32.mrb[0].mxu0
      %v4745 = vadd.f32 %v4521, %v4744
      %v4746 = vpop.f32.mrb[0].mxu0
      %4747 = vdwg.mxu0
      %4748 = vmatprep.subr.bf16.mxu0 0
      %4749 = vmatpush1.bf16.msra.mxu0 %v4635
      %4750 = vmatprep.subr.bf16.mxu0 0
      %4751 = vmatpush1.bf16.msra.mxu0 %v4636
      %4752 = vmatprep.subr.bf16.mxu0 0
      %4753 = vmatpush1.bf16.msra.mxu0 %v4637
      %4754 = vmatprep.subr.bf16.mxu0 0
      %4755 = vmatpush1.bf16.msra.mxu0 %v4638
      %4756 = vmatprep.subr.bf16.mxu0 0
      %4757 = vmatpush1.bf16.msra.mxu0 %v4639
      %4758 = vmatprep.subr.bf16.mxu0 0
      %4759 = vmatpush1.bf16.msra.mxu0 %v4640
      %4760 = vmatprep.subr.bf16.mxu0 0
      %4761 = vmatpush1.bf16.msra.mxu0 %v4641
      %4762 = vmatprep.subr.bf16.mxu0 0
      %4763 = vmatpush1.bf16.msra.mxu0 %v4642
      %4764 = vmatprep.subr.bf16.mxu0 0
      %4765 = vmatpush1.bf16.msra.mxu0 0
      %4766 = vmatprep.subr.bf16.mxu0 0
      %4767 = vmatpush1.bf16.msra.mxu0 0
      %4768 = vmatprep.subr.bf16.mxu0 0
      %4769 = vmatpush1.bf16.msra.mxu0 0
      %4770 = vmatprep.subr.bf16.mxu0 0
      %4771 = vmatpush1.bf16.msra.mxu0 0
      %4772 = vmatprep.subr.bf16.mxu0 0
      %4773 = vmatpush1.bf16.msra.mxu0 0
      %4774 = vmatprep.subr.bf16.mxu0 0
      %4775 = vmatpush1.bf16.msra.mxu0 0
      %4776 = vmatprep.subr.bf16.mxu0 0
      %4777 = vmatpush1.bf16.msra.mxu0 0
      %4778 = vmatprep.subr.bf16.mxu0 0
      %4779 = vmatpush1.bf16.msra.mxu0 0
      %4780 = vmatprep.mubr.bf16.mxu0 0
      %4781 = vmatmul.mubr.bf16.gmra.mrb[0].mxu0 %v4462
      %v4782 = vpop.f32.mrb[0].mxu0
      %v4783 = vadd.f32 %v4702, %v4782
      %v4784 = vpop.f32.mrb[0].mxu0
      %v4785 = vpop.f32.mrb[0].mxu0
      %v4786 = vadd.f32 %v4705, %v4785
      %v4787 = vpop.f32.mrb[0].mxu0
      %4788 = vmatprep.mubr.bf16.mxu0 0
      %4789 = vmatmul.mubr.bf16.gmra.mrb[0].mxu0 %v4463
      %v4790 = vpop.f32.mrb[0].mxu0
      %v4791 = vadd.f32 %v4710, %v4790
      %v4792 = vpop.f32.mrb[0].mxu0
      %v4793 = vpop.f32.mrb[0].mxu0
      %v4794 = vadd.f32 %v4713, %v4793
      %v4795 = vpop.f32.mrb[0].mxu0
      %4796 = vmatprep.mubr.bf16.mxu0 0
      %4797 = vmatmul.mubr.bf16.gmra.mrb[0].mxu0 %v4464
      %v4798 = vpop.f32.mrb[0].mxu0
      %v4799 = vadd.f32 %v4718, %v4798
      %v4800 = vpop.f32.mrb[0].mxu0
      %v4801 = vpop.f32.mrb[0].mxu0
      %v4802 = vadd.f32 %v4721, %v4801
      %v4803 = vpop.f32.mrb[0].mxu0
      %4804 = vmatprep.mubr.bf16.mxu0 0
      %4805 = vmatmul.mubr.bf16.gmra.mrb[0].mxu0 %v4465
      %v4806 = vpop.f32.mrb[0].mxu0
      %v4807 = vadd.f32 %v4726, %v4806
      %v4808 = vpop.f32.mrb[0].mxu0
      %v4809 = vpop.f32.mrb[0].mxu0
      %v4810 = vadd.f32 %v4729, %v4809
      %v4811 = vpop.f32.mrb[0].mxu0
      %4812 = vmatprep.mubr.bf16.mxu0 0
      %4813 = vmatmul.mubr.bf16.gmra.mrb[0].mxu0 %v4466
      %v4814 = vpop.f32.mrb[0].mxu0
      %v4815 = vadd.f32 %v4734, %v4814
      %v4816 = vpop.f32.mrb[0].mxu0
      %v4817 = vpop.f32.mrb[0].mxu0
      %v4818 = vadd.f32 %v4737, %v4817
      %v4819 = vpop.f32.mrb[0].mxu0
      %4820 = vmatprep.mubr.bf16.mxu0 0
      %4821 = vmatmul.mubr.bf16.gmra.mrb[0].mxu0 %v4467
      %v4822 = vpop.f32.mrb[0].mxu0
      %v4823 = vadd.f32 %v4742, %v4822
      %v4824 = vpop.f32.mrb[0].mxu0
      %v4825 = vpop.f32.mrb[0].mxu0
      %v4826 = vadd.f32 %v4745, %v4825
      %v4827 = vpop.f32.mrb[0].mxu0
      %4828 = vdwg.mxu0
      %v4829 = vmax.f32 %v4783, 0.0
      %v4830 = vmax.f32 %v4786, 0.0
      %v4831 = vmax.f32 %v4791, 0.0
      %v4832 = vmax.f32 %v4794, 0.0
      %v4833 = vmax.f32 %v4799, 0.0
      %v4834 = vmax.f32 %v4802, 0.0
      %v4835 = vmax.f32 %v4807, 0.0
      %v4836 = vmax.f32 %v4810, 0.0
      %v4837 = vmax.f32 %v4815, 0.0
      %v4838 = vmax.f32 %v4818, 0.0
      %v4839 = vmax.f32 %v4823, 0.0
      %v4840 = vmax.f32 %v4826, 0.0
      %vm4841 = vcmask 64512
      %4842 = vst.msk [vmem:[%s238] sm:$0xff] %vm4841, %v4829
      %4843 = vst.msk [vmem:[%s238 + $0x8] sm:$0xff] %vm4841, %v4830
      %4844 = vst.msk [vmem:[%s238 + $0x10] sm:$0xff] %vm4841, %v4831
      %4845 = vst.msk [vmem:[%s238 + $0x18] sm:$0xff] %vm4841, %v4832
      %4846 = vst.msk [vmem:[%s238 + $0x20] sm:$0xff] %vm4841, %v4833
      %4847 = vst.msk [vmem:[%s238 + $0x28] sm:$0xff] %vm4841, %v4834
      %4848 = vst.msk [vmem:[%s238 + $0x30] sm:$0xff] %vm4841, %v4835
      %4849 = vst.msk [vmem:[%s238 + $0x38] sm:$0xff] %vm4841, %v4836
      %4850 = vst.msk [vmem:[%s238 + $0x40] sm:$0xff] %vm4841, %v4837
      %4851 = vst.msk [vmem:[%s238 + $0x48] sm:$0xff] %vm4841, %v4838
      %4852 = vst.msk [vmem:[%s238 + $0x50] sm:$0xff] %vm4841, %v4839
      %vm4853 = vcmask 60416
      %4854 = vst.msk [vmem:[%s238 + $0x58] sm:$0xf] %vm4853, %v4840
      %p4855 = scmp.lt.s32.totalorder %s16, 1
      %s4856 = scalar_select %p4855, %s16, 1
      %s4857 = smul.addr %s4856, 12
      %s4858 = smul.addr %s4857, 8
      %s4859 = scalar_lea.vmem %s5, %s4858
      // Predicated region
      $region41: #{tpu_custom_call.1} parent=39 // pred_check
        %p4860 = pneg %p149
      $region42: #{tpu_custom_call.1} parent=39 // pred_check_branch
        %4862 = sbr.rel (%p4860) target = $region44
      $region43: #{tpu_custom_call.1} parent=39 // pred_region
        _
      $region44: #{tpu_custom_call.1} parent=39 // pred_fallthru
        _
    $region40: #{tpu_custom_call.1} parent=5 // pred_fallthru
      _
    %p4863 = scmp.le.s32.totalorder 2, %s11
    // Predicated region
    $region45: #{tpu_custom_call.1} parent=5 // pred_check
      %p4864 = pneg %p4863
    $region46: #{tpu_custom_call.1} parent=5 // pred_check_branch
      %4866 = sbr.rel (%p4864) target = $region48
    $region47: #{tpu_custom_call.1} parent=5 // pred_region
      %s4867 = ssub.s32 %s11, 2
      // Predicated region
      $region49: #{tpu_custom_call.1} parent=47 // pred_check
        %p4868 = pneg %p155
      $region50: #{tpu_custom_call.1} parent=47 // pred_check_branch
        %4870 = sbr.rel (%p4868) target = $region52
      $region51: #{tpu_custom_call.1} parent=47 // pred_region
        %p4871 = scmp.lt.s32.totalorder %s17, 1
        %s4872 = scalar_select %p4871, %s17, 1
        %s4873 = smul.addr %s4872, 12
        %s4874 = smul.addr %s4873, 8
        %s4875 = scalar_lea.vmem %s5, %s4874
      $region52: #{tpu_custom_call.1} parent=47 // pred_fallthru
        _
    $region48: #{tpu_custom_call.1} parent=5 // pred_fallthru
      _
  $region6: #{tpu_custom_call.1} parent=0 // loop_footer
    %s15 = sadd.s32 1, %s11
  $region7: #{tpu_custom_call.1} parent=0 // loop_footer_branch
    %10 = sbr.rel target = $region3
  $region8: #{tpu_custom_call.1} parent=0 // loop_exit
    _

</llo_original>
